<compile_context>
chip_gen: v6e
topology: v6e:2x2x1
jax: 0.10.0
libtpu: 0.0.40
codegen_flags: <defaults>
</compile_context>

<pallas_src>
import math

import jax
import jax.numpy as jnp
from jax.experimental import pallas as pl
from jax.experimental.pallas import tpu as pltpu

# ------------------------- config -------------------------
B, S = 2, 16            # batch, sequence length
HIDDEN = 64             # hidden size (stand-in for 768)
HEADS = 4
DHEAD = HIDDEN // HEADS
INTER = 128             # FFN intermediate size (stand-in for 3072)
LAYERS = 6              # num_hidden_layers=6 as in the module
VOCAB = 512             # stand-in for 30522
FINAL_DIM = 2048        # nn.Linear(vocab, 2048)
MAX_POS = 64
LN_EPS = 1e-12
NEG_INF = -1e9
N_TOK = B * S
SCALE = 1.0 / math.sqrt(DHEAD)
_GELU_C = math.sqrt(2.0 / math.pi)


# ------------------------- in-kernel helpers -------------------------
def _ln(x, g, b):
    mu = jnp.mean(x, axis=-1, keepdims=True)
    var = jnp.mean(jnp.square(x - mu), axis=-1, keepdims=True)
    return (x - mu) * jax.lax.rsqrt(var + LN_EPS) * g + b


def _gelu(x):
    # TODO(synk): BERT uses exact erf-GELU; tanh approximation used for robust Mosaic lowering.
    return 0.5 * x * (1.0 + jnp.tanh(_GELU_C * (x + 0.044715 * x * x * x)))


# ------------------ fused kernel: encoder stack + MLM head + CE loss + final Linear ------------------
def _fused_kernel(emb_ref, mask_ref, eg_ref, eb_ref,
                  qkvw_ref, qkvb_ref, aow_ref, aob_ref, alg_ref, alb_ref,
                  iw_ref, ib_ref, ow_ref, ob_ref, flg_ref, flb_ref,
                  lab_ref, trw_ref, trb_ref, tg_ref, tb_ref,
                  dw_ref, db_ref, fb_ref, fw_hbm,
                  loss_ref, x_ref,
                  hid_ref, fw_vmem, fw_sem):
    l = pl.program_id(0)

    @pl.when(l == 0)
    def _():
        # Kick off the big final-Linear weight DMA so it overlaps all encoder layers.
        pltpu.make_async_copy(fw_hbm, fw_vmem, fw_sem).start()
        # Embedding LayerNorm folded into step 0; hidden state lives in VMEM scratch.
        hid_ref[...] = _ln(emb_ref[...], eg_ref[...], eb_ref[...])

    hidden = hid_ref[...]                                              # (N_TOK, HIDDEN) f32

    # ---- self-attention: one fused QKV projection, all batches fused via block-diag mask ----
    qkv = jnp.dot(hidden, qkvw_ref[0],
                  preferred_element_type=jnp.float32) + qkvb_ref[0]    # (N_TOK, 3*HIDDEN)
    mask = mask_ref[...]                                               # (N_TOK, N_TOK) additive
    attn = jnp.zeros((N_TOK, HIDDEN), jnp.float32)
    for h in range(HEADS):
        q = qkv[:, h * DHEAD:(h + 1) * DHEAD]                          # (N_TOK, DHEAD)
        k = qkv[:, HIDDEN + h * DHEAD:HIDDEN + (h + 1) * DHEAD]
        v = qkv[:, 2 * HIDDEN + h * DHEAD:2 * HIDDEN + (h + 1) * DHEAD]
        s = jax.lax.dot_general(q, k, (((1,), (1,)), ((), ())),
                                preferred_element_type=jnp.float32) * SCALE + mask
        s = s - jnp.max(s, axis=-1, keepdims=True)
        p = jnp.exp(s)
        p = p * pl.reciprocal(jnp.sum(p, axis=-1, keepdims=True), approx=True)
        ctx = jnp.dot(p, v, preferred_element_type=jnp.float32)        # (N_TOK, DHEAD)
        attn = attn + jnp.dot(ctx, aow_ref[0, h],
                              preferred_element_type=jnp.float32)      # accumulate out-proj
    attn = attn + aob_ref[0]
    h1 = _ln(attn + hidden, alg_ref[0], alb_ref[0])                    # post-LN w/ residual

    # ---- feed-forward ----
    inter = _gelu(jnp.dot(h1, iw_ref[0], preferred_element_type=jnp.float32) + ib_ref[0])
    ffn = jnp.dot(inter, ow_ref[0], preferred_element_type=jnp.float32) + ob_ref[0]
    h2 = _ln(ffn + h1, flg_ref[0], flb_ref[0])
    hid_ref[...] = h2

    # ---- last step: MLM head + masked CE loss + final Linear on CLS logits ----
    @pl.when(l == pl.num_programs(0) - 1)
    def _():
        t = jnp.dot(h2, trw_ref[...], preferred_element_type=jnp.float32) + trb_ref[...]
        t = _ln(_gelu(t), tg_ref[...], tb_ref[...])
        logits = jnp.dot(t.astype(jnp.bfloat16), dw_ref[...],
                         preferred_element_type=jnp.float32) + db_ref[...]   # (N_TOK, VOCAB)

        # masked cross-entropy (ignore_index = -100)
        labels = lab_ref[...]                                          # (N_TOK, 1) int32
        m = jnp.max(logits, axis=-1, keepdims=True)
        lse = m + jnp.log(jnp.sum(jnp.exp(logits - m), axis=-1, keepdims=True))
        col = jax.lax.broadcasted_iota(jnp.int32, logits.shape, 1)
        onehot = (col == jnp.maximum(labels, 0)).astype(jnp.float32)
        picked = jnp.sum(logits * onehot, axis=-1, keepdims=True)
        valid = (labels >= 0).astype(jnp.float32)
        per = (lse - picked) * valid
        loss_ref[...] = (jnp.sum(per, axis=0, keepdims=True)
                         / jnp.maximum(jnp.sum(valid, axis=0, keepdims=True), 1.0))

        # final Linear on logits[:, 0, :]  (CLS rows extracted via a tiny selection matmul)
        tok_id = jax.lax.broadcasted_iota(jnp.int32, (B, N_TOK), 1)
        bat_id = jax.lax.broadcasted_iota(jnp.int32, (B, N_TOK), 0)
        sel = (tok_id == bat_id * S).astype(jnp.float32)               # (B, N_TOK)
        cls = jnp.dot(sel, logits, preferred_element_type=jnp.float32)  # (B, VOCAB)

        pltpu.make_async_copy(fw_hbm, fw_vmem, fw_sem).wait()          # prefetched at l==0
        x_ref[...] = (jnp.dot(cls.astype(jnp.bfloat16), fw_vmem[...],
                              preferred_element_type=jnp.float32) + fb_ref[...])


def fused_forward(params, emb, add_mask, labels2d):
    enc = params["enc"]
    const2 = lambda l: (0, 0)
    lyr3 = lambda l: (l, 0, 0)
    lyr4 = lambda l: (l, 0, 0, 0)

    grid_spec = pltpu.PrefetchScalarGridSpec(
        num_scalar_prefetch=0,
        grid=(LAYERS,),
        in_specs=[
            pl.BlockSpec((N_TOK, HIDDEN), const2),                 # emb
            pl.BlockSpec((N_TOK, N_TOK), const2),                  # additive attention mask
            pl.BlockSpec((1, HIDDEN), const2),                     # emb_ln_g
            pl.BlockSpec((1, HIDDEN), const2),                     # emb_ln_b
            pl.BlockSpec((1, HIDDEN, 3 * HIDDEN), lyr3),           # qkv_w
            pl.BlockSpec((1, 1, 3 * HIDDEN), lyr3),                # qkv_b
            pl.BlockSpec((1, HEADS, DHEAD, HIDDEN), lyr4),         # ao_w (per-head rows)
            pl.BlockSpec((1, 1, HIDDEN), lyr3),                    # ao_b
            pl.BlockSpec((1, 1, HIDDEN), lyr3),                    # attn_ln_g
            pl.BlockSpec((1, 1, HIDDEN), lyr3),                    # attn_ln_b
            pl.BlockSpec((1, HIDDEN, INTER), lyr3),                # i_w
            pl.BlockSpec((1, 1, INTER), lyr3),                     # i_b
            pl.BlockSpec((1, INTER, HIDDEN), lyr3),                # o_w
            pl.BlockSpec((1, 1, HIDDEN), lyr3),                    # o_b
            pl.BlockSpec((1, 1, HIDDEN), lyr3),                    # ffn_ln_g
            pl.BlockSpec((1, 1, HIDDEN), lyr3),                    # ffn_ln_b
            pl.BlockSpec((N_TOK, 1), const2),                      # labels
            pl.BlockSpec((HIDDEN, HIDDEN), const2),                # mlm transform w
            pl.BlockSpec((1, HIDDEN), const2),                     # mlm transform b
            pl.BlockSpec((1, HIDDEN), const2),                     # mlm transform ln_g
            pl.BlockSpec((1, HIDDEN), const2),                     # mlm transform ln_b
            pl.BlockSpec((HIDDEN, VOCAB), const2),                 # tied decoder w (bf16)
            pl.BlockSpec((1, VOCAB), const2),                      # decoder bias
            pl.BlockSpec((1, FINAL_DIM), const2),                  # final bias
            pl.BlockSpec(memory_space=pl.ANY),                     # final_w in HBM (bf16)
        ],
        out_specs=[pl.BlockSpec((1, 1), const2),                   # loss
                   pl.BlockSpec((B, FINAL_DIM), const2)],          # x
        scratch_shapes=[pltpu.VMEM((N_TOK, HIDDEN), jnp.float32),      # hidden carry
                        pltpu.VMEM((VOCAB, FINAL_DIM), jnp.bfloat16),  # prefetched final_w
                        pltpu.SemaphoreType.DMA(())],
    )
    loss, x = pl.pallas_call(
        _fused_kernel,
        out_shape=(jax.ShapeDtypeStruct((1, 1), jnp.float32),
                   jax.ShapeDtypeStruct((B, FINAL_DIM), jnp.float32)),
        grid_spec=grid_spec,
        compiler_params=pltpu.CompilerParams(dimension_semantics=("arbitrary",)),
    )(emb, add_mask,
      params["emb_ln_g"], params["emb_ln_b"],
      enc["qkv_w"], enc["qkv_b"], enc["ao_w"], enc["ao_b"],
      enc["attn_ln_g"], enc["attn_ln_b"],
      enc["i_w"], enc["i_b"], enc["o_w"], enc["o_b"],
      enc["ffn_ln_g"], enc["ffn_ln_b"],
      labels2d,
      params["tr_w"], params["tr_b"], params["tr_ln_g"], params["tr_ln_b"],
      params["dec_w"], params["dec_b"], params["final_b"],
      params["final_w"])
    return loss, x


# ------------------ model forward (embedding gather/adds are XLA glue; 1 pallas_call) ------------------
def model_forward(params, input_ids, attention_mask, labels):
    # TODO(synk): dropout omitted (eval-mode semantics); token_type_ids assumed all-zero.
    tok = jnp.take(params["word_emb"], input_ids.reshape(-1), axis=0)          # (B*S, H)
    emb = (tok.reshape(B, S, HIDDEN)
           + params["pos_emb"][:S][None, :, :]
           + params["type_emb"][0][None, None, :]).reshape(N_TOK, HIDDEN)

    # Block-diagonal (over batches) additive mask combined with the key padding mask.
    am = attention_mask.astype(jnp.float32).reshape(-1)                        # (N_TOK,)
    bid = jnp.arange(N_TOK, dtype=jnp.int32) // S
    same = (bid[:, None] == bid[None, :]).astype(jnp.float32)
    add_mask = (1.0 - same * am[None, :]) * NEG_INF                            # (N_TOK, N_TOK)

    labels2d = labels.reshape(N_TOK, 1).astype(jnp.int32)
    loss11, x = fused_forward(params, emb, add_mask, labels2d)
    return loss11[0, 0], x


# ------------------ deterministic parameter init ------------------
def init_params(key):
    keys = iter(jax.random.split(key, 64))

    def nrm(shape):
        return 0.02 * jax.random.normal(next(keys), shape, dtype=jnp.float32)

    zeros = lambda s: jnp.zeros(s, jnp.float32)
    ones = lambda s: jnp.ones(s, jnp.float32)

    # Encoder weights generated directly in the fused-kernel layout:
    #   qkv_w columns [0:H]=Q, [H:2H]=K, [2H:3H]=V, head h at columns h*DHEAD:(h+1)*DHEAD.
    #   ao_w is the (H,H) out-projection split row-wise per head: (L, HEADS, DHEAD, HIDDEN).
    enc = dict(
        qkv_w=nrm((LAYERS, HIDDEN, 3 * HIDDEN)),
        qkv_b=zeros((LAYERS, 1, 3 * HIDDEN)),
        ao_w=nrm((LAYERS, HEADS, DHEAD, HIDDEN)),
        ao_b=zeros((LAYERS, 1, HIDDEN)),
        attn_ln_g=ones((LAYERS, 1, HIDDEN)),
        attn_ln_b=zeros((LAYERS, 1, HIDDEN)),
        i_w=nrm((LAYERS, HIDDEN, INTER)),
        i_b=zeros((LAYERS, 1, INTER)),
        o_w=nrm((LAYERS, INTER, HIDDEN)),
        o_b=zeros((LAYERS, 1, HIDDEN)),
        ffn_ln_g=ones((LAYERS, 1, HIDDEN)),
        ffn_ln_b=zeros((LAYERS, 1, HIDDEN)),
    )

    word_emb = nrm((VOCAB, HIDDEN))
    return dict(
        word_emb=word_emb,
        dec_w=word_emb.T.astype(jnp.bfloat16),    # tied MLM decoder weight (H, V), bf16
        dec_b=zeros((1, VOCAB)),
        pos_emb=nrm((MAX_POS, HIDDEN)),
        type_emb=nrm((2, HIDDEN)),
        emb_ln_g=ones((1, HIDDEN)), emb_ln_b=zeros((1, HIDDEN)),
        enc=enc,
        tr_w=nrm((HIDDEN, HIDDEN)), tr_b=zeros((1, HIDDEN)),
        tr_ln_g=ones((1, HIDDEN)), tr_ln_b=zeros((1, HIDDEN)),
        final_w=nrm((VOCAB, FINAL_DIM)).astype(jnp.bfloat16),   # bf16: halves HBM bytes
        final_b=zeros((1, FINAL_DIM)),
    )


if __name__ == "__main__":
    key = jax.random.PRNGKey(0)
    pk, ik, lk, mk = jax.random.split(key, 4)
    params = init_params(pk)

    input_ids = jax.random.randint(ik, (B, S), 0, VOCAB, dtype=jnp.int32)
    attention_mask = jnp.ones((B, S), dtype=jnp.float32).at[1, S - 4:].set(0.0)
    rand_labels = jax.random.randint(lk, (B, S), 0, VOCAB, dtype=jnp.int32)
    mask_pos = jax.random.bernoulli(mk, 0.3, (B, S))
    labels = jnp.where(mask_pos, rand_labels, -100).astype(jnp.int32)  # ignore_index=-100

    loss, x = jax.jit(model_forward)(params, input_ids, attention_mask, labels)
    jax.block_until_ready((loss, x))

    assert loss.shape == () and bool(jnp.isfinite(loss))
    assert x.shape == (B, FINAL_DIM)
    print("KERNEL_OK")
</pallas_src>

<mosaic_0001>
module attributes {stable_mosaic.version = 11 : i64} {
  func.func @_fused_kernel(%arg0: i32, %arg1: memref<32x64xf32, #tpu.memory_space<vmem>>, %arg2: memref<32x32xf32, #tpu.memory_space<vmem>>, %arg3: memref<1x64xf32, #tpu.memory_space<vmem>>, %arg4: memref<1x64xf32, #tpu.memory_space<vmem>>, %arg5: memref<1x64x192xf32, #tpu.memory_space<vmem>>, %arg6: memref<1x1x192xf32, #tpu.memory_space<vmem>>, %arg7: memref<1x4x16x64xf32, #tpu.memory_space<vmem>>, %arg8: memref<1x1x64xf32, #tpu.memory_space<vmem>>, %arg9: memref<1x1x64xf32, #tpu.memory_space<vmem>>, %arg10: memref<1x1x64xf32, #tpu.memory_space<vmem>>, %arg11: memref<1x64x128xf32, #tpu.memory_space<vmem>>, %arg12: memref<1x1x128xf32, #tpu.memory_space<vmem>>, %arg13: memref<1x128x64xf32, #tpu.memory_space<vmem>>, %arg14: memref<1x1x64xf32, #tpu.memory_space<vmem>>, %arg15: memref<1x1x64xf32, #tpu.memory_space<vmem>>, %arg16: memref<1x1x64xf32, #tpu.memory_space<vmem>>, %arg17: memref<32x1xi32, #tpu.memory_space<vmem>>, %arg18: memref<64x64xf32, #tpu.memory_space<vmem>>, %arg19: memref<1x64xf32, #tpu.memory_space<vmem>>, %arg20: memref<1x64xf32, #tpu.memory_space<vmem>>, %arg21: memref<1x64xf32, #tpu.memory_space<vmem>>, %arg22: memref<64x512xbf16, #tpu.memory_space<vmem>>, %arg23: memref<1x512xf32, #tpu.memory_space<vmem>>, %arg24: memref<1x2048xf32, #tpu.memory_space<vmem>>, %arg25: memref<512x2048xbf16, #tpu.memory_space<any>>, %arg26: memref<1x1xf32, #tpu.memory_space<vmem>>, %arg27: memref<2x2048xf32, #tpu.memory_space<vmem>>, %arg28: memref<32x64xf32, #tpu.memory_space<vmem>>, %arg29: memref<512x2048xbf16, #tpu.memory_space<vmem>>, %arg30: memref<!tpu.dma_semaphore, #tpu.memory_space<semaphore_mem>>) attributes {dimension_semantics = [#tpu.dimension_semantics<arbitrary>], iteration_bounds = array<i64: 6>, scalar_prefetch = 0 : i64, scratch_operands = 3 : i64, tpu.core_type = #tpu.core_type<tc>, window_params = [{pipeline_mode = #tpu.pipeline_mode<synchronous>, transform_indices = @transform_0, window_bounds = array<i64: 32, 64>}, {pipeline_mode = #tpu.pipeline_mode<synchronous>, transform_indices = @transform_1, window_bounds = array<i64: 32, 32>}, {pipeline_mode = #tpu.pipeline_mode<synchronous>, transform_indices = @transform_2, window_bounds = array<i64: 1, 64>}, {pipeline_mode = #tpu.pipeline_mode<synchronous>, transform_indices = @transform_3, window_bounds = array<i64: 1, 64>}, {transform_indices = @transform_4, window_bounds = array<i64: 1, 64, 192>}, {transform_indices = @transform_5, window_bounds = array<i64: 1, 1, 192>}, {transform_indices = @transform_6, window_bounds = array<i64: 1, 4, 16, 64>}, {transform_indices = @transform_7, window_bounds = array<i64: 1, 1, 64>}, {transform_indices = @transform_8, window_bounds = array<i64: 1, 1, 64>}, {transform_indices = @transform_9, window_bounds = array<i64: 1, 1, 64>}, {transform_indices = @transform_10, window_bounds = array<i64: 1, 64, 128>}, {transform_indices = @transform_11, window_bounds = array<i64: 1, 1, 128>}, {transform_indices = @transform_12, window_bounds = array<i64: 1, 128, 64>}, {transform_indices = @transform_13, window_bounds = array<i64: 1, 1, 64>}, {transform_indices = @transform_14, window_bounds = array<i64: 1, 1, 64>}, {transform_indices = @transform_15, window_bounds = array<i64: 1, 1, 64>}, {pipeline_mode = #tpu.pipeline_mode<synchronous>, transform_indices = @transform_16, window_bounds = array<i64: 32, 1>}, {pipeline_mode = #tpu.pipeline_mode<synchronous>, transform_indices = @transform_17, window_bounds = array<i64: 64, 64>}, {pipeline_mode = #tpu.pipeline_mode<synchronous>, transform_indices = @transform_18, window_bounds = array<i64: 1, 64>}, {pipeline_mode = #tpu.pipeline_mode<synchronous>, transform_indices = @transform_19, window_bounds = array<i64: 1, 64>}, {pipeline_mode = #tpu.pipeline_mode<synchronous>, transform_indices = @transform_20, window_bounds = array<i64: 1, 64>}, {pipeline_mode = #tpu.pipeline_mode<synchronous>, transform_indices = @transform_21, window_bounds = array<i64: 64, 512>}, {pipeline_mode = #tpu.pipeline_mode<synchronous>, transform_indices = @transform_22, window_bounds = array<i64: 1, 512>}, {pipeline_mode = #tpu.pipeline_mode<synchronous>, transform_indices = @transform_23, window_bounds = array<i64: 1, 2048>}, {}, {pipeline_mode = #tpu.pipeline_mode<synchronous>, transform_indices = @transform_25, window_bounds = array<i64: 1, 1>}, {pipeline_mode = #tpu.pipeline_mode<synchronous>, transform_indices = @transform_26, window_bounds = array<i64: 2, 2048>}]} {
    %c0_i32 = arith.constant 0 : i32
    %0 = arith.cmpi eq, %arg0, %c0_i32 : i32
    %1 = arith.extui %0 : i1 to i32
    %c0_i32_0 = arith.constant 0 : i32
    %2 = arith.cmpi ne, %1, %c0_i32_0 : i32
    scf.if %2 {
      tpu.enqueue_dma source(%arg25 : memref<512x2048xbf16, #tpu.memory_space<any>>) target(%arg29 : memref<512x2048xbf16, #tpu.memory_space<vmem>>) target_semaphore(%arg30 : memref<!tpu.dma_semaphore, #tpu.memory_space<semaphore_mem>>)
      %c0_94 = arith.constant 0 : index
      %c0_95 = arith.constant 0 : index
      %190 = vector.load %arg1[%c0_94, %c0_95] : memref<32x64xf32, #tpu.memory_space<vmem>>, vector<32x64xf32>
      %c0_96 = arith.constant 0 : index
      %c0_97 = arith.constant 0 : index
      %191 = vector.load %arg3[%c0_96, %c0_97] : memref<1x64xf32, #tpu.memory_space<vmem>>, vector<1x64xf32>
      %c0_98 = arith.constant 0 : index
      %c0_99 = arith.constant 0 : index
      %192 = vector.load %arg4[%c0_98, %c0_99] : memref<1x64xf32, #tpu.memory_space<vmem>>, vector<1x64xf32>
      %cst_100 = arith.constant dense<0.000000e+00> : vector<32xf32>
      %193 = vector.multi_reduction <add>, %190, %cst_100 [1] : vector<32x64xf32> to vector<32xf32>
      %194 = vector.shape_cast %193 : vector<32xf32> to vector<32x1xf32>
      %cst_101 = arith.constant 6.400000e+01 : f32
      %195 = vector.broadcast %cst_101 : f32 to vector<32x1xf32>
      %196 = arith.divf %194, %195 : vector<32x1xf32>
      %197 = vector.broadcast %196 : vector<32x1xf32> to vector<32x64xf32>
      %198 = arith.subf %190, %197 : vector<32x64xf32>
      %199 = arith.mulf %198, %198 : vector<32x64xf32>
      %cst_102 = arith.constant dense<0.000000e+00> : vector<32xf32>
      %200 = vector.multi_reduction <add>, %199, %cst_102 [1] : vector<32x64xf32> to vector<32xf32>
      %201 = vector.shape_cast %200 : vector<32xf32> to vector<32x1xf32>
      %cst_103 = arith.constant 6.400000e+01 : f32
      %202 = vector.broadcast %cst_103 : f32 to vector<32x1xf32>
      %203 = arith.divf %201, %202 : vector<32x1xf32>
      %204 = vector.broadcast %196 : vector<32x1xf32> to vector<32x64xf32>
      %205 = arith.subf %190, %204 : vector<32x64xf32>
      %cst_104 = arith.constant 9.99999996E-13 : f32
      %206 = vector.broadcast %cst_104 : f32 to vector<32x1xf32>
      %207 = arith.addf %203, %206 : vector<32x1xf32>
      %208 = math.rsqrt %207 : vector<32x1xf32>
      %209 = vector.broadcast %208 : vector<32x1xf32> to vector<32x64xf32>
      %210 = arith.mulf %205, %209 : vector<32x64xf32>
      %211 = vector.broadcast %191 : vector<1x64xf32> to vector<32x64xf32>
      %212 = arith.mulf %210, %211 : vector<32x64xf32>
      %213 = vector.broadcast %192 : vector<1x64xf32> to vector<32x64xf32>
      %214 = arith.addf %212, %213 : vector<32x64xf32>
      %c0_105 = arith.constant 0 : index
      %c0_106 = arith.constant 0 : index
      %215 = vector.load %arg28[%c0_105, %c0_106] : memref<32x64xf32, #tpu.memory_space<vmem>>, vector<32x64xf32>
      tpu.vector_store %arg28[%c0_105, %c0_106], %214 {strides = array<i32>} : memref<32x64xf32, #tpu.memory_space<vmem>>, vector<32x64xf32>,
    } else {
    }
    %c0 = arith.constant 0 : index
    %c0_1 = arith.constant 0 : index
    %3 = vector.load %arg28[%c0, %c0_1] : memref<32x64xf32, #tpu.memory_space<vmem>>, vector<32x64xf32>
    %c0_2 = arith.constant 0 : index
    %c0_3 = arith.constant 0 : index
    %c0_4 = arith.constant 0 : index
    %4 = vector.load %arg5[%c0_2, %c0_3, %c0_4] : memref<1x64x192xf32, #tpu.memory_space<vmem>>, vector<1x64x192xf32>
    %5 = vector.shape_cast %4 : vector<1x64x192xf32> to vector<64x192xf32>
    %cst = arith.constant dense<0.000000e+00> : vector<32x192xf32>
    %6 = tpu.matmul %3, %5, %cst {dimension_numbers = #tpu.dot_dimension_numbers<[1], [0], [0], [1], [0, 0, 1, 1], [], []>} : vector<32x64xf32>, vector<64x192xf32>, vector<32x192xf32> -> vector<32x192xf32>
    %c0_5 = arith.constant 0 : index
    %c0_6 = arith.constant 0 : index
    %c0_7 = arith.constant 0 : index
    %7 = vector.load %arg6[%c0_5, %c0_6, %c0_7] : memref<1x1x192xf32, #tpu.memory_space<vmem>>, vector<1x1x192xf32>
    %8 = vector.shape_cast %7 : vector<1x1x192xf32> to vector<1x192xf32>
    %9 = vector.broadcast %8 : vector<1x192xf32> to vector<32x192xf32>
    %10 = arith.addf %6, %9 : vector<32x192xf32>
    %c0_8 = arith.constant 0 : index
    %c0_9 = arith.constant 0 : index
    %11 = vector.load %arg2[%c0_8, %c0_9] : memref<32x32xf32, #tpu.memory_space<vmem>>, vector<32x32xf32>
    %cst_10 = arith.constant 0.000000e+00 : f32
    %12 = vector.broadcast %cst_10 : f32 to vector<32x64xf32>
    %13 = vector.extract_strided_slice %10 {offsets = [0, 0], sizes = [32, 16], strides = [1, 1]} : vector<32x192xf32> to vector<32x16xf32>
    %14 = vector.extract_strided_slice %10 {offsets = [0, 64], sizes = [32, 16], strides = [1, 1]} : vector<32x192xf32> to vector<32x16xf32>
    %15 = vector.extract_strided_slice %10 {offsets = [0, 128], sizes = [32, 16], strides = [1, 1]} : vector<32x192xf32> to vector<32x16xf32>
    %cst_11 = arith.constant dense<0.000000e+00> : vector<32x32xf32>
    %16 = tpu.matmul %13, %14, %cst_11 {dimension_numbers = #tpu.dot_dimension_numbers<[1], [1], [0], [0], [0, 0, 1, 0], [], []>} : vector<32x16xf32>, vector<32x16xf32>, vector<32x32xf32> -> vector<32x32xf32>
    %cst_12 = arith.constant 2.500000e-01 : f32
    %17 = vector.broadcast %cst_12 : f32 to vector<32x32xf32>
    %18 = arith.mulf %16, %17 : vector<32x32xf32>
    %19 = arith.addf %18, %11 : vector<32x32xf32>
    %cst_13 = arith.constant dense<0xFF800000> : vector<32xf32>
    %20 = vector.multi_reduction <maximumf>, %19, %cst_13 [1] : vector<32x32xf32> to vector<32xf32>
    %21 = vector.shape_cast %20 : vector<32xf32> to vector<32x1xf32>
    %22 = vector.broadcast %21 : vector<32x1xf32> to vector<32x32xf32>
    %23 = arith.subf %19, %22 : vector<32x32xf32>
    %24 = math.exp %23 : vector<32x32xf32>
    %cst_14 = arith.constant dense<0.000000e+00> : vector<32xf32>
    %25 = vector.multi_reduction <add>, %24, %cst_14 [1] : vector<32x32xf32> to vector<32xf32>
    %26 = vector.shape_cast %25 : vector<32xf32> to vector<32x1xf32>
    %27 = tpu.reciprocal %26 {approx = true} : vector<32x1xf32> -> vector<32x1xf32>
    %28 = vector.broadcast %27 : vector<32x1xf32> to vector<32x32xf32>
    %29 = arith.mulf %24, %28 : vector<32x32xf32>
    %cst_15 = arith.constant dense<0.000000e+00> : vector<32x16xf32>
    %30 = tpu.matmul %29, %15, %cst_15 {dimension_numbers = #tpu.dot_dimension_numbers<[1], [0], [0], [1], [0, 0, 1, 1], [], []>} : vector<32x32xf32>, vector<32x16xf32>, vector<32x16xf32> -> vector<32x16xf32>
    %c0_16 = arith.constant 0 : index
    %c0_17 = arith.constant 0 : index
    %c0_18 = arith.constant 0 : index
    %c0_19 = arith.constant 0 : index
    %31 = vector.load %arg7[%c0_16, %c0_17, %c0_18, %c0_19] : memref<1x4x16x64xf32, #tpu.memory_space<vmem>>, vector<1x1x16x64xf32>
    %32 = vector.shape_cast %31 : vector<1x1x16x64xf32> to vector<16x64xf32>
    %cst_20 = arith.constant dense<0.000000e+00> : vector<32x64xf32>
    %33 = tpu.matmul %30, %32, %cst_20 {dimension_numbers = #tpu.dot_dimension_numbers<[1], [0], [0], [1], [0, 0, 1, 1], [], []>} : vector<32x16xf32>, vector<16x64xf32>, vector<32x64xf32> -> vector<32x64xf32>
    %34 = arith.addf %12, %33 : vector<32x64xf32>
    %35 = vector.extract_strided_slice %10 {offsets = [0, 16], sizes = [32, 16], strides = [1, 1]} : vector<32x192xf32> to vector<32x16xf32>
    %36 = vector.extract_strided_slice %10 {offsets = [0, 80], sizes = [32, 16], strides = [1, 1]} : vector<32x192xf32> to vector<32x16xf32>
    %37 = vector.extract_strided_slice %10 {offsets = [0, 144], sizes = [32, 16], strides = [1, 1]} : vector<32x192xf32> to vector<32x16xf32>
    %cst_21 = arith.constant dense<0.000000e+00> : vector<32x32xf32>
    %38 = tpu.matmul %35, %36, %cst_21 {dimension_numbers = #tpu.dot_dimension_numbers<[1], [1], [0], [0], [0, 0, 1, 0], [], []>} : vector<32x16xf32>, vector<32x16xf32>, vector<32x32xf32> -> vector<32x32xf32>
    %cst_22 = arith.constant 2.500000e-01 : f32
    %39 = vector.broadcast %cst_22 : f32 to vector<32x32xf32>
    %40 = arith.mulf %38, %39 : vector<32x32xf32>
    %41 = arith.addf %40, %11 : vector<32x32xf32>
    %cst_23 = arith.constant dense<0xFF800000> : vector<32xf32>
    %42 = vector.multi_reduction <maximumf>, %41, %cst_23 [1] : vector<32x32xf32> to vector<32xf32>
    %43 = vector.shape_cast %42 : vector<32xf32> to vector<32x1xf32>
    %44 = vector.broadcast %43 : vector<32x1xf32> to vector<32x32xf32>
    %45 = arith.subf %41, %44 : vector<32x32xf32>
    %46 = math.exp %45 : vector<32x32xf32>
    %cst_24 = arith.constant dense<0.000000e+00> : vector<32xf32>
    %47 = vector.multi_reduction <add>, %46, %cst_24 [1] : vector<32x32xf32> to vector<32xf32>
    %48 = vector.shape_cast %47 : vector<32xf32> to vector<32x1xf32>
    %49 = tpu.reciprocal %48 {approx = true} : vector<32x1xf32> -> vector<32x1xf32>
    %50 = vector.broadcast %49 : vector<32x1xf32> to vector<32x32xf32>
    %51 = arith.mulf %46, %50 : vector<32x32xf32>
    %cst_25 = arith.constant dense<0.000000e+00> : vector<32x16xf32>
    %52 = tpu.matmul %51, %37, %cst_25 {dimension_numbers = #tpu.dot_dimension_numbers<[1], [0], [0], [1], [0, 0, 1, 1], [], []>} : vector<32x32xf32>, vector<32x16xf32>, vector<32x16xf32> -> vector<32x16xf32>
    %c0_26 = arith.constant 0 : index
    %c1 = arith.constant 1 : index
    %c0_27 = arith.constant 0 : index
    %c0_28 = arith.constant 0 : index
    %53 = vector.load %arg7[%c0_26, %c1, %c0_27, %c0_28] : memref<1x4x16x64xf32, #tpu.memory_space<vmem>>, vector<1x1x16x64xf32>
    %54 = vector.shape_cast %53 : vector<1x1x16x64xf32> to vector<16x64xf32>
    %cst_29 = arith.constant dense<0.000000e+00> : vector<32x64xf32>
    %55 = tpu.matmul %52, %54, %cst_29 {dimension_numbers = #tpu.dot_dimension_numbers<[1], [0], [0], [1], [0, 0, 1, 1], [], []>} : vector<32x16xf32>, vector<16x64xf32>, vector<32x64xf32> -> vector<32x64xf32>
    %56 = arith.addf %34, %55 : vector<32x64xf32>
    %57 = vector.extract_strided_slice %10 {offsets = [0, 32], sizes = [32, 16], strides = [1, 1]} : vector<32x192xf32> to vector<32x16xf32>
    %58 = vector.extract_strided_slice %10 {offsets = [0, 96], sizes = [32, 16], strides = [1, 1]} : vector<32x192xf32> to vector<32x16xf32>
    %59 = vector.extract_strided_slice %10 {offsets = [0, 160], sizes = [32, 16], strides = [1, 1]} : vector<32x192xf32> to vector<32x16xf32>
    %cst_30 = arith.constant dense<0.000000e+00> : vector<32x32xf32>
    %60 = tpu.matmul %57, %58, %cst_30 {dimension_numbers = #tpu.dot_dimension_numbers<[1], [1], [0], [0], [0, 0, 1, 0], [], []>} : vector<32x16xf32>, vector<32x16xf32>, vector<32x32xf32> -> vector<32x32xf32>
    %cst_31 = arith.constant 2.500000e-01 : f32
    %61 = vector.broadcast %cst_31 : f32 to vector<32x32xf32>
    %62 = arith.mulf %60, %61 : vector<32x32xf32>
    %63 = arith.addf %62, %11 : vector<32x32xf32>
    %cst_32 = arith.constant dense<0xFF800000> : vector<32xf32>
    %64 = vector.multi_reduction <maximumf>, %63, %cst_32 [1] : vector<32x32xf32> to vector<32xf32>
    %65 = vector.shape_cast %64 : vector<32xf32> to vector<32x1xf32>
    %66 = vector.broadcast %65 : vector<32x1xf32> to vector<32x32xf32>
    %67 = arith.subf %63, %66 : vector<32x32xf32>
    %68 = math.exp %67 : vector<32x32xf32>
    %cst_33 = arith.constant dense<0.000000e+00> : vector<32xf32>
    %69 = vector.multi_reduction <add>, %68, %cst_33 [1] : vector<32x32xf32> to vector<32xf32>
    %70 = vector.shape_cast %69 : vector<32xf32> to vector<32x1xf32>
    %71 = tpu.reciprocal %70 {approx = true} : vector<32x1xf32> -> vector<32x1xf32>
    %72 = vector.broadcast %71 : vector<32x1xf32> to vector<32x32xf32>
    %73 = arith.mulf %68, %72 : vector<32x32xf32>
    %cst_34 = arith.constant dense<0.000000e+00> : vector<32x16xf32>
    %74 = tpu.matmul %73, %59, %cst_34 {dimension_numbers = #tpu.dot_dimension_numbers<[1], [0], [0], [1], [0, 0, 1, 1], [], []>} : vector<32x32xf32>, vector<32x16xf32>, vector<32x16xf32> -> vector<32x16xf32>
    %c0_35 = arith.constant 0 : index
    %c2 = arith.constant 2 : index
    %c0_36 = arith.constant 0 : index
    %c0_37 = arith.constant 0 : index
    %75 = vector.load %arg7[%c0_35, %c2, %c0_36, %c0_37] : memref<1x4x16x64xf32, #tpu.memory_space<vmem>>, vector<1x1x16x64xf32>
    %76 = vector.shape_cast %75 : vector<1x1x16x64xf32> to vector<16x64xf32>
    %cst_38 = arith.constant dense<0.000000e+00> : vector<32x64xf32>
    %77 = tpu.matmul %74, %76, %cst_38 {dimension_numbers = #tpu.dot_dimension_numbers<[1], [0], [0], [1], [0, 0, 1, 1], [], []>} : vector<32x16xf32>, vector<16x64xf32>, vector<32x64xf32> -> vector<32x64xf32>
    %78 = arith.addf %56, %77 : vector<32x64xf32>
    %79 = vector.extract_strided_slice %10 {offsets = [0, 48], sizes = [32, 16], strides = [1, 1]} : vector<32x192xf32> to vector<32x16xf32>
    %80 = vector.extract_strided_slice %10 {offsets = [0, 112], sizes = [32, 16], strides = [1, 1]} : vector<32x192xf32> to vector<32x16xf32>
    %81 = vector.extract_strided_slice %10 {offsets = [0, 176], sizes = [32, 16], strides = [1, 1]} : vector<32x192xf32> to vector<32x16xf32>
    %cst_39 = arith.constant dense<0.000000e+00> : vector<32x32xf32>
    %82 = tpu.matmul %79, %80, %cst_39 {dimension_numbers = #tpu.dot_dimension_numbers<[1], [1], [0], [0], [0, 0, 1, 0], [], []>} : vector<32x16xf32>, vector<32x16xf32>, vector<32x32xf32> -> vector<32x32xf32>
    %cst_40 = arith.constant 2.500000e-01 : f32
    %83 = vector.broadcast %cst_40 : f32 to vector<32x32xf32>
    %84 = arith.mulf %82, %83 : vector<32x32xf32>
    %85 = arith.addf %84, %11 : vector<32x32xf32>
    %cst_41 = arith.constant dense<0xFF800000> : vector<32xf32>
    %86 = vector.multi_reduction <maximumf>, %85, %cst_41 [1] : vector<32x32xf32> to vector<32xf32>
    %87 = vector.shape_cast %86 : vector<32xf32> to vector<32x1xf32>
    %88 = vector.broadcast %87 : vector<32x1xf32> to vector<32x32xf32>
    %89 = arith.subf %85, %88 : vector<32x32xf32>
    %90 = math.exp %89 : vector<32x32xf32>
    %cst_42 = arith.constant dense<0.000000e+00> : vector<32xf32>
    %91 = vector.multi_reduction <add>, %90, %cst_42 [1] : vector<32x32xf32> to vector<32xf32>
    %92 = vector.shape_cast %91 : vector<32xf32> to vector<32x1xf32>
    %93 = tpu.reciprocal %92 {approx = true} : vector<32x1xf32> -> vector<32x1xf32>
    %94 = vector.broadcast %93 : vector<32x1xf32> to vector<32x32xf32>
    %95 = arith.mulf %90, %94 : vector<32x32xf32>
    %cst_43 = arith.constant dense<0.000000e+00> : vector<32x16xf32>
    %96 = tpu.matmul %95, %81, %cst_43 {dimension_numbers = #tpu.dot_dimension_numbers<[1], [0], [0], [1], [0, 0, 1, 1], [], []>} : vector<32x32xf32>, vector<32x16xf32>, vector<32x16xf32> -> vector<32x16xf32>
    %c0_44 = arith.constant 0 : index
    %c3 = arith.constant 3 : index
    %c0_45 = arith.constant 0 : index
    %c0_46 = arith.constant 0 : index
    %97 = vector.load %arg7[%c0_44, %c3, %c0_45, %c0_46] : memref<1x4x16x64xf32, #tpu.memory_space<vmem>>, vector<1x1x16x64xf32>
    %98 = vector.shape_cast %97 : vector<1x1x16x64xf32> to vector<16x64xf32>
    %cst_47 = arith.constant dense<0.000000e+00> : vector<32x64xf32>
    %99 = tpu.matmul %96, %98, %cst_47 {dimension_numbers = #tpu.dot_dimension_numbers<[1], [0], [0], [1], [0, 0, 1, 1], [], []>} : vector<32x16xf32>, vector<16x64xf32>, vector<32x64xf32> -> vector<32x64xf32>
    %100 = arith.addf %78, %99 : vector<32x64xf32>
    %c0_48 = arith.constant 0 : index
    %c0_49 = arith.constant 0 : index
    %c0_50 = arith.constant 0 : index
    %101 = vector.load %arg8[%c0_48, %c0_49, %c0_50] : memref<1x1x64xf32, #tpu.memory_space<vmem>>, vector<1x1x64xf32>
    %102 = vector.shape_cast %101 : vector<1x1x64xf32> to vector<1x64xf32>
    %103 = vector.broadcast %102 : vector<1x64xf32> to vector<32x64xf32>
    %104 = arith.addf %100, %103 : vector<32x64xf32>
    %105 = arith.addf %104, %3 : vector<32x64xf32>
    %c0_51 = arith.constant 0 : index
    %c0_52 = arith.constant 0 : index
    %c0_53 = arith.constant 0 : index
    %106 = vector.load %arg9[%c0_51, %c0_52, %c0_53] : memref<1x1x64xf32, #tpu.memory_space<vmem>>, vector<1x1x64xf32>
    %107 = vector.shape_cast %106 : vector<1x1x64xf32> to vector<1x64xf32>
    %c0_54 = arith.constant 0 : index
    %c0_55 = arith.constant 0 : index
    %c0_56 = arith.constant 0 : index
    %108 = vector.load %arg10[%c0_54, %c0_55, %c0_56] : memref<1x1x64xf32, #tpu.memory_space<vmem>>, vector<1x1x64xf32>
    %109 = vector.shape_cast %108 : vector<1x1x64xf32> to vector<1x64xf32>
    %cst_57 = arith.constant dense<0.000000e+00> : vector<32xf32>
    %110 = vector.multi_reduction <add>, %105, %cst_57 [1] : vector<32x64xf32> to vector<32xf32>
    %111 = vector.shape_cast %110 : vector<32xf32> to vector<32x1xf32>
    %cst_58 = arith.constant 6.400000e+01 : f32
    %112 = vector.broadcast %cst_58 : f32 to vector<32x1xf32>
    %113 = arith.divf %111, %112 : vector<32x1xf32>
    %114 = vector.broadcast %113 : vector<32x1xf32> to vector<32x64xf32>
    %115 = arith.subf %105, %114 : vector<32x64xf32>
    %116 = arith.mulf %115, %115 : vector<32x64xf32>
    %cst_59 = arith.constant dense<0.000000e+00> : vector<32xf32>
    %117 = vector.multi_reduction <add>, %116, %cst_59 [1] : vector<32x64xf32> to vector<32xf32>
    %118 = vector.shape_cast %117 : vector<32xf32> to vector<32x1xf32>
    %cst_60 = arith.constant 6.400000e+01 : f32
    %119 = vector.broadcast %cst_60 : f32 to vector<32x1xf32>
    %120 = arith.divf %118, %119 : vector<32x1xf32>
    %121 = vector.broadcast %113 : vector<32x1xf32> to vector<32x64xf32>
    %122 = arith.subf %105, %121 : vector<32x64xf32>
    %cst_61 = arith.constant 9.99999996E-13 : f32
    %123 = vector.broadcast %cst_61 : f32 to vector<32x1xf32>
    %124 = arith.addf %120, %123 : vector<32x1xf32>
    %125 = math.rsqrt %124 : vector<32x1xf32>
    %126 = vector.broadcast %125 : vector<32x1xf32> to vector<32x64xf32>
    %127 = arith.mulf %122, %126 : vector<32x64xf32>
    %128 = vector.broadcast %107 : vector<1x64xf32> to vector<32x64xf32>
    %129 = arith.mulf %127, %128 : vector<32x64xf32>
    %130 = vector.broadcast %109 : vector<1x64xf32> to vector<32x64xf32>
    %131 = arith.addf %129, %130 : vector<32x64xf32>
    %c0_62 = arith.constant 0 : index
    %c0_63 = arith.constant 0 : index
    %c0_64 = arith.constant 0 : index
    %132 = vector.load %arg11[%c0_62, %c0_63, %c0_64] : memref<1x64x128xf32, #tpu.memory_space<vmem>>, vector<1x64x128xf32>
    %133 = vector.shape_cast %132 : vector<1x64x128xf32> to vector<64x128xf32>
    %cst_65 = arith.constant dense<0.000000e+00> : vector<32x128xf32>
    %134 = tpu.matmul %131, %133, %cst_65 {dimension_numbers = #tpu.dot_dimension_numbers<[1], [0], [0], [1], [0, 0, 1, 1], [], []>} : vector<32x64xf32>, vector<64x128xf32>, vector<32x128xf32> -> vector<32x128xf32>
    %c0_66 = arith.constant 0 : index
    %c0_67 = arith.constant 0 : index
    %c0_68 = arith.constant 0 : index
    %135 = vector.load %arg12[%c0_66, %c0_67, %c0_68] : memref<1x1x128xf32, #tpu.memory_space<vmem>>, vector<1x1x128xf32>
    %136 = vector.shape_cast %135 : vector<1x1x128xf32> to vector<1x128xf32>
    %137 = vector.broadcast %136 : vector<1x128xf32> to vector<32x128xf32>
    %138 = arith.addf %134, %137 : vector<32x128xf32>
    %cst_69 = arith.constant 5.000000e-01 : f32
    %139 = vector.broadcast %cst_69 : f32 to vector<32x128xf32>
    %140 = arith.mulf %139, %138 : vector<32x128xf32>
    %cst_70 = arith.constant 4.471500e-02 : f32
    %141 = vector.broadcast %cst_70 : f32 to vector<32x128xf32>
    %142 = arith.mulf %141, %138 : vector<32x128xf32>
    %143 = arith.mulf %142, %138 : vector<32x128xf32>
    %144 = arith.mulf %143, %138 : vector<32x128xf32>
    %145 = arith.addf %138, %144 : vector<32x128xf32>
    %cst_71 = arith.constant 0.797884583 : f32
    %146 = vector.broadcast %cst_71 : f32 to vector<32x128xf32>
    %147 = arith.mulf %146, %145 : vector<32x128xf32>
    %148 = math.tanh %147 : vector<32x128xf32>
    %cst_72 = arith.constant 1.000000e+00 : f32
    %149 = vector.broadcast %cst_72 : f32 to vector<32x128xf32>
    %150 = arith.addf %149, %148 : vector<32x128xf32>
    %151 = arith.mulf %140, %150 : vector<32x128xf32>
    %c0_73 = arith.constant 0 : index
    %c0_74 = arith.constant 0 : index
    %c0_75 = arith.constant 0 : index
    %152 = vector.load %arg13[%c0_73, %c0_74, %c0_75] : memref<1x128x64xf32, #tpu.memory_space<vmem>>, vector<1x128x64xf32>
    %153 = vector.shape_cast %152 : vector<1x128x64xf32> to vector<128x64xf32>
    %cst_76 = arith.constant dense<0.000000e+00> : vector<32x64xf32>
    %154 = tpu.matmul %151, %153, %cst_76 {dimension_numbers = #tpu.dot_dimension_numbers<[1], [0], [0], [1], [0, 0, 1, 1], [], []>} : vector<32x128xf32>, vector<128x64xf32>, vector<32x64xf32> -> vector<32x64xf32>
    %c0_77 = arith.constant 0 : index
    %c0_78 = arith.constant 0 : index
    %c0_79 = arith.constant 0 : index
    %155 = vector.load %arg14[%c0_77, %c0_78, %c0_79] : memref<1x1x64xf32, #tpu.memory_space<vmem>>, vector<1x1x64xf32>
    %156 = vector.shape_cast %155 : vector<1x1x64xf32> to vector<1x64xf32>
    %157 = vector.broadcast %156 : vector<1x64xf32> to vector<32x64xf32>
    %158 = arith.addf %154, %157 : vector<32x64xf32>
    %159 = arith.addf %158, %131 : vector<32x64xf32>
    %c0_80 = arith.constant 0 : index
    %c0_81 = arith.constant 0 : index
    %c0_82 = arith.constant 0 : index
    %160 = vector.load %arg15[%c0_80, %c0_81, %c0_82] : memref<1x1x64xf32, #tpu.memory_space<vmem>>, vector<1x1x64xf32>
    %161 = vector.shape_cast %160 : vector<1x1x64xf32> to vector<1x64xf32>
    %c0_83 = arith.constant 0 : index
    %c0_84 = arith.constant 0 : index
    %c0_85 = arith.constant 0 : index
    %162 = vector.load %arg16[%c0_83, %c0_84, %c0_85] : memref<1x1x64xf32, #tpu.memory_space<vmem>>, vector<1x1x64xf32>
    %163 = vector.shape_cast %162 : vector<1x1x64xf32> to vector<1x64xf32>
    %cst_86 = arith.constant dense<0.000000e+00> : vector<32xf32>
    %164 = vector.multi_reduction <add>, %159, %cst_86 [1] : vector<32x64xf32> to vector<32xf32>
    %165 = vector.shape_cast %164 : vector<32xf32> to vector<32x1xf32>
    %cst_87 = arith.constant 6.400000e+01 : f32
    %166 = vector.broadcast %cst_87 : f32 to vector<32x1xf32>
    %167 = arith.divf %165, %166 : vector<32x1xf32>
    %168 = vector.broadcast %167 : vector<32x1xf32> to vector<32x64xf32>
    %169 = arith.subf %159, %168 : vector<32x64xf32>
    %170 = arith.mulf %169, %169 : vector<32x64xf32>
    %cst_88 = arith.constant dense<0.000000e+00> : vector<32xf32>
    %171 = vector.multi_reduction <add>, %170, %cst_88 [1] : vector<32x64xf32> to vector<32xf32>
    %172 = vector.shape_cast %171 : vector<32xf32> to vector<32x1xf32>
    %cst_89 = arith.constant 6.400000e+01 : f32
    %173 = vector.broadcast %cst_89 : f32 to vector<32x1xf32>
    %174 = arith.divf %172, %173 : vector<32x1xf32>
    %175 = vector.broadcast %167 : vector<32x1xf32> to vector<32x64xf32>
    %176 = arith.subf %159, %175 : vector<32x64xf32>
    %cst_90 = arith.constant 9.99999996E-13 : f32
    %177 = vector.broadcast %cst_90 : f32 to vector<32x1xf32>
    %178 = arith.addf %174, %177 : vector<32x1xf32>
    %179 = math.rsqrt %178 : vector<32x1xf32>
    %180 = vector.broadcast %179 : vector<32x1xf32> to vector<32x64xf32>
    %181 = arith.mulf %176, %180 : vector<32x64xf32>
    %182 = vector.broadcast %161 : vector<1x64xf32> to vector<32x64xf32>
    %183 = arith.mulf %181, %182 : vector<32x64xf32>
    %184 = vector.broadcast %163 : vector<1x64xf32> to vector<32x64xf32>
    %185 = arith.addf %183, %184 : vector<32x64xf32>
    %c0_91 = arith.constant 0 : index
    %c0_92 = arith.constant 0 : index
    %186 = vector.load %arg28[%c0_91, %c0_92] : memref<32x64xf32, #tpu.memory_space<vmem>>, vector<32x64xf32>
    tpu.vector_store %arg28[%c0_91, %c0_92], %185 {strides = array<i32>} : memref<32x64xf32, #tpu.memory_space<vmem>>, vector<32x64xf32>,
    %c5_i32 = arith.constant 5 : i32
    %187 = arith.cmpi eq, %arg0, %c5_i32 : i32
    %188 = arith.extui %187 : i1 to i32
    %c0_i32_93 = arith.constant 0 : i32
    %189 = arith.cmpi ne, %188, %c0_i32_93 : i32
    scf.if %189 {
      %c0_94 = arith.constant 0 : index
      %c0_95 = arith.constant 0 : index
      %190 = vector.load %arg18[%c0_94, %c0_95] : memref<64x64xf32, #tpu.memory_space<vmem>>, vector<64x64xf32>
      %cst_96 = arith.constant dense<0.000000e+00> : vector<32x64xf32>
      %191 = tpu.matmul %185, %190, %cst_96 {dimension_numbers = #tpu.dot_dimension_numbers<[1], [0], [0], [1], [0, 0, 1, 1], [], []>} : vector<32x64xf32>, vector<64x64xf32>, vector<32x64xf32> -> vector<32x64xf32>
      %c0_97 = arith.constant 0 : index
      %c0_98 = arith.constant 0 : index
      %192 = vector.load %arg19[%c0_97, %c0_98] : memref<1x64xf32, #tpu.memory_space<vmem>>, vector<1x64xf32>
      %193 = vector.broadcast %192 : vector<1x64xf32> to vector<32x64xf32>
      %194 = arith.addf %191, %193 : vector<32x64xf32>
      %cst_99 = arith.constant 5.000000e-01 : f32
      %195 = vector.broadcast %cst_99 : f32 to vector<32x64xf32>
      %196 = arith.mulf %195, %194 : vector<32x64xf32>
      %cst_100 = arith.constant 4.471500e-02 : f32
      %197 = vector.broadcast %cst_100 : f32 to vector<32x64xf32>
      %198 = arith.mulf %197, %194 : vector<32x64xf32>
      %199 = arith.mulf %198, %194 : vector<32x64xf32>
      %200 = arith.mulf %199, %194 : vector<32x64xf32>
      %201 = arith.addf %194, %200 : vector<32x64xf32>
      %cst_101 = arith.constant 0.797884583 : f32
      %202 = vector.broadcast %cst_101 : f32 to vector<32x64xf32>
      %203 = arith.mulf %202, %201 : vector<32x64xf32>
      %204 = math.tanh %203 : vector<32x64xf32>
      %cst_102 = arith.constant 1.000000e+00 : f32
      %205 = vector.broadcast %cst_102 : f32 to vector<32x64xf32>
      %206 = arith.addf %205, %204 : vector<32x64xf32>
      %207 = arith.mulf %196, %206 : vector<32x64xf32>
      %c0_103 = arith.constant 0 : index
      %c0_104 = arith.constant 0 : index
      %208 = vector.load %arg20[%c0_103, %c0_104] : memref<1x64xf32, #tpu.memory_space<vmem>>, vector<1x64xf32>
      %c0_105 = arith.constant 0 : index
      %c0_106 = arith.constant 0 : index
      %209 = vector.load %arg21[%c0_105, %c0_106] : memref<1x64xf32, #tpu.memory_space<vmem>>, vector<1x64xf32>
      %cst_107 = arith.constant dense<0.000000e+00> : vector<32xf32>
      %210 = vector.multi_reduction <add>, %207, %cst_107 [1] : vector<32x64xf32> to vector<32xf32>
      %211 = vector.shape_cast %210 : vector<32xf32> to vector<32x1xf32>
      %cst_108 = arith.constant 6.400000e+01 : f32
      %212 = vector.broadcast %cst_108 : f32 to vector<32x1xf32>
      %213 = arith.divf %211, %212 : vector<32x1xf32>
      %214 = vector.broadcast %213 : vector<32x1xf32> to vector<32x64xf32>
      %215 = arith.subf %207, %214 : vector<32x64xf32>
      %216 = arith.mulf %215, %215 : vector<32x64xf32>
      %cst_109 = arith.constant dense<0.000000e+00> : vector<32xf32>
      %217 = vector.multi_reduction <add>, %216, %cst_109 [1] : vector<32x64xf32> to vector<32xf32>
      %218 = vector.shape_cast %217 : vector<32xf32> to vector<32x1xf32>
      %cst_110 = arith.constant 6.400000e+01 : f32
      %219 = vector.broadcast %cst_110 : f32 to vector<32x1xf32>
      %220 = arith.divf %218, %219 : vector<32x1xf32>
      %221 = vector.broadcast %213 : vector<32x1xf32> to vector<32x64xf32>
      %222 = arith.subf %207, %221 : vector<32x64xf32>
      %cst_111 = arith.constant 9.99999996E-13 : f32
      %223 = vector.broadcast %cst_111 : f32 to vector<32x1xf32>
      %224 = arith.addf %220, %223 : vector<32x1xf32>
      %225 = math.rsqrt %224 : vector<32x1xf32>
      %226 = vector.broadcast %225 : vector<32x1xf32> to vector<32x64xf32>
      %227 = arith.mulf %222, %226 : vector<32x64xf32>
      %228 = vector.broadcast %208 : vector<1x64xf32> to vector<32x64xf32>
      %229 = arith.mulf %227, %228 : vector<32x64xf32>
      %230 = vector.broadcast %209 : vector<1x64xf32> to vector<32x64xf32>
      %231 = arith.addf %229, %230 : vector<32x64xf32>
      %232 = arith.truncf %231 : vector<32x64xf32> to vector<32x64xbf16>
      %c0_112 = arith.constant 0 : index
      %c0_113 = arith.constant 0 : index
      %233 = vector.load %arg22[%c0_112, %c0_113] : memref<64x512xbf16, #tpu.memory_space<vmem>>, vector<64x512xbf16>
      %cst_114 = arith.constant dense<0.000000e+00> : vector<32x512xf32>
      %234 = tpu.matmul %232, %233, %cst_114 {dimension_numbers = #tpu.dot_dimension_numbers<[1], [0], [0], [1], [0, 0, 1, 1], [], []>} : vector<32x64xbf16>, vector<64x512xbf16>, vector<32x512xf32> -> vector<32x512xf32>
      %c0_115 = arith.constant 0 : index
      %c0_116 = arith.constant 0 : index
      %235 = vector.load %arg23[%c0_115, %c0_116] : memref<1x512xf32, #tpu.memory_space<vmem>>, vector<1x512xf32>
      %236 = vector.broadcast %235 : vector<1x512xf32> to vector<32x512xf32>
      %237 = arith.addf %234, %236 : vector<32x512xf32>
      %c0_117 = arith.constant 0 : index
      %c0_118 = arith.constant 0 : index
      %238 = vector.load %arg17[%c0_117, %c0_118] : memref<32x1xi32, #tpu.memory_space<vmem>>, vector<32x1xi32>
      %cst_119 = arith.constant dense<0xFF800000> : vector<32xf32>
      %239 = vector.multi_reduction <maximumf>, %237, %cst_119 [1] : vector<32x512xf32> to vector<32xf32>
      %240 = vector.shape_cast %239 : vector<32xf32> to vector<32x1xf32>
      %241 = vector.broadcast %240 : vector<32x1xf32> to vector<32x512xf32>
      %242 = arith.subf %237, %241 : vector<32x512xf32>
      %243 = math.exp %242 : vector<32x512xf32>
      %cst_120 = arith.constant dense<0.000000e+00> : vector<32xf32>
      %244 = vector.multi_reduction <add>, %243, %cst_120 [1] : vector<32x512xf32> to vector<32xf32>
      %245 = vector.shape_cast %244 : vector<32xf32> to vector<32x1xf32>
      %246 = math.log %245 : vector<32x1xf32>
      %247 = arith.addf %240, %246 : vector<32x1xf32>
      %248 = tpu.iota {dimensions = array<i32: 1>} : vector<32x512xi32>
      %c0_i32_121 = arith.constant 0 : i32
      %249 = vector.broadcast %c0_i32_121 : i32 to vector<32x1xi32>
      %250 = arith.maxsi %238, %249 : vector<32x1xi32>
      %251 = vector.broadcast %250 : vector<32x1xi32> to vector<32x512xi32>
      %252 = arith.cmpi eq, %248, %251 : vector<32x512xi32>
      %253 = arith.extui %252 : vector<32x512xi1> to vector<32x512xi32>
      %254 = arith.sitofp %253 : vector<32x512xi32> to vector<32x512xf32>
      %255 = arith.mulf %237, %254 : vector<32x512xf32>
      %cst_122 = arith.constant dense<0.000000e+00> : vector<32xf32>
      %256 = vector.multi_reduction <add>, %255, %cst_122 [1] : vector<32x512xf32> to vector<32xf32>
      %257 = vector.shape_cast %256 : vector<32xf32> to vector<32x1xf32>
      %c0_i32_123 = arith.constant 0 : i32
      %258 = vector.broadcast %c0_i32_123 : i32 to vector<32x1xi32>
      %259 = arith.cmpi sge, %238, %258 : vector<32x1xi32>
      %260 = arith.extui %259 : vector<32x1xi1> to vector<32x1xi32>
      %261 = arith.sitofp %260 : vector<32x1xi32> to vector<32x1xf32>
      %262 = arith.subf %247, %257 : vector<32x1xf32>
      %263 = arith.mulf %262, %261 : vector<32x1xf32>
      %cst_124 = arith.constant dense<0.000000e+00> : vector<1xf32>
      %264 = vector.multi_reduction <add>, %263, %cst_124 [0] : vector<32x1xf32> to vector<1xf32>
      %265 = vector.shape_cast %264 : vector<1xf32> to vector<1x1xf32>
      %cst_125 = arith.constant dense<0.000000e+00> : vector<1xf32>
      %266 = vector.multi_reduction <add>, %261, %cst_125 [0] : vector<32x1xf32> to vector<1xf32>
      %267 = vector.shape_cast %266 : vector<1xf32> to vector<1x1xf32>
      %cst_126 = arith.constant 1.000000e+00 : f32
      %268 = vector.broadcast %cst_126 : f32 to vector<1x1xf32>
      %269 = arith.maximumf %267, %268 : vector<1x1xf32>
      %270 = arith.divf %265, %269 : vector<1x1xf32>
      %c0_127 = arith.constant 0 : index
      %c0_128 = arith.constant 0 : index
      %271 = vector.load %arg26[%c0_127, %c0_128] : memref<1x1xf32, #tpu.memory_space<vmem>>, vector<1x1xf32>
      tpu.vector_store %arg26[%c0_127, %c0_128], %270 {strides = array<i32>} : memref<1x1xf32, #tpu.memory_space<vmem>>, vector<1x1xf32>,
      %272 = tpu.iota {dimensions = array<i32: 1>} : vector<2x32xi32>
      %273 = tpu.iota {dimensions = array<i32: 0>} : vector<2x32xi32>
      %c16_i32 = arith.constant 16 : i32
      %274 = vector.broadcast %c16_i32 : i32 to vector<2x32xi32>
      %275 = arith.muli %273, %274 : vector<2x32xi32>
      %276 = arith.cmpi eq, %272, %275 : vector<2x32xi32>
      %277 = arith.extui %276 : vector<2x32xi1> to vector<2x32xi32>
      %278 = arith.sitofp %277 : vector<2x32xi32> to vector<2x32xf32>
      %cst_129 = arith.constant dense<0.000000e+00> : vector<2x512xf32>
      %279 = tpu.matmul %278, %237, %cst_129 {dimension_numbers = #tpu.dot_dimension_numbers<[1], [0], [0], [1], [0, 0, 1, 1], [], []>} : vector<2x32xf32>, vector<32x512xf32>, vector<2x512xf32> -> vector<2x512xf32>
      tpu.wait_dma2 semaphore(%arg30 : memref<!tpu.dma_semaphore, #tpu.memory_space<semaphore_mem>>) src(%arg25 : memref<512x2048xbf16, #tpu.memory_space<any>>) dst(%arg29 : memref<512x2048xbf16, #tpu.memory_space<vmem>>)
      %280 = arith.truncf %279 : vector<2x512xf32> to vector<2x512xbf16>
      %c0_130 = arith.constant 0 : index
      %c0_131 = arith.constant 0 : index
      %281 = vector.load %arg29[%c0_130, %c0_131] : memref<512x2048xbf16, #tpu.memory_space<vmem>>, vector<512x2048xbf16>
      %cst_132 = arith.constant dense<0.000000e+00> : vector<2x2048xf32>
      %282 = tpu.matmul %280, %281, %cst_132 {dimension_numbers = #tpu.dot_dimension_numbers<[1], [0], [0], [1], [0, 0, 1, 1], [], []>} : vector<2x512xbf16>, vector<512x2048xbf16>, vector<2x2048xf32> -> vector<2x2048xf32>
      %c0_133 = arith.constant 0 : index
      %c0_134 = arith.constant 0 : index
      %283 = vector.load %arg24[%c0_133, %c0_134] : memref<1x2048xf32, #tpu.memory_space<vmem>>, vector<1x2048xf32>
      %284 = vector.broadcast %283 : vector<1x2048xf32> to vector<2x2048xf32>
      %285 = arith.addf %282, %284 : vector<2x2048xf32>
      %c0_135 = arith.constant 0 : index
      %c0_136 = arith.constant 0 : index
      %286 = vector.load %arg27[%c0_135, %c0_136] : memref<2x2048xf32, #tpu.memory_space<vmem>>, vector<2x2048xf32>
      tpu.vector_store %arg27[%c0_135, %c0_136], %285 {strides = array<i32>} : memref<2x2048xf32, #tpu.memory_space<vmem>>, vector<2x2048xf32>,
    } else {
    }
    return
  }
  func.func @transform_0(%arg0: i32) -> (i32, i32) {
    %c0_i32 = arith.constant 0 : i32
    %c0_i32_0 = arith.constant 0 : i32
    %c0_i32_1 = arith.constant 0 : i32
    return %c0_i32, %c0_i32_0 : i32, i32
  }
  func.func @transform_1(%arg0: i32) -> (i32, i32) {
    %c0_i32 = arith.constant 0 : i32
    %c0_i32_0 = arith.constant 0 : i32
    %c0_i32_1 = arith.constant 0 : i32
    return %c0_i32, %c0_i32_0 : i32, i32
  }
  func.func @transform_2(%arg0: i32) -> (i32, i32) {
    %c0_i32 = arith.constant 0 : i32
    %c0_i32_0 = arith.constant 0 : i32
    %c0_i32_1 = arith.constant 0 : i32
    return %c0_i32, %c0_i32_0 : i32, i32
  }
  func.func @transform_3(%arg0: i32) -> (i32, i32) {
    %c0_i32 = arith.constant 0 : i32
    %c0_i32_0 = arith.constant 0 : i32
    %c0_i32_1 = arith.constant 0 : i32
    return %c0_i32, %c0_i32_0 : i32, i32
  }
  func.func @transform_4(%arg0: i32) -> (i32, i32, i32) {
    %c0_i32 = arith.constant 0 : i32
    %c0_i32_0 = arith.constant 0 : i32
    %c0_i32_1 = arith.constant 0 : i32
    return %arg0, %c0_i32, %c0_i32_0 : i32, i32, i32
  }
  func.func @transform_5(%arg0: i32) -> (i32, i32, i32) {
    %c0_i32 = arith.constant 0 : i32
    %c0_i32_0 = arith.constant 0 : i32
    %c0_i32_1 = arith.constant 0 : i32
    return %arg0, %c0_i32, %c0_i32_0 : i32, i32, i32
  }
  func.func @transform_6(%arg0: i32) -> (i32, i32, i32, i32) {
    %c0_i32 = arith.constant 0 : i32
    %c0_i32_0 = arith.constant 0 : i32
    %c0_i32_1 = arith.constant 0 : i32
    %c0_i32_2 = arith.constant 0 : i32
    return %arg0, %c0_i32, %c0_i32_0, %c0_i32_1 : i32, i32, i32, i32
  }
  func.func @transform_7(%arg0: i32) -> (i32, i32, i32) {
    %c0_i32 = arith.constant 0 : i32
    %c0_i32_0 = arith.constant 0 : i32
    %c0_i32_1 = arith.constant 0 : i32
    return %arg0, %c0_i32, %c0_i32_0 : i32, i32, i32
  }
  func.func @transform_8(%arg0: i32) -> (i32, i32, i32) {
    %c0_i32 = arith.constant 0 : i32
    %c0_i32_0 = arith.constant 0 : i32
    %c0_i32_1 = arith.constant 0 : i32
    return %arg0, %c0_i32, %c0_i32_0 : i32, i32, i32
  }
  func.func @transform_9(%arg0: i32) -> (i32, i32, i32) {
    %c0_i32 = arith.constant 0 : i32
    %c0_i32_0 = arith.constant 0 : i32
    %c0_i32_1 = arith.constant 0 : i32
    return %arg0, %c0_i32, %c0_i32_0 : i32, i32, i32
  }
  func.func @transform_10(%arg0: i32) -> (i32, i32, i32) {
    %c0_i32 = arith.constant 0 : i32
    %c0_i32_0 = arith.constant 0 : i32
    %c0_i32_1 = arith.constant 0 : i32
    return %arg0, %c0_i32, %c0_i32_0 : i32, i32, i32
  }
  func.func @transform_11(%arg0: i32) -> (i32, i32, i32) {
    %c0_i32 = arith.constant 0 : i32
    %c0_i32_0 = arith.constant 0 : i32
    %c0_i32_1 = arith.constant 0 : i32
    return %arg0, %c0_i32, %c0_i32_0 : i32, i32, i32
  }
  func.func @transform_12(%arg0: i32) -> (i32, i32, i32) {
    %c0_i32 = arith.constant 0 : i32
    %c0_i32_0 = arith.constant 0 : i32
    %c0_i32_1 = arith.constant 0 : i32
    return %arg0, %c0_i32, %c0_i32_0 : i32, i32, i32
  }
  func.func @transform_13(%arg0: i32) -> (i32, i32, i32) {
    %c0_i32 = arith.constant 0 : i32
    %c0_i32_0 = arith.constant 0 : i32
    %c0_i32_1 = arith.constant 0 : i32
    return %arg0, %c0_i32, %c0_i32_0 : i32, i32, i32
  }
  func.func @transform_14(%arg0: i32) -> (i32, i32, i32) {
    %c0_i32 = arith.constant 0 : i32
    %c0_i32_0 = arith.constant 0 : i32
    %c0_i32_1 = arith.constant 0 : i32
    return %arg0, %c0_i32, %c0_i32_0 : i32, i32, i32
  }
  func.func @transform_15(%arg0: i32) -> (i32, i32, i32) {
    %c0_i32 = arith.constant 0 : i32
    %c0_i32_0 = arith.constant 0 : i32
    %c0_i32_1 = arith.constant 0 : i32
    return %arg0, %c0_i32, %c0_i32_0 : i32, i32, i32
  }
  func.func @transform_16(%arg0: i32) -> (i32, i32) {
    %c0_i32 = arith.constant 0 : i32
    %c0_i32_0 = arith.constant 0 : i32
    %c0_i32_1 = arith.constant 0 : i32
    return %c0_i32, %c0_i32_0 : i32, i32
  }
  func.func @transform_17(%arg0: i32) -> (i32, i32) {
    %c0_i32 = arith.constant 0 : i32
    %c0_i32_0 = arith.constant 0 : i32
    %c0_i32_1 = arith.constant 0 : i32
    return %c0_i32, %c0_i32_0 : i32, i32
  }
  func.func @transform_18(%arg0: i32) -> (i32, i32) {
    %c0_i32 = arith.constant 0 : i32
    %c0_i32_0 = arith.constant 0 : i32
    %c0_i32_1 = arith.constant 0 : i32
    return %c0_i32, %c0_i32_0 : i32, i32
  }
  func.func @transform_19(%arg0: i32) -> (i32, i32) {
    %c0_i32 = arith.constant 0 : i32
    %c0_i32_0 = arith.constant 0 : i32
    %c0_i32_1 = arith.constant 0 : i32
    return %c0_i32, %c0_i32_0 : i32, i32
  }
  func.func @transform_20(%arg0: i32) -> (i32, i32) {
    %c0_i32 = arith.constant 0 : i32
    %c0_i32_0 = arith.constant 0 : i32
    %c0_i32_1 = arith.constant 0 : i32
    return %c0_i32, %c0_i32_0 : i32, i32
  }
  func.func @transform_21(%arg0: i32) -> (i32, i32) {
    %c0_i32 = arith.constant 0 : i32
    %c0_i32_0 = arith.constant 0 : i32
    %c0_i32_1 = arith.constant 0 : i32
    return %c0_i32, %c0_i32_0 : i32, i32
  }
  func.func @transform_22(%arg0: i32) -> (i32, i32) {
    %c0_i32 = arith.constant 0 : i32
    %c0_i32_0 = arith.constant 0 : i32
    %c0_i32_1 = arith.constant 0 : i32
    return %c0_i32, %c0_i32_0 : i32, i32
  }
  func.func @transform_23(%arg0: i32) -> (i32, i32) {
    %c0_i32 = arith.constant 0 : i32
    %c0_i32_0 = arith.constant 0 : i32
    %c0_i32_1 = arith.constant 0 : i32
    return %c0_i32, %c0_i32_0 : i32, i32
  }
  func.func @transform_25(%arg0: i32) -> (i32, i32) {
    %c0_i32 = arith.constant 0 : i32
    %c0_i32_0 = arith.constant 0 : i32
    %c0_i32_1 = arith.constant 0 : i32
    return %c0_i32, %c0_i32_0 : i32, i32
  }
  func.func @transform_26(%arg0: i32) -> (i32, i32) {
    %c0_i32 = arith.constant 0 : i32
    %c0_i32_0 = arith.constant 0 : i32
    %c0_i32_1 = arith.constant 0 : i32
    return %c0_i32, %c0_i32_0 : i32, i32
  }
}

</mosaic_0001>

<llo_original>
// kernel: mul.8
$region0: #{mul.8}
  %s0 = inlined_call_operand.hbm [shape: f32[2,16], index: 0, kind: input, shape index: {}]
  %s1 = inlined_call_operand.vmem [shape: f32[32], index: 1, kind: output, shape index: {}]
  $region1: #{mul.8} parent=0
    #allocation0 [shape = 'u8[1024]{0}', space=vmem, size = 0x400, scoped, tag = 'operand span for operand 0']
    #allocation1 [shape = 's32[1]{0}', space=sflag, size = 0x4, scoped, tag = 'scoped memory for mul.8']
    #allocation2 [shape = 'u8[4096]{0}', space=vmem, size = 0x1000, scoped, tag = 'scoped mem for output reshape']
    #allocation3 [shape = 'u8[4096]{0}', space=vmem, size = 0x1000, scoped, tag = 'scoped mem for input reshape']
    %2 = vsyncpa [#allocation1], 0
    %s4 = ssub.s32 32, 32
    %5 = vsyncadd [#allocation1], %s4
    %s7 = sshll.u32 [#allocation0], 4
    %s8 = int_to_ptr.vmem [resolvable:$true] %s7
    %10 = dma.hbm_to_vmem [thread:$0]  %s0, 32, %s8, [#allocation1]
    %11 = dma.done [#allocation1], 32
    %s13 = sshll.u32 1, 2
    %s14 = ssub.s32 %s13, 1
    %v15 = vld [vmem:[#allocation0] sm:%s14]
    %16 = vst [vmem:[#allocation3] sm:%s14] %v15
    %v17 = vld [vmem:[#allocation3] sm:$0x1]
    %vm18 = vcmask 130048
    %19 = vst.msk [vmem:[#allocation2] sm:$0x1] %vm18, %v17
    %s20 = scalar_lea.vmem [#allocation3], 1
    %v21 = vld [vmem:[%s20] sm:$0x1]
    %22 = vrot.lane.b32.xlu0 %v21, 16
    %v23 = vpop.permute.xlu0 %22
    %vm24 = vcmask 261248
    %25 = vst.msk [vmem:[#allocation2] sm:$0x1] %vm24, %v23
    %s27 = sshll.u32 1, 1
    %s28 = ssub.s32 %s27, 1
    %v30 = vld [vmem:[#allocation2] sm:%s28]
    %s31 = sshll.u32 1, 1
    %s32 = ssub.s32 %s31, 1
    %33 = vst [vmem:[%s1] sm:%s32] %v30
    %34 = vsyncpa [#allocation1], 1

// kernel: model_forward.1
$region0: #{model_forward.1}
  #allocation0 [shape = 'u32[]', space=smem, size = 0x4, offset = 0x4, fixed_abs, tag = 'smem constant byte address 0x4 - core index']
  #allocation1 [shape = 'u32[144,128]{1,0:T(1,128)}', space=vmem, size = 0x12000, scoped, tag = 'internal scratch']
  #allocation2 [shape = 'f32[32,64]{1,0:T(8,128)}', space=vmem, size = 0x4000, scoped, tag = 'scratch operand']
  #allocation3 [shape = 'bf16[512,2048]{1,0:T(8,128)(2,1)}', space=vmem, size = 0x200000, scoped, tag = 'scratch operand']
  #allocation4 [shape = 's32[1]{0}', space=sflag, size = 0x4, scoped, tag = 'scratch operand']
  #allocation34 [shape = 's32[]', space=sflag, size = 0x4, offset = 0, fixed_abs, tag = 'sflag constant byte address 0x0 - dummy sync flag']
  #allocation35 [shape = 's32[]', space=sflag, size = 0x4, offset = 0, fixed_abs, tag = 'sflag constant byte address 0x0 - dummy sync flag']
  #allocation36 [shape = 'u32[]', space=smem, size = 0x4, offset = 0x44, fixed_abs, tag = 'smem constant byte address 0x44 - assertion arg 0']
  #allocation37 [shape = 'u32[]', space=smem, size = 0x4, offset = 0x48, fixed_abs, tag = 'smem constant byte address 0x48 - assertion arg 1']
  %s0 = inlined_call_operand.vmem [shape: f32[32,64], index: 0, kind: input, shape index: {}]
  %s1 = inlined_call_operand.vmem [shape: f32[32,32], index: 1, kind: input, shape index: {}]
  %s2 = inlined_call_operand.hbm [shape: f32[1,64], index: 2, kind: input, shape index: {}]
  %s3 = inlined_call_operand.hbm [shape: f32[1,64], index: 3, kind: input, shape index: {}]
  %s4 = inlined_call_operand.hbm [shape: f32[6,64,192], index: 4, kind: input, shape index: {}]
  %s5 = inlined_call_operand.hbm [shape: f32[6,1,192], index: 5, kind: input, shape index: {}]
  %s6 = inlined_call_operand.hbm [shape: f32[6,4,16,64], index: 6, kind: input, shape index: {}]
  %s7 = inlined_call_operand.hbm [shape: f32[6,1,64], index: 7, kind: input, shape index: {}]
  %s8 = inlined_call_operand.hbm [shape: f32[6,1,64], index: 8, kind: input, shape index: {}]
  %s9 = inlined_call_operand.hbm [shape: f32[6,1,64], index: 9, kind: input, shape index: {}]
  %s10 = inlined_call_operand.hbm [shape: f32[6,64,128], index: 10, kind: input, shape index: {}]
  %s11 = inlined_call_operand.hbm [shape: f32[6,1,128], index: 11, kind: input, shape index: {}]
  %s12 = inlined_call_operand.vmem [shape: f32[6,128,64], index: 12, kind: input, shape index: {}]
  %s13 = inlined_call_operand.hbm [shape: f32[6,1,64], index: 13, kind: input, shape index: {}]
  %s14 = inlined_call_operand.hbm [shape: f32[6,1,64], index: 14, kind: input, shape index: {}]
  %s15 = inlined_call_operand.hbm [shape: f32[6,1,64], index: 15, kind: input, shape index: {}]
  %s16 = inlined_call_operand.vmem [shape: s32[32,1], index: 16, kind: input, shape index: {}]
  %s17 = inlined_call_operand.hbm [shape: f32[64,64], index: 17, kind: input, shape index: {}]
  %s18 = inlined_call_operand.hbm [shape: f32[1,64], index: 18, kind: input, shape index: {}]
  %s19 = inlined_call_operand.hbm [shape: f32[1,64], index: 19, kind: input, shape index: {}]
  %s20 = inlined_call_operand.hbm [shape: f32[1,64], index: 20, kind: input, shape index: {}]
  %s21 = inlined_call_operand.hbm [shape: bf16[64,512], index: 21, kind: input, shape index: {}]
  %s22 = inlined_call_operand.hbm [shape: f32[1,512], index: 22, kind: input, shape index: {}]
  %s23 = inlined_call_operand.hbm [shape: f32[1,2048], index: 23, kind: input, shape index: {}]
  %s24 = inlined_call_operand.hbm [shape: bf16[512,2048], index: 24, kind: input, shape index: {}]
  %s25 = inlined_call_operand.hbm [shape: f32[1,1], index: 25, kind: output, shape index: {0}]
  %s26 = inlined_call_operand.hbm [shape: f32[2,2048], index: 26, kind: output, shape index: {1}]
  %27 = xla_tuple %s25, %s26
  %s28 = sld [smem:[#allocation0]]
  $region229: #{model_forward.1} parent=0
    _
  %s30 = ssub.s32 1, %s28
  %s31 = scalar_select 0, %s30, %s28
  $region1: #{model_forward.1} parent=0
    #allocation5 [shape = 'u8[512]{0}', space=vmem, size = 0x400, scoped, tag = 'input window, operand 2, single buffered']
    #allocation6 [shape = 's32[2]{0}', space=sflag, size = 0x8, scoped, tag = 'scoped memory for model_forward.1']
    #allocation7 [shape = 's32[2]{0}', space=sflag, size = 0x8, scoped, tag = 'scoped memory for model_forward.1']
    #allocation8 [shape = 'u8[512]{0}', space=vmem, size = 0x400, scoped, tag = 'input window, operand 3, single buffered']
    #allocation9 [shape = 's32[1]{0}', space=sflag, size = 0x4, scoped, tag = 'scoped memory for model_forward.1']
    #allocation10 [shape = 'u8[131072]{0}', space=vmem, size = 0x20000, scoped, tag = 'input window, operand 4']
    #allocation11 [shape = 'u8[2048]{0}', space=vmem, size = 0x800, scoped, tag = 'input window, operand 5']
    #allocation12 [shape = 'u8[65536]{0}', space=vmem, size = 0x10000, scoped, tag = 'input window, operand 6']
    #allocation13 [shape = 'u8[1024]{0}', space=vmem, size = 0x400, scoped, tag = 'input window, operand 7']
    #allocation14 [shape = 'u8[1024]{0}', space=vmem, size = 0x400, scoped, tag = 'input window, operand 8']
    #allocation15 [shape = 'u8[1024]{0}', space=vmem, size = 0x400, scoped, tag = 'input window, operand 9']
    #allocation16 [shape = 'u8[65536]{0}', space=vmem, size = 0x10000, scoped, tag = 'input window, operand 10']
    #allocation17 [shape = 'u8[1024]{0}', space=vmem, size = 0x400, scoped, tag = 'input window, operand 11']
    #allocation18 [shape = 'u8[1024]{0}', space=vmem, size = 0x400, scoped, tag = 'input window, operand 13']
    #allocation19 [shape = 'u8[1024]{0}', space=vmem, size = 0x400, scoped, tag = 'input window, operand 14']
    #allocation20 [shape = 'u8[1024]{0}', space=vmem, size = 0x400, scoped, tag = 'input window, operand 15']
    #allocation21 [shape = 'u8[32768]{0}', space=vmem, size = 0x8000, scoped, tag = 'input window, operand 17, single buffered']
    #allocation22 [shape = 'u8[512]{0}', space=vmem, size = 0x400, scoped, tag = 'input window, operand 18, single buffered']
    #allocation23 [shape = 's32[1]{0}', space=sflag, size = 0x4, scoped, tag = 'scoped memory for model_forward.1']
    #allocation24 [shape = 'u8[512]{0}', space=vmem, size = 0x400, scoped, tag = 'input window, operand 19, single buffered']
    #allocation25 [shape = 'u8[512]{0}', space=vmem, size = 0x400, scoped, tag = 'input window, operand 20, single buffered']
    #allocation26 [shape = 's32[1]{0}', space=sflag, size = 0x4, scoped, tag = 'scoped memory for model_forward.1']
    #allocation27 [shape = 'u8[65536]{0}', space=vmem, size = 0x10000, scoped, tag = 'input window, operand 21, single buffered']
    #allocation28 [shape = 'u8[2048]{0}', space=vmem, size = 0x800, scoped, tag = 'input window, operand 22, single buffered']
    #allocation29 [shape = 's32[1]{0}', space=sflag, size = 0x4, scoped, tag = 'scoped memory for model_forward.1']
    #allocation30 [shape = 'u8[8192]{0}', space=vmem, size = 0x2000, scoped, tag = 'input window, operand 23, single buffered']
    #allocation31 [shape = 'u8[512]{0}', space=vmem, size = 0x400, scoped, tag = 'output window, operand 0, single buffered']
    #allocation32 [shape = 'u8[16384]{0}', space=vmem, size = 0x4000, scoped, tag = 'output window, operand 1, single buffered']
    #allocation33 [shape = 's32[1]{0}', space=sflag, size = 0x4, scoped, tag = 'scoped memory for model_forward.1']
    %32 = vsyncpa [#allocation6], 0
    %33 = vsyncpa [#allocation9], 0
    %34 = vsyncpa [#allocation23], 0
    %35 = vsyncpa [#allocation26], 0
    %36 = vsyncpa [#allocation29], 0
    %37 = vsyncpa [#allocation7], 0
    %38 = vsyncpa [#allocation33], 0
    loop: start=0, step=1, limit=8
    $region2: #{model_forward.1} parent=1 // loop_pre_header
      _
    $region3: #{model_forward.1} parent=1 // loop_header
      %s40 = sphi 0, %s44
      %p41 = scmp.ge.s32.totalorder %s40, 8
      %s48 = sphi 0, %s48
      %s50 = sphi 0, %s48
      %s51 = sphi 0, %s50
      %s65 = sphi 0, %s51
      %s69 = sphi 0, %s69
      %s71 = sphi 0, %s69
      %s72 = sphi 0, %s71
      %s86 = sphi 0, %s72
      %s90 = sphi 0, %s90
      %s92 = sphi 0, %s90
      %s93 = sphi 0, %s92
      %s107 = sphi 0, %s93
      %s111 = sphi 0, %s111
      %s113 = sphi 0, %s111
      %s114 = sphi 0, %s113
      %s128 = sphi 0, %s114
      %s134 = sphi 0, %s136
      %s137 = sphi 0, %s134
      %s138 = sphi 0, %s137
      %s154 = sphi 0, %s138
      %s160 = sphi 0, %s162
      %s163 = sphi 0, %s160
      %s164 = sphi 0, %s163
      %s180 = sphi 0, %s164
      %s186 = sphi 0, %s188
      %s189 = sphi 0, %s186
      %s190 = sphi 0, %s189
      %s206 = sphi 0, %s190
      %s212 = sphi 0, %s214
      %s215 = sphi 0, %s212
      %s216 = sphi 0, %s215
      %s232 = sphi 0, %s216
      %s238 = sphi 0, %s240
      %s241 = sphi 0, %s238
      %s242 = sphi 0, %s241
      %s258 = sphi 0, %s242
      %s264 = sphi 0, %s266
      %s267 = sphi 0, %s264
      %s268 = sphi 0, %s267
      %s284 = sphi 0, %s268
      %s290 = sphi 0, %s292
      %s293 = sphi 0, %s290
      %s294 = sphi 0, %s293
      %s310 = sphi 0, %s294
      %s316 = sphi 0, %s318
      %s319 = sphi 0, %s316
      %s320 = sphi 0, %s319
      %s336 = sphi 0, %s320
      %s342 = sphi 0, %s344
      %s345 = sphi 0, %s342
      %s346 = sphi 0, %s345
      %s362 = sphi 0, %s346
      %s368 = sphi 0, %s370
      %s371 = sphi 0, %s368
      %s372 = sphi 0, %s371
      %s388 = sphi 0, %s372
      %s394 = sphi 0, %s396
      %s397 = sphi 0, %s394
      %s398 = sphi 0, %s397
      %s414 = sphi 0, %s398
      %s420 = sphi 0, %s422
      %s423 = sphi 0, %s420
      %s424 = sphi 0, %s423
      %s440 = sphi 0, %s424
      %s444 = sphi 0, %s444
      %s446 = sphi 0, %s444
      %s447 = sphi 0, %s446
      %s461 = sphi 0, %s447
      %s465 = sphi 0, %s465
      %s467 = sphi 0, %s465
      %s468 = sphi 0, %s467
      %s482 = sphi 0, %s468
      %s486 = sphi 0, %s486
      %s488 = sphi 0, %s486
      %s489 = sphi 0, %s488
      %s503 = sphi 0, %s489
      %s507 = sphi 0, %s507
      %s509 = sphi 0, %s507
      %s510 = sphi 0, %s509
      %s524 = sphi 0, %s510
      %s528 = sphi 0, %s528
      %s530 = sphi 0, %s528
      %s531 = sphi 0, %s530
      %s545 = sphi 0, %s531
      %s549 = sphi 0, %s549
      %s551 = sphi 0, %s549
      %s552 = sphi 0, %s551
      %s566 = sphi 0, %s552
      %s570 = sphi 0, %s570
      %s572 = sphi 0, %s570
      %s573 = sphi 0, %s572
      %s587 = sphi 0, %s573
      %s591 = sphi 0, %s591
      %s593 = sphi 0, %s591
      %s594 = sphi 0, %s593
      %s608 = sphi 0, %s594
      %s612 = sphi 0, %s612
      %s614 = sphi 0, %s612
      %s615 = sphi 0, %s614
      %s629 = sphi 0, %s615
      %s633 = sphi 0, %s633
      %s635 = sphi 0, %s633
      %s636 = sphi 0, %s635
      %s650 = sphi 0, %s636
    $region4: #{model_forward.1} parent=1 // loop_header_branch
      %43 = sbr.rel (%p41) target = $region8
    $region5: #{model_forward.1} parent=1 // loop_body
      %s45 = ssub.s32 %s40, 1
      %s46 = ssub.s32 %s40, 2
      %s47 = sadd.s32 %s40, 1
      %s49 = sadd.s32 %s48, 1
      %p52 = scmp.eq.s32.totalorder %s40, 5
      %p53 = scmp.ne.s32.totalorder %s48, %s50
      %p54 = scmp.eq.s32.totalorder %s40, 0
      %p55 = por %p53, %p54
      %p56 = scmp.ne.s32.totalorder %s48, %s50
      %p57 = scmp.eq.s32.totalorder %s45, 5
      %p58 = por %p56, %p57
      %p59 = scmp.ne.s32.totalorder %s50, %s51
      %p60 = scmp.eq.s32.totalorder %s45, 0
      %p61 = por %p59, %p60
      %p62 = scmp.ne.s32.totalorder %s50, %s51
      %p63 = scmp.eq.s32.totalorder %s46, 5
      %p64 = por %p62, %p63
      %p66 = scmp.ne.s32.totalorder %s51, %s65
      %p67 = scmp.eq.s32.totalorder %s46, 0
      %p68 = por %p66, %p67
      %s70 = sadd.s32 %s69, 1
      %p73 = scmp.eq.s32.totalorder %s40, 5
      %p74 = scmp.ne.s32.totalorder %s69, %s71
      %p75 = scmp.eq.s32.totalorder %s40, 0
      %p76 = por %p74, %p75
      %p77 = scmp.ne.s32.totalorder %s69, %s71
      %p78 = scmp.eq.s32.totalorder %s45, 5
      %p79 = por %p77, %p78
      %p80 = scmp.ne.s32.totalorder %s71, %s72
      %p81 = scmp.eq.s32.totalorder %s45, 0
      %p82 = por %p80, %p81
      %p83 = scmp.ne.s32.totalorder %s71, %s72
      %p84 = scmp.eq.s32.totalorder %s46, 5
      %p85 = por %p83, %p84
      %p87 = scmp.ne.s32.totalorder %s72, %s86
      %p88 = scmp.eq.s32.totalorder %s46, 0
      %p89 = por %p87, %p88
      %s91 = sadd.s32 %s90, 1
      %p94 = scmp.eq.s32.totalorder %s40, 5
      %p95 = scmp.ne.s32.totalorder %s90, %s92
      %p96 = scmp.eq.s32.totalorder %s40, 0
      %p97 = por %p95, %p96
      %p98 = scmp.ne.s32.totalorder %s90, %s92
      %p99 = scmp.eq.s32.totalorder %s45, 5
      %p100 = por %p98, %p99
      %p101 = scmp.ne.s32.totalorder %s92, %s93
      %p102 = scmp.eq.s32.totalorder %s45, 0
      %p103 = por %p101, %p102
      %p104 = scmp.ne.s32.totalorder %s92, %s93
      %p105 = scmp.eq.s32.totalorder %s46, 5
      %p106 = por %p104, %p105
      %p108 = scmp.ne.s32.totalorder %s93, %s107
      %p109 = scmp.eq.s32.totalorder %s46, 0
      %p110 = por %p108, %p109
      %s112 = sadd.s32 %s111, 1
      %p115 = scmp.eq.s32.totalorder %s40, 5
      %p116 = scmp.ne.s32.totalorder %s111, %s113
      %p117 = scmp.eq.s32.totalorder %s40, 0
      %p118 = por %p116, %p117
      %p119 = scmp.ne.s32.totalorder %s111, %s113
      %p120 = scmp.eq.s32.totalorder %s45, 5
      %p121 = por %p119, %p120
      %p122 = scmp.ne.s32.totalorder %s113, %s114
      %p123 = scmp.eq.s32.totalorder %s45, 0
      %p124 = por %p122, %p123
      %p125 = scmp.ne.s32.totalorder %s113, %s114
      %p126 = scmp.eq.s32.totalorder %s46, 5
      %p127 = por %p125, %p126
      %p129 = scmp.ne.s32.totalorder %s114, %s128
      %p130 = scmp.eq.s32.totalorder %s46, 0
      %p131 = por %p129, %p130
      %s132 = ssub.s32 %s40, %s47
      %p133 = scmp.eq.s32.totalorder %s132, 0
      %s135 = sadd.s32 %s134, 1
      %s136 = scalar_select %p133, %s134, %s135
      %p139 = pneg %p133
      %p140 = scmp.eq.s32.totalorder %s40, 5
      %p141 = por %p139, %p140
      %p142 = scmp.ne.s32.totalorder %s134, %s137
      %p143 = scmp.eq.s32.totalorder %s40, 0
      %p144 = por %p142, %p143
      %p145 = scmp.ne.s32.totalorder %s134, %s137
      %p146 = scmp.eq.s32.totalorder %s45, 5
      %p147 = por %p145, %p146
      %p148 = scmp.ne.s32.totalorder %s137, %s138
      %p149 = scmp.eq.s32.totalorder %s45, 0
      %p150 = por %p148, %p149
      %p151 = scmp.ne.s32.totalorder %s137, %s138
      %p152 = scmp.eq.s32.totalorder %s46, 5
      %p153 = por %p151, %p152
      %p155 = scmp.ne.s32.totalorder %s138, %s154
      %p156 = scmp.eq.s32.totalorder %s46, 0
      %p157 = por %p155, %p156
      %s158 = ssub.s32 %s40, %s47
      %p159 = scmp.eq.s32.totalorder %s158, 0
      %s161 = sadd.s32 %s160, 1
      %s162 = scalar_select %p159, %s160, %s161
      %p165 = pneg %p159
      %p166 = scmp.eq.s32.totalorder %s40, 5
      %p167 = por %p165, %p166
      %p168 = scmp.ne.s32.totalorder %s160, %s163
      %p169 = scmp.eq.s32.totalorder %s40, 0
      %p170 = por %p168, %p169
      %p171 = scmp.ne.s32.totalorder %s160, %s163
      %p172 = scmp.eq.s32.totalorder %s45, 5
      %p173 = por %p171, %p172
      %p174 = scmp.ne.s32.totalorder %s163, %s164
      %p175 = scmp.eq.s32.totalorder %s45, 0
      %p176 = por %p174, %p175
      %p177 = scmp.ne.s32.totalorder %s163, %s164
      %p178 = scmp.eq.s32.totalorder %s46, 5
      %p179 = por %p177, %p178
      %p181 = scmp.ne.s32.totalorder %s164, %s180
      %p182 = scmp.eq.s32.totalorder %s46, 0
      %p183 = por %p181, %p182
      %s184 = ssub.s32 %s40, %s47
      %p185 = scmp.eq.s32.totalorder %s184, 0
      %s187 = sadd.s32 %s186, 1
      %s188 = scalar_select %p185, %s186, %s187
      %p191 = pneg %p185
      %p192 = scmp.eq.s32.totalorder %s40, 5
      %p193 = por %p191, %p192
      %p194 = scmp.ne.s32.totalorder %s186, %s189
      %p195 = scmp.eq.s32.totalorder %s40, 0
      %p196 = por %p194, %p195
      %p197 = scmp.ne.s32.totalorder %s186, %s189
      %p198 = scmp.eq.s32.totalorder %s45, 5
      %p199 = por %p197, %p198
      %p200 = scmp.ne.s32.totalorder %s189, %s190
      %p201 = scmp.eq.s32.totalorder %s45, 0
      %p202 = por %p200, %p201
      %p203 = scmp.ne.s32.totalorder %s189, %s190
      %p204 = scmp.eq.s32.totalorder %s46, 5
      %p205 = por %p203, %p204
      %p207 = scmp.ne.s32.totalorder %s190, %s206
      %p208 = scmp.eq.s32.totalorder %s46, 0
      %p209 = por %p207, %p208
      %s210 = ssub.s32 %s40, %s47
      %p211 = scmp.eq.s32.totalorder %s210, 0
      %s213 = sadd.s32 %s212, 1
      %s214 = scalar_select %p211, %s212, %s213
      %p217 = pneg %p211
      %p218 = scmp.eq.s32.totalorder %s40, 5
      %p219 = por %p217, %p218
      %p220 = scmp.ne.s32.totalorder %s212, %s215
      %p221 = scmp.eq.s32.totalorder %s40, 0
      %p222 = por %p220, %p221
      %p223 = scmp.ne.s32.totalorder %s212, %s215
      %p224 = scmp.eq.s32.totalorder %s45, 5
      %p225 = por %p223, %p224
      %p226 = scmp.ne.s32.totalorder %s215, %s216
      %p227 = scmp.eq.s32.totalorder %s45, 0
      %p228 = por %p226, %p227
      %p229 = scmp.ne.s32.totalorder %s215, %s216
      %p230 = scmp.eq.s32.totalorder %s46, 5
      %p231 = por %p229, %p230
      %p233 = scmp.ne.s32.totalorder %s216, %s232
      %p234 = scmp.eq.s32.totalorder %s46, 0
      %p235 = por %p233, %p234
      %s236 = ssub.s32 %s40, %s47
      %p237 = scmp.eq.s32.totalorder %s236, 0
      %s239 = sadd.s32 %s238, 1
      %s240 = scalar_select %p237, %s238, %s239
      %p243 = pneg %p237
      %p244 = scmp.eq.s32.totalorder %s40, 5
      %p245 = por %p243, %p244
      %p246 = scmp.ne.s32.totalorder %s238, %s241
      %p247 = scmp.eq.s32.totalorder %s40, 0
      %p248 = por %p246, %p247
      %p249 = scmp.ne.s32.totalorder %s238, %s241
      %p250 = scmp.eq.s32.totalorder %s45, 5
      %p251 = por %p249, %p250
      %p252 = scmp.ne.s32.totalorder %s241, %s242
      %p253 = scmp.eq.s32.totalorder %s45, 0
      %p254 = por %p252, %p253
      %p255 = scmp.ne.s32.totalorder %s241, %s242
      %p256 = scmp.eq.s32.totalorder %s46, 5
      %p257 = por %p255, %p256
      %p259 = scmp.ne.s32.totalorder %s242, %s258
      %p260 = scmp.eq.s32.totalorder %s46, 0
      %p261 = por %p259, %p260
      %s262 = ssub.s32 %s40, %s47
      %p263 = scmp.eq.s32.totalorder %s262, 0
      %s265 = sadd.s32 %s264, 1
      %s266 = scalar_select %p263, %s264, %s265
      %p269 = pneg %p263
      %p270 = scmp.eq.s32.totalorder %s40, 5
      %p271 = por %p269, %p270
      %p272 = scmp.ne.s32.totalorder %s264, %s267
      %p273 = scmp.eq.s32.totalorder %s40, 0
      %p274 = por %p272, %p273
      %p275 = scmp.ne.s32.totalorder %s264, %s267
      %p276 = scmp.eq.s32.totalorder %s45, 5
      %p277 = por %p275, %p276
      %p278 = scmp.ne.s32.totalorder %s267, %s268
      %p279 = scmp.eq.s32.totalorder %s45, 0
      %p280 = por %p278, %p279
      %p281 = scmp.ne.s32.totalorder %s267, %s268
      %p282 = scmp.eq.s32.totalorder %s46, 5
      %p283 = por %p281, %p282
      %p285 = scmp.ne.s32.totalorder %s268, %s284
      %p286 = scmp.eq.s32.totalorder %s46, 0
      %p287 = por %p285, %p286
      %s288 = ssub.s32 %s40, %s47
      %p289 = scmp.eq.s32.totalorder %s288, 0
      %s291 = sadd.s32 %s290, 1
      %s292 = scalar_select %p289, %s290, %s291
      %p295 = pneg %p289
      %p296 = scmp.eq.s32.totalorder %s40, 5
      %p297 = por %p295, %p296
      %p298 = scmp.ne.s32.totalorder %s290, %s293
      %p299 = scmp.eq.s32.totalorder %s40, 0
      %p300 = por %p298, %p299
      %p301 = scmp.ne.s32.totalorder %s290, %s293
      %p302 = scmp.eq.s32.totalorder %s45, 5
      %p303 = por %p301, %p302
      %p304 = scmp.ne.s32.totalorder %s293, %s294
      %p305 = scmp.eq.s32.totalorder %s45, 0
      %p306 = por %p304, %p305
      %p307 = scmp.ne.s32.totalorder %s293, %s294
      %p308 = scmp.eq.s32.totalorder %s46, 5
      %p309 = por %p307, %p308
      %p311 = scmp.ne.s32.totalorder %s294, %s310
      %p312 = scmp.eq.s32.totalorder %s46, 0
      %p313 = por %p311, %p312
      %s314 = ssub.s32 %s40, %s47
      %p315 = scmp.eq.s32.totalorder %s314, 0
      %s317 = sadd.s32 %s316, 1
      %s318 = scalar_select %p315, %s316, %s317
      %p321 = pneg %p315
      %p322 = scmp.eq.s32.totalorder %s40, 5
      %p323 = por %p321, %p322
      %p324 = scmp.ne.s32.totalorder %s316, %s319
      %p325 = scmp.eq.s32.totalorder %s40, 0
      %p326 = por %p324, %p325
      %p327 = scmp.ne.s32.totalorder %s316, %s319
      %p328 = scmp.eq.s32.totalorder %s45, 5
      %p329 = por %p327, %p328
      %p330 = scmp.ne.s32.totalorder %s319, %s320
      %p331 = scmp.eq.s32.totalorder %s45, 0
      %p332 = por %p330, %p331
      %p333 = scmp.ne.s32.totalorder %s319, %s320
      %p334 = scmp.eq.s32.totalorder %s46, 5
      %p335 = por %p333, %p334
      %p337 = scmp.ne.s32.totalorder %s320, %s336
      %p338 = scmp.eq.s32.totalorder %s46, 0
      %p339 = por %p337, %p338
      %s340 = ssub.s32 %s40, %s47
      %p341 = scmp.eq.s32.totalorder %s340, 0
      %s343 = sadd.s32 %s342, 1
      %s344 = scalar_select %p341, %s342, %s343
      %p347 = pneg %p341
      %p348 = scmp.eq.s32.totalorder %s40, 5
      %p349 = por %p347, %p348
      %p350 = scmp.ne.s32.totalorder %s342, %s345
      %p351 = scmp.eq.s32.totalorder %s40, 0
      %p352 = por %p350, %p351
      %p353 = scmp.ne.s32.totalorder %s342, %s345
      %p354 = scmp.eq.s32.totalorder %s45, 5
      %p355 = por %p353, %p354
      %p356 = scmp.ne.s32.totalorder %s345, %s346
      %p357 = scmp.eq.s32.totalorder %s45, 0
      %p358 = por %p356, %p357
      %p359 = scmp.ne.s32.totalorder %s345, %s346
      %p360 = scmp.eq.s32.totalorder %s46, 5
      %p361 = por %p359, %p360
      %p363 = scmp.ne.s32.totalorder %s346, %s362
      %p364 = scmp.eq.s32.totalorder %s46, 0
      %p365 = por %p363, %p364
      %s366 = ssub.s32 %s40, %s47
      %p367 = scmp.eq.s32.totalorder %s366, 0
      %s369 = sadd.s32 %s368, 1
      %s370 = scalar_select %p367, %s368, %s369
      %p373 = pneg %p367
      %p374 = scmp.eq.s32.totalorder %s40, 5
      %p375 = por %p373, %p374
      %p376 = scmp.ne.s32.totalorder %s368, %s371
      %p377 = scmp.eq.s32.totalorder %s40, 0
      %p378 = por %p376, %p377
      %p379 = scmp.ne.s32.totalorder %s368, %s371
      %p380 = scmp.eq.s32.totalorder %s45, 5
      %p381 = por %p379, %p380
      %p382 = scmp.ne.s32.totalorder %s371, %s372
      %p383 = scmp.eq.s32.totalorder %s45, 0
      %p384 = por %p382, %p383
      %p385 = scmp.ne.s32.totalorder %s371, %s372
      %p386 = scmp.eq.s32.totalorder %s46, 5
      %p387 = por %p385, %p386
      %p389 = scmp.ne.s32.totalorder %s372, %s388
      %p390 = scmp.eq.s32.totalorder %s46, 0
      %p391 = por %p389, %p390
      %s392 = ssub.s32 %s40, %s47
      %p393 = scmp.eq.s32.totalorder %s392, 0
      %s395 = sadd.s32 %s394, 1
      %s396 = scalar_select %p393, %s394, %s395
      %p399 = pneg %p393
      %p400 = scmp.eq.s32.totalorder %s40, 5
      %p401 = por %p399, %p400
      %p402 = scmp.ne.s32.totalorder %s394, %s397
      %p403 = scmp.eq.s32.totalorder %s40, 0
      %p404 = por %p402, %p403
      %p405 = scmp.ne.s32.totalorder %s394, %s397
      %p406 = scmp.eq.s32.totalorder %s45, 5
      %p407 = por %p405, %p406
      %p408 = scmp.ne.s32.totalorder %s397, %s398
      %p409 = scmp.eq.s32.totalorder %s45, 0
      %p410 = por %p408, %p409
      %p411 = scmp.ne.s32.totalorder %s397, %s398
      %p412 = scmp.eq.s32.totalorder %s46, 5
      %p413 = por %p411, %p412
      %p415 = scmp.ne.s32.totalorder %s398, %s414
      %p416 = scmp.eq.s32.totalorder %s46, 0
      %p417 = por %p415, %p416
      %s418 = ssub.s32 %s40, %s47
      %p419 = scmp.eq.s32.totalorder %s418, 0
      %s421 = sadd.s32 %s420, 1
      %s422 = scalar_select %p419, %s420, %s421
      %p425 = pneg %p419
      %p426 = scmp.eq.s32.totalorder %s40, 5
      %p427 = por %p425, %p426
      %p428 = scmp.ne.s32.totalorder %s420, %s423
      %p429 = scmp.eq.s32.totalorder %s40, 0
      %p430 = por %p428, %p429
      %p431 = scmp.ne.s32.totalorder %s420, %s423
      %p432 = scmp.eq.s32.totalorder %s45, 5
      %p433 = por %p431, %p432
      %p434 = scmp.ne.s32.totalorder %s423, %s424
      %p435 = scmp.eq.s32.totalorder %s45, 0
      %p436 = por %p434, %p435
      %p437 = scmp.ne.s32.totalorder %s423, %s424
      %p438 = scmp.eq.s32.totalorder %s46, 5
      %p439 = por %p437, %p438
      %p441 = scmp.ne.s32.totalorder %s424, %s440
      %p442 = scmp.eq.s32.totalorder %s46, 0
      %p443 = por %p441, %p442
      %s445 = sadd.s32 %s444, 1
      %p448 = scmp.eq.s32.totalorder %s40, 5
      %p449 = scmp.ne.s32.totalorder %s444, %s446
      %p450 = scmp.eq.s32.totalorder %s40, 0
      %p451 = por %p449, %p450
      %p452 = scmp.ne.s32.totalorder %s444, %s446
      %p453 = scmp.eq.s32.totalorder %s45, 5
      %p454 = por %p452, %p453
      %p455 = scmp.ne.s32.totalorder %s446, %s447
      %p456 = scmp.eq.s32.totalorder %s45, 0
      %p457 = por %p455, %p456
      %p458 = scmp.ne.s32.totalorder %s446, %s447
      %p459 = scmp.eq.s32.totalorder %s46, 5
      %p460 = por %p458, %p459
      %p462 = scmp.ne.s32.totalorder %s447, %s461
      %p463 = scmp.eq.s32.totalorder %s46, 0
      %p464 = por %p462, %p463
      %s466 = sadd.s32 %s465, 1
      %p469 = scmp.eq.s32.totalorder %s40, 5
      %p470 = scmp.ne.s32.totalorder %s465, %s467
      %p471 = scmp.eq.s32.totalorder %s40, 0
      %p472 = por %p470, %p471
      %p473 = scmp.ne.s32.totalorder %s465, %s467
      %p474 = scmp.eq.s32.totalorder %s45, 5
      %p475 = por %p473, %p474
      %p476 = scmp.ne.s32.totalorder %s467, %s468
      %p477 = scmp.eq.s32.totalorder %s45, 0
      %p478 = por %p476, %p477
      %p479 = scmp.ne.s32.totalorder %s467, %s468
      %p480 = scmp.eq.s32.totalorder %s46, 5
      %p481 = por %p479, %p480
      %p483 = scmp.ne.s32.totalorder %s468, %s482
      %p484 = scmp.eq.s32.totalorder %s46, 0
      %p485 = por %p483, %p484
      %s487 = sadd.s32 %s486, 1
      %p490 = scmp.eq.s32.totalorder %s40, 5
      %p491 = scmp.ne.s32.totalorder %s486, %s488
      %p492 = scmp.eq.s32.totalorder %s40, 0
      %p493 = por %p491, %p492
      %p494 = scmp.ne.s32.totalorder %s486, %s488
      %p495 = scmp.eq.s32.totalorder %s45, 5
      %p496 = por %p494, %p495
      %p497 = scmp.ne.s32.totalorder %s488, %s489
      %p498 = scmp.eq.s32.totalorder %s45, 0
      %p499 = por %p497, %p498
      %p500 = scmp.ne.s32.totalorder %s488, %s489
      %p501 = scmp.eq.s32.totalorder %s46, 5
      %p502 = por %p500, %p501
      %p504 = scmp.ne.s32.totalorder %s489, %s503
      %p505 = scmp.eq.s32.totalorder %s46, 0
      %p506 = por %p504, %p505
      %s508 = sadd.s32 %s507, 1
      %p511 = scmp.eq.s32.totalorder %s40, 5
      %p512 = scmp.ne.s32.totalorder %s507, %s509
      %p513 = scmp.eq.s32.totalorder %s40, 0
      %p514 = por %p512, %p513
      %p515 = scmp.ne.s32.totalorder %s507, %s509
      %p516 = scmp.eq.s32.totalorder %s45, 5
      %p517 = por %p515, %p516
      %p518 = scmp.ne.s32.totalorder %s509, %s510
      %p519 = scmp.eq.s32.totalorder %s45, 0
      %p520 = por %p518, %p519
      %p521 = scmp.ne.s32.totalorder %s509, %s510
      %p522 = scmp.eq.s32.totalorder %s46, 5
      %p523 = por %p521, %p522
      %p525 = scmp.ne.s32.totalorder %s510, %s524
      %p526 = scmp.eq.s32.totalorder %s46, 0
      %p527 = por %p525, %p526
      %s529 = sadd.s32 %s528, 1
      %p532 = scmp.eq.s32.totalorder %s40, 5
      %p533 = scmp.ne.s32.totalorder %s528, %s530
      %p534 = scmp.eq.s32.totalorder %s40, 0
      %p535 = por %p533, %p534
      %p536 = scmp.ne.s32.totalorder %s528, %s530
      %p537 = scmp.eq.s32.totalorder %s45, 5
      %p538 = por %p536, %p537
      %p539 = scmp.ne.s32.totalorder %s530, %s531
      %p540 = scmp.eq.s32.totalorder %s45, 0
      %p541 = por %p539, %p540
      %p542 = scmp.ne.s32.totalorder %s530, %s531
      %p543 = scmp.eq.s32.totalorder %s46, 5
      %p544 = por %p542, %p543
      %p546 = scmp.ne.s32.totalorder %s531, %s545
      %p547 = scmp.eq.s32.totalorder %s46, 0
      %p548 = por %p546, %p547
      %s550 = sadd.s32 %s549, 1
      %p553 = scmp.eq.s32.totalorder %s40, 5
      %p554 = scmp.ne.s32.totalorder %s549, %s551
      %p555 = scmp.eq.s32.totalorder %s40, 0
      %p556 = por %p554, %p555
      %p557 = scmp.ne.s32.totalorder %s549, %s551
      %p558 = scmp.eq.s32.totalorder %s45, 5
      %p559 = por %p557, %p558
      %p560 = scmp.ne.s32.totalorder %s551, %s552
      %p561 = scmp.eq.s32.totalorder %s45, 0
      %p562 = por %p560, %p561
      %p563 = scmp.ne.s32.totalorder %s551, %s552
      %p564 = scmp.eq.s32.totalorder %s46, 5
      %p565 = por %p563, %p564
      %p567 = scmp.ne.s32.totalorder %s552, %s566
      %p568 = scmp.eq.s32.totalorder %s46, 0
      %p569 = por %p567, %p568
      %s571 = sadd.s32 %s570, 1
      %p574 = scmp.eq.s32.totalorder %s40, 5
      %p575 = scmp.ne.s32.totalorder %s570, %s572
      %p576 = scmp.eq.s32.totalorder %s40, 0
      %p577 = por %p575, %p576
      %p578 = scmp.ne.s32.totalorder %s570, %s572
      %p579 = scmp.eq.s32.totalorder %s45, 5
      %p580 = por %p578, %p579
      %p581 = scmp.ne.s32.totalorder %s572, %s573
      %p582 = scmp.eq.s32.totalorder %s45, 0
      %p583 = por %p581, %p582
      %p584 = scmp.ne.s32.totalorder %s572, %s573
      %p585 = scmp.eq.s32.totalorder %s46, 5
      %p586 = por %p584, %p585
      %p588 = scmp.ne.s32.totalorder %s573, %s587
      %p589 = scmp.eq.s32.totalorder %s46, 0
      %p590 = por %p588, %p589
      %s592 = sadd.s32 %s591, 1
      %p595 = scmp.eq.s32.totalorder %s40, 5
      %p596 = scmp.ne.s32.totalorder %s591, %s593
      %p597 = scmp.eq.s32.totalorder %s40, 0
      %p598 = por %p596, %p597
      %p599 = scmp.ne.s32.totalorder %s591, %s593
      %p600 = scmp.eq.s32.totalorder %s45, 5
      %p601 = por %p599, %p600
      %p602 = scmp.ne.s32.totalorder %s593, %s594
      %p603 = scmp.eq.s32.totalorder %s45, 0
      %p604 = por %p602, %p603
      %p605 = scmp.ne.s32.totalorder %s593, %s594
      %p606 = scmp.eq.s32.totalorder %s46, 5
      %p607 = por %p605, %p606
      %p609 = scmp.ne.s32.totalorder %s594, %s608
      %p610 = scmp.eq.s32.totalorder %s46, 0
      %p611 = por %p609, %p610
      %s613 = sadd.s32 %s612, 1
      %p616 = scmp.eq.s32.totalorder %s40, 5
      %p617 = scmp.ne.s32.totalorder %s612, %s614
      %p618 = scmp.eq.s32.totalorder %s40, 0
      %p619 = por %p617, %p618
      %p620 = scmp.ne.s32.totalorder %s612, %s614
      %p621 = scmp.eq.s32.totalorder %s45, 5
      %p622 = por %p620, %p621
      %p623 = scmp.ne.s32.totalorder %s614, %s615
      %p624 = scmp.eq.s32.totalorder %s45, 0
      %p625 = por %p623, %p624
      %p626 = scmp.ne.s32.totalorder %s614, %s615
      %p627 = scmp.eq.s32.totalorder %s46, 5
      %p628 = por %p626, %p627
      %p630 = scmp.ne.s32.totalorder %s615, %s629
      %p631 = scmp.eq.s32.totalorder %s46, 0
      %p632 = por %p630, %p631
      %s634 = sadd.s32 %s633, 1
      %p637 = scmp.eq.s32.totalorder %s40, 5
      %p638 = scmp.ne.s32.totalorder %s633, %s635
      %p639 = scmp.eq.s32.totalorder %s40, 0
      %p640 = por %p638, %p639
      %p641 = scmp.ne.s32.totalorder %s633, %s635
      %p642 = scmp.eq.s32.totalorder %s45, 5
      %p643 = por %p641, %p642
      %p644 = scmp.ne.s32.totalorder %s635, %s636
      %p645 = scmp.eq.s32.totalorder %s45, 0
      %p646 = por %p644, %p645
      %p647 = scmp.ne.s32.totalorder %s635, %s636
      %p648 = scmp.eq.s32.totalorder %s46, 5
      %p649 = por %p647, %p648
      %p651 = scmp.ne.s32.totalorder %s636, %s650
      %p652 = scmp.eq.s32.totalorder %s46, 0
      %p653 = por %p651, %p652
      %p654 = scmp.le.s32.totalorder 1, %s40
      %p655 = scmp.lt.s32.totalorder %s40, 7
      %p656 = pnand %p654, %p655
      %p657 = pneg %p656
      // Predicated region
      $region9: #{model_forward.1} parent=5 // pred_check
        _
      $region10: #{model_forward.1} parent=5 // pred_check_branch
        %659 = sbr.rel (%p656) target = $region12
      $region11: #{model_forward.1} parent=5 // pred_region
        %s660 = ssub.s32 %s40, 1
        // Predicated region
        $region13: #{model_forward.1} parent=11 // pred_check
          %p661 = pneg %p61
        $region14: #{model_forward.1} parent=11 // pred_check_branch
          %663 = sbr.rel (%p661) target = $region16
        $region15: #{model_forward.1} parent=11 // pred_region
          _
        $region16: #{model_forward.1} parent=11 // pred_fallthru
          _
        // Predicated region
        $region17: #{model_forward.1} parent=11 // pred_check
          %p664 = pneg %p82
        $region18: #{model_forward.1} parent=11 // pred_check_branch
          %666 = sbr.rel (%p664) target = $region20
        $region19: #{model_forward.1} parent=11 // pred_region
          _
        $region20: #{model_forward.1} parent=11 // pred_fallthru
          _
        // Predicated region
        $region21: #{model_forward.1} parent=11 // pred_check
          %p667 = pneg %p103
        $region22: #{model_forward.1} parent=11 // pred_check_branch
          %669 = sbr.rel (%p667) target = $region24
        $region23: #{model_forward.1} parent=11 // pred_region
          %s671 = ssub.s32 16, 16
          %672 = vsyncadd [#allocation6], %s671
          %s674 = sshll.u32 [#allocation5], 4
          %s675 = int_to_ptr.vmem [resolvable:$true] %s674
          %677 = dma.hbm_to_vmem [thread:$0]  %s2, 16, %s675, [#allocation6]
        $region24: #{model_forward.1} parent=11 // pred_fallthru
          _
        // Predicated region
        $region25: #{model_forward.1} parent=11 // pred_check
          %p678 = pneg %p124
        $region26: #{model_forward.1} parent=11 // pred_check_branch
          %680 = sbr.rel (%p678) target = $region28
        $region27: #{model_forward.1} parent=11 // pred_region
          %s682 = ssub.s32 16, 16
          %683 = vsyncadd [#allocation9], %s682
          %s685 = sshll.u32 [#allocation8], 4
          %s686 = int_to_ptr.vmem [resolvable:$true] %s685
          %688 = dma.hbm_to_vmem [thread:$0]  %s3, 16, %s686, [#allocation9]
        $region28: #{model_forward.1} parent=11 // pred_fallthru
          _
        // Predicated region
        $region29: #{model_forward.1} parent=11 // pred_check
          %p689 = pneg %p457
        $region30: #{model_forward.1} parent=11 // pred_check_branch
          %691 = sbr.rel (%p689) target = $region32
        $region31: #{model_forward.1} parent=11 // pred_region
          _
        $region32: #{model_forward.1} parent=11 // pred_fallthru
          _
        // Predicated region
        $region33: #{model_forward.1} parent=11 // pred_check
          %p692 = pneg %p478
        $region34: #{model_forward.1} parent=11 // pred_check_branch
          %694 = sbr.rel (%p692) target = $region36
        $region35: #{model_forward.1} parent=11 // pred_region
          %s696 = ssub.s32 1024, 1024
          %697 = vsyncadd [#allocation9], %s696
          %s698 = sshll.u32 [#allocation21], 4
          %s699 = int_to_ptr.vmem [resolvable:$true] %s698
          %704 = dma.hbm_to_vmem [thread:$0]  %s17, 1024, %s699, [#allocation9], 128, 128, 8
        $region36: #{model_forward.1} parent=11 // pred_fallthru
          _
        // Predicated region
        $region37: #{model_forward.1} parent=11 // pred_check
          %p705 = pneg %p499
        $region38: #{model_forward.1} parent=11 // pred_check_branch
          %707 = sbr.rel (%p705) target = $region40
        $region39: #{model_forward.1} parent=11 // pred_region
          %s709 = ssub.s32 16, 16
          %710 = vsyncadd [#allocation23], %s709
          %s712 = sshll.u32 [#allocation22], 4
          %s713 = int_to_ptr.vmem [resolvable:$true] %s712
          %715 = dma.hbm_to_vmem [thread:$0]  %s18, 16, %s713, [#allocation23]
        $region40: #{model_forward.1} parent=11 // pred_fallthru
          _
        // Predicated region
        $region41: #{model_forward.1} parent=11 // pred_check
          %p716 = pneg %p520
        $region42: #{model_forward.1} parent=11 // pred_check_branch
          %718 = sbr.rel (%p716) target = $region44
        $region43: #{model_forward.1} parent=11 // pred_region
          %s720 = ssub.s32 16, 16
          %721 = vsyncadd [#allocation23], %s720
          %s723 = sshll.u32 [#allocation24], 4
          %s724 = int_to_ptr.vmem [resolvable:$true] %s723
          %726 = dma.hbm_to_vmem [thread:$0]  %s19, 16, %s724, [#allocation23]
        $region44: #{model_forward.1} parent=11 // pred_fallthru
          _
        // Predicated region
        $region45: #{model_forward.1} parent=11 // pred_check
          %p727 = pneg %p541
        $region46: #{model_forward.1} parent=11 // pred_check_branch
          %729 = sbr.rel (%p727) target = $region48
        $region47: #{model_forward.1} parent=11 // pred_region
          %s731 = ssub.s32 16, 16
          %732 = vsyncadd [#allocation26], %s731
          %s734 = sshll.u32 [#allocation25], 4
          %s735 = int_to_ptr.vmem [resolvable:$true] %s734
          %737 = dma.hbm_to_vmem [thread:$0]  %s20, 16, %s735, [#allocation26]
        $region48: #{model_forward.1} parent=11 // pred_fallthru
          _
        // Predicated region
        $region49: #{model_forward.1} parent=11 // pred_check
          %p738 = pneg %p562
        $region50: #{model_forward.1} parent=11 // pred_check_branch
          %740 = sbr.rel (%p738) target = $region52
        $region51: #{model_forward.1} parent=11 // pred_region
          %s742 = ssub.s32 2048, 2048
          %743 = vsyncadd [#allocation26], %s742
          %s744 = sshll.u32 [#allocation27], 4
          %s745 = int_to_ptr.vmem [resolvable:$true] %s744
          %750 = dma.hbm_to_vmem [thread:$0]  %s21, 2048, %s745, [#allocation26], 256, 256, 16
        $region52: #{model_forward.1} parent=11 // pred_fallthru
          _
        // Predicated region
        $region53: #{model_forward.1} parent=11 // pred_check
          %p751 = pneg %p583
        $region54: #{model_forward.1} parent=11 // pred_check_branch
          %753 = sbr.rel (%p751) target = $region56
        $region55: #{model_forward.1} parent=11 // pred_region
          %s755 = ssub.s32 64, 64
          %756 = vsyncadd [#allocation29], %s755
          %s758 = sshll.u32 [#allocation28], 4
          %s759 = int_to_ptr.vmem [resolvable:$true] %s758
          %761 = dma.hbm_to_vmem [thread:$0]  %s22, 64, %s759, [#allocation29]
        $region56: #{model_forward.1} parent=11 // pred_fallthru
          _
        // Predicated region
        $region57: #{model_forward.1} parent=11 // pred_check
          %p762 = pneg %p604
        $region58: #{model_forward.1} parent=11 // pred_check_branch
          %764 = sbr.rel (%p762) target = $region60
        $region59: #{model_forward.1} parent=11 // pred_region
          %s766 = ssub.s32 256, 256
          %767 = vsyncadd [#allocation29], %s766
          %s769 = sshll.u32 [#allocation30], 4
          %s770 = int_to_ptr.vmem [resolvable:$true] %s769
          %772 = dma.hbm_to_vmem [thread:$0]  %s23, 256, %s770, [#allocation29]
        $region60: #{model_forward.1} parent=11 // pred_fallthru
          _
      $region12: #{model_forward.1} parent=5 // pred_fallthru
        _
      %p773 = scmp.lt.s32.totalorder %s40, 6
      // Predicated region
      $region61: #{model_forward.1} parent=5 // pred_check
        %p774 = pneg %p773
      $region62: #{model_forward.1} parent=5 // pred_check_branch
        %776 = sbr.rel (%p774) target = $region64
      $region63: #{model_forward.1} parent=5 // pred_region
        // Predicated region
        $region65: #{model_forward.1} parent=63 // pred_check
          %p777 = pneg %p144
        $region66: #{model_forward.1} parent=63 // pred_check_branch
          %779 = sbr.rel (%p777) target = $region68
        $region67: #{model_forward.1} parent=63 // pred_region
          %s780 = sand.u32 %s40, 1
          %s781 = scalar_lea.sflag [#allocation6], %s780
          %s782 = sand.u32 %s134, 1
          %s783 = smul.addr %s782, 128
          %s784 = scalar_lea.vmem [#allocation10], %s783
          %s786 = ssub.s32 2048, 2048
          %787 = vsyncadd %s781, %s786
          %s788 = smul.addr %s40, 16
          %s789 = smul.addr %s788, 128
          %s790 = scalar_lea.hbm %s4, %s789
          %s791 = sshll.u32 %s784, 4
          %s792 = int_to_ptr.vmem [resolvable:$true] %s791
          %797 = dma.hbm_to_vmem [thread:$0]  %s790, 2048, %s792, %s781, 256, 256, 16
        $region68: #{model_forward.1} parent=63 // pred_fallthru
          _
        // Predicated region
        $region69: #{model_forward.1} parent=63 // pred_check
          %p798 = pneg %p170
        $region70: #{model_forward.1} parent=63 // pred_check_branch
          %800 = sbr.rel (%p798) target = $region72
        $region71: #{model_forward.1} parent=63 // pred_region
          %s801 = sand.u32 %s40, 1
          %s802 = scalar_lea.sflag [#allocation6], %s801
          %s803 = sand.u32 %s160, 1
          %s804 = smul.addr %s803, 2
          %s805 = scalar_lea.vmem [#allocation11], %s804
          %s807 = ssub.s32 32, 32
          %808 = vsyncadd %s802, %s807
          %s809 = smul.addr %s40, 2
          %s810 = smul.addr %s809, 16
          %s811 = scalar_lea.hbm %s5, %s810
          %s813 = sshll.u32 %s805, 4
          %s814 = int_to_ptr.vmem [resolvable:$true] %s813
          %816 = dma.hbm_to_vmem [thread:$0]  %s811, 32, %s814, %s802
        $region72: #{model_forward.1} parent=63 // pred_fallthru
          _
        // Predicated region
        $region73: #{model_forward.1} parent=63 // pred_check
          %p817 = pneg %p196
        $region74: #{model_forward.1} parent=63 // pred_check_branch
          %819 = sbr.rel (%p817) target = $region76
        $region75: #{model_forward.1} parent=63 // pred_region
          %s820 = sand.u32 %s40, 1
          %s821 = scalar_lea.sflag [#allocation6], %s820
          %s822 = sand.u32 %s186, 1
          %s823 = smul.addr %s822, 64
          %s824 = scalar_lea.vmem [#allocation12], %s823
          %s826 = ssub.s32 1024, 1024
          %827 = vsyncadd %s821, %s826
          %s828 = smul.addr %s40, 8
          %s829 = smul.addr %s828, 128
          %s830 = scalar_lea.hbm %s6, %s829
          %s831 = sshll.u32 %s824, 4
          %s832 = int_to_ptr.vmem [resolvable:$true] %s831
          %837 = dma.hbm_to_vmem [thread:$0]  %s830, 1024, %s832, %s821, 128, 128, 8
        $region76: #{model_forward.1} parent=63 // pred_fallthru
          _
        // Predicated region
        $region77: #{model_forward.1} parent=63 // pred_check
          %p838 = pneg %p222
        $region78: #{model_forward.1} parent=63 // pred_check_branch
          %840 = sbr.rel (%p838) target = $region80
        $region79: #{model_forward.1} parent=63 // pred_region
          %s841 = sand.u32 %s40, 1
          %s842 = scalar_lea.sflag [#allocation6], %s841
          %s843 = sand.u32 %s212, 1
          %s844 = scalar_lea.vmem [#allocation13], %s843
          %s846 = ssub.s32 16, 16
          %847 = vsyncadd %s842, %s846
          %s848 = smul.addr %s40, 16
          %s849 = scalar_lea.hbm %s7, %s848
          %s851 = sshll.u32 %s844, 4
          %s852 = int_to_ptr.vmem [resolvable:$true] %s851
          %854 = dma.hbm_to_vmem [thread:$0]  %s849, 16, %s852, %s842
        $region80: #{model_forward.1} parent=63 // pred_fallthru
          _
        // Predicated region
        $region81: #{model_forward.1} parent=63 // pred_check
          %p855 = pneg %p248
        $region82: #{model_forward.1} parent=63 // pred_check_branch
          %857 = sbr.rel (%p855) target = $region84
        $region83: #{model_forward.1} parent=63 // pred_region
          %s858 = sand.u32 %s40, 1
          %s859 = scalar_lea.sflag [#allocation6], %s858
          %s860 = sand.u32 %s238, 1
          %s861 = scalar_lea.vmem [#allocation14], %s860
          %s863 = ssub.s32 16, 16
          %864 = vsyncadd %s859, %s863
          %s865 = smul.addr %s40, 16
          %s866 = scalar_lea.hbm %s8, %s865
          %s868 = sshll.u32 %s861, 4
          %s869 = int_to_ptr.vmem [resolvable:$true] %s868
          %871 = dma.hbm_to_vmem [thread:$0]  %s866, 16, %s869, %s859
        $region84: #{model_forward.1} parent=63 // pred_fallthru
          _
        // Predicated region
        $region85: #{model_forward.1} parent=63 // pred_check
          %p872 = pneg %p274
        $region86: #{model_forward.1} parent=63 // pred_check_branch
          %874 = sbr.rel (%p872) target = $region88
        $region87: #{model_forward.1} parent=63 // pred_region
          %s875 = sand.u32 %s40, 1
          %s876 = scalar_lea.sflag [#allocation6], %s875
          %s877 = sand.u32 %s264, 1
          %s878 = scalar_lea.vmem [#allocation15], %s877
          %s880 = ssub.s32 16, 16
          %881 = vsyncadd %s876, %s880
          %s882 = smul.addr %s40, 16
          %s883 = scalar_lea.hbm %s9, %s882
          %s885 = sshll.u32 %s878, 4
          %s886 = int_to_ptr.vmem [resolvable:$true] %s885
          %888 = dma.hbm_to_vmem [thread:$0]  %s883, 16, %s886, %s876
        $region88: #{model_forward.1} parent=63 // pred_fallthru
          _
        // Predicated region
        $region89: #{model_forward.1} parent=63 // pred_check
          %p889 = pneg %p300
        $region90: #{model_forward.1} parent=63 // pred_check_branch
          %891 = sbr.rel (%p889) target = $region92
        $region91: #{model_forward.1} parent=63 // pred_region
          %s892 = sand.u32 %s40, 1
          %s893 = scalar_lea.sflag [#allocation6], %s892
          %s894 = sand.u32 %s290, 1
          %s895 = smul.addr %s894, 64
          %s896 = scalar_lea.vmem [#allocation16], %s895
          %s898 = ssub.s32 1024, 1024
          %899 = vsyncadd %s893, %s898
          %s900 = smul.addr %s40, 8
          %s901 = smul.addr %s900, 128
          %s902 = scalar_lea.hbm %s10, %s901
          %s903 = sshll.u32 %s896, 4
          %s904 = int_to_ptr.vmem [resolvable:$true] %s903
          %909 = dma.hbm_to_vmem [thread:$0]  %s902, 1024, %s904, %s893, 128, 128, 8
        $region92: #{model_forward.1} parent=63 // pred_fallthru
          _
        // Predicated region
        $region93: #{model_forward.1} parent=63 // pred_check
          %p910 = pneg %p326
        $region94: #{model_forward.1} parent=63 // pred_check_branch
          %912 = sbr.rel (%p910) target = $region96
        $region95: #{model_forward.1} parent=63 // pred_region
          %s913 = sand.u32 %s40, 1
          %s914 = scalar_lea.sflag [#allocation6], %s913
          %s915 = sand.u32 %s316, 1
          %s916 = scalar_lea.vmem [#allocation17], %s915
          %s918 = ssub.s32 16, 16
          %919 = vsyncadd %s914, %s918
          %s920 = smul.addr %s40, 16
          %s921 = scalar_lea.hbm %s11, %s920
          %s923 = sshll.u32 %s916, 4
          %s924 = int_to_ptr.vmem [resolvable:$true] %s923
          %926 = dma.hbm_to_vmem [thread:$0]  %s921, 16, %s924, %s914
        $region96: #{model_forward.1} parent=63 // pred_fallthru
          _
        // Predicated region
        $region97: #{model_forward.1} parent=63 // pred_check
          %p927 = pneg %p352
        $region98: #{model_forward.1} parent=63 // pred_check_branch
          %929 = sbr.rel (%p927) target = $region100
        $region99: #{model_forward.1} parent=63 // pred_region
          %p930 = scmp.lt.s32.totalorder %s40, 5
          %s931 = scalar_select %p930, %s40, 5
          %s932 = smul.addr %s931, 16
          %s933 = smul.addr %s932, 8
          %s934 = scalar_lea.vmem %s12, %s933
        $region100: #{model_forward.1} parent=63 // pred_fallthru
          _
        // Predicated region
        $region101: #{model_forward.1} parent=63 // pred_check
          %p935 = pneg %p378
        $region102: #{model_forward.1} parent=63 // pred_check_branch
          %937 = sbr.rel (%p935) target = $region104
        $region103: #{model_forward.1} parent=63 // pred_region
          %s938 = sand.u32 %s40, 1
          %s939 = scalar_lea.sflag [#allocation6], %s938
          %s940 = sand.u32 %s368, 1
          %s941 = scalar_lea.vmem [#allocation18], %s940
          %s943 = ssub.s32 16, 16
          %944 = vsyncadd %s939, %s943
          %s945 = smul.addr %s40, 16
          %s946 = scalar_lea.hbm %s13, %s945
          %s948 = sshll.u32 %s941, 4
          %s949 = int_to_ptr.vmem [resolvable:$true] %s948
          %951 = dma.hbm_to_vmem [thread:$0]  %s946, 16, %s949, %s939
        $region104: #{model_forward.1} parent=63 // pred_fallthru
          _
        // Predicated region
        $region105: #{model_forward.1} parent=63 // pred_check
          %p952 = pneg %p404
        $region106: #{model_forward.1} parent=63 // pred_check_branch
          %954 = sbr.rel (%p952) target = $region108
        $region107: #{model_forward.1} parent=63 // pred_region
          %s955 = sand.u32 %s40, 1
          %s956 = scalar_lea.sflag [#allocation6], %s955
          %s957 = sand.u32 %s394, 1
          %s958 = scalar_lea.vmem [#allocation19], %s957
          %s960 = ssub.s32 16, 16
          %961 = vsyncadd %s956, %s960
          %s962 = smul.addr %s40, 16
          %s963 = scalar_lea.hbm %s14, %s962
          %s965 = sshll.u32 %s958, 4
          %s966 = int_to_ptr.vmem [resolvable:$true] %s965
          %968 = dma.hbm_to_vmem [thread:$0]  %s963, 16, %s966, %s956
        $region108: #{model_forward.1} parent=63 // pred_fallthru
          _
        // Predicated region
        $region109: #{model_forward.1} parent=63 // pred_check
          %p969 = pneg %p430
        $region110: #{model_forward.1} parent=63 // pred_check_branch
          %971 = sbr.rel (%p969) target = $region112
        $region111: #{model_forward.1} parent=63 // pred_region
          %s972 = sand.u32 %s40, 1
          %s973 = scalar_lea.sflag [#allocation6], %s972
          %s974 = sand.u32 %s420, 1
          %s975 = scalar_lea.vmem [#allocation20], %s974
          %s977 = ssub.s32 16, 16
          %978 = vsyncadd %s973, %s977
          %s979 = smul.addr %s40, 16
          %s980 = scalar_lea.hbm %s15, %s979
          %s982 = sshll.u32 %s975, 4
          %s983 = int_to_ptr.vmem [resolvable:$true] %s982
          %985 = dma.hbm_to_vmem [thread:$0]  %s980, 16, %s983, %s973
        $region112: #{model_forward.1} parent=63 // pred_fallthru
          _
      $region64: #{model_forward.1} parent=5 // pred_fallthru
        _
      %p986 = scmp.le.s32.totalorder 1, %s40
      %p987 = scmp.lt.s32.totalorder %s40, 7
      %p988 = pnand %p986, %p987
      %p989 = pneg %p988
      // Predicated region
      $region113: #{model_forward.1} parent=5 // pred_check
        _
      $region114: #{model_forward.1} parent=5 // pred_check_branch
        %991 = sbr.rel (%p988) target = $region116
      $region115: #{model_forward.1} parent=5 // pred_region
        %s992 = ssub.s32 %s40, 1
        // Predicated region
        $region117: #{model_forward.1} parent=115 // pred_check
          %p993 = pneg %p103
        $region118: #{model_forward.1} parent=115 // pred_check_branch
          %995 = sbr.rel (%p993) target = $region120
        $region119: #{model_forward.1} parent=115 // pred_region
          %996 = dma.done [#allocation6], 16
        $region120: #{model_forward.1} parent=115 // pred_fallthru
          _
        // Predicated region
        $region121: #{model_forward.1} parent=115 // pred_check
          %p997 = pneg %p124
        $region122: #{model_forward.1} parent=115 // pred_check_branch
          %999 = sbr.rel (%p997) target = $region124
        $region123: #{model_forward.1} parent=115 // pred_region
          %1000 = dma.done [#allocation9], 16
        $region124: #{model_forward.1} parent=115 // pred_fallthru
          _
        %s1001 = sand.u32 %s45, 1
        %s1002 = scalar_lea.sflag [#allocation6], %s1001
        %s1003 = sand.u32 %s137, 1
        %s1004 = smul.addr %s1003, 128
        %s1005 = scalar_lea.vmem [#allocation10], %s1004
        // Predicated region
        $region125: #{model_forward.1} parent=115 // pred_check
          %p1006 = pneg %p150
        $region126: #{model_forward.1} parent=115 // pred_check_branch
          %1008 = sbr.rel (%p1006) target = $region128
        $region127: #{model_forward.1} parent=115 // pred_region
          %1009 = dma.done %s1002, 2048
        $region128: #{model_forward.1} parent=115 // pred_fallthru
          _
        %s1010 = sand.u32 %s45, 1
        %s1011 = scalar_lea.sflag [#allocation6], %s1010
        %s1012 = sand.u32 %s163, 1
        %s1013 = smul.addr %s1012, 2
        %s1014 = scalar_lea.vmem [#allocation11], %s1013
        // Predicated region
        $region129: #{model_forward.1} parent=115 // pred_check
          %p1015 = pneg %p176
        $region130: #{model_forward.1} parent=115 // pred_check_branch
          %1017 = sbr.rel (%p1015) target = $region132
        $region131: #{model_forward.1} parent=115 // pred_region
          %1018 = dma.done %s1011, 32
        $region132: #{model_forward.1} parent=115 // pred_fallthru
          _
        %s1019 = sand.u32 %s45, 1
        %s1020 = scalar_lea.sflag [#allocation6], %s1019
        %s1021 = sand.u32 %s189, 1
        %s1022 = smul.addr %s1021, 64
        %s1023 = scalar_lea.vmem [#allocation12], %s1022
        // Predicated region
        $region133: #{model_forward.1} parent=115 // pred_check
          %p1024 = pneg %p202
        $region134: #{model_forward.1} parent=115 // pred_check_branch
          %1026 = sbr.rel (%p1024) target = $region136
        $region135: #{model_forward.1} parent=115 // pred_region
          %1027 = dma.done %s1020, 1024
        $region136: #{model_forward.1} parent=115 // pred_fallthru
          _
        %s1028 = sand.u32 %s45, 1
        %s1029 = scalar_lea.sflag [#allocation6], %s1028
        %s1030 = sand.u32 %s215, 1
        %s1031 = scalar_lea.vmem [#allocation13], %s1030
        // Predicated region
        $region137: #{model_forward.1} parent=115 // pred_check
          %p1032 = pneg %p228
        $region138: #{model_forward.1} parent=115 // pred_check_branch
          %1034 = sbr.rel (%p1032) target = $region140
        $region139: #{model_forward.1} parent=115 // pred_region
          %1035 = dma.done %s1029, 16
        $region140: #{model_forward.1} parent=115 // pred_fallthru
          _
        %s1036 = sand.u32 %s45, 1
        %s1037 = scalar_lea.sflag [#allocation6], %s1036
        %s1038 = sand.u32 %s241, 1
        %s1039 = scalar_lea.vmem [#allocation14], %s1038
        // Predicated region
        $region141: #{model_forward.1} parent=115 // pred_check
          %p1040 = pneg %p254
        $region142: #{model_forward.1} parent=115 // pred_check_branch
          %1042 = sbr.rel (%p1040) target = $region144
        $region143: #{model_forward.1} parent=115 // pred_region
          %1043 = dma.done %s1037, 16
        $region144: #{model_forward.1} parent=115 // pred_fallthru
          _
        %s1044 = sand.u32 %s45, 1
        %s1045 = scalar_lea.sflag [#allocation6], %s1044
        %s1046 = sand.u32 %s267, 1
        %s1047 = scalar_lea.vmem [#allocation15], %s1046
        // Predicated region
        $region145: #{model_forward.1} parent=115 // pred_check
          %p1048 = pneg %p280
        $region146: #{model_forward.1} parent=115 // pred_check_branch
          %1050 = sbr.rel (%p1048) target = $region148
        $region147: #{model_forward.1} parent=115 // pred_region
          %1051 = dma.done %s1045, 16
        $region148: #{model_forward.1} parent=115 // pred_fallthru
          _
        %s1052 = sand.u32 %s45, 1
        %s1053 = scalar_lea.sflag [#allocation6], %s1052
        %s1054 = sand.u32 %s293, 1
        %s1055 = smul.addr %s1054, 64
        %s1056 = scalar_lea.vmem [#allocation16], %s1055
        // Predicated region
        $region149: #{model_forward.1} parent=115 // pred_check
          %p1057 = pneg %p306
        $region150: #{model_forward.1} parent=115 // pred_check_branch
          %1059 = sbr.rel (%p1057) target = $region152
        $region151: #{model_forward.1} parent=115 // pred_region
          %1060 = dma.done %s1053, 1024
        $region152: #{model_forward.1} parent=115 // pred_fallthru
          _
        %s1061 = sand.u32 %s45, 1
        %s1062 = scalar_lea.sflag [#allocation6], %s1061
        %s1063 = sand.u32 %s319, 1
        %s1064 = scalar_lea.vmem [#allocation17], %s1063
        // Predicated region
        $region153: #{model_forward.1} parent=115 // pred_check
          %p1065 = pneg %p332
        $region154: #{model_forward.1} parent=115 // pred_check_branch
          %1067 = sbr.rel (%p1065) target = $region156
        $region155: #{model_forward.1} parent=115 // pred_region
          %1068 = dma.done %s1062, 16
        $region156: #{model_forward.1} parent=115 // pred_fallthru
          _
        %s1069 = sand.u32 %s45, 1
        %s1070 = scalar_lea.sflag [#allocation6], %s1069
        %s1071 = sand.u32 %s371, 1
        %s1072 = scalar_lea.vmem [#allocation18], %s1071
        // Predicated region
        $region157: #{model_forward.1} parent=115 // pred_check
          %p1073 = pneg %p384
        $region158: #{model_forward.1} parent=115 // pred_check_branch
          %1075 = sbr.rel (%p1073) target = $region160
        $region159: #{model_forward.1} parent=115 // pred_region
          %1076 = dma.done %s1070, 16
        $region160: #{model_forward.1} parent=115 // pred_fallthru
          _
        %s1077 = sand.u32 %s45, 1
        %s1078 = scalar_lea.sflag [#allocation6], %s1077
        %s1079 = sand.u32 %s397, 1
        %s1080 = scalar_lea.vmem [#allocation19], %s1079
        // Predicated region
        $region161: #{model_forward.1} parent=115 // pred_check
          %p1081 = pneg %p410
        $region162: #{model_forward.1} parent=115 // pred_check_branch
          %1083 = sbr.rel (%p1081) target = $region164
        $region163: #{model_forward.1} parent=115 // pred_region
          %1084 = dma.done %s1078, 16
        $region164: #{model_forward.1} parent=115 // pred_fallthru
          _
        %s1085 = sand.u32 %s45, 1
        %s1086 = scalar_lea.sflag [#allocation6], %s1085
        %s1087 = sand.u32 %s423, 1
        %s1088 = scalar_lea.vmem [#allocation20], %s1087
        // Predicated region
        $region165: #{model_forward.1} parent=115 // pred_check
          %p1089 = pneg %p436
        $region166: #{model_forward.1} parent=115 // pred_check_branch
          %1091 = sbr.rel (%p1089) target = $region168
        $region167: #{model_forward.1} parent=115 // pred_region
          %1092 = dma.done %s1086, 16
        $region168: #{model_forward.1} parent=115 // pred_fallthru
          _
        // Predicated region
        $region169: #{model_forward.1} parent=115 // pred_check
          %p1093 = pneg %p478
        $region170: #{model_forward.1} parent=115 // pred_check_branch
          %1095 = sbr.rel (%p1093) target = $region172
        $region171: #{model_forward.1} parent=115 // pred_region
          %1096 = dma.done [#allocation9], 1024
        $region172: #{model_forward.1} parent=115 // pred_fallthru
          _
        // Predicated region
        $region173: #{model_forward.1} parent=115 // pred_check
          %p1097 = pneg %p499
        $region174: #{model_forward.1} parent=115 // pred_check_branch
          %1099 = sbr.rel (%p1097) target = $region176
        $region175: #{model_forward.1} parent=115 // pred_region
          %1100 = dma.done [#allocation23], 16
        $region176: #{model_forward.1} parent=115 // pred_fallthru
          _
        // Predicated region
        $region177: #{model_forward.1} parent=115 // pred_check
          %p1101 = pneg %p520
        $region178: #{model_forward.1} parent=115 // pred_check_branch
          %1103 = sbr.rel (%p1101) target = $region180
        $region179: #{model_forward.1} parent=115 // pred_region
          %1104 = dma.done [#allocation23], 16
        $region180: #{model_forward.1} parent=115 // pred_fallthru
          _
        // Predicated region
        $region181: #{model_forward.1} parent=115 // pred_check
          %p1105 = pneg %p541
        $region182: #{model_forward.1} parent=115 // pred_check_branch
          %1107 = sbr.rel (%p1105) target = $region184
        $region183: #{model_forward.1} parent=115 // pred_region
          %1108 = dma.done [#allocation26], 16
        $region184: #{model_forward.1} parent=115 // pred_fallthru
          _
        // Predicated region
        $region185: #{model_forward.1} parent=115 // pred_check
          %p1109 = pneg %p562
        $region186: #{model_forward.1} parent=115 // pred_check_branch
          %1111 = sbr.rel (%p1109) target = $region188
        $region187: #{model_forward.1} parent=115 // pred_region
          %1112 = dma.done [#allocation26], 2048
        $region188: #{model_forward.1} parent=115 // pred_fallthru
          _
        // Predicated region
        $region189: #{model_forward.1} parent=115 // pred_check
          %p1113 = pneg %p583
        $region190: #{model_forward.1} parent=115 // pred_check_branch
          %1115 = sbr.rel (%p1113) target = $region192
        $region191: #{model_forward.1} parent=115 // pred_region
          %1116 = dma.done [#allocation29], 64
        $region192: #{model_forward.1} parent=115 // pred_fallthru
          _
        // Predicated region
        $region193: #{model_forward.1} parent=115 // pred_check
          %p1117 = pneg %p604
        $region194: #{model_forward.1} parent=115 // pred_check_branch
          %1119 = sbr.rel (%p1117) target = $region196
        $region195: #{model_forward.1} parent=115 // pred_region
          %1120 = dma.done [#allocation29], 256
        $region196: #{model_forward.1} parent=115 // pred_fallthru
          _
        %p1121 = pneg %p61
        %p1122 = pneg %p58
        %p1123 = pneg %p82
        %p1124 = pneg %p79
        %p1125 = pneg %p103
        %p1126 = pneg %p100
        %p1127 = pneg %p124
        %p1128 = pneg %p121
        %s1129 = sand.u32 %s45, 1
        %s1130 = scalar_lea.sflag [#allocation6], %s1129
        %s1131 = sand.u32 %s137, 1
        %s1132 = smul.addr %s1131, 128
        %s1133 = scalar_lea.vmem [#allocation10], %s1132
        %p1134 = pneg %p150
        %p1135 = pneg %p147
        %s1136 = sand.u32 %s45, 1
        %s1137 = scalar_lea.sflag [#allocation6], %s1136
        %s1138 = sand.u32 %s163, 1
        %s1139 = smul.addr %s1138, 2
        %s1140 = scalar_lea.vmem [#allocation11], %s1139
        %p1141 = pneg %p176
        %p1142 = pneg %p173
        %s1143 = sand.u32 %s45, 1
        %s1144 = scalar_lea.sflag [#allocation6], %s1143
        %s1145 = sand.u32 %s189, 1
        %s1146 = smul.addr %s1145, 64
        %s1147 = scalar_lea.vmem [#allocation12], %s1146
        %p1148 = pneg %p202
        %p1149 = pneg %p199
        %s1150 = sand.u32 %s45, 1
        %s1151 = scalar_lea.sflag [#allocation6], %s1150
        %s1152 = sand.u32 %s215, 1
        %s1153 = scalar_lea.vmem [#allocation13], %s1152
        %p1154 = pneg %p228
        %p1155 = pneg %p225
        %s1156 = sand.u32 %s45, 1
        %s1157 = scalar_lea.sflag [#allocation6], %s1156
        %s1158 = sand.u32 %s241, 1
        %s1159 = scalar_lea.vmem [#allocation14], %s1158
        %p1160 = pneg %p254
        %p1161 = pneg %p251
        %s1162 = sand.u32 %s45, 1
        %s1163 = scalar_lea.sflag [#allocation6], %s1162
        %s1164 = sand.u32 %s267, 1
        %s1165 = scalar_lea.vmem [#allocation15], %s1164
        %p1166 = pneg %p280
        %p1167 = pneg %p277
        %s1168 = sand.u32 %s45, 1
        %s1169 = scalar_lea.sflag [#allocation6], %s1168
        %s1170 = sand.u32 %s293, 1
        %s1171 = smul.addr %s1170, 64
        %s1172 = scalar_lea.vmem [#allocation16], %s1171
        %p1173 = pneg %p306
        %p1174 = pneg %p303
        %s1175 = sand.u32 %s45, 1
        %s1176 = scalar_lea.sflag [#allocation6], %s1175
        %s1177 = sand.u32 %s319, 1
        %s1178 = scalar_lea.vmem [#allocation17], %s1177
        %p1179 = pneg %p332
        %p1180 = pneg %p329
        %p1181 = scmp.lt.s32.totalorder %s45, 5
        %s1182 = scalar_select %p1181, %s45, 5
        %s1183 = smul.addr %s1182, 16
        %s1184 = smul.addr %s1183, 8
        %s1185 = scalar_lea.vmem %s12, %s1184
        %p1186 = pneg %p358
        %p1187 = pneg %p355
        %s1188 = sand.u32 %s45, 1
        %s1189 = scalar_lea.sflag [#allocation6], %s1188
        %s1190 = sand.u32 %s371, 1
        %s1191 = scalar_lea.vmem [#allocation18], %s1190
        %p1192 = pneg %p384
        %p1193 = pneg %p381
        %s1194 = sand.u32 %s45, 1
        %s1195 = scalar_lea.sflag [#allocation6], %s1194
        %s1196 = sand.u32 %s397, 1
        %s1197 = scalar_lea.vmem [#allocation19], %s1196
        %p1198 = pneg %p410
        %p1199 = pneg %p407
        %s1200 = sand.u32 %s45, 1
        %s1201 = scalar_lea.sflag [#allocation6], %s1200
        %s1202 = sand.u32 %s423, 1
        %s1203 = scalar_lea.vmem [#allocation20], %s1202
        %p1204 = pneg %p436
        %p1205 = pneg %p433
        %p1206 = pneg %p457
        %p1207 = pneg %p454
        %p1208 = pneg %p478
        %p1209 = pneg %p475
        %p1210 = pneg %p499
        %p1211 = pneg %p496
        %p1212 = pneg %p520
        %p1213 = pneg %p517
        %p1214 = pneg %p541
        %p1215 = pneg %p538
        %p1216 = pneg %p562
        %p1217 = pneg %p559
        %p1218 = pneg %p583
        %p1219 = pneg %p580
        %p1220 = pneg %p604
        %p1221 = pneg %p601
        %p1222 = pneg %p625
        %p1223 = pneg %p622
        %p1224 = pneg %p646
        %p1225 = pneg %p643
        %p1226 = scmp.lt.s32.totalorder %s45, 5
        %s1227 = scalar_select %p1226, %s45, 5
        %s1228 = smul.addr %s1227, 16
        %s1229 = smul.addr %s1228, 8
        %s1230 = scalar_lea.vmem %s12, %s1229
        %p1232 = scmp.eq.s32.totalorder %s45, 0
        // Predicated region
        $region197: #{model_forward.1} parent=115 // pred_check
          %p1233 = pneg %p1232
        $region198: #{model_forward.1} parent=115 // pred_check_branch
          %1235 = sbr.rel (%p1233) target = $region200
        $region199: #{model_forward.1} parent=115 // pred_region
          // Predicated region
          $region201: #{model_forward.1} parent=199 // pred_check
            _
          $region202: #{model_forward.1} parent=199 // pred_check_branch
            %1237 = sbr.rel target = $region204
          $region203: #{model_forward.1} parent=199 // pred_region
            %1238 = sst [smem:[#allocation36]] [#allocation35]
            %1239 = sst [smem:[#allocation37]] [#allocation34]
          $region204: #{model_forward.1} parent=199 // pred_fallthru
            _
          %1241 = shalt.err (0)
          %s1243 = sshll.u32 [#allocation3], 4
          %s1244 = int_to_ptr.vmem [resolvable:$true] %s1243
          %1246 = dma.hbm_to_vmem [thread:$0]  %s24, 65536, %s1244, [#allocation4]
          %v1247 = vld [vmem:[%s0] sm:$0xff]
          %v1248 = vld [vmem:[%s0 + $0x8] sm:$0xff]
          %v1249 = vld [vmem:[%s0 + $0x10] sm:$0xff]
          %v1250 = vld [vmem:[%s0 + $0x18] sm:$0xff]
          %v1251 = vld [vmem:[#allocation5] sm:$0x1]
          %v1252 = vld [vmem:[#allocation8] sm:$0x1]
          %vm1253 = vcmask 523264
          %v1254 = vsel %vm1253, %v1247, 0.0
          %1255 = vadd.xlane.f32.xlu0 %v1254
          %v1256 = vpop.xlane.xlu0 %1255
          %v1257 = vsel %vm1253, %v1248, 0.0
          %1258 = vadd.xlane.f32.xlu0 %v1257
          %v1259 = vpop.xlane.xlu0 %1258
          %v1260 = vsel %vm1253, %v1249, 0.0
          %1261 = vadd.xlane.f32.xlu0 %v1260
          %v1262 = vpop.xlane.xlu0 %1261
          %v1263 = vsel %vm1253, %v1250, 0.0
          %1264 = vadd.xlane.f32.xlu0 %v1263
          %v1265 = vpop.xlane.xlu0 %1264
          %v1266 = vrcp.pop 64.0
          %v1267 = vmul.f32 %v1256, %v1266
          %v1268 = vmul.f32 %v1259, %v1266
          %v1269 = vmul.f32 %v1262, %v1266
          %v1270 = vmul.f32 %v1265, %v1266
          %v1271 = vsub.f32 %v1247, %v1267
          %v1272 = vsub.f32 %v1248, %v1268
          %v1273 = vsub.f32 %v1249, %v1269
          %v1274 = vsub.f32 %v1250, %v1270
          %v1275 = vmul.f32 %v1271, %v1271
          %v1276 = vmul.f32 %v1272, %v1272
          %v1277 = vmul.f32 %v1273, %v1273
          %v1278 = vmul.f32 %v1274, %v1274
          %v1279 = vsel %vm1253, %v1275, 0.0
          %1280 = vadd.xlane.f32.xlu0 %v1279
          %v1281 = vpop.xlane.xlu0 %1280
          %v1282 = vsel %vm1253, %v1276, 0.0
          %1283 = vadd.xlane.f32.xlu0 %v1282
          %v1284 = vpop.xlane.xlu0 %1283
          %v1285 = vsel %vm1253, %v1277, 0.0
          %1286 = vadd.xlane.f32.xlu0 %v1285
          %v1287 = vpop.xlane.xlu0 %1286
          %v1288 = vsel %vm1253, %v1278, 0.0
          %1289 = vadd.xlane.f32.xlu0 %v1288
          %v1290 = vpop.xlane.xlu0 %1289
          %v1291 = vmul.f32 %v1281, %v1266
          %v1292 = vmul.f32 %v1284, %v1266
          %v1293 = vmul.f32 %v1287, %v1266
          %v1294 = vmul.f32 %v1290, %v1266
          %v1295 = vadd.f32 %v1291, 1e-12
          %v1296 = vadd.f32 %v1292, 1e-12
          %v1297 = vadd.f32 %v1293, 1e-12
          %v1298 = vadd.f32 %v1294, 1e-12
          %v1299 = vrsqrt.pop %v1295
          %v1300 = vrsqrt.pop %v1296
          %v1301 = vrsqrt.pop %v1297
          %v1302 = vrsqrt.pop %v1298
          %v1303 = vmul.f32 %v1271, %v1299
          %v1304 = vmul.f32 %v1272, %v1300
          %v1305 = vmul.f32 %v1273, %v1301
          %v1306 = vmul.f32 %v1274, %v1302
          %v1308 = vlaneseq
          %v1309 = vshrl.u32 %v1308, 7
          %v1310 = vsub.s32 0, %v1309
          %v1311 = vrot.slane %v1251, %v1310
          %v1313 = vmul.f32 %v1303, %v1311
          %v1314 = vmul.f32 %v1304, %v1311
          %v1315 = vmul.f32 %v1305, %v1311
          %v1316 = vmul.f32 %v1306, %v1311
          %v1318 = vlaneseq
          %v1319 = vshrl.u32 %v1318, 7
          %v1320 = vsub.s32 0, %v1319
          %v1321 = vrot.slane %v1252, %v1320
          %v1323 = vadd.f32 %v1313, %v1321
          %v1324 = vadd.f32 %v1314, %v1321
          %v1325 = vadd.f32 %v1315, %v1321
          %v1326 = vadd.f32 %v1316, %v1321
          %1327 = vst.msk [vmem:[#allocation2] sm:$0xff] %vm1253, %v1323
          %1328 = vst.msk [vmem:[#allocation2 + $0x8] sm:$0xff] %vm1253, %v1324
          %1329 = vst.msk [vmem:[#allocation2 + $0x10] sm:$0xff] %vm1253, %v1325
          %1330 = vst.msk [vmem:[#allocation2 + $0x18] sm:$0xff] %vm1253, %v1326
        $region200: #{model_forward.1} parent=115 // pred_fallthru
          _
        %v1331 = vld [vmem:[#allocation2] sm:$0xff]
        %v1332 = vld [vmem:[#allocation2 + $0x8] sm:$0xff]
        %v1333 = vld [vmem:[#allocation2 + $0x10] sm:$0xff]
        %v1334 = vld [vmem:[#allocation2 + $0x18] sm:$0xff]
        %v1335 = vld [vmem:[%s1005] sm:$0xff]
        %v1336 = vld [vmem:[%s1005 + $0x8] sm:$0xff]
        %v1337 = vld [vmem:[%s1005 + $0x10] sm:$0xff]
        %v1338 = vld [vmem:[%s1005 + $0x18] sm:$0xff]
        %v1339 = vld [vmem:[%s1005 + $0x20] sm:$0xff]
        %v1340 = vld [vmem:[%s1005 + $0x28] sm:$0xff]
        %v1341 = vld [vmem:[%s1005 + $0x30] sm:$0xff]
        %v1342 = vld [vmem:[%s1005 + $0x38] sm:$0xff]
        %v1343 = vld [vmem:[%s1005 + $0x40] sm:$0xff]
        %v1344 = vld [vmem:[%s1005 + $0x48] sm:$0xff]
        %v1345 = vld [vmem:[%s1005 + $0x50] sm:$0xff]
        %v1346 = vld [vmem:[%s1005 + $0x58] sm:$0xff]
        %v1347 = vld [vmem:[%s1005 + $0x60] sm:$0xff]
        %v1348 = vld [vmem:[%s1005 + $0x68] sm:$0xff]
        %v1349 = vld [vmem:[%s1005 + $0x70] sm:$0xff]
        %v1350 = vld [vmem:[%s1005 + $0x78] sm:$0xff]
        %v1351 = vld [vmem:[%s1014] sm:$0x3]
        %v1353 = vlaneseq
        %v1354 = vshrl.u32 %v1353, 7
        %v1355 = vsub.s32 0, %v1354
        %v1356 = vrot.slane %v1351, %v1355
        %v1357 = vlaneseq
        %v1358 = vshrl.u32 %v1357, 7
        %v1359 = vsub.s32 1, %v1358
        %v1360 = vrot.slane %v1351, %v1359
        %vm1363 = vcmask 523264
        %v1365 = vsel %vm1363, %v1331, 0
        %v1368 = vsel %vm1363, %v1332, 0
        %v1371 = vsel %vm1363, %v1333, 0
        %v1374 = vsel %vm1363, %v1334, 0
        %1376 = vmatprep.subr.mxu0 0.0
        %1377 = vmatpush1.msra.mxu0 0.0
        %1378 = vmatprep.subr.mxu0 0.0
        %1379 = vmatpush1.msra.mxu0 0.0
        %1380 = vmatprep.subr.mxu0 0.0
        %1381 = vmatpush1.msra.mxu0 0.0
        %1382 = vmatprep.subr.mxu0 0.0
        %1383 = vmatpush1.msra.mxu0 0.0
        %1384 = vmatprep.subr.mxu0 0.0
        %1385 = vmatpush1.msra.mxu0 0.0
        %1386 = vmatprep.subr.mxu0 0.0
        %1387 = vmatpush1.msra.mxu0 0.0
        %1388 = vmatprep.subr.mxu0 0.0
        %1389 = vmatpush1.msra.mxu0 0.0
        %1390 = vmatprep.subr.mxu0 0.0
        %1391 = vmatpush1.msra.mxu0 0.0
        %1392 = vmatprep.subr.mxu0 %v1350
        %1393 = vmatpush1.msra.mxu0 %v1349
        %1394 = vmatprep.subr.mxu0 %v1348
        %1395 = vmatpush1.msra.mxu0 %v1347
        %1396 = vmatprep.subr.mxu0 %v1346
        %1397 = vmatpush1.msra.mxu0 %v1345
        %1398 = vmatprep.subr.mxu0 %v1344
        %1399 = vmatpush1.msra.mxu0 %v1343
        %1400 = vmatprep.subr.mxu0 %v1342
        %1401 = vmatpush1.msra.mxu0 %v1341
        %1402 = vmatprep.subr.mxu0 %v1340
        %1403 = vmatpush1.msra.mxu0 %v1339
        %1404 = vmatprep.subr.mxu0 %v1338
        %1405 = vmatpush1.msra.mxu0 %v1337
        %1406 = vmatprep.subr.mxu0 %v1336
        %1407 = vmatpush1.msra.mxu0 %v1335
        %1408 = vmatprep.subr.mxu0 0.0
        %1409 = vmatpush2.msra.mxu0 0.0
        %1410 = vmatprep.subr.mxu0 0.0
        %1411 = vmatpush2.msra.mxu0 0.0
        %1412 = vmatprep.subr.mxu0 0.0
        %1413 = vmatpush2.msra.mxu0 0.0
        %1414 = vmatprep.subr.mxu0 0.0
        %1415 = vmatpush2.msra.mxu0 0.0
        %1416 = vmatprep.subr.mxu0 0.0
        %1417 = vmatpush2.msra.mxu0 0.0
        %1418 = vmatprep.subr.mxu0 0.0
        %1419 = vmatpush2.msra.mxu0 0.0
        %1420 = vmatprep.subr.mxu0 0.0
        %1421 = vmatpush2.msra.mxu0 0.0
        %1422 = vmatprep.subr.mxu0 0.0
        %1423 = vmatpush2.msra.mxu0 0.0
        %1424 = vmatprep.subr.mxu0 0.0
        %1425 = vmatpush2.msra.mxu0 0.0
        %1426 = vmatprep.subr.mxu0 0.0
        %1427 = vmatpush2.msra.mxu0 0.0
        %1428 = vmatprep.subr.mxu0 0.0
        %1429 = vmatpush2.msra.mxu0 0.0
        %1430 = vmatprep.subr.mxu0 0.0
        %1431 = vmatpush2.msra.mxu0 0.0
        %1432 = vmatprep.subr.mxu0 0.0
        %1433 = vmatpush2.msra.mxu0 0.0
        %1434 = vmatprep.subr.mxu0 0.0
        %1435 = vmatpush2.msra.mxu0 0.0
        %1436 = vmatprep.subr.mxu0 0.0
        %1437 = vmatpush2.msra.mxu0 0.0
        %1438 = vmatprep.subr.mxu0 0.0
        %1439 = vmatpush2.msra.mxu0 0.0
        %1440 = vmatprep.mubr.f32.mxu0 0.0
        %1441 = vmatmul.mubr.f32.gmra.mxu0 %v1365
        %v1442 = vpop.f32.mrf.mxu0
        %v1443 = vadd.f32 %v1356, %v1442
        %v1444 = vpop.f32.mrf.mxu0
        %v1445 = vadd.f32 %v1360, %v1444
        %1446 = vmatprep.mubr.f32.mxu0 0.0
        %1447 = vmatmul.mubr.f32.gmra.mxu0 %v1368
        %v1448 = vpop.f32.mrf.mxu0
        %v1449 = vadd.f32 %v1356, %v1448
        %v1450 = vpop.f32.mrf.mxu0
        %v1451 = vadd.f32 %v1360, %v1450
        %1452 = vmatprep.mubr.f32.mxu0 0.0
        %1453 = vmatmul.mubr.f32.gmra.mxu0 %v1371
        %v1454 = vpop.f32.mrf.mxu0
        %v1455 = vadd.f32 %v1356, %v1454
        %v1456 = vpop.f32.mrf.mxu0
        %v1457 = vadd.f32 %v1360, %v1456
        %1458 = vmatprep.mubr.f32.mxu0 0.0
        %1459 = vmatmul.mubr.f32.gmra.mxu0 %v1374
        %v1460 = vpop.f32.mrf.mxu0
        %v1461 = vadd.f32 %v1356, %v1460
        %v1462 = vpop.f32.mrf.mxu0
        %v1463 = vadd.f32 %v1360, %v1462
        %1464 = vdwg.mxu0
        %v1465 = vld [vmem:[%s1] sm:$0xff]
        %v1466 = vld [vmem:[%s1 + $0x8] sm:$0xff]
        %v1467 = vld [vmem:[%s1 + $0x10] sm:$0xff]
        %v1468 = vld [vmem:[%s1 + $0x18] sm:$0xff]
        %1473 = vrot.lane.b32.xlu0 %v1443, 64
        %v1474 = vpop.permute.xlu0 %1473
        %1475 = vrot.lane.b32.xlu0 %v1449, 64
        %v1476 = vpop.permute.xlu0 %1475
        %1477 = vrot.lane.b32.xlu0 %v1455, 64
        %v1478 = vpop.permute.xlu0 %1477
        %1479 = vrot.lane.b32.xlu0 %v1461, 64
        %v1480 = vpop.permute.xlu0 %1479
        %vm1481 = vcmask 130048
        %v1482 = vsel %vm1481, %v1443, 0
        %v1484 = vsel %vm1481, %v1449, 0
        %v1486 = vsel %vm1481, %v1455, 0
        %v1488 = vsel %vm1481, %v1461, 0
        %v1490 = vsel %vm1481, %v1474, 0
        %v1492 = vsel %vm1481, %v1476, 0
        %v1494 = vsel %vm1481, %v1478, 0
        %v1496 = vsel %vm1481, %v1480, 0
        %1498 = vmatprep.subr.mxu0 0.0
        %1499 = vmatpush1.xpose.msra.mxu0 0.0
        %1500 = vmatprep.subr.mxu0 0.0
        %1501 = vmatpush1.xpose.msra.mxu0 0.0
        %1502 = vmatprep.subr.mxu0 0.0
        %1503 = vmatpush1.xpose.msra.mxu0 0.0
        %1504 = vmatprep.subr.mxu0 0.0
        %1505 = vmatpush1.xpose.msra.mxu0 0.0
        %1506 = vmatprep.subr.mxu0 0.0
        %1507 = vmatpush1.xpose.msra.mxu0 0.0
        %1508 = vmatprep.subr.mxu0 0.0
        %1509 = vmatpush1.xpose.msra.mxu0 0.0
        %1510 = vmatprep.subr.mxu0 0.0
        %1511 = vmatpush1.xpose.msra.mxu0 0.0
        %1512 = vmatprep.subr.mxu0 0.0
        %1513 = vmatpush1.xpose.msra.mxu0 0.0
        %1514 = vmatprep.subr.mxu0 0.0
        %1515 = vmatpush1.xpose.msra.mxu0 0.0
        %1516 = vmatprep.subr.mxu0 0.0
        %1517 = vmatpush1.xpose.msra.mxu0 0.0
        %1518 = vmatprep.subr.mxu0 0.0
        %1519 = vmatpush1.xpose.msra.mxu0 0.0
        %1520 = vmatprep.subr.mxu0 0.0
        %1521 = vmatpush1.xpose.msra.mxu0 0.0
        %1522 = vmatprep.subr.mxu0 0.0
        %1523 = vmatpush1.xpose.msra.mxu0 %v1496
        %1524 = vmatprep.subr.mxu0 0.0
        %1525 = vmatpush1.xpose.msra.mxu0 %v1494
        %1526 = vmatprep.subr.mxu0 0.0
        %1527 = vmatpush1.xpose.msra.mxu0 %v1492
        %1528 = vmatprep.subr.mxu0 0.0
        %1529 = vmatpush1.xpose.msra.mxu0 %v1490
        %1530 = vmatprep.subr.mxu0 0.0
        %1531 = vmatpush2.xpose.msra.mxu0 0.0
        %1532 = vmatprep.subr.mxu0 0.0
        %1533 = vmatpush2.xpose.msra.mxu0 0.0
        %1534 = vmatprep.subr.mxu0 0.0
        %1535 = vmatpush2.xpose.msra.mxu0 0.0
        %1536 = vmatprep.subr.mxu0 0.0
        %1537 = vmatpush2.xpose.msra.mxu0 0.0
        %1538 = vmatprep.subr.mxu0 0.0
        %1539 = vmatpush2.xpose.msra.mxu0 0.0
        %1540 = vmatprep.subr.mxu0 0.0
        %1541 = vmatpush2.xpose.msra.mxu0 0.0
        %1542 = vmatprep.subr.mxu0 0.0
        %1543 = vmatpush2.xpose.msra.mxu0 0.0
        %1544 = vmatprep.subr.mxu0 0.0
        %1545 = vmatpush2.xpose.msra.mxu0 0.0
        %1546 = vmatprep.subr.mxu0 0.0
        %1547 = vmatpush2.xpose.msra.mxu0 0.0
        %1548 = vmatprep.subr.mxu0 0.0
        %1549 = vmatpush2.xpose.msra.mxu0 0.0
        %1550 = vmatprep.subr.mxu0 0.0
        %1551 = vmatpush2.xpose.msra.mxu0 0.0
        %1552 = vmatprep.subr.mxu0 0.0
        %1553 = vmatpush2.xpose.msra.mxu0 0.0
        %1554 = vmatprep.subr.mxu0 0.0
        %1555 = vmatpush2.xpose.msra.mxu0 0.0
        %1556 = vmatprep.subr.mxu0 0.0
        %1557 = vmatpush2.xpose.msra.mxu0 0.0
        %1558 = vmatprep.subr.mxu0 0.0
        %1559 = vmatpush2.xpose.msra.mxu0 0.0
        %1560 = vmatprep.subr.mxu0 0.0
        %1561 = vmatpush2.xpose.msra.mxu0 0.0
        %1562 = vmatprep.mubr.f32.mxu0 0.0
        %1563 = vmatmul.mubr.f32.gmra.mxu0 %v1482
        %v1564 = vpop.f32.mrf.mxu0
        %v1565 = vadd.f32 0.0, %v1564
        %v1566 = vpop.f32.mrf.mxu0
        %1567 = vmatprep.mubr.f32.mxu0 0.0
        %1568 = vmatmul.mubr.f32.gmra.mxu0 %v1484
        %v1569 = vpop.f32.mrf.mxu0
        %v1570 = vadd.f32 0.0, %v1569
        %v1571 = vpop.f32.mrf.mxu0
        %1572 = vmatprep.mubr.f32.mxu0 0.0
        %1573 = vmatmul.mubr.f32.gmra.mxu0 %v1486
        %v1574 = vpop.f32.mrf.mxu0
        %v1575 = vadd.f32 0.0, %v1574
        %v1576 = vpop.f32.mrf.mxu0
        %1577 = vmatprep.mubr.f32.mxu0 0.0
        %1578 = vmatmul.mubr.f32.gmra.mxu0 %v1488
        %v1579 = vpop.f32.mrf.mxu0
        %v1580 = vadd.f32 0.0, %v1579
        %v1581 = vpop.f32.mrf.mxu0
        %1582 = vdwg.mxu0
        %v1583 = vmul.f32 %v1565, 0.25
        %v1584 = vmul.f32 %v1570, 0.25
        %v1585 = vmul.f32 %v1575, 0.25
        %v1586 = vmul.f32 %v1580, 0.25
        %v1587 = vadd.f32 %v1583, %v1465
        %v1588 = vadd.f32 %v1584, %v1466
        %v1589 = vadd.f32 %v1585, %v1467
        %v1590 = vadd.f32 %v1586, %v1468
        %vm1591 = vcmask 261120
        %v1592 = vsel %vm1591, %v1587, -inf
        %1593 = vmax.xlane.f32.xlu0 %v1592
        %v1594 = vpop.xlane.xlu0 %1593
        %v1595 = vsel %vm1591, %v1588, -inf
        %1596 = vmax.xlane.f32.xlu0 %v1595
        %v1597 = vpop.xlane.xlu0 %1596
        %v1598 = vsel %vm1591, %v1589, -inf
        %1599 = vmax.xlane.f32.xlu0 %v1598
        %v1600 = vpop.xlane.xlu0 %1599
        %v1601 = vsel %vm1591, %v1590, -inf
        %1602 = vmax.xlane.f32.xlu0 %v1601
        %v1603 = vpop.xlane.xlu0 %1602
        %v1604 = vsub.f32 %v1587, %v1594
        %v1605 = vsub.f32 %v1588, %v1597
        %v1606 = vsub.f32 %v1589, %v1600
        %v1607 = vsub.f32 %v1590, %v1603
        %v1608 = vmul.f32 %v1604, 1.442695
        %v1609 = vpow.pop %v1608
        %v1610 = vmul.f32 %v1605, 1.442695
        %v1611 = vpow.pop %v1610
        %v1612 = vmul.f32 %v1606, 1.442695
        %v1613 = vpow.pop %v1612
        %v1614 = vmul.f32 %v1607, 1.442695
        %v1615 = vpow.pop %v1614
        %v1616 = vsel %vm1591, %v1609, 0.0
        %1617 = vadd.xlane.f32.xlu0 %v1616
        %v1618 = vpop.xlane.xlu0 %1617
        %v1619 = vsel %vm1591, %v1611, 0.0
        %1620 = vadd.xlane.f32.xlu0 %v1619
        %v1621 = vpop.xlane.xlu0 %1620
        %v1622 = vsel %vm1591, %v1613, 0.0
        %1623 = vadd.xlane.f32.xlu0 %v1622
        %v1624 = vpop.xlane.xlu0 %1623
        %v1625 = vsel %vm1591, %v1615, 0.0
        %1626 = vadd.xlane.f32.xlu0 %v1625
        %v1627 = vpop.xlane.xlu0 %1626
        %v1628 = vrcp.pop %v1618
        %v1629 = vrcp.pop %v1621
        %v1630 = vrcp.pop %v1624
        %v1631 = vrcp.pop %v1627
        %v1632 = vmul.f32 %v1609, %v1628
        %v1633 = vmul.f32 %v1611, %v1629
        %v1634 = vmul.f32 %v1613, %v1630
        %v1635 = vmul.f32 %v1615, %v1631
        %v1637 = vsel %vm1591, %v1632, 0
        %v1640 = vsel %vm1591, %v1633, 0
        %v1643 = vsel %vm1591, %v1634, 0
        %v1646 = vsel %vm1591, %v1635, 0
        %1648 = vmatprep.subr.mxu0 0.0
        %1649 = vmatpush1.msra.mxu0 0.0
        %1650 = vmatprep.subr.mxu0 0.0
        %1651 = vmatpush1.msra.mxu0 0.0
        %1652 = vmatprep.subr.mxu0 0.0
        %1653 = vmatpush1.msra.mxu0 0.0
        %1654 = vmatprep.subr.mxu0 0.0
        %1655 = vmatpush1.msra.mxu0 0.0
        %1656 = vmatprep.subr.mxu0 0.0
        %1657 = vmatpush1.msra.mxu0 0.0
        %1658 = vmatprep.subr.mxu0 0.0
        %1659 = vmatpush1.msra.mxu0 0.0
        %1660 = vmatprep.subr.mxu0 0.0
        %1661 = vmatpush1.msra.mxu0 0.0
        %1662 = vmatprep.subr.mxu0 0.0
        %1663 = vmatpush1.msra.mxu0 0.0
        %1664 = vmatprep.subr.mxu0 0.0
        %1665 = vmatpush1.msra.mxu0 0.0
        %1666 = vmatprep.subr.mxu0 0.0
        %1667 = vmatpush1.msra.mxu0 0.0
        %1668 = vmatprep.subr.mxu0 0.0
        %1669 = vmatpush1.msra.mxu0 0.0
        %1670 = vmatprep.subr.mxu0 0.0
        %1671 = vmatpush1.msra.mxu0 0.0
        %1672 = vmatprep.subr.mxu0 0.0
        %1673 = vmatpush1.msra.mxu0 %v1463
        %1674 = vmatprep.subr.mxu0 0.0
        %1675 = vmatpush1.msra.mxu0 %v1457
        %1676 = vmatprep.subr.mxu0 0.0
        %1677 = vmatpush1.msra.mxu0 %v1451
        %1678 = vmatprep.subr.mxu0 0.0
        %1679 = vmatpush1.msra.mxu0 %v1445
        %1680 = vmatprep.subr.mxu0 0.0
        %1681 = vmatpush2.msra.mxu0 0.0
        %1682 = vmatprep.subr.mxu0 0.0
        %1683 = vmatpush2.msra.mxu0 0.0
        %1684 = vmatprep.subr.mxu0 0.0
        %1685 = vmatpush2.msra.mxu0 0.0
        %1686 = vmatprep.subr.mxu0 0.0
        %1687 = vmatpush2.msra.mxu0 0.0
        %1688 = vmatprep.subr.mxu0 0.0
        %1689 = vmatpush2.msra.mxu0 0.0
        %1690 = vmatprep.subr.mxu0 0.0
        %1691 = vmatpush2.msra.mxu0 0.0
        %1692 = vmatprep.subr.mxu0 0.0
        %1693 = vmatpush2.msra.mxu0 0.0
        %1694 = vmatprep.subr.mxu0 0.0
        %1695 = vmatpush2.msra.mxu0 0.0
        %1696 = vmatprep.subr.mxu0 0.0
        %1697 = vmatpush2.msra.mxu0 0.0
        %1698 = vmatprep.subr.mxu0 0.0
        %1699 = vmatpush2.msra.mxu0 0.0
        %1700 = vmatprep.subr.mxu0 0.0
        %1701 = vmatpush2.msra.mxu0 0.0
        %1702 = vmatprep.subr.mxu0 0.0
        %1703 = vmatpush2.msra.mxu0 0.0
        %1704 = vmatprep.subr.mxu0 0.0
        %1705 = vmatpush2.msra.mxu0 0.0
        %1706 = vmatprep.subr.mxu0 0.0
        %1707 = vmatpush2.msra.mxu0 0.0
        %1708 = vmatprep.subr.mxu0 0.0
        %1709 = vmatpush2.msra.mxu0 0.0
        %1710 = vmatprep.subr.mxu0 0.0
        %1711 = vmatpush2.msra.mxu0 0.0
        %1712 = vmatprep.mubr.f32.mxu0 0.0
        %1713 = vmatmul.mubr.f32.gmra.mxu0 %v1637
        %v1714 = vpop.f32.mrf.mxu0
        %v1715 = vadd.f32 0.0, %v1714
        %v1716 = vpop.f32.mrf.mxu0
        %1717 = vmatprep.mubr.f32.mxu0 0.0
        %1718 = vmatmul.mubr.f32.gmra.mxu0 %v1640
        %v1719 = vpop.f32.mrf.mxu0
        %v1720 = vadd.f32 0.0, %v1719
        %v1721 = vpop.f32.mrf.mxu0
        %1722 = vmatprep.mubr.f32.mxu0 0.0
        %1723 = vmatmul.mubr.f32.gmra.mxu0 %v1643
        %v1724 = vpop.f32.mrf.mxu0
        %v1725 = vadd.f32 0.0, %v1724
        %v1726 = vpop.f32.mrf.mxu0
        %1727 = vmatprep.mubr.f32.mxu0 0.0
        %1728 = vmatmul.mubr.f32.gmra.mxu0 %v1646
        %v1729 = vpop.f32.mrf.mxu0
        %v1730 = vadd.f32 0.0, %v1729
        %v1731 = vpop.f32.mrf.mxu0
        %1732 = vdwg.mxu0
        %v1733 = vld [vmem:[%s1023] sm:$0xff]
        %v1734 = vld [vmem:[%s1023 + $0x8] sm:$0xff]
        %1735 = vrot.lane.b32.xlu0 %v1443, 112
        %v1736 = vpop.permute.xlu0 %1735
        %1737 = vrot.lane.b32.xlu0 %v1449, 112
        %v1738 = vpop.permute.xlu0 %1737
        %1739 = vrot.lane.b32.xlu0 %v1455, 112
        %v1740 = vpop.permute.xlu0 %1739
        %1741 = vrot.lane.b32.xlu0 %v1461, 112
        %v1742 = vpop.permute.xlu0 %1741
        %1743 = vrot.lane.b32.xlu0 %v1443, 48
        %v1744 = vpop.permute.xlu0 %1743
        %1745 = vrot.lane.b32.xlu0 %v1449, 48
        %v1746 = vpop.permute.xlu0 %1745
        %1747 = vrot.lane.b32.xlu0 %v1455, 48
        %v1748 = vpop.permute.xlu0 %1747
        %1749 = vrot.lane.b32.xlu0 %v1461, 48
        %v1750 = vpop.permute.xlu0 %1749
        %v1751 = vsel %vm1481, %v1736, 0
        %v1753 = vsel %vm1481, %v1738, 0
        %v1755 = vsel %vm1481, %v1740, 0
        %v1757 = vsel %vm1481, %v1742, 0
        %v1759 = vsel %vm1481, %v1744, 0
        %v1761 = vsel %vm1481, %v1746, 0
        %v1763 = vsel %vm1481, %v1748, 0
        %v1765 = vsel %vm1481, %v1750, 0
        %1767 = vmatprep.subr.mxu0 0.0
        %1768 = vmatpush1.xpose.msra.mxu0 0.0
        %1769 = vmatprep.subr.mxu0 0.0
        %1770 = vmatpush1.xpose.msra.mxu0 0.0
        %1771 = vmatprep.subr.mxu0 0.0
        %1772 = vmatpush1.xpose.msra.mxu0 0.0
        %1773 = vmatprep.subr.mxu0 0.0
        %1774 = vmatpush1.xpose.msra.mxu0 0.0
        %1775 = vmatprep.subr.mxu0 0.0
        %1776 = vmatpush1.xpose.msra.mxu0 0.0
        %1777 = vmatprep.subr.mxu0 0.0
        %1778 = vmatpush1.xpose.msra.mxu0 0.0
        %1779 = vmatprep.subr.mxu0 0.0
        %1780 = vmatpush1.xpose.msra.mxu0 0.0
        %1781 = vmatprep.subr.mxu0 0.0
        %1782 = vmatpush1.xpose.msra.mxu0 0.0
        %1783 = vmatprep.subr.mxu0 0.0
        %1784 = vmatpush1.xpose.msra.mxu0 0.0
        %1785 = vmatprep.subr.mxu0 0.0
        %1786 = vmatpush1.xpose.msra.mxu0 0.0
        %1787 = vmatprep.subr.mxu0 0.0
        %1788 = vmatpush1.xpose.msra.mxu0 0.0
        %1789 = vmatprep.subr.mxu0 0.0
        %1790 = vmatpush1.xpose.msra.mxu0 0.0
        %1791 = vmatprep.subr.mxu0 0.0
        %1792 = vmatpush1.xpose.msra.mxu0 %v1765
        %1793 = vmatprep.subr.mxu0 0.0
        %1794 = vmatpush1.xpose.msra.mxu0 %v1763
        %1795 = vmatprep.subr.mxu0 0.0
        %1796 = vmatpush1.xpose.msra.mxu0 %v1761
        %1797 = vmatprep.subr.mxu0 0.0
        %1798 = vmatpush1.xpose.msra.mxu0 %v1759
        %1799 = vmatprep.subr.mxu0 0.0
        %1800 = vmatpush2.xpose.msra.mxu0 0.0
        %1801 = vmatprep.subr.mxu0 0.0
        %1802 = vmatpush2.xpose.msra.mxu0 0.0
        %1803 = vmatprep.subr.mxu0 0.0
        %1804 = vmatpush2.xpose.msra.mxu0 0.0
        %1805 = vmatprep.subr.mxu0 0.0
        %1806 = vmatpush2.xpose.msra.mxu0 0.0
        %1807 = vmatprep.subr.mxu0 0.0
        %1808 = vmatpush2.xpose.msra.mxu0 0.0
        %1809 = vmatprep.subr.mxu0 0.0
        %1810 = vmatpush2.xpose.msra.mxu0 0.0
        %1811 = vmatprep.subr.mxu0 0.0
        %1812 = vmatpush2.xpose.msra.mxu0 0.0
        %1813 = vmatprep.subr.mxu0 0.0
        %1814 = vmatpush2.xpose.msra.mxu0 0.0
        %1815 = vmatprep.subr.mxu0 0.0
        %1816 = vmatpush2.xpose.msra.mxu0 0.0
        %1817 = vmatprep.subr.mxu0 0.0
        %1818 = vmatpush2.xpose.msra.mxu0 0.0
        %1819 = vmatprep.subr.mxu0 0.0
        %1820 = vmatpush2.xpose.msra.mxu0 0.0
        %1821 = vmatprep.subr.mxu0 0.0
        %1822 = vmatpush2.xpose.msra.mxu0 0.0
        %1823 = vmatprep.subr.mxu0 0.0
        %1824 = vmatpush2.xpose.msra.mxu0 0.0
        %1825 = vmatprep.subr.mxu0 0.0
        %1826 = vmatpush2.xpose.msra.mxu0 0.0
        %1827 = vmatprep.subr.mxu0 0.0
        %1828 = vmatpush2.xpose.msra.mxu0 0.0
        %1829 = vmatprep.subr.mxu0 0.0
        %1830 = vmatpush2.xpose.msra.mxu0 0.0
        %1831 = vmatprep.mubr.f32.mxu0 0.0
        %1832 = vmatmul.mubr.f32.gmra.mxu0 %v1751
        %v1833 = vpop.f32.mrf.mxu0
        %v1834 = vadd.f32 0.0, %v1833
        %v1835 = vpop.f32.mrf.mxu0
        %1836 = vmatprep.mubr.f32.mxu0 0.0
        %1837 = vmatmul.mubr.f32.gmra.mxu0 %v1753
        %v1838 = vpop.f32.mrf.mxu0
        %v1839 = vadd.f32 0.0, %v1838
        %v1840 = vpop.f32.mrf.mxu0
        %1841 = vmatprep.mubr.f32.mxu0 0.0
        %1842 = vmatmul.mubr.f32.gmra.mxu0 %v1755
        %v1843 = vpop.f32.mrf.mxu0
        %v1844 = vadd.f32 0.0, %v1843
        %v1845 = vpop.f32.mrf.mxu0
        %1846 = vmatprep.mubr.f32.mxu0 0.0
        %1847 = vmatmul.mubr.f32.gmra.mxu0 %v1757
        %v1848 = vpop.f32.mrf.mxu0
        %v1849 = vadd.f32 0.0, %v1848
        %v1850 = vpop.f32.mrf.mxu0
        %1851 = vdwg.mxu0
        %v1852 = vmul.f32 %v1834, 0.25
        %v1853 = vmul.f32 %v1839, 0.25
        %v1854 = vmul.f32 %v1844, 0.25
        %v1855 = vmul.f32 %v1849, 0.25
        %v1856 = vadd.f32 %v1852, %v1465
        %v1857 = vadd.f32 %v1853, %v1466
        %v1858 = vadd.f32 %v1854, %v1467
        %v1859 = vadd.f32 %v1855, %v1468
        %v1860 = vsel %vm1591, %v1856, -inf
        %1861 = vmax.xlane.f32.xlu0 %v1860
        %v1862 = vpop.xlane.xlu0 %1861
        %v1863 = vsel %vm1591, %v1857, -inf
        %1864 = vmax.xlane.f32.xlu0 %v1863
        %v1865 = vpop.xlane.xlu0 %1864
        %v1866 = vsel %vm1591, %v1858, -inf
        %1867 = vmax.xlane.f32.xlu0 %v1866
        %v1868 = vpop.xlane.xlu0 %1867
        %v1869 = vsel %vm1591, %v1859, -inf
        %1870 = vmax.xlane.f32.xlu0 %v1869
        %v1871 = vpop.xlane.xlu0 %1870
        %v1872 = vsub.f32 %v1856, %v1862
        %v1873 = vsub.f32 %v1857, %v1865
        %v1874 = vsub.f32 %v1858, %v1868
        %v1875 = vsub.f32 %v1859, %v1871
        %v1876 = vmul.f32 %v1872, 1.442695
        %v1877 = vpow.pop %v1876
        %v1878 = vmul.f32 %v1873, 1.442695
        %v1879 = vpow.pop %v1878
        %v1880 = vmul.f32 %v1874, 1.442695
        %v1881 = vpow.pop %v1880
        %v1882 = vmul.f32 %v1875, 1.442695
        %v1883 = vpow.pop %v1882
        %v1884 = vsel %vm1591, %v1877, 0.0
        %1885 = vadd.xlane.f32.xlu0 %v1884
        %v1886 = vpop.xlane.xlu0 %1885
        %v1887 = vsel %vm1591, %v1879, 0.0
        %1888 = vadd.xlane.f32.xlu0 %v1887
        %v1889 = vpop.xlane.xlu0 %1888
        %v1890 = vsel %vm1591, %v1881, 0.0
        %1891 = vadd.xlane.f32.xlu0 %v1890
        %v1892 = vpop.xlane.xlu0 %1891
        %v1893 = vsel %vm1591, %v1883, 0.0
        %1894 = vadd.xlane.f32.xlu0 %v1893
        %v1895 = vpop.xlane.xlu0 %1894
        %v1896 = vrcp.pop %v1886
        %v1897 = vrcp.pop %v1889
        %v1898 = vrcp.pop %v1892
        %v1899 = vrcp.pop %v1895
        %v1900 = vmul.f32 %v1877, %v1896
        %v1901 = vmul.f32 %v1879, %v1897
        %v1902 = vmul.f32 %v1881, %v1898
        %v1903 = vmul.f32 %v1883, %v1899
        %1908 = vrot.lane.b32.xlu0 %v1445, 112
        %v1909 = vpop.permute.xlu0 %1908
        %1910 = vrot.lane.b32.xlu0 %v1451, 112
        %v1911 = vpop.permute.xlu0 %1910
        %1912 = vrot.lane.b32.xlu0 %v1457, 112
        %v1913 = vpop.permute.xlu0 %1912
        %1914 = vrot.lane.b32.xlu0 %v1463, 112
        %v1915 = vpop.permute.xlu0 %1914
        %v1921 = vsel %vm1591, %v1900, 0
        %v1924 = vsel %vm1591, %v1901, 0
        %v1927 = vsel %vm1591, %v1902, 0
        %v1930 = vsel %vm1591, %v1903, 0
        %1932 = vmatprep.subr.mxu0 0.0
        %1933 = vmatpush1.msra.mxu0 0.0
        %1934 = vmatprep.subr.mxu0 0.0
        %1935 = vmatpush1.msra.mxu0 0.0
        %1936 = vmatprep.subr.mxu0 0.0
        %1937 = vmatpush1.msra.mxu0 0.0
        %1938 = vmatprep.subr.mxu0 0.0
        %1939 = vmatpush1.msra.mxu0 0.0
        %1940 = vmatprep.subr.mxu0 0.0
        %1941 = vmatpush1.msra.mxu0 0.0
        %1942 = vmatprep.subr.mxu0 0.0
        %1943 = vmatpush1.msra.mxu0 0.0
        %1944 = vmatprep.subr.mxu0 0.0
        %1945 = vmatpush1.msra.mxu0 0.0
        %1946 = vmatprep.subr.mxu0 0.0
        %1947 = vmatpush1.msra.mxu0 0.0
        %1948 = vmatprep.subr.mxu0 0.0
        %1949 = vmatpush1.msra.mxu0 0.0
        %1950 = vmatprep.subr.mxu0 0.0
        %1951 = vmatpush1.msra.mxu0 0.0
        %1952 = vmatprep.subr.mxu0 0.0
        %1953 = vmatpush1.msra.mxu0 0.0
        %1954 = vmatprep.subr.mxu0 0.0
        %1955 = vmatpush1.msra.mxu0 0.0
        %1956 = vmatprep.subr.mxu0 0.0
        %1957 = vmatpush1.msra.mxu0 %v1915
        %1958 = vmatprep.subr.mxu0 0.0
        %1959 = vmatpush1.msra.mxu0 %v1913
        %1960 = vmatprep.subr.mxu0 0.0
        %1961 = vmatpush1.msra.mxu0 %v1911
        %1962 = vmatprep.subr.mxu0 0.0
        %1963 = vmatpush1.msra.mxu0 %v1909
        %1964 = vmatprep.subr.mxu0 0.0
        %1965 = vmatpush2.msra.mxu0 0.0
        %1966 = vmatprep.subr.mxu0 0.0
        %1967 = vmatpush2.msra.mxu0 0.0
        %1968 = vmatprep.subr.mxu0 0.0
        %1969 = vmatpush2.msra.mxu0 0.0
        %1970 = vmatprep.subr.mxu0 0.0
        %1971 = vmatpush2.msra.mxu0 0.0
        %1972 = vmatprep.subr.mxu0 0.0
        %1973 = vmatpush2.msra.mxu0 0.0
        %1974 = vmatprep.subr.mxu0 0.0
        %1975 = vmatpush2.msra.mxu0 0.0
        %1976 = vmatprep.subr.mxu0 0.0
        %1977 = vmatpush2.msra.mxu0 0.0
        %1978 = vmatprep.subr.mxu0 0.0
        %1979 = vmatpush2.msra.mxu0 0.0
        %1980 = vmatprep.subr.mxu0 0.0
        %1981 = vmatpush2.msra.mxu0 0.0
        %1982 = vmatprep.subr.mxu0 0.0
        %1983 = vmatpush2.msra.mxu0 0.0
        %1984 = vmatprep.subr.mxu0 0.0
        %1985 = vmatpush2.msra.mxu0 0.0
        %1986 = vmatprep.subr.mxu0 0.0
        %1987 = vmatpush2.msra.mxu0 0.0
        %1988 = vmatprep.subr.mxu0 0.0
        %1989 = vmatpush2.msra.mxu0 0.0
        %1990 = vmatprep.subr.mxu0 0.0
        %1991 = vmatpush2.msra.mxu0 0.0
        %1992 = vmatprep.subr.mxu0 0.0
        %1993 = vmatpush2.msra.mxu0 0.0
        %1994 = vmatprep.subr.mxu0 0.0
        %1995 = vmatpush2.msra.mxu0 0.0
        %1996 = vmatprep.mubr.f32.mxu0 0.0
        %1997 = vmatmul.mubr.f32.gmra.mxu0 %v1921
        %v1998 = vpop.f32.mrf.mxu0
        %v1999 = vadd.f32 0.0, %v1998
        %v2000 = vpop.f32.mrf.mxu0
        %2001 = vmatprep.mubr.f32.mxu0 0.0
        %2002 = vmatmul.mubr.f32.gmra.mxu0 %v1924
        %v2003 = vpop.f32.mrf.mxu0
        %v2004 = vadd.f32 0.0, %v2003
        %v2005 = vpop.f32.mrf.mxu0
        %2006 = vmatprep.mubr.f32.mxu0 0.0
        %2007 = vmatmul.mubr.f32.gmra.mxu0 %v1927
        %v2008 = vpop.f32.mrf.mxu0
        %v2009 = vadd.f32 0.0, %v2008
        %v2010 = vpop.f32.mrf.mxu0
        %2011 = vmatprep.mubr.f32.mxu0 0.0
        %2012 = vmatmul.mubr.f32.gmra.mxu0 %v1930
        %v2013 = vpop.f32.mrf.mxu0
        %v2014 = vadd.f32 0.0, %v2013
        %v2015 = vpop.f32.mrf.mxu0
        %2016 = vdwg.mxu0
        %s2017 = scalar_lea.vmem %s1023, 16 [#allocation12]
        %v2018 = vld [vmem:[%s2017] sm:$0xff]
        %v2019 = vld [vmem:[%s2017 + $0x8] sm:$0xff]
        %v2021 = vsel %vm1481, %v1999, 0
        %v2024 = vsel %vm1481, %v2004, 0
        %v2027 = vsel %vm1481, %v2009, 0
        %v2030 = vsel %vm1481, %v2014, 0
        %2032 = vmatprep.subr.mxu0 0.0
        %2033 = vmatpush1.msra.mxu0 0.0
        %2034 = vmatprep.subr.mxu0 0.0
        %2035 = vmatpush1.msra.mxu0 0.0
        %2036 = vmatprep.subr.mxu0 0.0
        %2037 = vmatpush1.msra.mxu0 0.0
        %2038 = vmatprep.subr.mxu0 0.0
        %2039 = vmatpush1.msra.mxu0 0.0
        %2040 = vmatprep.subr.mxu0 0.0
        %2041 = vmatpush1.msra.mxu0 0.0
        %2042 = vmatprep.subr.mxu0 0.0
        %2043 = vmatpush1.msra.mxu0 0.0
        %2044 = vmatprep.subr.mxu0 0.0
        %2045 = vmatpush1.msra.mxu0 0.0
        %2046 = vmatprep.subr.mxu0 0.0
        %2047 = vmatpush1.msra.mxu0 0.0
        %2048 = vmatprep.subr.mxu0 0.0
        %2049 = vmatpush1.msra.mxu0 0.0
        %2050 = vmatprep.subr.mxu0 0.0
        %2051 = vmatpush1.msra.mxu0 0.0
        %2052 = vmatprep.subr.mxu0 0.0
        %2053 = vmatpush1.msra.mxu0 0.0
        %2054 = vmatprep.subr.mxu0 0.0
        %2055 = vmatpush1.msra.mxu0 0.0
        %2056 = vmatprep.subr.mxu0 0.0
        %2057 = vmatpush1.msra.mxu0 0.0
        %2058 = vmatprep.subr.mxu0 0.0
        %2059 = vmatpush1.msra.mxu0 0.0
        %2060 = vmatprep.subr.mxu0 0.0
        %2061 = vmatpush1.msra.mxu0 %v2019
        %2062 = vmatprep.subr.mxu0 0.0
        %2063 = vmatpush1.msra.mxu0 %v2018
        %2064 = vmatprep.subr.mxu0 0.0
        %2065 = vmatpush2.msra.mxu0 0.0
        %2066 = vmatprep.subr.mxu0 0.0
        %2067 = vmatpush2.msra.mxu0 0.0
        %2068 = vmatprep.subr.mxu0 0.0
        %2069 = vmatpush2.msra.mxu0 0.0
        %2070 = vmatprep.subr.mxu0 0.0
        %2071 = vmatpush2.msra.mxu0 0.0
        %2072 = vmatprep.subr.mxu0 0.0
        %2073 = vmatpush2.msra.mxu0 0.0
        %2074 = vmatprep.subr.mxu0 0.0
        %2075 = vmatpush2.msra.mxu0 0.0
        %2076 = vmatprep.subr.mxu0 0.0
        %2077 = vmatpush2.msra.mxu0 0.0
        %2078 = vmatprep.subr.mxu0 0.0
        %2079 = vmatpush2.msra.mxu0 0.0
        %2080 = vmatprep.subr.mxu0 0.0
        %2081 = vmatpush2.msra.mxu0 0.0
        %2082 = vmatprep.subr.mxu0 0.0
        %2083 = vmatpush2.msra.mxu0 0.0
        %2084 = vmatprep.subr.mxu0 0.0
        %2085 = vmatpush2.msra.mxu0 0.0
        %2086 = vmatprep.subr.mxu0 0.0
        %2087 = vmatpush2.msra.mxu0 0.0
        %2088 = vmatprep.subr.mxu0 0.0
        %2089 = vmatpush2.msra.mxu0 0.0
        %2090 = vmatprep.subr.mxu0 0.0
        %2091 = vmatpush2.msra.mxu0 0.0
        %2092 = vmatprep.subr.mxu0 0.0
        %2093 = vmatpush2.msra.mxu0 0.0
        %2094 = vmatprep.subr.mxu0 0.0
        %2095 = vmatpush2.msra.mxu0 0.0
        %2096 = vmatprep.mubr.f32.mxu0 0.0
        %2097 = vmatmul.mubr.f32.gmra.mxu0 %v2021
        %v2098 = vpop.f32.mrf.mxu0
        %v2099 = vadd.f32 0.0, %v2098
        %v2100 = vpop.f32.mrf.mxu0
        %2101 = vmatprep.mubr.f32.mxu0 0.0
        %2102 = vmatmul.mubr.f32.gmra.mxu0 %v2024
        %v2103 = vpop.f32.mrf.mxu0
        %v2104 = vadd.f32 0.0, %v2103
        %v2105 = vpop.f32.mrf.mxu0
        %2106 = vmatprep.mubr.f32.mxu0 0.0
        %2107 = vmatmul.mubr.f32.gmra.mxu0 %v2027
        %v2108 = vpop.f32.mrf.mxu0
        %v2109 = vadd.f32 0.0, %v2108
        %v2110 = vpop.f32.mrf.mxu0
        %2111 = vmatprep.mubr.f32.mxu0 0.0
        %2112 = vmatmul.mubr.f32.gmra.mxu0 %v2030
        %v2113 = vpop.f32.mrf.mxu0
        %v2114 = vadd.f32 0.0, %v2113
        %v2115 = vpop.f32.mrf.mxu0
        %2116 = vdwg.mxu0
        %v2118 = vsel %vm1481, %v1715, 0
        %v2121 = vsel %vm1481, %v1720, 0
        %v2124 = vsel %vm1481, %v1725, 0
        %v2127 = vsel %vm1481, %v1730, 0
        %2129 = vmatprep.subr.mxu0 0.0
        %2130 = vmatpush1.msra.mxu0 0.0
        %2131 = vmatprep.subr.mxu0 0.0
        %2132 = vmatpush1.msra.mxu0 0.0
        %2133 = vmatprep.subr.mxu0 0.0
        %2134 = vmatpush1.msra.mxu0 0.0
        %2135 = vmatprep.subr.mxu0 0.0
        %2136 = vmatpush1.msra.mxu0 0.0
        %2137 = vmatprep.subr.mxu0 0.0
        %2138 = vmatpush1.msra.mxu0 0.0
        %2139 = vmatprep.subr.mxu0 0.0
        %2140 = vmatpush1.msra.mxu0 0.0
        %2141 = vmatprep.subr.mxu0 0.0
        %2142 = vmatpush1.msra.mxu0 0.0
        %2143 = vmatprep.subr.mxu0 0.0
        %2144 = vmatpush1.msra.mxu0 0.0
        %2145 = vmatprep.subr.mxu0 0.0
        %2146 = vmatpush1.msra.mxu0 0.0
        %2147 = vmatprep.subr.mxu0 0.0
        %2148 = vmatpush1.msra.mxu0 0.0
        %2149 = vmatprep.subr.mxu0 0.0
        %2150 = vmatpush1.msra.mxu0 0.0
        %2151 = vmatprep.subr.mxu0 0.0
        %2152 = vmatpush1.msra.mxu0 0.0
        %2153 = vmatprep.subr.mxu0 0.0
        %2154 = vmatpush1.msra.mxu0 0.0
        %2155 = vmatprep.subr.mxu0 0.0
        %2156 = vmatpush1.msra.mxu0 0.0
        %2157 = vmatprep.subr.mxu0 0.0
        %2158 = vmatpush1.msra.mxu0 %v1734
        %2159 = vmatprep.subr.mxu0 0.0
        %2160 = vmatpush1.msra.mxu0 %v1733
        %2161 = vmatprep.subr.mxu0 0.0
        %2162 = vmatpush2.msra.mxu0 0.0
        %2163 = vmatprep.subr.mxu0 0.0
        %2164 = vmatpush2.msra.mxu0 0.0
        %2165 = vmatprep.subr.mxu0 0.0
        %2166 = vmatpush2.msra.mxu0 0.0
        %2167 = vmatprep.subr.mxu0 0.0
        %2168 = vmatpush2.msra.mxu0 0.0
        %2169 = vmatprep.subr.mxu0 0.0
        %2170 = vmatpush2.msra.mxu0 0.0
        %2171 = vmatprep.subr.mxu0 0.0
        %2172 = vmatpush2.msra.mxu0 0.0
        %2173 = vmatprep.subr.mxu0 0.0
        %2174 = vmatpush2.msra.mxu0 0.0
        %2175 = vmatprep.subr.mxu0 0.0
        %2176 = vmatpush2.msra.mxu0 0.0
        %2177 = vmatprep.subr.mxu0 0.0
        %2178 = vmatpush2.msra.mxu0 0.0
        %2179 = vmatprep.subr.mxu0 0.0
        %2180 = vmatpush2.msra.mxu0 0.0
        %2181 = vmatprep.subr.mxu0 0.0
        %2182 = vmatpush2.msra.mxu0 0.0
        %2183 = vmatprep.subr.mxu0 0.0
        %2184 = vmatpush2.msra.mxu0 0.0
        %2185 = vmatprep.subr.mxu0 0.0
        %2186 = vmatpush2.msra.mxu0 0.0
        %2187 = vmatprep.subr.mxu0 0.0
        %2188 = vmatpush2.msra.mxu0 0.0
        %2189 = vmatprep.subr.mxu0 0.0
        %2190 = vmatpush2.msra.mxu0 0.0
        %2191 = vmatprep.subr.mxu0 0.0
        %2192 = vmatpush2.msra.mxu0 0.0
        %2193 = vmatprep.mubr.f32.mxu0 0.0
        %2194 = vmatmul.mubr.f32.gmra.mxu0 %v2118
        %v2195 = vpop.f32.mrf.mxu0
        %v2196 = vadd.f32 %v2099, %v2195
        %v2197 = vpop.f32.mrf.mxu0
        %2198 = vmatprep.mubr.f32.mxu0 0.0
        %2199 = vmatmul.mubr.f32.gmra.mxu0 %v2121
        %v2200 = vpop.f32.mrf.mxu0
        %v2201 = vadd.f32 %v2104, %v2200
        %v2202 = vpop.f32.mrf.mxu0
        %2203 = vmatprep.mubr.f32.mxu0 0.0
        %2204 = vmatmul.mubr.f32.gmra.mxu0 %v2124
        %v2205 = vpop.f32.mrf.mxu0
        %v2206 = vadd.f32 %v2109, %v2205
        %v2207 = vpop.f32.mrf.mxu0
        %2208 = vmatprep.mubr.f32.mxu0 0.0
        %2209 = vmatmul.mubr.f32.gmra.mxu0 %v2127
        %v2210 = vpop.f32.mrf.mxu0
        %v2211 = vadd.f32 %v2114, %v2210
        %v2212 = vpop.f32.mrf.mxu0
        %2213 = vdwg.mxu0
        %2214 = vrot.lane.b32.xlu0 %v1443, 96
        %v2215 = vpop.permute.xlu0 %2214
        %2216 = vrot.lane.b32.xlu0 %v1449, 96
        %v2217 = vpop.permute.xlu0 %2216
        %2218 = vrot.lane.b32.xlu0 %v1455, 96
        %v2219 = vpop.permute.xlu0 %2218
        %2220 = vrot.lane.b32.xlu0 %v1461, 96
        %v2221 = vpop.permute.xlu0 %2220
        %2222 = vrot.lane.b32.xlu0 %v1443, 32
        %v2223 = vpop.permute.xlu0 %2222
        %2224 = vrot.lane.b32.xlu0 %v1449, 32
        %v2225 = vpop.permute.xlu0 %2224
        %2226 = vrot.lane.b32.xlu0 %v1455, 32
        %v2227 = vpop.permute.xlu0 %2226
        %2228 = vrot.lane.b32.xlu0 %v1461, 32
        %v2229 = vpop.permute.xlu0 %2228
        %v2230 = vsel %vm1481, %v2215, 0
        %v2232 = vsel %vm1481, %v2217, 0
        %v2234 = vsel %vm1481, %v2219, 0
        %v2236 = vsel %vm1481, %v2221, 0
        %v2238 = vsel %vm1481, %v2223, 0
        %v2240 = vsel %vm1481, %v2225, 0
        %v2242 = vsel %vm1481, %v2227, 0
        %v2244 = vsel %vm1481, %v2229, 0
        %2246 = vmatprep.subr.mxu0 0.0
        %2247 = vmatpush1.xpose.msra.mxu0 0.0
        %2248 = vmatprep.subr.mxu0 0.0
        %2249 = vmatpush1.xpose.msra.mxu0 0.0
        %2250 = vmatprep.subr.mxu0 0.0
        %2251 = vmatpush1.xpose.msra.mxu0 0.0
        %2252 = vmatprep.subr.mxu0 0.0
        %2253 = vmatpush1.xpose.msra.mxu0 0.0
        %2254 = vmatprep.subr.mxu0 0.0
        %2255 = vmatpush1.xpose.msra.mxu0 0.0
        %2256 = vmatprep.subr.mxu0 0.0
        %2257 = vmatpush1.xpose.msra.mxu0 0.0
        %2258 = vmatprep.subr.mxu0 0.0
        %2259 = vmatpush1.xpose.msra.mxu0 0.0
        %2260 = vmatprep.subr.mxu0 0.0
        %2261 = vmatpush1.xpose.msra.mxu0 0.0
        %2262 = vmatprep.subr.mxu0 0.0
        %2263 = vmatpush1.xpose.msra.mxu0 0.0
        %2264 = vmatprep.subr.mxu0 0.0
        %2265 = vmatpush1.xpose.msra.mxu0 0.0
        %2266 = vmatprep.subr.mxu0 0.0
        %2267 = vmatpush1.xpose.msra.mxu0 0.0
        %2268 = vmatprep.subr.mxu0 0.0
        %2269 = vmatpush1.xpose.msra.mxu0 0.0
        %2270 = vmatprep.subr.mxu0 0.0
        %2271 = vmatpush1.xpose.msra.mxu0 %v2244
        %2272 = vmatprep.subr.mxu0 0.0
        %2273 = vmatpush1.xpose.msra.mxu0 %v2242
        %2274 = vmatprep.subr.mxu0 0.0
        %2275 = vmatpush1.xpose.msra.mxu0 %v2240
        %2276 = vmatprep.subr.mxu0 0.0
        %2277 = vmatpush1.xpose.msra.mxu0 %v2238
        %2278 = vmatprep.subr.mxu0 0.0
        %2279 = vmatpush2.xpose.msra.mxu0 0.0
        %2280 = vmatprep.subr.mxu0 0.0
        %2281 = vmatpush2.xpose.msra.mxu0 0.0
        %2282 = vmatprep.subr.mxu0 0.0
        %2283 = vmatpush2.xpose.msra.mxu0 0.0
        %2284 = vmatprep.subr.mxu0 0.0
        %2285 = vmatpush2.xpose.msra.mxu0 0.0
        %2286 = vmatprep.subr.mxu0 0.0
        %2287 = vmatpush2.xpose.msra.mxu0 0.0
        %2288 = vmatprep.subr.mxu0 0.0
        %2289 = vmatpush2.xpose.msra.mxu0 0.0
        %2290 = vmatprep.subr.mxu0 0.0
        %2291 = vmatpush2.xpose.msra.mxu0 0.0
        %2292 = vmatprep.subr.mxu0 0.0
        %2293 = vmatpush2.xpose.msra.mxu0 0.0
        %2294 = vmatprep.subr.mxu0 0.0
        %2295 = vmatpush2.xpose.msra.mxu0 0.0
        %2296 = vmatprep.subr.mxu0 0.0
        %2297 = vmatpush2.xpose.msra.mxu0 0.0
        %2298 = vmatprep.subr.mxu0 0.0
        %2299 = vmatpush2.xpose.msra.mxu0 0.0
        %2300 = vmatprep.subr.mxu0 0.0
        %2301 = vmatpush2.xpose.msra.mxu0 0.0
        %2302 = vmatprep.subr.mxu0 0.0
        %2303 = vmatpush2.xpose.msra.mxu0 0.0
        %2304 = vmatprep.subr.mxu0 0.0
        %2305 = vmatpush2.xpose.msra.mxu0 0.0
        %2306 = vmatprep.subr.mxu0 0.0
        %2307 = vmatpush2.xpose.msra.mxu0 0.0
        %2308 = vmatprep.subr.mxu0 0.0
        %2309 = vmatpush2.xpose.msra.mxu0 0.0
        %2310 = vmatprep.mubr.f32.mxu0 0.0
        %2311 = vmatmul.mubr.f32.gmra.mxu0 %v2230
        %v2312 = vpop.f32.mrf.mxu0
        %v2313 = vadd.f32 0.0, %v2312
        %v2314 = vpop.f32.mrf.mxu0
        %2315 = vmatprep.mubr.f32.mxu0 0.0
        %2316 = vmatmul.mubr.f32.gmra.mxu0 %v2232
        %v2317 = vpop.f32.mrf.mxu0
        %v2318 = vadd.f32 0.0, %v2317
        %v2319 = vpop.f32.mrf.mxu0
        %2320 = vmatprep.mubr.f32.mxu0 0.0
        %2321 = vmatmul.mubr.f32.gmra.mxu0 %v2234
        %v2322 = vpop.f32.mrf.mxu0
        %v2323 = vadd.f32 0.0, %v2322
        %v2324 = vpop.f32.mrf.mxu0
        %2325 = vmatprep.mubr.f32.mxu0 0.0
        %2326 = vmatmul.mubr.f32.gmra.mxu0 %v2236
        %v2327 = vpop.f32.mrf.mxu0
        %v2328 = vadd.f32 0.0, %v2327
        %v2329 = vpop.f32.mrf.mxu0
        %2330 = vdwg.mxu0
        %v2331 = vmul.f32 %v2313, 0.25
        %v2332 = vmul.f32 %v2318, 0.25
        %v2333 = vmul.f32 %v2323, 0.25
        %v2334 = vmul.f32 %v2328, 0.25
        %v2335 = vadd.f32 %v2331, %v1465
        %v2336 = vadd.f32 %v2332, %v1466
        %v2337 = vadd.f32 %v2333, %v1467
        %v2338 = vadd.f32 %v2334, %v1468
        %v2339 = vsel %vm1591, %v2335, -inf
        %2340 = vmax.xlane.f32.xlu0 %v2339
        %v2341 = vpop.xlane.xlu0 %2340
        %v2342 = vsel %vm1591, %v2336, -inf
        %2343 = vmax.xlane.f32.xlu0 %v2342
        %v2344 = vpop.xlane.xlu0 %2343
        %v2345 = vsel %vm1591, %v2337, -inf
        %2346 = vmax.xlane.f32.xlu0 %v2345
        %v2347 = vpop.xlane.xlu0 %2346
        %v2348 = vsel %vm1591, %v2338, -inf
        %2349 = vmax.xlane.f32.xlu0 %v2348
        %v2350 = vpop.xlane.xlu0 %2349
        %v2351 = vsub.f32 %v2335, %v2341
        %v2352 = vsub.f32 %v2336, %v2344
        %v2353 = vsub.f32 %v2337, %v2347
        %v2354 = vsub.f32 %v2338, %v2350
        %v2355 = vmul.f32 %v2351, 1.442695
        %v2356 = vpow.pop %v2355
        %v2357 = vmul.f32 %v2352, 1.442695
        %v2358 = vpow.pop %v2357
        %v2359 = vmul.f32 %v2353, 1.442695
        %v2360 = vpow.pop %v2359
        %v2361 = vmul.f32 %v2354, 1.442695
        %v2362 = vpow.pop %v2361
        %v2363 = vsel %vm1591, %v2356, 0.0
        %2364 = vadd.xlane.f32.xlu0 %v2363
        %v2365 = vpop.xlane.xlu0 %2364
        %v2366 = vsel %vm1591, %v2358, 0.0
        %2367 = vadd.xlane.f32.xlu0 %v2366
        %v2368 = vpop.xlane.xlu0 %2367
        %v2369 = vsel %vm1591, %v2360, 0.0
        %2370 = vadd.xlane.f32.xlu0 %v2369
        %v2371 = vpop.xlane.xlu0 %2370
        %v2372 = vsel %vm1591, %v2362, 0.0
        %2373 = vadd.xlane.f32.xlu0 %v2372
        %v2374 = vpop.xlane.xlu0 %2373
        %v2375 = vrcp.pop %v2365
        %v2376 = vrcp.pop %v2368
        %v2377 = vrcp.pop %v2371
        %v2378 = vrcp.pop %v2374
        %v2379 = vmul.f32 %v2356, %v2375
        %v2380 = vmul.f32 %v2358, %v2376
        %v2381 = vmul.f32 %v2360, %v2377
        %v2382 = vmul.f32 %v2362, %v2378
        %2383 = vrot.lane.b32.xlu0 %v1445, 96
        %v2384 = vpop.permute.xlu0 %2383
        %2385 = vrot.lane.b32.xlu0 %v1451, 96
        %v2386 = vpop.permute.xlu0 %2385
        %2387 = vrot.lane.b32.xlu0 %v1457, 96
        %v2388 = vpop.permute.xlu0 %2387
        %2389 = vrot.lane.b32.xlu0 %v1463, 96
        %v2390 = vpop.permute.xlu0 %2389
        %v2396 = vsel %vm1591, %v2379, 0
        %v2399 = vsel %vm1591, %v2380, 0
        %v2402 = vsel %vm1591, %v2381, 0
        %v2405 = vsel %vm1591, %v2382, 0
        %2407 = vmatprep.subr.mxu0 0.0
        %2408 = vmatpush1.msra.mxu0 0.0
        %2409 = vmatprep.subr.mxu0 0.0
        %2410 = vmatpush1.msra.mxu0 0.0
        %2411 = vmatprep.subr.mxu0 0.0
        %2412 = vmatpush1.msra.mxu0 0.0
        %2413 = vmatprep.subr.mxu0 0.0
        %2414 = vmatpush1.msra.mxu0 0.0
        %2415 = vmatprep.subr.mxu0 0.0
        %2416 = vmatpush1.msra.mxu0 0.0
        %2417 = vmatprep.subr.mxu0 0.0
        %2418 = vmatpush1.msra.mxu0 0.0
        %2419 = vmatprep.subr.mxu0 0.0
        %2420 = vmatpush1.msra.mxu0 0.0
        %2421 = vmatprep.subr.mxu0 0.0
        %2422 = vmatpush1.msra.mxu0 0.0
        %2423 = vmatprep.subr.mxu0 0.0
        %2424 = vmatpush1.msra.mxu0 0.0
        %2425 = vmatprep.subr.mxu0 0.0
        %2426 = vmatpush1.msra.mxu0 0.0
        %2427 = vmatprep.subr.mxu0 0.0
        %2428 = vmatpush1.msra.mxu0 0.0
        %2429 = vmatprep.subr.mxu0 0.0
        %2430 = vmatpush1.msra.mxu0 0.0
        %2431 = vmatprep.subr.mxu0 0.0
        %2432 = vmatpush1.msra.mxu0 %v2390
        %2433 = vmatprep.subr.mxu0 0.0
        %2434 = vmatpush1.msra.mxu0 %v2388
        %2435 = vmatprep.subr.mxu0 0.0
        %2436 = vmatpush1.msra.mxu0 %v2386
        %2437 = vmatprep.subr.mxu0 0.0
        %2438 = vmatpush1.msra.mxu0 %v2384
        %2439 = vmatprep.subr.mxu0 0.0
        %2440 = vmatpush2.msra.mxu0 0.0
        %2441 = vmatprep.subr.mxu0 0.0
        %2442 = vmatpush2.msra.mxu0 0.0
        %2443 = vmatprep.subr.mxu0 0.0
        %2444 = vmatpush2.msra.mxu0 0.0
        %2445 = vmatprep.subr.mxu0 0.0
        %2446 = vmatpush2.msra.mxu0 0.0
        %2447 = vmatprep.subr.mxu0 0.0
        %2448 = vmatpush2.msra.mxu0 0.0
        %2449 = vmatprep.subr.mxu0 0.0
        %2450 = vmatpush2.msra.mxu0 0.0
        %2451 = vmatprep.subr.mxu0 0.0
        %2452 = vmatpush2.msra.mxu0 0.0
        %2453 = vmatprep.subr.mxu0 0.0
        %2454 = vmatpush2.msra.mxu0 0.0
        %2455 = vmatprep.subr.mxu0 0.0
        %2456 = vmatpush2.msra.mxu0 0.0
        %2457 = vmatprep.subr.mxu0 0.0
        %2458 = vmatpush2.msra.mxu0 0.0
        %2459 = vmatprep.subr.mxu0 0.0
        %2460 = vmatpush2.msra.mxu0 0.0
        %2461 = vmatprep.subr.mxu0 0.0
        %2462 = vmatpush2.msra.mxu0 0.0
        %2463 = vmatprep.subr.mxu0 0.0
        %2464 = vmatpush2.msra.mxu0 0.0
        %2465 = vmatprep.subr.mxu0 0.0
        %2466 = vmatpush2.msra.mxu0 0.0
        %2467 = vmatprep.subr.mxu0 0.0
        %2468 = vmatpush2.msra.mxu0 0.0
        %2469 = vmatprep.subr.mxu0 0.0
        %2470 = vmatpush2.msra.mxu0 0.0
        %2471 = vmatprep.mubr.f32.mxu0 0.0
        %2472 = vmatmul.mubr.f32.gmra.mxu0 %v2396
        %v2473 = vpop.f32.mrf.mxu0
        %v2474 = vadd.f32 0.0, %v2473
        %v2475 = vpop.f32.mrf.mxu0
        %2476 = vmatprep.mubr.f32.mxu0 0.0
        %2477 = vmatmul.mubr.f32.gmra.mxu0 %v2399
        %v2478 = vpop.f32.mrf.mxu0
        %v2479 = vadd.f32 0.0, %v2478
        %v2480 = vpop.f32.mrf.mxu0
        %2481 = vmatprep.mubr.f32.mxu0 0.0
        %2482 = vmatmul.mubr.f32.gmra.mxu0 %v2402
        %v2483 = vpop.f32.mrf.mxu0
        %v2484 = vadd.f32 0.0, %v2483
        %v2485 = vpop.f32.mrf.mxu0
        %2486 = vmatprep.mubr.f32.mxu0 0.0
        %2487 = vmatmul.mubr.f32.gmra.mxu0 %v2405
        %v2488 = vpop.f32.mrf.mxu0
        %v2489 = vadd.f32 0.0, %v2488
        %v2490 = vpop.f32.mrf.mxu0
        %2491 = vdwg.mxu0
        %s2492 = scalar_lea.vmem %s1023, 32 [#allocation12]
        %v2493 = vld [vmem:[%s2492] sm:$0xff]
        %v2494 = vld [vmem:[%s2492 + $0x8] sm:$0xff]
        %v2496 = vsel %vm1481, %v2474, 0
        %v2499 = vsel %vm1481, %v2479, 0
        %v2502 = vsel %vm1481, %v2484, 0
        %v2505 = vsel %vm1481, %v2489, 0
        %2507 = vmatprep.subr.mxu0 0.0
        %2508 = vmatpush1.msra.mxu0 0.0
        %2509 = vmatprep.subr.mxu0 0.0
        %2510 = vmatpush1.msra.mxu0 0.0
        %2511 = vmatprep.subr.mxu0 0.0
        %2512 = vmatpush1.msra.mxu0 0.0
        %2513 = vmatprep.subr.mxu0 0.0
        %2514 = vmatpush1.msra.mxu0 0.0
        %2515 = vmatprep.subr.mxu0 0.0
        %2516 = vmatpush1.msra.mxu0 0.0
        %2517 = vmatprep.subr.mxu0 0.0
        %2518 = vmatpush1.msra.mxu0 0.0
        %2519 = vmatprep.subr.mxu0 0.0
        %2520 = vmatpush1.msra.mxu0 0.0
        %2521 = vmatprep.subr.mxu0 0.0
        %2522 = vmatpush1.msra.mxu0 0.0
        %2523 = vmatprep.subr.mxu0 0.0
        %2524 = vmatpush1.msra.mxu0 0.0
        %2525 = vmatprep.subr.mxu0 0.0
        %2526 = vmatpush1.msra.mxu0 0.0
        %2527 = vmatprep.subr.mxu0 0.0
        %2528 = vmatpush1.msra.mxu0 0.0
        %2529 = vmatprep.subr.mxu0 0.0
        %2530 = vmatpush1.msra.mxu0 0.0
        %2531 = vmatprep.subr.mxu0 0.0
        %2532 = vmatpush1.msra.mxu0 0.0
        %2533 = vmatprep.subr.mxu0 0.0
        %2534 = vmatpush1.msra.mxu0 0.0
        %2535 = vmatprep.subr.mxu0 0.0
        %2536 = vmatpush1.msra.mxu0 %v2494
        %2537 = vmatprep.subr.mxu0 0.0
        %2538 = vmatpush1.msra.mxu0 %v2493
        %2539 = vmatprep.subr.mxu0 0.0
        %2540 = vmatpush2.msra.mxu0 0.0
        %2541 = vmatprep.subr.mxu0 0.0
        %2542 = vmatpush2.msra.mxu0 0.0
        %2543 = vmatprep.subr.mxu0 0.0
        %2544 = vmatpush2.msra.mxu0 0.0
        %2545 = vmatprep.subr.mxu0 0.0
        %2546 = vmatpush2.msra.mxu0 0.0
        %2547 = vmatprep.subr.mxu0 0.0
        %2548 = vmatpush2.msra.mxu0 0.0
        %2549 = vmatprep.subr.mxu0 0.0
        %2550 = vmatpush2.msra.mxu0 0.0
        %2551 = vmatprep.subr.mxu0 0.0
        %2552 = vmatpush2.msra.mxu0 0.0
        %2553 = vmatprep.subr.mxu0 0.0
        %2554 = vmatpush2.msra.mxu0 0.0
        %2555 = vmatprep.subr.mxu0 0.0
        %2556 = vmatpush2.msra.mxu0 0.0
        %2557 = vmatprep.subr.mxu0 0.0
        %2558 = vmatpush2.msra.mxu0 0.0
        %2559 = vmatprep.subr.mxu0 0.0
        %2560 = vmatpush2.msra.mxu0 0.0
        %2561 = vmatprep.subr.mxu0 0.0
        %2562 = vmatpush2.msra.mxu0 0.0
        %2563 = vmatprep.subr.mxu0 0.0
        %2564 = vmatpush2.msra.mxu0 0.0
        %2565 = vmatprep.subr.mxu0 0.0
        %2566 = vmatpush2.msra.mxu0 0.0
        %2567 = vmatprep.subr.mxu0 0.0
        %2568 = vmatpush2.msra.mxu0 0.0
        %2569 = vmatprep.subr.mxu0 0.0
        %2570 = vmatpush2.msra.mxu0 0.0
        %2571 = vmatprep.mubr.f32.mxu0 0.0
        %2572 = vmatmul.mubr.f32.gmra.mxu0 %v2496
        %v2573 = vpop.f32.mrf.mxu0
        %v2574 = vadd.f32 0.0, %v2573
        %v2575 = vpop.f32.mrf.mxu0
        %2576 = vmatprep.mubr.f32.mxu0 0.0
        %2577 = vmatmul.mubr.f32.gmra.mxu0 %v2499
        %v2578 = vpop.f32.mrf.mxu0
        %v2579 = vadd.f32 0.0, %v2578
        %v2580 = vpop.f32.mrf.mxu0
        %2581 = vmatprep.mubr.f32.mxu0 0.0
        %2582 = vmatmul.mubr.f32.gmra.mxu0 %v2502
        %v2583 = vpop.f32.mrf.mxu0
        %v2584 = vadd.f32 0.0, %v2583
        %v2585 = vpop.f32.mrf.mxu0
        %2586 = vmatprep.mubr.f32.mxu0 0.0
        %2587 = vmatmul.mubr.f32.gmra.mxu0 %v2505
        %v2588 = vpop.f32.mrf.mxu0
        %v2589 = vadd.f32 0.0, %v2588
        %v2590 = vpop.f32.mrf.mxu0
        %2591 = vdwg.mxu0
        %v2592 = vadd.f32 %v2196, %v2574
        %v2593 = vadd.f32 %v2201, %v2579
        %v2594 = vadd.f32 %v2206, %v2584
        %v2595 = vadd.f32 %v2211, %v2589
        %2596 = vrot.lane.b32.xlu0 %v1443, 80
        %v2597 = vpop.permute.xlu0 %2596
        %2598 = vrot.lane.b32.xlu0 %v1449, 80
        %v2599 = vpop.permute.xlu0 %2598
        %2600 = vrot.lane.b32.xlu0 %v1455, 80
        %v2601 = vpop.permute.xlu0 %2600
        %2602 = vrot.lane.b32.xlu0 %v1461, 80
        %v2603 = vpop.permute.xlu0 %2602
        %2604 = vrot.lane.b32.xlu0 %v1443, 16
        %v2605 = vpop.permute.xlu0 %2604
        %2606 = vrot.lane.b32.xlu0 %v1449, 16
        %v2607 = vpop.permute.xlu0 %2606
        %2608 = vrot.lane.b32.xlu0 %v1455, 16
        %v2609 = vpop.permute.xlu0 %2608
        %2610 = vrot.lane.b32.xlu0 %v1461, 16
        %v2611 = vpop.permute.xlu0 %2610
        %v2612 = vsel %vm1481, %v2597, 0
        %v2614 = vsel %vm1481, %v2599, 0
        %v2616 = vsel %vm1481, %v2601, 0
        %v2618 = vsel %vm1481, %v2603, 0
        %v2620 = vsel %vm1481, %v2605, 0
        %v2622 = vsel %vm1481, %v2607, 0
        %v2624 = vsel %vm1481, %v2609, 0
        %v2626 = vsel %vm1481, %v2611, 0
        %2628 = vmatprep.subr.mxu0 0.0
        %2629 = vmatpush1.xpose.msra.mxu0 0.0
        %2630 = vmatprep.subr.mxu0 0.0
        %2631 = vmatpush1.xpose.msra.mxu0 0.0
        %2632 = vmatprep.subr.mxu0 0.0
        %2633 = vmatpush1.xpose.msra.mxu0 0.0
        %2634 = vmatprep.subr.mxu0 0.0
        %2635 = vmatpush1.xpose.msra.mxu0 0.0
        %2636 = vmatprep.subr.mxu0 0.0
        %2637 = vmatpush1.xpose.msra.mxu0 0.0
        %2638 = vmatprep.subr.mxu0 0.0
        %2639 = vmatpush1.xpose.msra.mxu0 0.0
        %2640 = vmatprep.subr.mxu0 0.0
        %2641 = vmatpush1.xpose.msra.mxu0 0.0
        %2642 = vmatprep.subr.mxu0 0.0
        %2643 = vmatpush1.xpose.msra.mxu0 0.0
        %2644 = vmatprep.subr.mxu0 0.0
        %2645 = vmatpush1.xpose.msra.mxu0 0.0
        %2646 = vmatprep.subr.mxu0 0.0
        %2647 = vmatpush1.xpose.msra.mxu0 0.0
        %2648 = vmatprep.subr.mxu0 0.0
        %2649 = vmatpush1.xpose.msra.mxu0 0.0
        %2650 = vmatprep.subr.mxu0 0.0
        %2651 = vmatpush1.xpose.msra.mxu0 0.0
        %2652 = vmatprep.subr.mxu0 0.0
        %2653 = vmatpush1.xpose.msra.mxu0 %v2626
        %2654 = vmatprep.subr.mxu0 0.0
        %2655 = vmatpush1.xpose.msra.mxu0 %v2624
        %2656 = vmatprep.subr.mxu0 0.0
        %2657 = vmatpush1.xpose.msra.mxu0 %v2622
        %2658 = vmatprep.subr.mxu0 0.0
        %2659 = vmatpush1.xpose.msra.mxu0 %v2620
        %2660 = vmatprep.subr.mxu0 0.0
        %2661 = vmatpush2.xpose.msra.mxu0 0.0
        %2662 = vmatprep.subr.mxu0 0.0
        %2663 = vmatpush2.xpose.msra.mxu0 0.0
        %2664 = vmatprep.subr.mxu0 0.0
        %2665 = vmatpush2.xpose.msra.mxu0 0.0
        %2666 = vmatprep.subr.mxu0 0.0
        %2667 = vmatpush2.xpose.msra.mxu0 0.0
        %2668 = vmatprep.subr.mxu0 0.0
        %2669 = vmatpush2.xpose.msra.mxu0 0.0
        %2670 = vmatprep.subr.mxu0 0.0
        %2671 = vmatpush2.xpose.msra.mxu0 0.0
        %2672 = vmatprep.subr.mxu0 0.0
        %2673 = vmatpush2.xpose.msra.mxu0 0.0
        %2674 = vmatprep.subr.mxu0 0.0
        %2675 = vmatpush2.xpose.msra.mxu0 0.0
        %2676 = vmatprep.subr.mxu0 0.0
        %2677 = vmatpush2.xpose.msra.mxu0 0.0
        %2678 = vmatprep.subr.mxu0 0.0
        %2679 = vmatpush2.xpose.msra.mxu0 0.0
        %2680 = vmatprep.subr.mxu0 0.0
        %2681 = vmatpush2.xpose.msra.mxu0 0.0
        %2682 = vmatprep.subr.mxu0 0.0
        %2683 = vmatpush2.xpose.msra.mxu0 0.0
        %2684 = vmatprep.subr.mxu0 0.0
        %2685 = vmatpush2.xpose.msra.mxu0 0.0
        %2686 = vmatprep.subr.mxu0 0.0
        %2687 = vmatpush2.xpose.msra.mxu0 0.0
        %2688 = vmatprep.subr.mxu0 0.0
        %2689 = vmatpush2.xpose.msra.mxu0 0.0
        %2690 = vmatprep.subr.mxu0 0.0
        %2691 = vmatpush2.xpose.msra.mxu0 0.0
        %2692 = vmatprep.mubr.f32.mxu0 0.0
        %2693 = vmatmul.mubr.f32.gmra.mxu0 %v2612
        %v2694 = vpop.f32.mrf.mxu0
        %v2695 = vadd.f32 0.0, %v2694
        %v2696 = vpop.f32.mrf.mxu0
        %2697 = vmatprep.mubr.f32.mxu0 0.0
        %2698 = vmatmul.mubr.f32.gmra.mxu0 %v2614
        %v2699 = vpop.f32.mrf.mxu0
        %v2700 = vadd.f32 0.0, %v2699
        %v2701 = vpop.f32.mrf.mxu0
        %2702 = vmatprep.mubr.f32.mxu0 0.0
        %2703 = vmatmul.mubr.f32.gmra.mxu0 %v2616
        %v2704 = vpop.f32.mrf.mxu0
        %v2705 = vadd.f32 0.0, %v2704
        %v2706 = vpop.f32.mrf.mxu0
        %2707 = vmatprep.mubr.f32.mxu0 0.0
        %2708 = vmatmul.mubr.f32.gmra.mxu0 %v2618
        %v2709 = vpop.f32.mrf.mxu0
        %v2710 = vadd.f32 0.0, %v2709
        %v2711 = vpop.f32.mrf.mxu0
        %2712 = vdwg.mxu0
        %v2713 = vmul.f32 %v2695, 0.25
        %v2714 = vmul.f32 %v2700, 0.25
        %v2715 = vmul.f32 %v2705, 0.25
        %v2716 = vmul.f32 %v2710, 0.25
        %v2717 = vadd.f32 %v2713, %v1465
        %v2718 = vadd.f32 %v2714, %v1466
        %v2719 = vadd.f32 %v2715, %v1467
        %v2720 = vadd.f32 %v2716, %v1468
        %v2721 = vsel %vm1591, %v2717, -inf
        %2722 = vmax.xlane.f32.xlu0 %v2721
        %v2723 = vpop.xlane.xlu0 %2722
        %v2724 = vsel %vm1591, %v2718, -inf
        %2725 = vmax.xlane.f32.xlu0 %v2724
        %v2726 = vpop.xlane.xlu0 %2725
        %v2727 = vsel %vm1591, %v2719, -inf
        %2728 = vmax.xlane.f32.xlu0 %v2727
        %v2729 = vpop.xlane.xlu0 %2728
        %v2730 = vsel %vm1591, %v2720, -inf
        %2731 = vmax.xlane.f32.xlu0 %v2730
        %v2732 = vpop.xlane.xlu0 %2731
        %v2733 = vsub.f32 %v2717, %v2723
        %v2734 = vsub.f32 %v2718, %v2726
        %v2735 = vsub.f32 %v2719, %v2729
        %v2736 = vsub.f32 %v2720, %v2732
        %v2737 = vmul.f32 %v2733, 1.442695
        %v2738 = vpow.pop %v2737
        %v2739 = vmul.f32 %v2734, 1.442695
        %v2740 = vpow.pop %v2739
        %v2741 = vmul.f32 %v2735, 1.442695
        %v2742 = vpow.pop %v2741
        %v2743 = vmul.f32 %v2736, 1.442695
        %v2744 = vpow.pop %v2743
        %v2745 = vsel %vm1591, %v2738, 0.0
        %2746 = vadd.xlane.f32.xlu0 %v2745
        %v2747 = vpop.xlane.xlu0 %2746
        %v2748 = vsel %vm1591, %v2740, 0.0
        %2749 = vadd.xlane.f32.xlu0 %v2748
        %v2750 = vpop.xlane.xlu0 %2749
        %v2751 = vsel %vm1591, %v2742, 0.0
        %2752 = vadd.xlane.f32.xlu0 %v2751
        %v2753 = vpop.xlane.xlu0 %2752
        %v2754 = vsel %vm1591, %v2744, 0.0
        %2755 = vadd.xlane.f32.xlu0 %v2754
        %v2756 = vpop.xlane.xlu0 %2755
        %v2757 = vrcp.pop %v2747
        %v2758 = vrcp.pop %v2750
        %v2759 = vrcp.pop %v2753
        %v2760 = vrcp.pop %v2756
        %v2761 = vmul.f32 %v2738, %v2757
        %v2762 = vmul.f32 %v2740, %v2758
        %v2763 = vmul.f32 %v2742, %v2759
        %v2764 = vmul.f32 %v2744, %v2760
        %2765 = vrot.lane.b32.xlu0 %v1445, 80
        %v2766 = vpop.permute.xlu0 %2765
        %2767 = vrot.lane.b32.xlu0 %v1451, 80
        %v2768 = vpop.permute.xlu0 %2767
        %2769 = vrot.lane.b32.xlu0 %v1457, 80
        %v2770 = vpop.permute.xlu0 %2769
        %2771 = vrot.lane.b32.xlu0 %v1463, 80
        %v2772 = vpop.permute.xlu0 %2771
        %v2778 = vsel %vm1591, %v2761, 0
        %v2781 = vsel %vm1591, %v2762, 0
        %v2784 = vsel %vm1591, %v2763, 0
        %v2787 = vsel %vm1591, %v2764, 0
        %2789 = vmatprep.subr.mxu0 0.0
        %2790 = vmatpush1.msra.mxu0 0.0
        %2791 = vmatprep.subr.mxu0 0.0
        %2792 = vmatpush1.msra.mxu0 0.0
        %2793 = vmatprep.subr.mxu0 0.0
        %2794 = vmatpush1.msra.mxu0 0.0
        %2795 = vmatprep.subr.mxu0 0.0
        %2796 = vmatpush1.msra.mxu0 0.0
        %2797 = vmatprep.subr.mxu0 0.0
        %2798 = vmatpush1.msra.mxu0 0.0
        %2799 = vmatprep.subr.mxu0 0.0
        %2800 = vmatpush1.msra.mxu0 0.0
        %2801 = vmatprep.subr.mxu0 0.0
        %2802 = vmatpush1.msra.mxu0 0.0
        %2803 = vmatprep.subr.mxu0 0.0
        %2804 = vmatpush1.msra.mxu0 0.0
        %2805 = vmatprep.subr.mxu0 0.0
        %2806 = vmatpush1.msra.mxu0 0.0
        %2807 = vmatprep.subr.mxu0 0.0
        %2808 = vmatpush1.msra.mxu0 0.0
        %2809 = vmatprep.subr.mxu0 0.0
        %2810 = vmatpush1.msra.mxu0 0.0
        %2811 = vmatprep.subr.mxu0 0.0
        %2812 = vmatpush1.msra.mxu0 0.0
        %2813 = vmatprep.subr.mxu0 0.0
        %2814 = vmatpush1.msra.mxu0 %v2772
        %2815 = vmatprep.subr.mxu0 0.0
        %2816 = vmatpush1.msra.mxu0 %v2770
        %2817 = vmatprep.subr.mxu0 0.0
        %2818 = vmatpush1.msra.mxu0 %v2768
        %2819 = vmatprep.subr.mxu0 0.0
        %2820 = vmatpush1.msra.mxu0 %v2766
        %2821 = vmatprep.subr.mxu0 0.0
        %2822 = vmatpush2.msra.mxu0 0.0
        %2823 = vmatprep.subr.mxu0 0.0
        %2824 = vmatpush2.msra.mxu0 0.0
        %2825 = vmatprep.subr.mxu0 0.0
        %2826 = vmatpush2.msra.mxu0 0.0
        %2827 = vmatprep.subr.mxu0 0.0
        %2828 = vmatpush2.msra.mxu0 0.0
        %2829 = vmatprep.subr.mxu0 0.0
        %2830 = vmatpush2.msra.mxu0 0.0
        %2831 = vmatprep.subr.mxu0 0.0
        %2832 = vmatpush2.msra.mxu0 0.0
        %2833 = vmatprep.subr.mxu0 0.0
        %2834 = vmatpush2.msra.mxu0 0.0
        %2835 = vmatprep.subr.mxu0 0.0
        %2836 = vmatpush2.msra.mxu0 0.0
        %2837 = vmatprep.subr.mxu0 0.0
        %2838 = vmatpush2.msra.mxu0 0.0
        %2839 = vmatprep.subr.mxu0 0.0
        %2840 = vmatpush2.msra.mxu0 0.0
        %2841 = vmatprep.subr.mxu0 0.0
        %2842 = vmatpush2.msra.mxu0 0.0
        %2843 = vmatprep.subr.mxu0 0.0
        %2844 = vmatpush2.msra.mxu0 0.0
        %2845 = vmatprep.subr.mxu0 0.0
        %2846 = vmatpush2.msra.mxu0 0.0
        %2847 = vmatprep.subr.mxu0 0.0
        %2848 = vmatpush2.msra.mxu0 0.0
        %2849 = vmatprep.subr.mxu0 0.0
        %2850 = vmatpush2.msra.mxu0 0.0
        %2851 = vmatprep.subr.mxu0 0.0
        %2852 = vmatpush2.msra.mxu0 0.0
        %2853 = vmatprep.mubr.f32.mxu0 0.0
        %2854 = vmatmul.mubr.f32.gmra.mxu0 %v2778
        %v2855 = vpop.f32.mrf.mxu0
        %v2856 = vadd.f32 0.0, %v2855
        %v2857 = vpop.f32.mrf.mxu0
        %2858 = vmatprep.mubr.f32.mxu0 0.0
        %2859 = vmatmul.mubr.f32.gmra.mxu0 %v2781
        %v2860 = vpop.f32.mrf.mxu0
        %v2861 = vadd.f32 0.0, %v2860
        %v2862 = vpop.f32.mrf.mxu0
        %2863 = vmatprep.mubr.f32.mxu0 0.0
        %2864 = vmatmul.mubr.f32.gmra.mxu0 %v2784
        %v2865 = vpop.f32.mrf.mxu0
        %v2866 = vadd.f32 0.0, %v2865
        %v2867 = vpop.f32.mrf.mxu0
        %2868 = vmatprep.mubr.f32.mxu0 0.0
        %2869 = vmatmul.mubr.f32.gmra.mxu0 %v2787
        %v2870 = vpop.f32.mrf.mxu0
        %v2871 = vadd.f32 0.0, %v2870
        %v2872 = vpop.f32.mrf.mxu0
        %2873 = vdwg.mxu0
        %s2874 = scalar_lea.vmem %s1023, 48 [#allocation12]
        %v2875 = vld [vmem:[%s2874] sm:$0xff]
        %v2876 = vld [vmem:[%s2874 + $0x8] sm:$0xff]
        %v2878 = vsel %vm1481, %v2856, 0
        %v2881 = vsel %vm1481, %v2861, 0
        %v2884 = vsel %vm1481, %v2866, 0
        %v2887 = vsel %vm1481, %v2871, 0
        %2889 = vmatprep.subr.mxu0 0.0
        %2890 = vmatpush1.msra.mxu0 0.0
        %2891 = vmatprep.subr.mxu0 0.0
        %2892 = vmatpush1.msra.mxu0 0.0
        %2893 = vmatprep.subr.mxu0 0.0
        %2894 = vmatpush1.msra.mxu0 0.0
        %2895 = vmatprep.subr.mxu0 0.0
        %2896 = vmatpush1.msra.mxu0 0.0
        %2897 = vmatprep.subr.mxu0 0.0
        %2898 = vmatpush1.msra.mxu0 0.0
        %2899 = vmatprep.subr.mxu0 0.0
        %2900 = vmatpush1.msra.mxu0 0.0
        %2901 = vmatprep.subr.mxu0 0.0
        %2902 = vmatpush1.msra.mxu0 0.0
        %2903 = vmatprep.subr.mxu0 0.0
        %2904 = vmatpush1.msra.mxu0 0.0
        %2905 = vmatprep.subr.mxu0 0.0
        %2906 = vmatpush1.msra.mxu0 0.0
        %2907 = vmatprep.subr.mxu0 0.0
        %2908 = vmatpush1.msra.mxu0 0.0
        %2909 = vmatprep.subr.mxu0 0.0
        %2910 = vmatpush1.msra.mxu0 0.0
        %2911 = vmatprep.subr.mxu0 0.0
        %2912 = vmatpush1.msra.mxu0 0.0
        %2913 = vmatprep.subr.mxu0 0.0
        %2914 = vmatpush1.msra.mxu0 0.0
        %2915 = vmatprep.subr.mxu0 0.0
        %2916 = vmatpush1.msra.mxu0 0.0
        %2917 = vmatprep.subr.mxu0 0.0
        %2918 = vmatpush1.msra.mxu0 %v2876
        %2919 = vmatprep.subr.mxu0 0.0
        %2920 = vmatpush1.msra.mxu0 %v2875
        %2921 = vmatprep.subr.mxu0 0.0
        %2922 = vmatpush2.msra.mxu0 0.0
        %2923 = vmatprep.subr.mxu0 0.0
        %2924 = vmatpush2.msra.mxu0 0.0
        %2925 = vmatprep.subr.mxu0 0.0
        %2926 = vmatpush2.msra.mxu0 0.0
        %2927 = vmatprep.subr.mxu0 0.0
        %2928 = vmatpush2.msra.mxu0 0.0
        %2929 = vmatprep.subr.mxu0 0.0
        %2930 = vmatpush2.msra.mxu0 0.0
        %2931 = vmatprep.subr.mxu0 0.0
        %2932 = vmatpush2.msra.mxu0 0.0
        %2933 = vmatprep.subr.mxu0 0.0
        %2934 = vmatpush2.msra.mxu0 0.0
        %2935 = vmatprep.subr.mxu0 0.0
        %2936 = vmatpush2.msra.mxu0 0.0
        %2937 = vmatprep.subr.mxu0 0.0
        %2938 = vmatpush2.msra.mxu0 0.0
        %2939 = vmatprep.subr.mxu0 0.0
        %2940 = vmatpush2.msra.mxu0 0.0
        %2941 = vmatprep.subr.mxu0 0.0
        %2942 = vmatpush2.msra.mxu0 0.0
        %2943 = vmatprep.subr.mxu0 0.0
        %2944 = vmatpush2.msra.mxu0 0.0
        %2945 = vmatprep.subr.mxu0 0.0
        %2946 = vmatpush2.msra.mxu0 0.0
        %2947 = vmatprep.subr.mxu0 0.0
        %2948 = vmatpush2.msra.mxu0 0.0
        %2949 = vmatprep.subr.mxu0 0.0
        %2950 = vmatpush2.msra.mxu0 0.0
        %2951 = vmatprep.subr.mxu0 0.0
        %2952 = vmatpush2.msra.mxu0 0.0
        %2953 = vmatprep.mubr.f32.mxu0 0.0
        %2954 = vmatmul.mubr.f32.gmra.mxu0 %v2878
        %v2955 = vpop.f32.mrf.mxu0
        %v2956 = vadd.f32 0.0, %v2955
        %v2957 = vpop.f32.mrf.mxu0
        %2958 = vmatprep.mubr.f32.mxu0 0.0
        %2959 = vmatmul.mubr.f32.gmra.mxu0 %v2881
        %v2960 = vpop.f32.mrf.mxu0
        %v2961 = vadd.f32 0.0, %v2960
        %v2962 = vpop.f32.mrf.mxu0
        %2963 = vmatprep.mubr.f32.mxu0 0.0
        %2964 = vmatmul.mubr.f32.gmra.mxu0 %v2884
        %v2965 = vpop.f32.mrf.mxu0
        %v2966 = vadd.f32 0.0, %v2965
        %v2967 = vpop.f32.mrf.mxu0
        %2968 = vmatprep.mubr.f32.mxu0 0.0
        %2969 = vmatmul.mubr.f32.gmra.mxu0 %v2887
        %v2970 = vpop.f32.mrf.mxu0
        %v2971 = vadd.f32 0.0, %v2970
        %v2972 = vpop.f32.mrf.mxu0
        %2973 = vdwg.mxu0
        %v2974 = vadd.f32 %v2592, %v2956
        %v2975 = vadd.f32 %v2593, %v2961
        %v2976 = vadd.f32 %v2594, %v2966
        %v2977 = vadd.f32 %v2595, %v2971
        %v2978 = vld [vmem:[%s1031] sm:$0x1]
        %v2980 = vlaneseq
        %v2981 = vshrl.u32 %v2980, 7
        %v2982 = vsub.s32 0, %v2981
        %v2983 = vrot.slane %v2978, %v2982
        %v2985 = vadd.f32 %v2974, %v2983
        %v2986 = vadd.f32 %v2975, %v2983
        %v2987 = vadd.f32 %v2976, %v2983
        %v2988 = vadd.f32 %v2977, %v2983
        %v2989 = vadd.f32 %v2985, %v1331
        %v2990 = vadd.f32 %v2986, %v1332
        %v2991 = vadd.f32 %v2987, %v1333
        %v2992 = vadd.f32 %v2988, %v1334
        %v2993 = vld [vmem:[%s1039] sm:$0x1]
        %v2994 = vld [vmem:[%s1047] sm:$0x1]
        %v2995 = vsel %vm1363, %v2989, 0.0
        %2996 = vadd.xlane.f32.xlu0 %v2995
        %v2997 = vpop.xlane.xlu0 %2996
        %v2998 = vsel %vm1363, %v2990, 0.0
        %2999 = vadd.xlane.f32.xlu0 %v2998
        %v3000 = vpop.xlane.xlu0 %2999
        %v3001 = vsel %vm1363, %v2991, 0.0
        %3002 = vadd.xlane.f32.xlu0 %v3001
        %v3003 = vpop.xlane.xlu0 %3002
        %v3004 = vsel %vm1363, %v2992, 0.0
        %3005 = vadd.xlane.f32.xlu0 %v3004
        %v3006 = vpop.xlane.xlu0 %3005
        %v3007 = vrcp.pop 64.0
        %v3008 = vmul.f32 %v2997, %v3007
        %v3009 = vmul.f32 %v3000, %v3007
        %v3010 = vmul.f32 %v3003, %v3007
        %v3011 = vmul.f32 %v3006, %v3007
        %v3012 = vsub.f32 %v2989, %v3008
        %v3013 = vsub.f32 %v2990, %v3009
        %v3014 = vsub.f32 %v2991, %v3010
        %v3015 = vsub.f32 %v2992, %v3011
        %v3016 = vmul.f32 %v3012, %v3012
        %v3017 = vmul.f32 %v3013, %v3013
        %v3018 = vmul.f32 %v3014, %v3014
        %v3019 = vmul.f32 %v3015, %v3015
        %v3020 = vsel %vm1363, %v3016, 0.0
        %3021 = vadd.xlane.f32.xlu0 %v3020
        %v3022 = vpop.xlane.xlu0 %3021
        %v3023 = vsel %vm1363, %v3017, 0.0
        %3024 = vadd.xlane.f32.xlu0 %v3023
        %v3025 = vpop.xlane.xlu0 %3024
        %v3026 = vsel %vm1363, %v3018, 0.0
        %3027 = vadd.xlane.f32.xlu0 %v3026
        %v3028 = vpop.xlane.xlu0 %3027
        %v3029 = vsel %vm1363, %v3019, 0.0
        %3030 = vadd.xlane.f32.xlu0 %v3029
        %v3031 = vpop.xlane.xlu0 %3030
        %v3032 = vmul.f32 %v3022, %v3007
        %v3033 = vmul.f32 %v3025, %v3007
        %v3034 = vmul.f32 %v3028, %v3007
        %v3035 = vmul.f32 %v3031, %v3007
        %v3036 = vadd.f32 %v3032, 1e-12
        %v3037 = vadd.f32 %v3033, 1e-12
        %v3038 = vadd.f32 %v3034, 1e-12
        %v3039 = vadd.f32 %v3035, 1e-12
        %v3040 = vrsqrt.pop %v3036
        %v3041 = vrsqrt.pop %v3037
        %v3042 = vrsqrt.pop %v3038
        %v3043 = vrsqrt.pop %v3039
        %v3044 = vmul.f32 %v3012, %v3040
        %v3045 = vmul.f32 %v3013, %v3041
        %v3046 = vmul.f32 %v3014, %v3042
        %v3047 = vmul.f32 %v3015, %v3043
        %v3049 = vlaneseq
        %v3050 = vshrl.u32 %v3049, 7
        %v3051 = vsub.s32 0, %v3050
        %v3052 = vrot.slane %v2993, %v3051
        %v3054 = vmul.f32 %v3044, %v3052
        %v3055 = vmul.f32 %v3045, %v3052
        %v3056 = vmul.f32 %v3046, %v3052
        %v3057 = vmul.f32 %v3047, %v3052
        %v3059 = vlaneseq
        %v3060 = vshrl.u32 %v3059, 7
        %v3061 = vsub.s32 0, %v3060
        %v3062 = vrot.slane %v2994, %v3061
        %v3064 = vadd.f32 %v3054, %v3062
        %v3065 = vadd.f32 %v3055, %v3062
        %v3066 = vadd.f32 %v3056, %v3062
        %v3067 = vadd.f32 %v3057, %v3062
        %v3068 = vld [vmem:[%s1056] sm:$0xff]
        %v3069 = vld [vmem:[%s1056 + $0x8] sm:$0xff]
        %v3070 = vld [vmem:[%s1056 + $0x10] sm:$0xff]
        %v3071 = vld [vmem:[%s1056 + $0x18] sm:$0xff]
        %v3072 = vld [vmem:[%s1056 + $0x20] sm:$0xff]
        %v3073 = vld [vmem:[%s1056 + $0x28] sm:$0xff]
        %v3074 = vld [vmem:[%s1056 + $0x30] sm:$0xff]
        %v3075 = vld [vmem:[%s1056 + $0x38] sm:$0xff]
        %v3076 = vld [vmem:[%s1064] sm:$0x1]
        %v3078 = vlaneseq
        %v3079 = vshrl.u32 %v3078, 7
        %v3080 = vsub.s32 0, %v3079
        %v3081 = vrot.slane %v3076, %v3080
        %v3084 = vsel %vm1363, %v3064, 0
        %v3087 = vsel %vm1363, %v3065, 0
        %v3090 = vsel %vm1363, %v3066, 0
        %v3093 = vsel %vm1363, %v3067, 0
        %3095 = vmatprep.subr.mxu0 0.0
        %3096 = vmatpush1.msra.mxu0 0.0
        %3097 = vmatprep.subr.mxu0 0.0
        %3098 = vmatpush1.msra.mxu0 0.0
        %3099 = vmatprep.subr.mxu0 0.0
        %3100 = vmatpush1.msra.mxu0 0.0
        %3101 = vmatprep.subr.mxu0 0.0
        %3102 = vmatpush1.msra.mxu0 0.0
        %3103 = vmatprep.subr.mxu0 0.0
        %3104 = vmatpush1.msra.mxu0 0.0
        %3105 = vmatprep.subr.mxu0 0.0
        %3106 = vmatpush1.msra.mxu0 0.0
        %3107 = vmatprep.subr.mxu0 0.0
        %3108 = vmatpush1.msra.mxu0 0.0
        %3109 = vmatprep.subr.mxu0 0.0
        %3110 = vmatpush1.msra.mxu0 0.0
        %3111 = vmatprep.subr.mxu0 0.0
        %3112 = vmatpush1.msra.mxu0 %v3075
        %3113 = vmatprep.subr.mxu0 0.0
        %3114 = vmatpush1.msra.mxu0 %v3074
        %3115 = vmatprep.subr.mxu0 0.0
        %3116 = vmatpush1.msra.mxu0 %v3073
        %3117 = vmatprep.subr.mxu0 0.0
        %3118 = vmatpush1.msra.mxu0 %v3072
        %3119 = vmatprep.subr.mxu0 0.0
        %3120 = vmatpush1.msra.mxu0 %v3071
        %3121 = vmatprep.subr.mxu0 0.0
        %3122 = vmatpush1.msra.mxu0 %v3070
        %3123 = vmatprep.subr.mxu0 0.0
        %3124 = vmatpush1.msra.mxu0 %v3069
        %3125 = vmatprep.subr.mxu0 0.0
        %3126 = vmatpush1.msra.mxu0 %v3068
        %3127 = vmatprep.subr.mxu0 0.0
        %3128 = vmatpush2.msra.mxu0 0.0
        %3129 = vmatprep.subr.mxu0 0.0
        %3130 = vmatpush2.msra.mxu0 0.0
        %3131 = vmatprep.subr.mxu0 0.0
        %3132 = vmatpush2.msra.mxu0 0.0
        %3133 = vmatprep.subr.mxu0 0.0
        %3134 = vmatpush2.msra.mxu0 0.0
        %3135 = vmatprep.subr.mxu0 0.0
        %3136 = vmatpush2.msra.mxu0 0.0
        %3137 = vmatprep.subr.mxu0 0.0
        %3138 = vmatpush2.msra.mxu0 0.0
        %3139 = vmatprep.subr.mxu0 0.0
        %3140 = vmatpush2.msra.mxu0 0.0
        %3141 = vmatprep.subr.mxu0 0.0
        %3142 = vmatpush2.msra.mxu0 0.0
        %3143 = vmatprep.subr.mxu0 0.0
        %3144 = vmatpush2.msra.mxu0 0.0
        %3145 = vmatprep.subr.mxu0 0.0
        %3146 = vmatpush2.msra.mxu0 0.0
        %3147 = vmatprep.subr.mxu0 0.0
        %3148 = vmatpush2.msra.mxu0 0.0
        %3149 = vmatprep.subr.mxu0 0.0
        %3150 = vmatpush2.msra.mxu0 0.0
        %3151 = vmatprep.subr.mxu0 0.0
        %3152 = vmatpush2.msra.mxu0 0.0
        %3153 = vmatprep.subr.mxu0 0.0
        %3154 = vmatpush2.msra.mxu0 0.0
        %3155 = vmatprep.subr.mxu0 0.0
        %3156 = vmatpush2.msra.mxu0 0.0
        %3157 = vmatprep.subr.mxu0 0.0
        %3158 = vmatpush2.msra.mxu0 0.0
        %3159 = vmatprep.mubr.f32.mxu0 0.0
        %3160 = vmatmul.mubr.f32.gmra.mxu0 %v3084
        %v3161 = vpop.f32.mrf.mxu0
        %v3162 = vadd.f32 %v3081, %v3161
        %v3163 = vpop.f32.mrf.mxu0
        %3164 = vmatprep.mubr.f32.mxu0 0.0
        %3165 = vmatmul.mubr.f32.gmra.mxu0 %v3087
        %v3166 = vpop.f32.mrf.mxu0
        %v3167 = vadd.f32 %v3081, %v3166
        %v3168 = vpop.f32.mrf.mxu0
        %3169 = vmatprep.mubr.f32.mxu0 0.0
        %3170 = vmatmul.mubr.f32.gmra.mxu0 %v3090
        %v3171 = vpop.f32.mrf.mxu0
        %v3172 = vadd.f32 %v3081, %v3171
        %v3173 = vpop.f32.mrf.mxu0
        %3174 = vmatprep.mubr.f32.mxu0 0.0
        %3175 = vmatmul.mubr.f32.gmra.mxu0 %v3093
        %v3176 = vpop.f32.mrf.mxu0
        %v3177 = vadd.f32 %v3081, %v3176
        %v3178 = vpop.f32.mrf.mxu0
        %3179 = vdwg.mxu0
        %v3180 = vmul.f32 %v3162, 0.5
        %v3181 = vmul.f32 %v3167, 0.5
        %v3182 = vmul.f32 %v3172, 0.5
        %v3183 = vmul.f32 %v3177, 0.5
        %v3184 = vmul.f32 %v3162, 0.044715
        %v3185 = vmul.f32 %v3167, 0.044715
        %v3186 = vmul.f32 %v3172, 0.044715
        %v3187 = vmul.f32 %v3177, 0.044715
        %v3188 = vmul.f32 %v3184, %v3162
        %v3189 = vmul.f32 %v3185, %v3167
        %v3190 = vmul.f32 %v3186, %v3172
        %v3191 = vmul.f32 %v3187, %v3177
        %v3192 = vmul.f32 %v3188, %v3162
        %v3193 = vmul.f32 %v3189, %v3167
        %v3194 = vmul.f32 %v3190, %v3172
        %v3195 = vmul.f32 %v3191, %v3177
        %v3196 = vadd.f32 %v3162, %v3192
        %v3197 = vadd.f32 %v3167, %v3193
        %v3198 = vadd.f32 %v3172, %v3194
        %v3199 = vadd.f32 %v3177, %v3195
        %v3200 = vmul.f32 %v3196, 0.7978846
        %v3201 = vmul.f32 %v3197, 0.7978846
        %v3202 = vmul.f32 %v3198, 0.7978846
        %v3203 = vmul.f32 %v3199, 0.7978846
        %v3204 = vtanh.pop %v3200
        %v3205 = vtanh.pop %v3201
        %v3206 = vtanh.pop %v3202
        %v3207 = vtanh.pop %v3203
        %v3208 = vadd.f32 %v3204, 1.0
        %v3209 = vadd.f32 %v3205, 1.0
        %v3210 = vadd.f32 %v3206, 1.0
        %v3211 = vadd.f32 %v3207, 1.0
        %v3212 = vmul.f32 %v3180, %v3208
        %v3213 = vmul.f32 %v3181, %v3209
        %v3214 = vmul.f32 %v3182, %v3210
        %v3215 = vmul.f32 %v3183, %v3211
        %v3216 = vld [vmem:[%s1230] sm:$0xff]
        %v3217 = vld [vmem:[%s1230 + $0x8] sm:$0xff]
        %v3218 = vld [vmem:[%s1230 + $0x10] sm:$0xff]
        %v3219 = vld [vmem:[%s1230 + $0x18] sm:$0xff]
        %v3220 = vld [vmem:[%s1230 + $0x20] sm:$0xff]
        %v3221 = vld [vmem:[%s1230 + $0x28] sm:$0xff]
        %v3222 = vld [vmem:[%s1230 + $0x30] sm:$0xff]
        %v3223 = vld [vmem:[%s1230 + $0x38] sm:$0xff]
        %v3224 = vld [vmem:[%s1230 + $0x40] sm:$0xff]
        %v3225 = vld [vmem:[%s1230 + $0x48] sm:$0xff]
        %v3226 = vld [vmem:[%s1230 + $0x50] sm:$0xff]
        %v3227 = vld [vmem:[%s1230 + $0x58] sm:$0xff]
        %v3228 = vld [vmem:[%s1230 + $0x60] sm:$0xff]
        %v3229 = vld [vmem:[%s1230 + $0x68] sm:$0xff]
        %v3230 = vld [vmem:[%s1230 + $0x70] sm:$0xff]
        %v3231 = vld [vmem:[%s1230 + $0x78] sm:$0xff]
        %v3232 = vld [vmem:[%s1072] sm:$0x1]
        %v3234 = vlaneseq
        %v3235 = vshrl.u32 %v3234, 7
        %v3236 = vsub.s32 0, %v3235
        %v3237 = vrot.slane %v3232, %v3236
        %3239 = vmatprep.subr.mxu0 0.0
        %3240 = vmatpush1.msra.mxu0 %v3231
        %3241 = vmatprep.subr.mxu0 0.0
        %3242 = vmatpush1.msra.mxu0 %v3230
        %3243 = vmatprep.subr.mxu0 0.0
        %3244 = vmatpush1.msra.mxu0 %v3229
        %3245 = vmatprep.subr.mxu0 0.0
        %3246 = vmatpush1.msra.mxu0 %v3228
        %3247 = vmatprep.subr.mxu0 0.0
        %3248 = vmatpush1.msra.mxu0 %v3227
        %3249 = vmatprep.subr.mxu0 0.0
        %3250 = vmatpush1.msra.mxu0 %v3226
        %3251 = vmatprep.subr.mxu0 0.0
        %3252 = vmatpush1.msra.mxu0 %v3225
        %3253 = vmatprep.subr.mxu0 0.0
        %3254 = vmatpush1.msra.mxu0 %v3224
        %3255 = vmatprep.subr.mxu0 0.0
        %3256 = vmatpush1.msra.mxu0 %v3223
        %3257 = vmatprep.subr.mxu0 0.0
        %3258 = vmatpush1.msra.mxu0 %v3222
        %3259 = vmatprep.subr.mxu0 0.0
        %3260 = vmatpush1.msra.mxu0 %v3221
        %3261 = vmatprep.subr.mxu0 0.0
        %3262 = vmatpush1.msra.mxu0 %v3220
        %3263 = vmatprep.subr.mxu0 0.0
        %3264 = vmatpush1.msra.mxu0 %v3219
        %3265 = vmatprep.subr.mxu0 0.0
        %3266 = vmatpush1.msra.mxu0 %v3218
        %3267 = vmatprep.subr.mxu0 0.0
        %3268 = vmatpush1.msra.mxu0 %v3217
        %3269 = vmatprep.subr.mxu0 0.0
        %3270 = vmatpush1.msra.mxu0 %v3216
        %3271 = vmatprep.subr.mxu0 0.0
        %3272 = vmatpush2.msra.mxu0 0.0
        %3273 = vmatprep.subr.mxu0 0.0
        %3274 = vmatpush2.msra.mxu0 0.0
        %3275 = vmatprep.subr.mxu0 0.0
        %3276 = vmatpush2.msra.mxu0 0.0
        %3277 = vmatprep.subr.mxu0 0.0
        %3278 = vmatpush2.msra.mxu0 0.0
        %3279 = vmatprep.subr.mxu0 0.0
        %3280 = vmatpush2.msra.mxu0 0.0
        %3281 = vmatprep.subr.mxu0 0.0
        %3282 = vmatpush2.msra.mxu0 0.0
        %3283 = vmatprep.subr.mxu0 0.0
        %3284 = vmatpush2.msra.mxu0 0.0
        %3285 = vmatprep.subr.mxu0 0.0
        %3286 = vmatpush2.msra.mxu0 0.0
        %3287 = vmatprep.subr.mxu0 0.0
        %3288 = vmatpush2.msra.mxu0 0.0
        %3289 = vmatprep.subr.mxu0 0.0
        %3290 = vmatpush2.msra.mxu0 0.0
        %3291 = vmatprep.subr.mxu0 0.0
        %3292 = vmatpush2.msra.mxu0 0.0
        %3293 = vmatprep.subr.mxu0 0.0
        %3294 = vmatpush2.msra.mxu0 0.0
        %3295 = vmatprep.subr.mxu0 0.0
        %3296 = vmatpush2.msra.mxu0 0.0
        %3297 = vmatprep.subr.mxu0 0.0
        %3298 = vmatpush2.msra.mxu0 0.0
        %3299 = vmatprep.subr.mxu0 0.0
        %3300 = vmatpush2.msra.mxu0 0.0
        %3301 = vmatprep.subr.mxu0 0.0
        %3302 = vmatpush2.msra.mxu0 0.0
        %3303 = vmatprep.mubr.f32.mxu0 0.0
        %3304 = vmatmul.mubr.f32.gmra.mxu0 %v3212
        %v3305 = vpop.f32.mrf.mxu0
        %v3306 = vadd.f32 %v3237, %v3305
        %v3307 = vpop.f32.mrf.mxu0
        %3308 = vmatprep.mubr.f32.mxu0 0.0
        %3309 = vmatmul.mubr.f32.gmra.mxu0 %v3213
        %v3310 = vpop.f32.mrf.mxu0
        %v3311 = vadd.f32 %v3237, %v3310
        %v3312 = vpop.f32.mrf.mxu0
        %3313 = vmatprep.mubr.f32.mxu0 0.0
        %3314 = vmatmul.mubr.f32.gmra.mxu0 %v3214
        %v3315 = vpop.f32.mrf.mxu0
        %v3316 = vadd.f32 %v3237, %v3315
        %v3317 = vpop.f32.mrf.mxu0
        %3318 = vmatprep.mubr.f32.mxu0 0.0
        %3319 = vmatmul.mubr.f32.gmra.mxu0 %v3215
        %v3320 = vpop.f32.mrf.mxu0
        %v3321 = vadd.f32 %v3237, %v3320
        %v3322 = vpop.f32.mrf.mxu0
        %3323 = vdwg.mxu0
        %v3324 = vadd.f32 %v3306, %v3064
        %v3325 = vadd.f32 %v3311, %v3065
        %v3326 = vadd.f32 %v3316, %v3066
        %v3327 = vadd.f32 %v3321, %v3067
        %v3328 = vld [vmem:[%s1080] sm:$0x1]
        %v3329 = vld [vmem:[%s1088] sm:$0x1]
        %v3330 = vsel %vm1363, %v3324, 0.0
        %3331 = vadd.xlane.f32.xlu0 %v3330
        %v3332 = vpop.xlane.xlu0 %3331
        %v3333 = vsel %vm1363, %v3325, 0.0
        %3334 = vadd.xlane.f32.xlu0 %v3333
        %v3335 = vpop.xlane.xlu0 %3334
        %v3336 = vsel %vm1363, %v3326, 0.0
        %3337 = vadd.xlane.f32.xlu0 %v3336
        %v3338 = vpop.xlane.xlu0 %3337
        %v3339 = vsel %vm1363, %v3327, 0.0
        %3340 = vadd.xlane.f32.xlu0 %v3339
        %v3341 = vpop.xlane.xlu0 %3340
        %v3342 = vmul.f32 %v3332, %v3007
        %v3343 = vmul.f32 %v3335, %v3007
        %v3344 = vmul.f32 %v3338, %v3007
        %v3345 = vmul.f32 %v3341, %v3007
        %v3346 = vsub.f32 %v3324, %v3342
        %v3347 = vsub.f32 %v3325, %v3343
        %v3348 = vsub.f32 %v3326, %v3344
        %v3349 = vsub.f32 %v3327, %v3345
        %v3350 = vmul.f32 %v3346, %v3346
        %v3351 = vmul.f32 %v3347, %v3347
        %v3352 = vmul.f32 %v3348, %v3348
        %v3353 = vmul.f32 %v3349, %v3349
        %v3354 = vsel %vm1363, %v3350, 0.0
        %3355 = vadd.xlane.f32.xlu0 %v3354
        %v3356 = vpop.xlane.xlu0 %3355
        %v3357 = vsel %vm1363, %v3351, 0.0
        %3358 = vadd.xlane.f32.xlu0 %v3357
        %v3359 = vpop.xlane.xlu0 %3358
        %v3360 = vsel %vm1363, %v3352, 0.0
        %3361 = vadd.xlane.f32.xlu0 %v3360
        %v3362 = vpop.xlane.xlu0 %3361
        %v3363 = vsel %vm1363, %v3353, 0.0
        %3364 = vadd.xlane.f32.xlu0 %v3363
        %v3365 = vpop.xlane.xlu0 %3364
        %v3366 = vmul.f32 %v3356, %v3007
        %v3367 = vmul.f32 %v3359, %v3007
        %v3368 = vmul.f32 %v3362, %v3007
        %v3369 = vmul.f32 %v3365, %v3007
        %v3370 = vadd.f32 %v3366, 1e-12
        %v3371 = vadd.f32 %v3367, 1e-12
        %v3372 = vadd.f32 %v3368, 1e-12
        %v3373 = vadd.f32 %v3369, 1e-12
        %v3374 = vrsqrt.pop %v3370
        %v3375 = vrsqrt.pop %v3371
        %v3376 = vrsqrt.pop %v3372
        %v3377 = vrsqrt.pop %v3373
        %v3378 = vmul.f32 %v3346, %v3374
        %v3379 = vmul.f32 %v3347, %v3375
        %v3380 = vmul.f32 %v3348, %v3376
        %v3381 = vmul.f32 %v3349, %v3377
        %v3383 = vlaneseq
        %v3384 = vshrl.u32 %v3383, 7
        %v3385 = vsub.s32 0, %v3384
        %v3386 = vrot.slane %v3328, %v3385
        %v3388 = vmul.f32 %v3378, %v3386
        %v3389 = vmul.f32 %v3379, %v3386
        %v3390 = vmul.f32 %v3380, %v3386
        %v3391 = vmul.f32 %v3381, %v3386
        %v3393 = vlaneseq
        %v3394 = vshrl.u32 %v3393, 7
        %v3395 = vsub.s32 0, %v3394
        %v3396 = vrot.slane %v3329, %v3395
        %v3398 = vadd.f32 %v3388, %v3396
        %v3399 = vadd.f32 %v3389, %v3396
        %v3400 = vadd.f32 %v3390, %v3396
        %v3401 = vadd.f32 %v3391, %v3396
        %3402 = vst.msk [vmem:[#allocation2] sm:$0xff] %vm1363, %v3398
        %3403 = vst.msk [vmem:[#allocation2 + $0x8] sm:$0xff] %vm1363, %v3399
        %3404 = vst.msk [vmem:[#allocation2 + $0x10] sm:$0xff] %vm1363, %v3400
        %3405 = vst.msk [vmem:[#allocation2 + $0x18] sm:$0xff] %vm1363, %v3401
        %p3406 = scmp.eq.s32.totalorder %s45, 5
        // Predicated region
        $region205: #{model_forward.1} parent=115 // pred_check
          %p3407 = pneg %p3406
        $region206: #{model_forward.1} parent=115 // pred_check_branch
          %3409 = sbr.rel (%p3407) target = $region208
        $region207: #{model_forward.1} parent=115 // pred_region
          %v3410 = vld [vmem:[#allocation21] sm:$0xff]
          %v3411 = vld [vmem:[#allocation21 + $0x8] sm:$0xff]
          %v3412 = vld [vmem:[#allocation21 + $0x10] sm:$0xff]
          %v3413 = vld [vmem:[#allocation21 + $0x18] sm:$0xff]
          %v3414 = vld [vmem:[#allocation21 + $0x20] sm:$0xff]
          %v3415 = vld [vmem:[#allocation21 + $0x28] sm:$0xff]
          %v3416 = vld [vmem:[#allocation21 + $0x30] sm:$0xff]
          %v3417 = vld [vmem:[#allocation21 + $0x38] sm:$0xff]
          %v3418 = vld [vmem:[#allocation22] sm:$0x1]
          %v3420 = vlaneseq
          %v3421 = vshrl.u32 %v3420, 7
          %v3422 = vsub.s32 0, %v3421
          %v3423 = vrot.slane %v3418, %v3422
          %v3426 = vsel %vm1363, %v3398, 0
          %v3429 = vsel %vm1363, %v3399, 0
          %v3432 = vsel %vm1363, %v3400, 0
          %v3435 = vsel %vm1363, %v3401, 0
          %3437 = vmatprep.subr.mxu0 0.0
          %3438 = vmatpush1.msra.mxu0 0.0
          %3439 = vmatprep.subr.mxu0 0.0
          %3440 = vmatpush1.msra.mxu0 0.0
          %3441 = vmatprep.subr.mxu0 0.0
          %3442 = vmatpush1.msra.mxu0 0.0
          %3443 = vmatprep.subr.mxu0 0.0
          %3444 = vmatpush1.msra.mxu0 0.0
          %3445 = vmatprep.subr.mxu0 0.0
          %3446 = vmatpush1.msra.mxu0 0.0
          %3447 = vmatprep.subr.mxu0 0.0
          %3448 = vmatpush1.msra.mxu0 0.0
          %3449 = vmatprep.subr.mxu0 0.0
          %3450 = vmatpush1.msra.mxu0 0.0
          %3451 = vmatprep.subr.mxu0 0.0
          %3452 = vmatpush1.msra.mxu0 0.0
          %3453 = vmatprep.subr.mxu0 0.0
          %3454 = vmatpush1.msra.mxu0 %v3417
          %3455 = vmatprep.subr.mxu0 0.0
          %3456 = vmatpush1.msra.mxu0 %v3416
          %3457 = vmatprep.subr.mxu0 0.0
          %3458 = vmatpush1.msra.mxu0 %v3415
          %3459 = vmatprep.subr.mxu0 0.0
          %3460 = vmatpush1.msra.mxu0 %v3414
          %3461 = vmatprep.subr.mxu0 0.0
          %3462 = vmatpush1.msra.mxu0 %v3413
          %3463 = vmatprep.subr.mxu0 0.0
          %3464 = vmatpush1.msra.mxu0 %v3412
          %3465 = vmatprep.subr.mxu0 0.0
          %3466 = vmatpush1.msra.mxu0 %v3411
          %3467 = vmatprep.subr.mxu0 0.0
          %3468 = vmatpush1.msra.mxu0 %v3410
          %3469 = vmatprep.subr.mxu0 0.0
          %3470 = vmatpush2.msra.mxu0 0.0
          %3471 = vmatprep.subr.mxu0 0.0
          %3472 = vmatpush2.msra.mxu0 0.0
          %3473 = vmatprep.subr.mxu0 0.0
          %3474 = vmatpush2.msra.mxu0 0.0
          %3475 = vmatprep.subr.mxu0 0.0
          %3476 = vmatpush2.msra.mxu0 0.0
          %3477 = vmatprep.subr.mxu0 0.0
          %3478 = vmatpush2.msra.mxu0 0.0
          %3479 = vmatprep.subr.mxu0 0.0
          %3480 = vmatpush2.msra.mxu0 0.0
          %3481 = vmatprep.subr.mxu0 0.0
          %3482 = vmatpush2.msra.mxu0 0.0
          %3483 = vmatprep.subr.mxu0 0.0
          %3484 = vmatpush2.msra.mxu0 0.0
          %3485 = vmatprep.subr.mxu0 0.0
          %3486 = vmatpush2.msra.mxu0 0.0
          %3487 = vmatprep.subr.mxu0 0.0
          %3488 = vmatpush2.msra.mxu0 0.0
          %3489 = vmatprep.subr.mxu0 0.0
          %3490 = vmatpush2.msra.mxu0 0.0
          %3491 = vmatprep.subr.mxu0 0.0
          %3492 = vmatpush2.msra.mxu0 0.0
          %3493 = vmatprep.subr.mxu0 0.0
          %3494 = vmatpush2.msra.mxu0 0.0
          %3495 = vmatprep.subr.mxu0 0.0
          %3496 = vmatpush2.msra.mxu0 0.0
          %3497 = vmatprep.subr.mxu0 0.0
          %3498 = vmatpush2.msra.mxu0 0.0
          %3499 = vmatprep.subr.mxu0 0.0
          %3500 = vmatpush2.msra.mxu0 0.0
          %3501 = vmatprep.mubr.f32.mxu0 0.0
          %3502 = vmatmul.mubr.f32.gmra.mxu0 %v3426
          %v3503 = vpop.f32.mrf.mxu0
          %v3504 = vadd.f32 %v3423, %v3503
          %v3505 = vpop.f32.mrf.mxu0
          %3506 = vmatprep.mubr.f32.mxu0 0.0
          %3507 = vmatmul.mubr.f32.gmra.mxu0 %v3429
          %v3508 = vpop.f32.mrf.mxu0
          %v3509 = vadd.f32 %v3423, %v3508
          %v3510 = vpop.f32.mrf.mxu0
          %3511 = vmatprep.mubr.f32.mxu0 0.0
          %3512 = vmatmul.mubr.f32.gmra.mxu0 %v3432
          %v3513 = vpop.f32.mrf.mxu0
          %v3514 = vadd.f32 %v3423, %v3513
          %v3515 = vpop.f32.mrf.mxu0
          %3516 = vmatprep.mubr.f32.mxu0 0.0
          %3517 = vmatmul.mubr.f32.gmra.mxu0 %v3435
          %v3518 = vpop.f32.mrf.mxu0
          %v3519 = vadd.f32 %v3423, %v3518
          %v3520 = vpop.f32.mrf.mxu0
          %3521 = vdwg.mxu0
          %v3522 = vmul.f32 %v3504, 0.5
          %v3523 = vmul.f32 %v3509, 0.5
          %v3524 = vmul.f32 %v3514, 0.5
          %v3525 = vmul.f32 %v3519, 0.5
          %v3526 = vmul.f32 %v3504, 0.044715
          %v3527 = vmul.f32 %v3509, 0.044715
          %v3528 = vmul.f32 %v3514, 0.044715
          %v3529 = vmul.f32 %v3519, 0.044715
          %v3530 = vmul.f32 %v3526, %v3504
          %v3531 = vmul.f32 %v3527, %v3509
          %v3532 = vmul.f32 %v3528, %v3514
          %v3533 = vmul.f32 %v3529, %v3519
          %v3534 = vmul.f32 %v3530, %v3504
          %v3535 = vmul.f32 %v3531, %v3509
          %v3536 = vmul.f32 %v3532, %v3514
          %v3537 = vmul.f32 %v3533, %v3519
          %v3538 = vadd.f32 %v3504, %v3534
          %v3539 = vadd.f32 %v3509, %v3535
          %v3540 = vadd.f32 %v3514, %v3536
          %v3541 = vadd.f32 %v3519, %v3537
          %v3542 = vmul.f32 %v3538, 0.7978846
          %v3543 = vmul.f32 %v3539, 0.7978846
          %v3544 = vmul.f32 %v3540, 0.7978846
          %v3545 = vmul.f32 %v3541, 0.7978846
          %v3546 = vtanh.pop %v3542
          %v3547 = vtanh.pop %v3543
          %v3548 = vtanh.pop %v3544
          %v3549 = vtanh.pop %v3545
          %v3550 = vadd.f32 %v3546, 1.0
          %v3551 = vadd.f32 %v3547, 1.0
          %v3552 = vadd.f32 %v3548, 1.0
          %v3553 = vadd.f32 %v3549, 1.0
          %v3554 = vmul.f32 %v3522, %v3550
          %v3555 = vmul.f32 %v3523, %v3551
          %v3556 = vmul.f32 %v3524, %v3552
          %v3557 = vmul.f32 %v3525, %v3553
          %v3558 = vld [vmem:[#allocation24] sm:$0x1]
          %v3559 = vld [vmem:[#allocation25] sm:$0x1]
          %v3560 = vsel %vm1363, %v3554, 0.0
          %3561 = vadd.xlane.f32.xlu0 %v3560
          %v3562 = vpop.xlane.xlu0 %3561
          %v3563 = vsel %vm1363, %v3555, 0.0
          %3564 = vadd.xlane.f32.xlu0 %v3563
          %v3565 = vpop.xlane.xlu0 %3564
          %v3566 = vsel %vm1363, %v3556, 0.0
          %3567 = vadd.xlane.f32.xlu0 %v3566
          %v3568 = vpop.xlane.xlu0 %3567
          %v3569 = vsel %vm1363, %v3557, 0.0
          %3570 = vadd.xlane.f32.xlu0 %v3569
          %v3571 = vpop.xlane.xlu0 %3570
          %v3572 = vmul.f32 %v3562, %v3007
          %v3573 = vmul.f32 %v3565, %v3007
          %v3574 = vmul.f32 %v3568, %v3007
          %v3575 = vmul.f32 %v3571, %v3007
          %v3576 = vsub.f32 %v3554, %v3572
          %v3577 = vsub.f32 %v3555, %v3573
          %v3578 = vsub.f32 %v3556, %v3574
          %v3579 = vsub.f32 %v3557, %v3575
          %v3580 = vmul.f32 %v3576, %v3576
          %v3581 = vmul.f32 %v3577, %v3577
          %v3582 = vmul.f32 %v3578, %v3578
          %v3583 = vmul.f32 %v3579, %v3579
          %v3584 = vsel %vm1363, %v3580, 0.0
          %3585 = vadd.xlane.f32.xlu0 %v3584
          %v3586 = vpop.xlane.xlu0 %3585
          %v3587 = vsel %vm1363, %v3581, 0.0
          %3588 = vadd.xlane.f32.xlu0 %v3587
          %v3589 = vpop.xlane.xlu0 %3588
          %v3590 = vsel %vm1363, %v3582, 0.0
          %3591 = vadd.xlane.f32.xlu0 %v3590
          %v3592 = vpop.xlane.xlu0 %3591
          %v3593 = vsel %vm1363, %v3583, 0.0
          %3594 = vadd.xlane.f32.xlu0 %v3593
          %v3595 = vpop.xlane.xlu0 %3594
          %v3596 = vmul.f32 %v3586, %v3007
          %v3597 = vmul.f32 %v3589, %v3007
          %v3598 = vmul.f32 %v3592, %v3007
          %v3599 = vmul.f32 %v3595, %v3007
          %v3600 = vadd.f32 %v3596, 1e-12
          %v3601 = vadd.f32 %v3597, 1e-12
          %v3602 = vadd.f32 %v3598, 1e-12
          %v3603 = vadd.f32 %v3599, 1e-12
          %v3604 = vrsqrt.pop %v3600
          %v3605 = vrsqrt.pop %v3601
          %v3606 = vrsqrt.pop %v3602
          %v3607 = vrsqrt.pop %v3603
          %v3608 = vmul.f32 %v3576, %v3604
          %v3609 = vmul.f32 %v3577, %v3605
          %v3610 = vmul.f32 %v3578, %v3606
          %v3611 = vmul.f32 %v3579, %v3607
          %v3613 = vlaneseq
          %v3614 = vshrl.u32 %v3613, 7
          %v3615 = vsub.s32 0, %v3614
          %v3616 = vrot.slane %v3558, %v3615
          %v3618 = vmul.f32 %v3608, %v3616
          %v3619 = vmul.f32 %v3609, %v3616
          %v3620 = vmul.f32 %v3610, %v3616
          %v3621 = vmul.f32 %v3611, %v3616
          %v3623 = vlaneseq
          %v3624 = vshrl.u32 %v3623, 7
          %v3625 = vsub.s32 0, %v3624
          %v3626 = vrot.slane %v3559, %v3625
          %v3628 = vadd.f32 %v3618, %v3626
          %v3629 = vadd.f32 %v3619, %v3626
          %v3630 = vadd.f32 %v3620, %v3626
          %v3631 = vadd.f32 %v3621, %v3626
          %v3632 = vpack.c.bf16 %v3629, %v3628
          %v3633 = vpack.c.bf16 %v3631, %v3630
          %v3634 = vld [vmem:[#allocation27] sm:$0xff]
          %v3635 = vld [vmem:[#allocation27 + $0x8] sm:$0xff]
          %v3636 = vld [vmem:[#allocation27 + $0x10] sm:$0xff]
          %v3637 = vld [vmem:[#allocation27 + $0x18] sm:$0xff]
          %v3638 = vld [vmem:[#allocation27 + $0x20] sm:$0xff]
          %v3639 = vld [vmem:[#allocation27 + $0x28] sm:$0xff]
          %v3640 = vld [vmem:[#allocation27 + $0x30] sm:$0xff]
          %v3641 = vld [vmem:[#allocation27 + $0x38] sm:$0xff]
          %v3642 = vld [vmem:[#allocation27 + $0x40] sm:$0xff]
          %v3643 = vld [vmem:[#allocation27 + $0x48] sm:$0xff]
          %v3644 = vld [vmem:[#allocation27 + $0x50] sm:$0xff]
          %v3645 = vld [vmem:[#allocation27 + $0x58] sm:$0xff]
          %v3646 = vld [vmem:[#allocation27 + $0x60] sm:$0xff]
          %v3647 = vld [vmem:[#allocation27 + $0x68] sm:$0xff]
          %v3648 = vld [vmem:[#allocation27 + $0x70] sm:$0xff]
          %v3649 = vld [vmem:[#allocation27 + $0x78] sm:$0xff]
          %v3650 = vld [vmem:[#allocation28] sm:$0xf]
          %v3652 = vlaneseq
          %v3653 = vshrl.u32 %v3652, 7
          %v3654 = vsub.s32 0, %v3653
          %v3655 = vrot.slane %v3650, %v3654
          %v3656 = vlaneseq
          %v3657 = vshrl.u32 %v3656, 7
          %v3658 = vsub.s32 1, %v3657
          %v3659 = vrot.slane %v3650, %v3658
          %v3660 = vlaneseq
          %v3661 = vshrl.u32 %v3660, 7
          %v3662 = vsub.s32 2, %v3661
          %v3663 = vrot.slane %v3650, %v3662
          %v3664 = vlaneseq
          %v3665 = vshrl.u32 %v3664, 7
          %v3666 = vsub.s32 3, %v3665
          %v3667 = vrot.slane %v3650, %v3666
          %v3688 = vunpack.c.l.b16 %v3634
          %v3689 = vunpack.c.h.b16 %v3634
          %v3690 = vunpack.c.l.b16 %v3635
          %v3691 = vunpack.c.h.b16 %v3635
          %v3692 = vunpack.c.l.b16 %v3636
          %v3693 = vunpack.c.h.b16 %v3636
          %v3694 = vunpack.c.l.b16 %v3637
          %v3695 = vunpack.c.h.b16 %v3637
          %v3696 = vunpack.c.l.b16 %v3638
          %v3697 = vunpack.c.h.b16 %v3638
          %v3698 = vunpack.c.l.b16 %v3639
          %v3699 = vunpack.c.h.b16 %v3639
          %v3700 = vunpack.c.l.b16 %v3640
          %v3701 = vunpack.c.h.b16 %v3640
          %v3702 = vunpack.c.l.b16 %v3641
          %v3703 = vunpack.c.h.b16 %v3641
          %v3704 = vunpack.c.l.b16 %v3642
          %v3705 = vunpack.c.h.b16 %v3642
          %v3706 = vunpack.c.l.b16 %v3643
          %v3707 = vunpack.c.h.b16 %v3643
          %v3708 = vunpack.c.l.b16 %v3644
          %v3709 = vunpack.c.h.b16 %v3644
          %v3710 = vunpack.c.l.b16 %v3645
          %v3711 = vunpack.c.h.b16 %v3645
          %v3712 = vunpack.c.l.b16 %v3646
          %v3713 = vunpack.c.h.b16 %v3646
          %v3714 = vunpack.c.l.b16 %v3647
          %v3715 = vunpack.c.h.b16 %v3647
          %v3716 = vunpack.c.l.b16 %v3648
          %v3717 = vunpack.c.h.b16 %v3648
          %v3718 = vunpack.c.l.b16 %v3649
          %v3719 = vunpack.c.h.b16 %v3649
          %v3720 = vpack.c.b16 %v3692, %v3688
          %v3721 = vpack.c.b16 %v3693, %v3689
          %v3722 = vpack.c.b16 %v3694, %v3690
          %v3723 = vpack.c.b16 %v3695, %v3691
          %v3724 = vpack.c.b16 %v3700, %v3696
          %v3725 = vpack.c.b16 %v3701, %v3697
          %v3726 = vpack.c.b16 %v3702, %v3698
          %v3727 = vpack.c.b16 %v3703, %v3699
          %v3728 = vpack.c.b16 %v3708, %v3704
          %v3729 = vpack.c.b16 %v3709, %v3705
          %v3730 = vpack.c.b16 %v3710, %v3706
          %v3731 = vpack.c.b16 %v3711, %v3707
          %v3732 = vpack.c.b16 %v3716, %v3712
          %v3733 = vpack.c.b16 %v3717, %v3713
          %v3734 = vpack.c.b16 %v3718, %v3714
          %v3735 = vpack.c.b16 %v3719, %v3715
          %v3753 = vsel %vm1363, %v3632, 0
          %v3756 = vsel %vm1363, %v3633, 0
          %3758 = vmatprep.subr.bf16.mxu0 0
          %3759 = vmatpush1.bf16.msra.mxu0 0
          %3760 = vmatprep.subr.bf16.mxu0 0
          %3761 = vmatpush1.bf16.msra.mxu0 0
          %3762 = vmatprep.subr.bf16.mxu0 0
          %3763 = vmatpush1.bf16.msra.mxu0 0
          %3764 = vmatprep.subr.bf16.mxu0 0
          %3765 = vmatpush1.bf16.msra.mxu0 0
          %3766 = vmatprep.subr.bf16.mxu0 %v3733
          %3767 = vmatpush1.bf16.msra.mxu0 %v3732
          %3768 = vmatprep.subr.bf16.mxu0 %v3729
          %3769 = vmatpush1.bf16.msra.mxu0 %v3728
          %3770 = vmatprep.subr.bf16.mxu0 %v3725
          %3771 = vmatpush1.bf16.msra.mxu0 %v3724
          %3772 = vmatprep.subr.bf16.mxu0 %v3721
          %3773 = vmatpush1.bf16.msra.mxu0 %v3720
          %3774 = vmatprep.subr.bf16.mxu0 0
          %3775 = vmatpush2.bf16.msra.mxu0 0
          %3776 = vmatprep.subr.bf16.mxu0 0
          %3777 = vmatpush2.bf16.msra.mxu0 0
          %3778 = vmatprep.subr.bf16.mxu0 0
          %3779 = vmatpush2.bf16.msra.mxu0 0
          %3780 = vmatprep.subr.bf16.mxu0 0
          %3781 = vmatpush2.bf16.msra.mxu0 0
          %3782 = vmatprep.subr.bf16.mxu0 0
          %3783 = vmatpush2.bf16.msra.mxu0 0
          %3784 = vmatprep.subr.bf16.mxu0 0
          %3785 = vmatpush2.bf16.msra.mxu0 0
          %3786 = vmatprep.subr.bf16.mxu0 0
          %3787 = vmatpush2.bf16.msra.mxu0 0
          %3788 = vmatprep.subr.bf16.mxu0 0
          %3789 = vmatpush2.bf16.msra.mxu0 0
          %3790 = vmatprep.mubr.bf16.mxu0 0
          %3791 = vmatmul.mubr.bf16.gmra.mxu0 %v3753
          %v3792 = vpop.f32.mrf.mxu0
          %v3793 = vadd.f32 %v3655, %v3792
          %v3794 = vpop.f32.mrf.mxu0
          %v3795 = vadd.f32 %v3659, %v3794
          %v3796 = vpop.f32.mrf.mxu0
          %v3797 = vadd.f32 %v3655, %v3796
          %v3798 = vpop.f32.mrf.mxu0
          %v3799 = vadd.f32 %v3659, %v3798
          %3800 = vmatprep.mubr.bf16.mxu0 0
          %3801 = vmatmul.mubr.bf16.gmra.mxu0 %v3756
          %v3802 = vpop.f32.mrf.mxu0
          %v3803 = vadd.f32 %v3655, %v3802
          %v3804 = vpop.f32.mrf.mxu0
          %v3805 = vadd.f32 %v3659, %v3804
          %v3806 = vpop.f32.mrf.mxu0
          %v3807 = vadd.f32 %v3655, %v3806
          %v3808 = vpop.f32.mrf.mxu0
          %v3809 = vadd.f32 %v3659, %v3808
          %3810 = vdwg.mxu0
          %3811 = vmatprep.subr.bf16.mxu0 0
          %3812 = vmatpush1.bf16.msra.mxu0 0
          %3813 = vmatprep.subr.bf16.mxu0 0
          %3814 = vmatpush1.bf16.msra.mxu0 0
          %3815 = vmatprep.subr.bf16.mxu0 0
          %3816 = vmatpush1.bf16.msra.mxu0 0
          %3817 = vmatprep.subr.bf16.mxu0 0
          %3818 = vmatpush1.bf16.msra.mxu0 0
          %3819 = vmatprep.subr.bf16.mxu0 %v3735
          %3820 = vmatpush1.bf16.msra.mxu0 %v3734
          %3821 = vmatprep.subr.bf16.mxu0 %v3731
          %3822 = vmatpush1.bf16.msra.mxu0 %v3730
          %3823 = vmatprep.subr.bf16.mxu0 %v3727
          %3824 = vmatpush1.bf16.msra.mxu0 %v3726
          %3825 = vmatprep.subr.bf16.mxu0 %v3723
          %3826 = vmatpush1.bf16.msra.mxu0 %v3722
          %3827 = vmatprep.subr.bf16.mxu0 0
          %3828 = vmatpush2.bf16.msra.mxu0 0
          %3829 = vmatprep.subr.bf16.mxu0 0
          %3830 = vmatpush2.bf16.msra.mxu0 0
          %3831 = vmatprep.subr.bf16.mxu0 0
          %3832 = vmatpush2.bf16.msra.mxu0 0
          %3833 = vmatprep.subr.bf16.mxu0 0
          %3834 = vmatpush2.bf16.msra.mxu0 0
          %3835 = vmatprep.subr.bf16.mxu0 0
          %3836 = vmatpush2.bf16.msra.mxu0 0
          %3837 = vmatprep.subr.bf16.mxu0 0
          %3838 = vmatpush2.bf16.msra.mxu0 0
          %3839 = vmatprep.subr.bf16.mxu0 0
          %3840 = vmatpush2.bf16.msra.mxu0 0
          %3841 = vmatprep.subr.bf16.mxu0 0
          %3842 = vmatpush2.bf16.msra.mxu0 0
          %3843 = vmatprep.mubr.bf16.mxu0 0
          %3844 = vmatmul.mubr.bf16.gmra.mxu0 %v3753
          %v3845 = vpop.f32.mrf.mxu0
          %v3846 = vadd.f32 %v3663, %v3845
          %v3847 = vpop.f32.mrf.mxu0
          %v3848 = vadd.f32 %v3667, %v3847
          %v3849 = vpop.f32.mrf.mxu0
          %v3850 = vadd.f32 %v3663, %v3849
          %v3851 = vpop.f32.mrf.mxu0
          %v3852 = vadd.f32 %v3667, %v3851
          %3853 = vmatprep.mubr.bf16.mxu0 0
          %3854 = vmatmul.mubr.bf16.gmra.mxu0 %v3756
          %v3855 = vpop.f32.mrf.mxu0
          %v3856 = vadd.f32 %v3663, %v3855
          %v3857 = vpop.f32.mrf.mxu0
          %v3858 = vadd.f32 %v3667, %v3857
          %v3859 = vpop.f32.mrf.mxu0
          %v3860 = vadd.f32 %v3663, %v3859
          %v3861 = vpop.f32.mrf.mxu0
          %v3862 = vadd.f32 %v3667, %v3861
          %3863 = vdwg.mxu0
          %v3864 = vld [vmem:[%s16] sm:$0xff]
          %v3865 = vld [vmem:[%s16 + $0x8] sm:$0xff]
          %v3866 = vld [vmem:[%s16 + $0x10] sm:$0xff]
          %v3867 = vld [vmem:[%s16 + $0x18] sm:$0xff]
          %v3868 = vmax.f32 %v3793, %v3795
          %v3869 = vmax.f32 %v3868, %v3846
          %v3870 = vmax.f32 %v3869, %v3848
          %3871 = vmax.xlane.f32.xlu0 %v3870
          %v3872 = vpop.xlane.xlu0 %3871
          %v3873 = vmax.f32 %v3797, %v3799
          %v3874 = vmax.f32 %v3873, %v3850
          %v3875 = vmax.f32 %v3874, %v3852
          %3876 = vmax.xlane.f32.xlu0 %v3875
          %v3877 = vpop.xlane.xlu0 %3876
          %v3878 = vmax.f32 %v3803, %v3805
          %v3879 = vmax.f32 %v3878, %v3856
          %v3880 = vmax.f32 %v3879, %v3858
          %3881 = vmax.xlane.f32.xlu0 %v3880
          %v3882 = vpop.xlane.xlu0 %3881
          %v3883 = vmax.f32 %v3807, %v3809
          %v3884 = vmax.f32 %v3883, %v3860
          %v3885 = vmax.f32 %v3884, %v3862
          %3886 = vmax.xlane.f32.xlu0 %v3885
          %v3887 = vpop.xlane.xlu0 %3886
          %v3888 = vsub.f32 %v3793, %v3872
          %v3889 = vsub.f32 %v3795, %v3872
          %v3890 = vsub.f32 %v3846, %v3872
          %v3891 = vsub.f32 %v3848, %v3872
          %v3892 = vsub.f32 %v3797, %v3877
          %v3893 = vsub.f32 %v3799, %v3877
          %v3894 = vsub.f32 %v3850, %v3877
          %v3895 = vsub.f32 %v3852, %v3877
          %v3896 = vsub.f32 %v3803, %v3882
          %v3897 = vsub.f32 %v3805, %v3882
          %v3898 = vsub.f32 %v3856, %v3882
          %v3899 = vsub.f32 %v3858, %v3882
          %v3900 = vsub.f32 %v3807, %v3887
          %v3901 = vsub.f32 %v3809, %v3887
          %v3902 = vsub.f32 %v3860, %v3887
          %v3903 = vsub.f32 %v3862, %v3887
          %v3904 = vmul.f32 %v3888, 1.442695
          %v3905 = vpow.pop %v3904
          %v3906 = vmul.f32 %v3889, 1.442695
          %v3907 = vpow.pop %v3906
          %v3908 = vmul.f32 %v3890, 1.442695
          %v3909 = vpow.pop %v3908
          %v3910 = vmul.f32 %v3891, 1.442695
          %v3911 = vpow.pop %v3910
          %v3912 = vmul.f32 %v3892, 1.442695
          %v3913 = vpow.pop %v3912
          %v3914 = vmul.f32 %v3893, 1.442695
          %v3915 = vpow.pop %v3914
          %v3916 = vmul.f32 %v3894, 1.442695
          %v3917 = vpow.pop %v3916
          %v3918 = vmul.f32 %v3895, 1.442695
          %v3919 = vpow.pop %v3918
          %v3920 = vmul.f32 %v3896, 1.442695
          %v3921 = vpow.pop %v3920
          %v3922 = vmul.f32 %v3897, 1.442695
          %v3923 = vpow.pop %v3922
          %v3924 = vmul.f32 %v3898, 1.442695
          %v3925 = vpow.pop %v3924
          %v3926 = vmul.f32 %v3899, 1.442695
          %v3927 = vpow.pop %v3926
          %v3928 = vmul.f32 %v3900, 1.442695
          %v3929 = vpow.pop %v3928
          %v3930 = vmul.f32 %v3901, 1.442695
          %v3931 = vpow.pop %v3930
          %v3932 = vmul.f32 %v3902, 1.442695
          %v3933 = vpow.pop %v3932
          %v3934 = vmul.f32 %v3903, 1.442695
          %v3935 = vpow.pop %v3934
          %v3936 = vadd.f32 %v3905, %v3907
          %v3937 = vadd.f32 %v3936, %v3909
          %v3938 = vadd.f32 %v3937, %v3911
          %3939 = vadd.xlane.f32.xlu0 %v3938
          %v3940 = vpop.xlane.xlu0 %3939
          %v3941 = vadd.f32 %v3913, %v3915
          %v3942 = vadd.f32 %v3941, %v3917
          %v3943 = vadd.f32 %v3942, %v3919
          %3944 = vadd.xlane.f32.xlu0 %v3943
          %v3945 = vpop.xlane.xlu0 %3944
          %v3946 = vadd.f32 %v3921, %v3923
          %v3947 = vadd.f32 %v3946, %v3925
          %v3948 = vadd.f32 %v3947, %v3927
          %3949 = vadd.xlane.f32.xlu0 %v3948
          %v3950 = vpop.xlane.xlu0 %3949
          %v3951 = vadd.f32 %v3929, %v3931
          %v3952 = vadd.f32 %v3951, %v3933
          %v3953 = vadd.f32 %v3952, %v3935
          %3954 = vadd.xlane.f32.xlu0 %v3953
          %v3955 = vpop.xlane.xlu0 %3954
          %v3956 = vlog2.pop %v3940
          %v3957 = vmul.f32 %v3956, 0.6931472
          %v3958 = vlog2.pop %v3945
          %v3959 = vmul.f32 %v3958, 0.6931472
          %v3960 = vlog2.pop %v3950
          %v3961 = vmul.f32 %v3960, 0.6931472
          %v3962 = vlog2.pop %v3955
          %v3963 = vmul.f32 %v3962, 0.6931472
          %v3964 = vadd.f32 %v3872, %v3957
          %v3965 = vadd.f32 %v3877, %v3959
          %v3966 = vadd.f32 %v3882, %v3961
          %v3967 = vadd.f32 %v3887, %v3963
          %v3968 = vlaneseq
          %v3969 = vand.u32 %v3968, 127
          %v3970 = vadd.s32 %v3969, 128
          %v3971 = vadd.s32 %v3969, 256
          %v3972 = vadd.s32 %v3969, 384
          %vm3973 = vcmp.gt.s32.totalorder %v3864, 0
          %v3974 = vsel %vm3973, %v3864, 0
          %vm3975 = vcmp.gt.s32.totalorder %v3865, 0
          %v3976 = vsel %vm3975, %v3865, 0
          %vm3977 = vcmp.gt.s32.totalorder %v3866, 0
          %v3978 = vsel %vm3977, %v3866, 0
          %vm3979 = vcmp.gt.s32.totalorder %v3867, 0
          %v3980 = vsel %vm3979, %v3867, 0
          %3981 = vset.pattern.permute.xlu0 0
          %3982 = vperm.xlu0 %3981, %v3974
          %v3983 = vpop.permute.xlu0 %3982
          %3984 = vset.pattern.permute.xlu0 0
          %3985 = vperm.xlu0 %3984, %v3976
          %v3986 = vpop.permute.xlu0 %3985
          %3987 = vset.pattern.permute.xlu0 0
          %3988 = vperm.xlu0 %3987, %v3978
          %v3989 = vpop.permute.xlu0 %3988
          %3990 = vset.pattern.permute.xlu0 0
          %3991 = vperm.xlu0 %3990, %v3980
          %v3992 = vpop.permute.xlu0 %3991
          %vm3993 = vcmp.eq.s32.totalorder %v3969, %v3983
          %vm3994 = vcmp.eq.s32.totalorder %v3970, %v3983
          %vm3995 = vcmp.eq.s32.totalorder %v3971, %v3983
          %vm3996 = vcmp.eq.s32.totalorder %v3972, %v3983
          %vm3997 = vcmp.eq.s32.totalorder %v3969, %v3986
          %vm3998 = vcmp.eq.s32.totalorder %v3970, %v3986
          %vm3999 = vcmp.eq.s32.totalorder %v3971, %v3986
          %vm4000 = vcmp.eq.s32.totalorder %v3972, %v3986
          %vm4001 = vcmp.eq.s32.totalorder %v3969, %v3989
          %vm4002 = vcmp.eq.s32.totalorder %v3970, %v3989
          %vm4003 = vcmp.eq.s32.totalorder %v3971, %v3989
          %vm4004 = vcmp.eq.s32.totalorder %v3972, %v3989
          %vm4005 = vcmp.eq.s32.totalorder %v3969, %v3992
          %vm4006 = vcmp.eq.s32.totalorder %v3970, %v3992
          %vm4007 = vcmp.eq.s32.totalorder %v3971, %v3992
          %vm4008 = vcmp.eq.s32.totalorder %v3972, %v3992
          %v4009 = vsel %vm3993, 1, 0
          %v4010 = vsel %vm3994, 1, 0
          %v4011 = vsel %vm3995, 1, 0
          %v4012 = vsel %vm3996, 1, 0
          %v4013 = vsel %vm3997, 1, 0
          %v4014 = vsel %vm3998, 1, 0
          %v4015 = vsel %vm3999, 1, 0
          %v4016 = vsel %vm4000, 1, 0
          %v4017 = vsel %vm4001, 1, 0
          %v4018 = vsel %vm4002, 1, 0
          %v4019 = vsel %vm4003, 1, 0
          %v4020 = vsel %vm4004, 1, 0
          %v4021 = vsel %vm4005, 1, 0
          %v4022 = vsel %vm4006, 1, 0
          %v4023 = vsel %vm4007, 1, 0
          %v4024 = vsel %vm4008, 1, 0
          %v4025 = vcvt.s32.f32 %v4009
          %v4026 = vcvt.s32.f32 %v4010
          %v4027 = vcvt.s32.f32 %v4011
          %v4028 = vcvt.s32.f32 %v4012
          %v4029 = vcvt.s32.f32 %v4013
          %v4030 = vcvt.s32.f32 %v4014
          %v4031 = vcvt.s32.f32 %v4015
          %v4032 = vcvt.s32.f32 %v4016
          %v4033 = vcvt.s32.f32 %v4017
          %v4034 = vcvt.s32.f32 %v4018
          %v4035 = vcvt.s32.f32 %v4019
          %v4036 = vcvt.s32.f32 %v4020
          %v4037 = vcvt.s32.f32 %v4021
          %v4038 = vcvt.s32.f32 %v4022
          %v4039 = vcvt.s32.f32 %v4023
          %v4040 = vcvt.s32.f32 %v4024
          %v4041 = vmul.f32 %v3793, %v4025
          %v4042 = vmul.f32 %v3795, %v4026
          %v4043 = vmul.f32 %v3846, %v4027
          %v4044 = vmul.f32 %v3848, %v4028
          %v4045 = vmul.f32 %v3797, %v4029
          %v4046 = vmul.f32 %v3799, %v4030
          %v4047 = vmul.f32 %v3850, %v4031
          %v4048 = vmul.f32 %v3852, %v4032
          %v4049 = vmul.f32 %v3803, %v4033
          %v4050 = vmul.f32 %v3805, %v4034
          %v4051 = vmul.f32 %v3856, %v4035
          %v4052 = vmul.f32 %v3858, %v4036
          %v4053 = vmul.f32 %v3807, %v4037
          %v4054 = vmul.f32 %v3809, %v4038
          %v4055 = vmul.f32 %v3860, %v4039
          %v4056 = vmul.f32 %v3862, %v4040
          %v4057 = vadd.f32 %v4041, %v4042
          %v4058 = vadd.f32 %v4057, %v4043
          %v4059 = vadd.f32 %v4058, %v4044
          %4060 = vadd.xlane.f32.xlu0 %v4059
          %v4061 = vpop.xlane.xlu0 %4060
          %v4062 = vadd.f32 %v4045, %v4046
          %v4063 = vadd.f32 %v4062, %v4047
          %v4064 = vadd.f32 %v4063, %v4048
          %4065 = vadd.xlane.f32.xlu0 %v4064
          %v4066 = vpop.xlane.xlu0 %4065
          %v4067 = vadd.f32 %v4049, %v4050
          %v4068 = vadd.f32 %v4067, %v4051
          %v4069 = vadd.f32 %v4068, %v4052
          %4070 = vadd.xlane.f32.xlu0 %v4069
          %v4071 = vpop.xlane.xlu0 %4070
          %v4072 = vadd.f32 %v4053, %v4054
          %v4073 = vadd.f32 %v4072, %v4055
          %v4074 = vadd.f32 %v4073, %v4056
          %4075 = vadd.xlane.f32.xlu0 %v4074
          %v4076 = vpop.xlane.xlu0 %4075
          %vm4077 = vcmp.ge.s32.totalorder %v3864, 0
          %vm4078 = vcmp.ge.s32.totalorder %v3865, 0
          %vm4079 = vcmp.ge.s32.totalorder %v3866, 0
          %vm4080 = vcmp.ge.s32.totalorder %v3867, 0
          %v4081 = vsel %vm4077, 1, 0
          %v4082 = vsel %vm4078, 1, 0
          %v4083 = vsel %vm4079, 1, 0
          %v4084 = vsel %vm4080, 1, 0
          %v4085 = vcvt.s32.f32 %v4081
          %v4086 = vcvt.s32.f32 %v4082
          %v4087 = vcvt.s32.f32 %v4083
          %v4088 = vcvt.s32.f32 %v4084
          %v4089 = vsub.f32 %v3964, %v4061
          %v4090 = vsub.f32 %v3965, %v4066
          %v4091 = vsub.f32 %v3966, %v4071
          %v4092 = vsub.f32 %v3967, %v4076
          %v4093 = vmul.f32 %v4089, %v4085
          %v4094 = vmul.f32 %v4090, %v4086
          %v4095 = vmul.f32 %v4091, %v4087
          %v4096 = vmul.f32 %v4092, %v4088
          %vm4097 = vcmask 7168
          %v4098 = vsel %vm4097, %v4093, 0.0
          %v4099 = vsel %vm4097, %v4094, 0.0
          %v4100 = vadd.f32 %v4098, %v4099
          %v4101 = vsel %vm4097, %v4095, 0.0
          %v4102 = vadd.f32 %v4100, %v4101
          %v4103 = vsel %vm4097, %v4096, 0.0
          %v4104 = vadd.f32 %v4102, %v4103
          %v4105 = vrot.slane %v4104, 4
          %v4106 = vadd.f32 %v4104, %v4105
          %v4107 = vrot.slane %v4106, 2
          %v4108 = vadd.f32 %v4106, %v4107
          %v4109 = vrot.slane %v4108, 1
          %v4110 = vadd.f32 %v4108, %v4109
          %v4111 = vsel %vm4097, %v4085, 0.0
          %v4112 = vsel %vm4097, %v4086, 0.0
          %v4113 = vadd.f32 %v4111, %v4112
          %v4114 = vsel %vm4097, %v4087, 0.0
          %v4115 = vadd.f32 %v4113, %v4114
          %v4116 = vsel %vm4097, %v4088, 0.0
          %v4117 = vadd.f32 %v4115, %v4116
          %v4118 = vrot.slane %v4117, 4
          %v4119 = vadd.f32 %v4117, %v4118
          %v4120 = vrot.slane %v4119, 2
          %v4121 = vadd.f32 %v4119, %v4120
          %v4122 = vrot.slane %v4121, 1
          %v4123 = vadd.f32 %v4121, %v4122
          %v4124 = vmax.f32 %v4123, 1.0
          %v4125 = vrcp.pop %v4124
          %v4126 = vmul.f32 %v4110, %v4125
          %vm4127 = vcmask 0
          %4128 = vst.msk [vmem:[#allocation31] sm:$0x1] %vm4127, %v4126
          %v4129 = vlaneseq
          %v4130 = vshrl.u32 %v4129, 7
          %v4131 = vmul.u32 %v4130, 16
          %vm4132 = vcmp.eq.s32.totalorder %v3969, %v4131
          %v4133 = vsel %vm4132, 1, 0
          %v4134 = vcvt.s32.f32 %v4133
          %v4136 = vsel %vm1591, %v4134, 0
          %4138 = vmatprep.subr.mxu0 0.0
          %4139 = vmatpush1.msra.mxu0 0.0
          %4140 = vmatprep.subr.mxu0 0.0
          %4141 = vmatpush1.msra.mxu0 0.0
          %4142 = vmatprep.subr.mxu0 0.0
          %4143 = vmatpush1.msra.mxu0 0.0
          %4144 = vmatprep.subr.mxu0 0.0
          %4145 = vmatpush1.msra.mxu0 0.0
          %4146 = vmatprep.subr.mxu0 0.0
          %4147 = vmatpush1.msra.mxu0 0.0
          %4148 = vmatprep.subr.mxu0 0.0
          %4149 = vmatpush1.msra.mxu0 0.0
          %4150 = vmatprep.subr.mxu0 0.0
          %4151 = vmatpush1.msra.mxu0 0.0
          %4152 = vmatprep.subr.mxu0 0.0
          %4153 = vmatpush1.msra.mxu0 0.0
          %4154 = vmatprep.subr.mxu0 0.0
          %4155 = vmatpush1.msra.mxu0 0.0
          %4156 = vmatprep.subr.mxu0 0.0
          %4157 = vmatpush1.msra.mxu0 0.0
          %4158 = vmatprep.subr.mxu0 0.0
          %4159 = vmatpush1.msra.mxu0 0.0
          %4160 = vmatprep.subr.mxu0 0.0
          %4161 = vmatpush1.msra.mxu0 0.0
          %4162 = vmatprep.subr.mxu0 %v3809
          %4163 = vmatpush1.msra.mxu0 %v3807
          %4164 = vmatprep.subr.mxu0 %v3805
          %4165 = vmatpush1.msra.mxu0 %v3803
          %4166 = vmatprep.subr.mxu0 %v3799
          %4167 = vmatpush1.msra.mxu0 %v3797
          %4168 = vmatprep.subr.mxu0 %v3795
          %4169 = vmatpush1.msra.mxu0 %v3793
          %4170 = vmatprep.subr.mxu0 0.0
          %4171 = vmatpush2.msra.mxu0 0.0
          %4172 = vmatprep.subr.mxu0 0.0
          %4173 = vmatpush2.msra.mxu0 0.0
          %4174 = vmatprep.subr.mxu0 0.0
          %4175 = vmatpush2.msra.mxu0 0.0
          %4176 = vmatprep.subr.mxu0 0.0
          %4177 = vmatpush2.msra.mxu0 0.0
          %4178 = vmatprep.subr.mxu0 0.0
          %4179 = vmatpush2.msra.mxu0 0.0
          %4180 = vmatprep.subr.mxu0 0.0
          %4181 = vmatpush2.msra.mxu0 0.0
          %4182 = vmatprep.subr.mxu0 0.0
          %4183 = vmatpush2.msra.mxu0 0.0
          %4184 = vmatprep.subr.mxu0 0.0
          %4185 = vmatpush2.msra.mxu0 0.0
          %4186 = vmatprep.subr.mxu0 0.0
          %4187 = vmatpush2.msra.mxu0 0.0
          %4188 = vmatprep.subr.mxu0 0.0
          %4189 = vmatpush2.msra.mxu0 0.0
          %4190 = vmatprep.subr.mxu0 0.0
          %4191 = vmatpush2.msra.mxu0 0.0
          %4192 = vmatprep.subr.mxu0 0.0
          %4193 = vmatpush2.msra.mxu0 0.0
          %4194 = vmatprep.subr.mxu0 0.0
          %4195 = vmatpush2.msra.mxu0 0.0
          %4196 = vmatprep.subr.mxu0 0.0
          %4197 = vmatpush2.msra.mxu0 0.0
          %4198 = vmatprep.subr.mxu0 0.0
          %4199 = vmatpush2.msra.mxu0 0.0
          %4200 = vmatprep.subr.mxu0 0.0
          %4201 = vmatpush2.msra.mxu0 0.0
          %4202 = vmatprep.mubr.f32.mxu0 0.0
          %4203 = vmatmul.mubr.f32.gmra.mxu0 %v4136
          %v4204 = vpop.f32.mrf.mxu0
          %v4205 = vadd.f32 0.0, %v4204
          %v4206 = vpop.f32.mrf.mxu0
          %v4207 = vadd.f32 0.0, %v4206
          %4208 = vdwg.mxu0
          %4209 = vmatprep.subr.mxu0 0.0
          %4210 = vmatpush1.msra.mxu0 0.0
          %4211 = vmatprep.subr.mxu0 0.0
          %4212 = vmatpush1.msra.mxu0 0.0
          %4213 = vmatprep.subr.mxu0 0.0
          %4214 = vmatpush1.msra.mxu0 0.0
          %4215 = vmatprep.subr.mxu0 0.0
          %4216 = vmatpush1.msra.mxu0 0.0
          %4217 = vmatprep.subr.mxu0 0.0
          %4218 = vmatpush1.msra.mxu0 0.0
          %4219 = vmatprep.subr.mxu0 0.0
          %4220 = vmatpush1.msra.mxu0 0.0
          %4221 = vmatprep.subr.mxu0 0.0
          %4222 = vmatpush1.msra.mxu0 0.0
          %4223 = vmatprep.subr.mxu0 0.0
          %4224 = vmatpush1.msra.mxu0 0.0
          %4225 = vmatprep.subr.mxu0 0.0
          %4226 = vmatpush1.msra.mxu0 0.0
          %4227 = vmatprep.subr.mxu0 0.0
          %4228 = vmatpush1.msra.mxu0 0.0
          %4229 = vmatprep.subr.mxu0 0.0
          %4230 = vmatpush1.msra.mxu0 0.0
          %4231 = vmatprep.subr.mxu0 0.0
          %4232 = vmatpush1.msra.mxu0 0.0
          %4233 = vmatprep.subr.mxu0 %v3862
          %4234 = vmatpush1.msra.mxu0 %v3860
          %4235 = vmatprep.subr.mxu0 %v3858
          %4236 = vmatpush1.msra.mxu0 %v3856
          %4237 = vmatprep.subr.mxu0 %v3852
          %4238 = vmatpush1.msra.mxu0 %v3850
          %4239 = vmatprep.subr.mxu0 %v3848
          %4240 = vmatpush1.msra.mxu0 %v3846
          %4241 = vmatprep.subr.mxu0 0.0
          %4242 = vmatpush2.msra.mxu0 0.0
          %4243 = vmatprep.subr.mxu0 0.0
          %4244 = vmatpush2.msra.mxu0 0.0
          %4245 = vmatprep.subr.mxu0 0.0
          %4246 = vmatpush2.msra.mxu0 0.0
          %4247 = vmatprep.subr.mxu0 0.0
          %4248 = vmatpush2.msra.mxu0 0.0
          %4249 = vmatprep.subr.mxu0 0.0
          %4250 = vmatpush2.msra.mxu0 0.0
          %4251 = vmatprep.subr.mxu0 0.0
          %4252 = vmatpush2.msra.mxu0 0.0
          %4253 = vmatprep.subr.mxu0 0.0
          %4254 = vmatpush2.msra.mxu0 0.0
          %4255 = vmatprep.subr.mxu0 0.0
          %4256 = vmatpush2.msra.mxu0 0.0
          %4257 = vmatprep.subr.mxu0 0.0
          %4258 = vmatpush2.msra.mxu0 0.0
          %4259 = vmatprep.subr.mxu0 0.0
          %4260 = vmatpush2.msra.mxu0 0.0
          %4261 = vmatprep.subr.mxu0 0.0
          %4262 = vmatpush2.msra.mxu0 0.0
          %4263 = vmatprep.subr.mxu0 0.0
          %4264 = vmatpush2.msra.mxu0 0.0
          %4265 = vmatprep.subr.mxu0 0.0
          %4266 = vmatpush2.msra.mxu0 0.0
          %4267 = vmatprep.subr.mxu0 0.0
          %4268 = vmatpush2.msra.mxu0 0.0
          %4269 = vmatprep.subr.mxu0 0.0
          %4270 = vmatpush2.msra.mxu0 0.0
          %4271 = vmatprep.subr.mxu0 0.0
          %4272 = vmatpush2.msra.mxu0 0.0
          %4273 = vmatprep.mubr.f32.mxu0 0.0
          %4274 = vmatmul.mubr.f32.gmra.mxu0 %v4136
          %v4275 = vpop.f32.mrf.mxu0
          %v4276 = vadd.f32 0.0, %v4275
          %v4277 = vpop.f32.mrf.mxu0
          %v4278 = vadd.f32 0.0, %v4277
          %4279 = vdwg.mxu0
          %s4280 = smul.u32 4, 64
          %s4281 = smul.u32 %s4280, 16
          %s4282 = sshll.u32 %s4281, 4
          %4283 = dma.done [#allocation4], %s4282
          %v4284 = vpack.c.bf16 %v4205, %v4205
          %v4285 = vpack.c.bf16 %v4207, %v4207
          %v4286 = vpack.c.bf16 %v4276, %v4276
          %v4287 = vpack.c.bf16 %v4278, %v4278
          %v4288 = vld [vmem:[#allocation3] sm:$0xff]
          %v4289 = vld [vmem:[#allocation3 + $0x8] sm:$0xff]
          %v4290 = vld [vmem:[#allocation3 + $0x10] sm:$0xff]
          %v4291 = vld [vmem:[#allocation3 + $0x18] sm:$0xff]
          %v4292 = vld [vmem:[#allocation3 + $0x20] sm:$0xff]
          %v4293 = vld [vmem:[#allocation3 + $0x28] sm:$0xff]
          %v4294 = vld [vmem:[#allocation3 + $0x30] sm:$0xff]
          %v4295 = vld [vmem:[#allocation3 + $0x38] sm:$0xff]
          %v4296 = vld [vmem:[#allocation3 + $0x40] sm:$0xff]
          %v4297 = vld [vmem:[#allocation3 + $0x48] sm:$0xff]
          %v4298 = vld [vmem:[#allocation3 + $0x50] sm:$0xff]
          %v4299 = vld [vmem:[#allocation3 + $0x58] sm:$0xff]
          %v4300 = vld [vmem:[#allocation3 + $0x60] sm:$0xff]
          %v4301 = vld [vmem:[#allocation3 + $0x68] sm:$0xff]
          %v4302 = vld [vmem:[#allocation3 + $0x70] sm:$0xff]
          %v4303 = vld [vmem:[#allocation3 + $0x78] sm:$0xff]
          %v4304 = vld [vmem:[#allocation3 + $0x80] sm:$0xff]
          %v4305 = vld [vmem:[#allocation3 + $0x88] sm:$0xff]
          %v4306 = vld [vmem:[#allocation3 + $0x90] sm:$0xff]
          %v4307 = vld [vmem:[#allocation3 + $0x98] sm:$0xff]
          %v4308 = vld [vmem:[#allocation3 + $0xa0] sm:$0xff]
          %v4309 = vld [vmem:[#allocation3 + $0xa8] sm:$0xff]
          %v4310 = vld [vmem:[#allocation3 + $0xb0] sm:$0xff]
          %v4311 = vld [vmem:[#allocation3 + $0xb8] sm:$0xff]
          %v4312 = vld [vmem:[#allocation3 + $0xc0] sm:$0xff]
          %v4313 = vld [vmem:[#allocation3 + $0xc8] sm:$0xff]
          %v4314 = vld [vmem:[#allocation3 + $0xd0] sm:$0xff]
          %v4315 = vld [vmem:[#allocation3 + $0xd8] sm:$0xff]
          %v4316 = vld [vmem:[#allocation3 + $0xe0] sm:$0xff]
          %v4317 = vld [vmem:[#allocation3 + $0xe8] sm:$0xff]
          %v4318 = vld [vmem:[#allocation3 + $0xf0] sm:$0xff]
          %v4319 = vld [vmem:[#allocation3 + $0xf8] sm:$0xff]
          %v4320 = vld [vmem:[#allocation3 + $0x100] sm:$0xff]
          %v4321 = vld [vmem:[#allocation3 + $0x108] sm:$0xff]
          %v4322 = vld [vmem:[#allocation3 + $0x110] sm:$0xff]
          %v4323 = vld [vmem:[#allocation3 + $0x118] sm:$0xff]
          %v4324 = vld [vmem:[#allocation3 + $0x120] sm:$0xff]
          %v4325 = vld [vmem:[#allocation3 + $0x128] sm:$0xff]
          %v4326 = vld [vmem:[#allocation3 + $0x130] sm:$0xff]
          %v4327 = vld [vmem:[#allocation3 + $0x138] sm:$0xff]
          %v4328 = vld [vmem:[#allocation3 + $0x140] sm:$0xff]
          %v4329 = vld [vmem:[#allocation3 + $0x148] sm:$0xff]
          %v4330 = vld [vmem:[#allocation3 + $0x150] sm:$0xff]
          %v4331 = vld [vmem:[#allocation3 + $0x158] sm:$0xff]
          %v4332 = vld [vmem:[#allocation3 + $0x160] sm:$0xff]
          %v4333 = vld [vmem:[#allocation3 + $0x168] sm:$0xff]
          %v4334 = vld [vmem:[#allocation3 + $0x170] sm:$0xff]
          %v4335 = vld [vmem:[#allocation3 + $0x178] sm:$0xff]
          %v4336 = vld [vmem:[#allocation3 + $0x180] sm:$0xff]
          %v4337 = vld [vmem:[#allocation3 + $0x188] sm:$0xff]
          %v4338 = vld [vmem:[#allocation3 + $0x190] sm:$0xff]
          %v4339 = vld [vmem:[#allocation3 + $0x198] sm:$0xff]
          %v4340 = vld [vmem:[#allocation3 + $0x1a0] sm:$0xff]
          %v4341 = vld [vmem:[#allocation3 + $0x1a8] sm:$0xff]
          %v4342 = vld [vmem:[#allocation3 + $0x1b0] sm:$0xff]
          %v4343 = vld [vmem:[#allocation3 + $0x1b8] sm:$0xff]
          %v4344 = vld [vmem:[#allocation3 + $0x1c0] sm:$0xff]
          %v4345 = vld [vmem:[#allocation3 + $0x1c8] sm:$0xff]
          %v4346 = vld [vmem:[#allocation3 + $0x1d0] sm:$0xff]
          %v4347 = vld [vmem:[#allocation3 + $0x1d8] sm:$0xff]
          %v4348 = vld [vmem:[#allocation3 + $0x1e0] sm:$0xff]
          %v4349 = vld [vmem:[#allocation3 + $0x1e8] sm:$0xff]
          %v4350 = vld [vmem:[#allocation3 + $0x1f0] sm:$0xff]
          %v4351 = vld [vmem:[#allocation3 + $0x1f8] sm:$0xff]
          %v4352 = vld [vmem:[#allocation3 + $0x200] sm:$0xff]
          %v4353 = vld [vmem:[#allocation3 + $0x208] sm:$0xff]
          %v4354 = vld [vmem:[#allocation3 + $0x210] sm:$0xff]
          %v4355 = vld [vmem:[#allocation3 + $0x218] sm:$0xff]
          %v4356 = vld [vmem:[#allocation3 + $0x220] sm:$0xff]
          %v4357 = vld [vmem:[#allocation3 + $0x228] sm:$0xff]
          %v4358 = vld [vmem:[#allocation3 + $0x230] sm:$0xff]
          %v4359 = vld [vmem:[#allocation3 + $0x238] sm:$0xff]
          %v4360 = vld [vmem:[#allocation3 + $0x240] sm:$0xff]
          %v4361 = vld [vmem:[#allocation3 + $0x248] sm:$0xff]
          %v4362 = vld [vmem:[#allocation3 + $0x250] sm:$0xff]
          %v4363 = vld [vmem:[#allocation3 + $0x258] sm:$0xff]
          %v4364 = vld [vmem:[#allocation3 + $0x260] sm:$0xff]
          %v4365 = vld [vmem:[#allocation3 + $0x268] sm:$0xff]
          %v4366 = vld [vmem:[#allocation3 + $0x270] sm:$0xff]
          %v4367 = vld [vmem:[#allocation3 + $0x278] sm:$0xff]
          %v4368 = vld [vmem:[#allocation3 + $0x280] sm:$0xff]
          %v4369 = vld [vmem:[#allocation3 + $0x288] sm:$0xff]
          %v4370 = vld [vmem:[#allocation3 + $0x290] sm:$0xff]
          %v4371 = vld [vmem:[#allocation3 + $0x298] sm:$0xff]
          %v4372 = vld [vmem:[#allocation3 + $0x2a0] sm:$0xff]
          %v4373 = vld [vmem:[#allocation3 + $0x2a8] sm:$0xff]
          %v4374 = vld [vmem:[#allocation3 + $0x2b0] sm:$0xff]
          %v4375 = vld [vmem:[#allocation3 + $0x2b8] sm:$0xff]
          %v4376 = vld [vmem:[#allocation3 + $0x2c0] sm:$0xff]
          %v4377 = vld [vmem:[#allocation3 + $0x2c8] sm:$0xff]
          %v4378 = vld [vmem:[#allocation3 + $0x2d0] sm:$0xff]
          %v4379 = vld [vmem:[#allocation3 + $0x2d8] sm:$0xff]
          %v4380 = vld [vmem:[#allocation3 + $0x2e0] sm:$0xff]
          %v4381 = vld [vmem:[#allocation3 + $0x2e8] sm:$0xff]
          %v4382 = vld [vmem:[#allocation3 + $0x2f0] sm:$0xff]
          %v4383 = vld [vmem:[#allocation3 + $0x2f8] sm:$0xff]
          %v4384 = vld [vmem:[#allocation3 + $0x300] sm:$0xff]
          %v4385 = vld [vmem:[#allocation3 + $0x308] sm:$0xff]
          %v4386 = vld [vmem:[#allocation3 + $0x310] sm:$0xff]
          %v4387 = vld [vmem:[#allocation3 + $0x318] sm:$0xff]
          %v4388 = vld [vmem:[#allocation3 + $0x320] sm:$0xff]
          %v4389 = vld [vmem:[#allocation3 + $0x328] sm:$0xff]
          %v4390 = vld [vmem:[#allocation3 + $0x330] sm:$0xff]
          %v4391 = vld [vmem:[#allocation3 + $0x338] sm:$0xff]
          %v4392 = vld [vmem:[#allocation3 + $0x340] sm:$0xff]
          %v4393 = vld [vmem:[#allocation3 + $0x348] sm:$0xff]
          %v4394 = vld [vmem:[#allocation3 + $0x350] sm:$0xff]
          %v4395 = vld [vmem:[#allocation3 + $0x358] sm:$0xff]
          %v4396 = vld [vmem:[#allocation3 + $0x360] sm:$0xff]
          %v4397 = vld [vmem:[#allocation3 + $0x368] sm:$0xff]
          %v4398 = vld [vmem:[#allocation3 + $0x370] sm:$0xff]
          %v4399 = vld [vmem:[#allocation3 + $0x378] sm:$0xff]
          %v4400 = vld [vmem:[#allocation3 + $0x380] sm:$0xff]
          %v4401 = vld [vmem:[#allocation3 + $0x388] sm:$0xff]
          %v4402 = vld [vmem:[#allocation3 + $0x390] sm:$0xff]
          %v4403 = vld [vmem:[#allocation3 + $0x398] sm:$0xff]
          %v4404 = vld [vmem:[#allocation3 + $0x3a0] sm:$0xff]
          %v4405 = vld [vmem:[#allocation3 + $0x3a8] sm:$0xff]
          %v4406 = vld [vmem:[#allocation3 + $0x3b0] sm:$0xff]
          %v4407 = vld [vmem:[#allocation3 + $0x3b8] sm:$0xff]
          %v4408 = vld [vmem:[#allocation3 + $0x3c0] sm:$0xff]
          %v4409 = vld [vmem:[#allocation3 + $0x3c8] sm:$0xff]
          %v4410 = vld [vmem:[#allocation3 + $0x3d0] sm:$0xff]
          %v4411 = vld [vmem:[#allocation3 + $0x3d8] sm:$0xff]
          %v4412 = vld [vmem:[#allocation3 + $0x3e0] sm:$0xff]
          %v4413 = vld [vmem:[#allocation3 + $0x3e8] sm:$0xff]
          %v4414 = vld [vmem:[#allocation3 + $0x3f0] sm:$0xff]
          %v4415 = vld [vmem:[#allocation3 + $0x3f8] sm:$0xff]
          %v4416 = vld [vmem:[#allocation3 + $0x400] sm:$0xff]
          %v4417 = vld [vmem:[#allocation3 + $0x408] sm:$0xff]
          %v4418 = vld [vmem:[#allocation3 + $0x410] sm:$0xff]
          %v4419 = vld [vmem:[#allocation3 + $0x418] sm:$0xff]
          %v4420 = vld [vmem:[#allocation3 + $0x420] sm:$0xff]
          %v4421 = vld [vmem:[#allocation3 + $0x428] sm:$0xff]
          %v4422 = vld [vmem:[#allocation3 + $0x430] sm:$0xff]
          %v4423 = vld [vmem:[#allocation3 + $0x438] sm:$0xff]
          %v4424 = vld [vmem:[#allocation3 + $0x440] sm:$0xff]
          %v4425 = vld [vmem:[#allocation3 + $0x448] sm:$0xff]
          %v4426 = vld [vmem:[#allocation3 + $0x450] sm:$0xff]
          %v4427 = vld [vmem:[#allocation3 + $0x458] sm:$0xff]
          %v4428 = vld [vmem:[#allocation3 + $0x460] sm:$0xff]
          %v4429 = vld [vmem:[#allocation3 + $0x468] sm:$0xff]
          %v4430 = vld [vmem:[#allocation3 + $0x470] sm:$0xff]
          %v4431 = vld [vmem:[#allocation3 + $0x478] sm:$0xff]
          %v4432 = vld [vmem:[#allocation3 + $0x480] sm:$0xff]
          %v4433 = vld [vmem:[#allocation3 + $0x488] sm:$0xff]
          %v4434 = vld [vmem:[#allocation3 + $0x490] sm:$0xff]
          %v4435 = vld [vmem:[#allocation3 + $0x498] sm:$0xff]
          %v4436 = vld [vmem:[#allocation3 + $0x4a0] sm:$0xff]
          %v4437 = vld [vmem:[#allocation3 + $0x4a8] sm:$0xff]
          %v4438 = vld [vmem:[#allocation3 + $0x4b0] sm:$0xff]
          %v4439 = vld [vmem:[#allocation3 + $0x4b8] sm:$0xff]
          %v4440 = vld [vmem:[#allocation3 + $0x4c0] sm:$0xff]
          %v4441 = vld [vmem:[#allocation3 + $0x4c8] sm:$0xff]
          %v4442 = vld [vmem:[#allocation3 + $0x4d0] sm:$0xff]
          %v4443 = vld [vmem:[#allocation3 + $0x4d8] sm:$0xff]
          %v4444 = vld [vmem:[#allocation3 + $0x4e0] sm:$0xff]
          %v4445 = vld [vmem:[#allocation3 + $0x4e8] sm:$0xff]
          %v4446 = vld [vmem:[#allocation3 + $0x4f0] sm:$0xff]
          %v4447 = vld [vmem:[#allocation3 + $0x4f8] sm:$0xff]
          %v4448 = vld [vmem:[#allocation3 + $0x500] sm:$0xff]
          %v4449 = vld [vmem:[#allocation3 + $0x508] sm:$0xff]
          %v4450 = vld [vmem:[#allocation3 + $0x510] sm:$0xff]
          %v4451 = vld [vmem:[#allocation3 + $0x518] sm:$0xff]
          %v4452 = vld [vmem:[#allocation3 + $0x520] sm:$0xff]
          %v4453 = vld [vmem:[#allocation3 + $0x528] sm:$0xff]
          %v4454 = vld [vmem:[#allocation3 + $0x530] sm:$0xff]
          %v4455 = vld [vmem:[#allocation3 + $0x538] sm:$0xff]
          %v4456 = vld [vmem:[#allocation3 + $0x540] sm:$0xff]
          %v4457 = vld [vmem:[#allocation3 + $0x548] sm:$0xff]
          %v4458 = vld [vmem:[#allocation3 + $0x550] sm:$0xff]
          %v4459 = vld [vmem:[#allocation3 + $0x558] sm:$0xff]
          %v4460 = vld [vmem:[#allocation3 + $0x560] sm:$0xff]
          %v4461 = vld [vmem:[#allocation3 + $0x568] sm:$0xff]
          %v4462 = vld [vmem:[#allocation3 + $0x570] sm:$0xff]
          %v4463 = vld [vmem:[#allocation3 + $0x578] sm:$0xff]
          %v4464 = vld [vmem:[#allocation3 + $0x580] sm:$0xff]
          %v4465 = vld [vmem:[#allocation3 + $0x588] sm:$0xff]
          %v4466 = vld [vmem:[#allocation3 + $0x590] sm:$0xff]
          %v4467 = vld [vmem:[#allocation3 + $0x598] sm:$0xff]
          %v4468 = vld [vmem:[#allocation3 + $0x5a0] sm:$0xff]
          %v4469 = vld [vmem:[#allocation3 + $0x5a8] sm:$0xff]
          %v4470 = vld [vmem:[#allocation3 + $0x5b0] sm:$0xff]
          %v4471 = vld [vmem:[#allocation3 + $0x5b8] sm:$0xff]
          %v4472 = vld [vmem:[#allocation3 + $0x5c0] sm:$0xff]
          %v4473 = vld [vmem:[#allocation3 + $0x5c8] sm:$0xff]
          %v4474 = vld [vmem:[#allocation3 + $0x5d0] sm:$0xff]
          %v4475 = vld [vmem:[#allocation3 + $0x5d8] sm:$0xff]
          %v4476 = vld [vmem:[#allocation3 + $0x5e0] sm:$0xff]
          %v4477 = vld [vmem:[#allocation3 + $0x5e8] sm:$0xff]
          %v4478 = vld [vmem:[#allocation3 + $0x5f0] sm:$0xff]
          %v4479 = vld [vmem:[#allocation3 + $0x5f8] sm:$0xff]
          %v4480 = vld [vmem:[#allocation3 + $0x600] sm:$0xff]
          %v4481 = vld [vmem:[#allocation3 + $0x608] sm:$0xff]
          %v4482 = vld [vmem:[#allocation3 + $0x610] sm:$0xff]
          %v4483 = vld [vmem:[#allocation3 + $0x618] sm:$0xff]
          %v4484 = vld [vmem:[#allocation3 + $0x620] sm:$0xff]
          %v4485 = vld [vmem:[#allocation3 + $0x628] sm:$0xff]
          %v4486 = vld [vmem:[#allocation3 + $0x630] sm:$0xff]
          %v4487 = vld [vmem:[#allocation3 + $0x638] sm:$0xff]
          %v4488 = vld [vmem:[#allocation3 + $0x640] sm:$0xff]
          %v4489 = vld [vmem:[#allocation3 + $0x648] sm:$0xff]
          %v4490 = vld [vmem:[#allocation3 + $0x650] sm:$0xff]
          %v4491 = vld [vmem:[#allocation3 + $0x658] sm:$0xff]
          %v4492 = vld [vmem:[#allocation3 + $0x660] sm:$0xff]
          %v4493 = vld [vmem:[#allocation3 + $0x668] sm:$0xff]
          %v4494 = vld [vmem:[#allocation3 + $0x670] sm:$0xff]
          %v4495 = vld [vmem:[#allocation3 + $0x678] sm:$0xff]
          %v4496 = vld [vmem:[#allocation3 + $0x680] sm:$0xff]
          %v4497 = vld [vmem:[#allocation3 + $0x688] sm:$0xff]
          %v4498 = vld [vmem:[#allocation3 + $0x690] sm:$0xff]
          %v4499 = vld [vmem:[#allocation3 + $0x698] sm:$0xff]
          %v4500 = vld [vmem:[#allocation3 + $0x6a0] sm:$0xff]
          %v4501 = vld [vmem:[#allocation3 + $0x6a8] sm:$0xff]
          %v4502 = vld [vmem:[#allocation3 + $0x6b0] sm:$0xff]
          %v4503 = vld [vmem:[#allocation3 + $0x6b8] sm:$0xff]
          %v4504 = vld [vmem:[#allocation3 + $0x6c0] sm:$0xff]
          %v4505 = vld [vmem:[#allocation3 + $0x6c8] sm:$0xff]
          %v4506 = vld [vmem:[#allocation3 + $0x6d0] sm:$0xff]
          %v4507 = vld [vmem:[#allocation3 + $0x6d8] sm:$0xff]
          %v4508 = vld [vmem:[#allocation3 + $0x6e0] sm:$0xff]
          %v4509 = vld [vmem:[#allocation3 + $0x6e8] sm:$0xff]
          %v4510 = vld [vmem:[#allocation3 + $0x6f0] sm:$0xff]
          %v4511 = vld [vmem:[#allocation3 + $0x6f8] sm:$0xff]
          %v4512 = vld [vmem:[#allocation3 + $0x700] sm:$0xff]
          %v4513 = vld [vmem:[#allocation3 + $0x708] sm:$0xff]
          %v4514 = vld [vmem:[#allocation3 + $0x710] sm:$0xff]
          %v4515 = vld [vmem:[#allocation3 + $0x718] sm:$0xff]
          %v4516 = vld [vmem:[#allocation3 + $0x720] sm:$0xff]
          %v4517 = vld [vmem:[#allocation3 + $0x728] sm:$0xff]
          %v4518 = vld [vmem:[#allocation3 + $0x730] sm:$0xff]
          %v4519 = vld [vmem:[#allocation3 + $0x738] sm:$0xff]
          %v4520 = vld [vmem:[#allocation3 + $0x740] sm:$0xff]
          %v4521 = vld [vmem:[#allocation3 + $0x748] sm:$0xff]
          %v4522 = vld [vmem:[#allocation3 + $0x750] sm:$0xff]
          %v4523 = vld [vmem:[#allocation3 + $0x758] sm:$0xff]
          %v4524 = vld [vmem:[#allocation3 + $0x760] sm:$0xff]
          %v4525 = vld [vmem:[#allocation3 + $0x768] sm:$0xff]
          %v4526 = vld [vmem:[#allocation3 + $0x770] sm:$0xff]
          %v4527 = vld [vmem:[#allocation3 + $0x778] sm:$0xff]
          %v4528 = vld [vmem:[#allocation3 + $0x780] sm:$0xff]
          %v4529 = vld [vmem:[#allocation3 + $0x788] sm:$0xff]
          %v4530 = vld [vmem:[#allocation3 + $0x790] sm:$0xff]
          %v4531 = vld [vmem:[#allocation3 + $0x798] sm:$0xff]
          %v4532 = vld [vmem:[#allocation3 + $0x7a0] sm:$0xff]
          %v4533 = vld [vmem:[#allocation3 + $0x7a8] sm:$0xff]
          %v4534 = vld [vmem:[#allocation3 + $0x7b0] sm:$0xff]
          %v4535 = vld [vmem:[#allocation3 + $0x7b8] sm:$0xff]
          %v4536 = vld [vmem:[#allocation3 + $0x7c0] sm:$0xff]
          %v4537 = vld [vmem:[#allocation3 + $0x7c8] sm:$0xff]
          %v4538 = vld [vmem:[#allocation3 + $0x7d0] sm:$0xff]
          %v4539 = vld [vmem:[#allocation3 + $0x7d8] sm:$0xff]
          %v4540 = vld [vmem:[#allocation3 + $0x7e0] sm:$0xff]
          %v4541 = vld [vmem:[#allocation3 + $0x7e8] sm:$0xff]
          %v4542 = vld [vmem:[#allocation3 + $0x7f0] sm:$0xff]
          %v4543 = vld [vmem:[#allocation3 + $0x7f8] sm:$0xff]
          %v4544 = vld [vmem:[#allocation3 + $0x800] sm:$0xff]
          %v4545 = vld [vmem:[#allocation3 + $0x808] sm:$0xff]
          %v4546 = vld [vmem:[#allocation3 + $0x810] sm:$0xff]
          %v4547 = vld [vmem:[#allocation3 + $0x818] sm:$0xff]
          %v4548 = vld [vmem:[#allocation3 + $0x820] sm:$0xff]
          %v4549 = vld [vmem:[#allocation3 + $0x828] sm:$0xff]
          %v4550 = vld [vmem:[#allocation3 + $0x830] sm:$0xff]
          %v4551 = vld [vmem:[#allocation3 + $0x838] sm:$0xff]
          %v4552 = vld [vmem:[#allocation3 + $0x840] sm:$0xff]
          %v4553 = vld [vmem:[#allocation3 + $0x848] sm:$0xff]
          %v4554 = vld [vmem:[#allocation3 + $0x850] sm:$0xff]
          %v4555 = vld [vmem:[#allocation3 + $0x858] sm:$0xff]
          %v4556 = vld [vmem:[#allocation3 + $0x860] sm:$0xff]
          %v4557 = vld [vmem:[#allocation3 + $0x868] sm:$0xff]
          %v4558 = vld [vmem:[#allocation3 + $0x870] sm:$0xff]
          %v4559 = vld [vmem:[#allocation3 + $0x878] sm:$0xff]
          %v4560 = vld [vmem:[#allocation3 + $0x880] sm:$0xff]
          %v4561 = vld [vmem:[#allocation3 + $0x888] sm:$0xff]
          %v4562 = vld [vmem:[#allocation3 + $0x890] sm:$0xff]
          %v4563 = vld [vmem:[#allocation3 + $0x898] sm:$0xff]
          %v4564 = vld [vmem:[#allocation3 + $0x8a0] sm:$0xff]
          %v4565 = vld [vmem:[#allocation3 + $0x8a8] sm:$0xff]
          %v4566 = vld [vmem:[#allocation3 + $0x8b0] sm:$0xff]
          %v4567 = vld [vmem:[#allocation3 + $0x8b8] sm:$0xff]
          %v4568 = vld [vmem:[#allocation3 + $0x8c0] sm:$0xff]
          %v4569 = vld [vmem:[#allocation3 + $0x8c8] sm:$0xff]
          %v4570 = vld [vmem:[#allocation3 + $0x8d0] sm:$0xff]
          %v4571 = vld [vmem:[#allocation3 + $0x8d8] sm:$0xff]
          %v4572 = vld [vmem:[#allocation3 + $0x8e0] sm:$0xff]
          %v4573 = vld [vmem:[#allocation3 + $0x8e8] sm:$0xff]
          %v4574 = vld [vmem:[#allocation3 + $0x8f0] sm:$0xff]
          %v4575 = vld [vmem:[#allocation3 + $0x8f8] sm:$0xff]
          %v4576 = vld [vmem:[#allocation3 + $0x900] sm:$0xff]
          %v4577 = vld [vmem:[#allocation3 + $0x908] sm:$0xff]
          %v4578 = vld [vmem:[#allocation3 + $0x910] sm:$0xff]
          %v4579 = vld [vmem:[#allocation3 + $0x918] sm:$0xff]
          %v4580 = vld [vmem:[#allocation3 + $0x920] sm:$0xff]
          %v4581 = vld [vmem:[#allocation3 + $0x928] sm:$0xff]
          %v4582 = vld [vmem:[#allocation3 + $0x930] sm:$0xff]
          %v4583 = vld [vmem:[#allocation3 + $0x938] sm:$0xff]
          %v4584 = vld [vmem:[#allocation3 + $0x940] sm:$0xff]
          %v4585 = vld [vmem:[#allocation3 + $0x948] sm:$0xff]
          %v4586 = vld [vmem:[#allocation3 + $0x950] sm:$0xff]
          %v4587 = vld [vmem:[#allocation3 + $0x958] sm:$0xff]
          %v4588 = vld [vmem:[#allocation3 + $0x960] sm:$0xff]
          %v4589 = vld [vmem:[#allocation3 + $0x968] sm:$0xff]
          %v4590 = vld [vmem:[#allocation3 + $0x970] sm:$0xff]
          %v4591 = vld [vmem:[#allocation3 + $0x978] sm:$0xff]
          %v4592 = vld [vmem:[#allocation3 + $0x980] sm:$0xff]
          %v4593 = vld [vmem:[#allocation3 + $0x988] sm:$0xff]
          %v4594 = vld [vmem:[#allocation3 + $0x990] sm:$0xff]
          %v4595 = vld [vmem:[#allocation3 + $0x998] sm:$0xff]
          %v4596 = vld [vmem:[#allocation3 + $0x9a0] sm:$0xff]
          %v4597 = vld [vmem:[#allocation3 + $0x9a8] sm:$0xff]
          %v4598 = vld [vmem:[#allocation3 + $0x9b0] sm:$0xff]
          %v4599 = vld [vmem:[#allocation3 + $0x9b8] sm:$0xff]
          %v4600 = vld [vmem:[#allocation3 + $0x9c0] sm:$0xff]
          %v4601 = vld [vmem:[#allocation3 + $0x9c8] sm:$0xff]
          %v4602 = vld [vmem:[#allocation3 + $0x9d0] sm:$0xff]
          %v4603 = vld [vmem:[#allocation3 + $0x9d8] sm:$0xff]
          %v4604 = vld [vmem:[#allocation3 + $0x9e0] sm:$0xff]
          %v4605 = vld [vmem:[#allocation3 + $0x9e8] sm:$0xff]
          %v4606 = vld [vmem:[#allocation3 + $0x9f0] sm:$0xff]
          %v4607 = vld [vmem:[#allocation3 + $0x9f8] sm:$0xff]
          %v4608 = vld [vmem:[#allocation3 + $0xa00] sm:$0xff]
          %v4609 = vld [vmem:[#allocation3 + $0xa08] sm:$0xff]
          %v4610 = vld [vmem:[#allocation3 + $0xa10] sm:$0xff]
          %v4611 = vld [vmem:[#allocation3 + $0xa18] sm:$0xff]
          %v4612 = vld [vmem:[#allocation3 + $0xa20] sm:$0xff]
          %v4613 = vld [vmem:[#allocation3 + $0xa28] sm:$0xff]
          %v4614 = vld [vmem:[#allocation3 + $0xa30] sm:$0xff]
          %v4615 = vld [vmem:[#allocation3 + $0xa38] sm:$0xff]
          %v4616 = vld [vmem:[#allocation3 + $0xa40] sm:$0xff]
          %v4617 = vld [vmem:[#allocation3 + $0xa48] sm:$0xff]
          %v4618 = vld [vmem:[#allocation3 + $0xa50] sm:$0xff]
          %v4619 = vld [vmem:[#allocation3 + $0xa58] sm:$0xff]
          %v4620 = vld [vmem:[#allocation3 + $0xa60] sm:$0xff]
          %v4621 = vld [vmem:[#allocation3 + $0xa68] sm:$0xff]
          %v4622 = vld [vmem:[#allocation3 + $0xa70] sm:$0xff]
          %v4623 = vld [vmem:[#allocation3 + $0xa78] sm:$0xff]
          %v4624 = vld [vmem:[#allocation3 + $0xa80] sm:$0xff]
          %v4625 = vld [vmem:[#allocation3 + $0xa88] sm:$0xff]
          %v4626 = vld [vmem:[#allocation3 + $0xa90] sm:$0xff]
          %v4627 = vld [vmem:[#allocation3 + $0xa98] sm:$0xff]
          %v4628 = vld [vmem:[#allocation3 + $0xaa0] sm:$0xff]
          %v4629 = vld [vmem:[#allocation3 + $0xaa8] sm:$0xff]
          %v4630 = vld [vmem:[#allocation3 + $0xab0] sm:$0xff]
          %v4631 = vld [vmem:[#allocation3 + $0xab8] sm:$0xff]
          %v4632 = vld [vmem:[#allocation3 + $0xac0] sm:$0xff]
          %v4633 = vld [vmem:[#allocation3 + $0xac8] sm:$0xff]
          %v4634 = vld [vmem:[#allocation3 + $0xad0] sm:$0xff]
          %v4635 = vld [vmem:[#allocation3 + $0xad8] sm:$0xff]
          %v4636 = vld [vmem:[#allocation3 + $0xae0] sm:$0xff]
          %v4637 = vld [vmem:[#allocation3 + $0xae8] sm:$0xff]
          %v4638 = vld [vmem:[#allocation3 + $0xaf0] sm:$0xff]
          %v4639 = vld [vmem:[#allocation3 + $0xaf8] sm:$0xff]
          %v4640 = vld [vmem:[#allocation3 + $0xb00] sm:$0xff]
          %v4641 = vld [vmem:[#allocation3 + $0xb08] sm:$0xff]
          %v4642 = vld [vmem:[#allocation3 + $0xb10] sm:$0xff]
          %v4643 = vld [vmem:[#allocation3 + $0xb18] sm:$0xff]
          %v4644 = vld [vmem:[#allocation3 + $0xb20] sm:$0xff]
          %v4645 = vld [vmem:[#allocation3 + $0xb28] sm:$0xff]
          %v4646 = vld [vmem:[#allocation3 + $0xb30] sm:$0xff]
          %v4647 = vld [vmem:[#allocation3 + $0xb38] sm:$0xff]
          %v4648 = vld [vmem:[#allocation3 + $0xb40] sm:$0xff]
          %v4649 = vld [vmem:[#allocation3 + $0xb48] sm:$0xff]
          %v4650 = vld [vmem:[#allocation3 + $0xb50] sm:$0xff]
          %v4651 = vld [vmem:[#allocation3 + $0xb58] sm:$0xff]
          %v4652 = vld [vmem:[#allocation3 + $0xb60] sm:$0xff]
          %v4653 = vld [vmem:[#allocation3 + $0xb68] sm:$0xff]
          %v4654 = vld [vmem:[#allocation3 + $0xb70] sm:$0xff]
          %v4655 = vld [vmem:[#allocation3 + $0xb78] sm:$0xff]
          %v4656 = vld [vmem:[#allocation3 + $0xb80] sm:$0xff]
          %v4657 = vld [vmem:[#allocation3 + $0xb88] sm:$0xff]
          %v4658 = vld [vmem:[#allocation3 + $0xb90] sm:$0xff]
          %v4659 = vld [vmem:[#allocation3 + $0xb98] sm:$0xff]
          %v4660 = vld [vmem:[#allocation3 + $0xba0] sm:$0xff]
          %v4661 = vld [vmem:[#allocation3 + $0xba8] sm:$0xff]
          %v4662 = vld [vmem:[#allocation3 + $0xbb0] sm:$0xff]
          %v4663 = vld [vmem:[#allocation3 + $0xbb8] sm:$0xff]
          %v4664 = vld [vmem:[#allocation3 + $0xbc0] sm:$0xff]
          %v4665 = vld [vmem:[#allocation3 + $0xbc8] sm:$0xff]
          %v4666 = vld [vmem:[#allocation3 + $0xbd0] sm:$0xff]
          %v4667 = vld [vmem:[#allocation3 + $0xbd8] sm:$0xff]
          %v4668 = vld [vmem:[#allocation3 + $0xbe0] sm:$0xff]
          %v4669 = vld [vmem:[#allocation3 + $0xbe8] sm:$0xff]
          %v4670 = vld [vmem:[#allocation3 + $0xbf0] sm:$0xff]
          %v4671 = vld [vmem:[#allocation3 + $0xbf8] sm:$0xff]
          %v4672 = vld [vmem:[#allocation3 + $0xc00] sm:$0xff]
          %v4673 = vld [vmem:[#allocation3 + $0xc08] sm:$0xff]
          %v4674 = vld [vmem:[#allocation3 + $0xc10] sm:$0xff]
          %v4675 = vld [vmem:[#allocation3 + $0xc18] sm:$0xff]
          %v4676 = vld [vmem:[#allocation3 + $0xc20] sm:$0xff]
          %v4677 = vld [vmem:[#allocation3 + $0xc28] sm:$0xff]
          %v4678 = vld [vmem:[#allocation3 + $0xc30] sm:$0xff]
          %v4679 = vld [vmem:[#allocation3 + $0xc38] sm:$0xff]
          %v4680 = vld [vmem:[#allocation3 + $0xc40] sm:$0xff]
          %v4681 = vld [vmem:[#allocation3 + $0xc48] sm:$0xff]
          %v4682 = vld [vmem:[#allocation3 + $0xc50] sm:$0xff]
          %v4683 = vld [vmem:[#allocation3 + $0xc58] sm:$0xff]
          %v4684 = vld [vmem:[#allocation3 + $0xc60] sm:$0xff]
          %v4685 = vld [vmem:[#allocation3 + $0xc68] sm:$0xff]
          %v4686 = vld [vmem:[#allocation3 + $0xc70] sm:$0xff]
          %v4687 = vld [vmem:[#allocation3 + $0xc78] sm:$0xff]
          %v4688 = vld [vmem:[#allocation3 + $0xc80] sm:$0xff]
          %v4689 = vld [vmem:[#allocation3 + $0xc88] sm:$0xff]
          %v4690 = vld [vmem:[#allocation3 + $0xc90] sm:$0xff]
          %v4691 = vld [vmem:[#allocation3 + $0xc98] sm:$0xff]
          %v4692 = vld [vmem:[#allocation3 + $0xca0] sm:$0xff]
          %v4693 = vld [vmem:[#allocation3 + $0xca8] sm:$0xff]
          %v4694 = vld [vmem:[#allocation3 + $0xcb0] sm:$0xff]
          %v4695 = vld [vmem:[#allocation3 + $0xcb8] sm:$0xff]
          %v4696 = vld [vmem:[#allocation3 + $0xcc0] sm:$0xff]
          %v4697 = vld [vmem:[#allocation3 + $0xcc8] sm:$0xff]
          %v4698 = vld [vmem:[#allocation3 + $0xcd0] sm:$0xff]
          %v4699 = vld [vmem:[#allocation3 + $0xcd8] sm:$0xff]
          %v4700 = vld [vmem:[#allocation3 + $0xce0] sm:$0xff]
          %v4701 = vld [vmem:[#allocation3 + $0xce8] sm:$0xff]
          %v4702 = vld [vmem:[#allocation3 + $0xcf0] sm:$0xff]
          %v4703 = vld [vmem:[#allocation3 + $0xcf8] sm:$0xff]
          %v4704 = vld [vmem:[#allocation3 + $0xd00] sm:$0xff]
          %v4705 = vld [vmem:[#allocation3 + $0xd08] sm:$0xff]
          %v4706 = vld [vmem:[#allocation3 + $0xd10] sm:$0xff]
          %v4707 = vld [vmem:[#allocation3 + $0xd18] sm:$0xff]
          %v4708 = vld [vmem:[#allocation3 + $0xd20] sm:$0xff]
          %v4709 = vld [vmem:[#allocation3 + $0xd28] sm:$0xff]
          %v4710 = vld [vmem:[#allocation3 + $0xd30] sm:$0xff]
          %v4711 = vld [vmem:[#allocation3 + $0xd38] sm:$0xff]
          %v4712 = vld [vmem:[#allocation3 + $0xd40] sm:$0xff]
          %v4713 = vld [vmem:[#allocation3 + $0xd48] sm:$0xff]
          %v4714 = vld [vmem:[#allocation3 + $0xd50] sm:$0xff]
          %v4715 = vld [vmem:[#allocation3 + $0xd58] sm:$0xff]
          %v4716 = vld [vmem:[#allocation3 + $0xd60] sm:$0xff]
          %v4717 = vld [vmem:[#allocation3 + $0xd68] sm:$0xff]
          %v4718 = vld [vmem:[#allocation3 + $0xd70] sm:$0xff]
          %v4719 = vld [vmem:[#allocation3 + $0xd78] sm:$0xff]
          %v4720 = vld [vmem:[#allocation3 + $0xd80] sm:$0xff]
          %v4721 = vld [vmem:[#allocation3 + $0xd88] sm:$0xff]
          %v4722 = vld [vmem:[#allocation3 + $0xd90] sm:$0xff]
          %v4723 = vld [vmem:[#allocation3 + $0xd98] sm:$0xff]
          %v4724 = vld [vmem:[#allocation3 + $0xda0] sm:$0xff]
          %v4725 = vld [vmem:[#allocation3 + $0xda8] sm:$0xff]
          %v4726 = vld [vmem:[#allocation3 + $0xdb0] sm:$0xff]
          %v4727 = vld [vmem:[#allocation3 + $0xdb8] sm:$0xff]
          %v4728 = vld [vmem:[#allocation3 + $0xdc0] sm:$0xff]
          %v4729 = vld [vmem:[#allocation3 + $0xdc8] sm:$0xff]
          %v4730 = vld [vmem:[#allocation3 + $0xdd0] sm:$0xff]
          %v4731 = vld [vmem:[#allocation3 + $0xdd8] sm:$0xff]
          %v4732 = vld [vmem:[#allocation3 + $0xde0] sm:$0xff]
          %v4733 = vld [vmem:[#allocation3 + $0xde8] sm:$0xff]
          %v4734 = vld [vmem:[#allocation3 + $0xdf0] sm:$0xff]
          %v4735 = vld [vmem:[#allocation3 + $0xdf8] sm:$0xff]
          %v4736 = vld [vmem:[#allocation3 + $0xe00] sm:$0xff]
          %v4737 = vld [vmem:[#allocation3 + $0xe08] sm:$0xff]
          %v4738 = vld [vmem:[#allocation3 + $0xe10] sm:$0xff]
          %v4739 = vld [vmem:[#allocation3 + $0xe18] sm:$0xff]
          %v4740 = vld [vmem:[#allocation3 + $0xe20] sm:$0xff]
          %v4741 = vld [vmem:[#allocation3 + $0xe28] sm:$0xff]
          %v4742 = vld [vmem:[#allocation3 + $0xe30] sm:$0xff]
          %v4743 = vld [vmem:[#allocation3 + $0xe38] sm:$0xff]
          %v4744 = vld [vmem:[#allocation3 + $0xe40] sm:$0xff]
          %v4745 = vld [vmem:[#allocation3 + $0xe48] sm:$0xff]
          %v4746 = vld [vmem:[#allocation3 + $0xe50] sm:$0xff]
          %v4747 = vld [vmem:[#allocation3 + $0xe58] sm:$0xff]
          %v4748 = vld [vmem:[#allocation3 + $0xe60] sm:$0xff]
          %v4749 = vld [vmem:[#allocation3 + $0xe68] sm:$0xff]
          %v4750 = vld [vmem:[#allocation3 + $0xe70] sm:$0xff]
          %v4751 = vld [vmem:[#allocation3 + $0xe78] sm:$0xff]
          %v4752 = vld [vmem:[#allocation3 + $0xe80] sm:$0xff]
          %v4753 = vld [vmem:[#allocation3 + $0xe88] sm:$0xff]
          %v4754 = vld [vmem:[#allocation3 + $0xe90] sm:$0xff]
          %v4755 = vld [vmem:[#allocation3 + $0xe98] sm:$0xff]
          %v4756 = vld [vmem:[#allocation3 + $0xea0] sm:$0xff]
          %v4757 = vld [vmem:[#allocation3 + $0xea8] sm:$0xff]
          %v4758 = vld [vmem:[#allocation3 + $0xeb0] sm:$0xff]
          %v4759 = vld [vmem:[#allocation3 + $0xeb8] sm:$0xff]
          %v4760 = vld [vmem:[#allocation3 + $0xec0] sm:$0xff]
          %v4761 = vld [vmem:[#allocation3 + $0xec8] sm:$0xff]
          %v4762 = vld [vmem:[#allocation3 + $0xed0] sm:$0xff]
          %v4763 = vld [vmem:[#allocation3 + $0xed8] sm:$0xff]
          %v4764 = vld [vmem:[#allocation3 + $0xee0] sm:$0xff]
          %v4765 = vld [vmem:[#allocation3 + $0xee8] sm:$0xff]
          %v4766 = vld [vmem:[#allocation3 + $0xef0] sm:$0xff]
          %v4767 = vld [vmem:[#allocation3 + $0xef8] sm:$0xff]
          %v4768 = vld [vmem:[#allocation3 + $0xf00] sm:$0xff]
          %v4769 = vld [vmem:[#allocation3 + $0xf08] sm:$0xff]
          %v4770 = vld [vmem:[#allocation3 + $0xf10] sm:$0xff]
          %v4771 = vld [vmem:[#allocation3 + $0xf18] sm:$0xff]
          %v4772 = vld [vmem:[#allocation3 + $0xf20] sm:$0xff]
          %v4773 = vld [vmem:[#allocation3 + $0xf28] sm:$0xff]
          %v4774 = vld [vmem:[#allocation3 + $0xf30] sm:$0xff]
          %v4775 = vld [vmem:[#allocation3 + $0xf38] sm:$0xff]
          %v4776 = vld [vmem:[#allocation3 + $0xf40] sm:$0xff]
          %v4777 = vld [vmem:[#allocation3 + $0xf48] sm:$0xff]
          %v4778 = vld [vmem:[#allocation3 + $0xf50] sm:$0xff]
          %v4779 = vld [vmem:[#allocation3 + $0xf58] sm:$0xff]
          %v4780 = vld [vmem:[#allocation3 + $0xf60] sm:$0xff]
          %v4781 = vld [vmem:[#allocation3 + $0xf68] sm:$0xff]
          %v4782 = vld [vmem:[#allocation3 + $0xf70] sm:$0xff]
          %v4783 = vld [vmem:[#allocation3 + $0xf78] sm:$0xff]
          %v4784 = vld [vmem:[#allocation3 + $0xf80] sm:$0xff]
          %v4785 = vld [vmem:[#allocation3 + $0xf88] sm:$0xff]
          %v4786 = vld [vmem:[#allocation3 + $0xf90] sm:$0xff]
          %v4787 = vld [vmem:[#allocation3 + $0xf98] sm:$0xff]
          %v4788 = vld [vmem:[#allocation3 + $0xfa0] sm:$0xff]
          %v4789 = vld [vmem:[#allocation3 + $0xfa8] sm:$0xff]
          %v4790 = vld [vmem:[#allocation3 + $0xfb0] sm:$0xff]
          %v4791 = vld [vmem:[#allocation3 + $0xfb8] sm:$0xff]
          %v4792 = vld [vmem:[#allocation3 + $0xfc0] sm:$0xff]
          %v4793 = vld [vmem:[#allocation3 + $0xfc8] sm:$0xff]
          %v4794 = vld [vmem:[#allocation3 + $0xfd0] sm:$0xff]
          %v4795 = vld [vmem:[#allocation3 + $0xfd8] sm:$0xff]
          %v4796 = vld [vmem:[#allocation3 + $0xfe0] sm:$0xff]
          %v4797 = vld [vmem:[#allocation3 + $0xfe8] sm:$0xff]
          %v4798 = vld [vmem:[#allocation3 + $0xff0] sm:$0xff]
          %v4799 = vld [vmem:[#allocation3 + $0xff8] sm:$0xff]
          %v4800 = vld [vmem:[#allocation30] sm:$0xff]
          %v4801 = vld [vmem:[#allocation30 + $0x8] sm:$0xff]
          %v4804 = vlaneseq
          %v4805 = vshrl.u32 %v4804, 7
          %v4806 = vsub.s32 0, %v4805
          %v4807 = vrot.slane %v4800, %v4806
          %v4808 = vlaneseq
          %v4809 = vshrl.u32 %v4808, 7
          %v4810 = vsub.s32 1, %v4809
          %v4811 = vrot.slane %v4800, %v4810
          %v4812 = vlaneseq
          %v4813 = vshrl.u32 %v4812, 7
          %v4814 = vsub.s32 2, %v4813
          %v4815 = vrot.slane %v4800, %v4814
          %v4816 = vlaneseq
          %v4817 = vshrl.u32 %v4816, 7
          %v4818 = vsub.s32 3, %v4817
          %v4819 = vrot.slane %v4800, %v4818
          %v4820 = vlaneseq
          %v4821 = vshrl.u32 %v4820, 7
          %v4822 = vsub.s32 4, %v4821
          %v4823 = vrot.slane %v4800, %v4822
          %v4824 = vlaneseq
          %v4825 = vshrl.u32 %v4824, 7
          %v4826 = vsub.s32 5, %v4825
          %v4827 = vrot.slane %v4800, %v4826
          %v4828 = vlaneseq
          %v4829 = vshrl.u32 %v4828, 7
          %v4830 = vsub.s32 6, %v4829
          %v4831 = vrot.slane %v4800, %v4830
          %v4832 = vlaneseq
          %v4833 = vshrl.u32 %v4832, 7
          %v4834 = vsub.s32 7, %v4833
          %v4835 = vrot.slane %v4800, %v4834
          %v4836 = vlaneseq
          %v4837 = vshrl.u32 %v4836, 7
          %v4838 = vsub.s32 0, %v4837
          %v4839 = vrot.slane %v4801, %v4838
          %v4840 = vlaneseq
          %v4841 = vshrl.u32 %v4840, 7
          %v4842 = vsub.s32 1, %v4841
          %v4843 = vrot.slane %v4801, %v4842
          %v4844 = vlaneseq
          %v4845 = vshrl.u32 %v4844, 7
          %v4846 = vsub.s32 2, %v4845
          %v4847 = vrot.slane %v4801, %v4846
          %v4848 = vlaneseq
          %v4849 = vshrl.u32 %v4848, 7
          %v4850 = vsub.s32 3, %v4849
          %v4851 = vrot.slane %v4801, %v4850
          %v4852 = vlaneseq
          %v4853 = vshrl.u32 %v4852, 7
          %v4854 = vsub.s32 4, %v4853
          %v4855 = vrot.slane %v4801, %v4854
          %v4856 = vlaneseq
          %v4857 = vshrl.u32 %v4856, 7
          %v4858 = vsub.s32 5, %v4857
          %v4859 = vrot.slane %v4801, %v4858
          %v4860 = vlaneseq
          %v4861 = vshrl.u32 %v4860, 7
          %v4862 = vsub.s32 6, %v4861
          %v4863 = vrot.slane %v4801, %v4862
          %v4864 = vlaneseq
          %v4865 = vshrl.u32 %v4864, 7
          %v4866 = vsub.s32 7, %v4865
          %v4867 = vrot.slane %v4801, %v4866
          %v5396 = vunpack.c.l.b16 %v4288
          %v5397 = vunpack.c.h.b16 %v4288
          %v5398 = vunpack.c.l.b16 %v4289
          %v5399 = vunpack.c.h.b16 %v4289
          %v5400 = vunpack.c.l.b16 %v4290
          %v5401 = vunpack.c.h.b16 %v4290
          %v5402 = vunpack.c.l.b16 %v4291
          %v5403 = vunpack.c.h.b16 %v4291
          %v5404 = vunpack.c.l.b16 %v4292
          %v5405 = vunpack.c.h.b16 %v4292
          %v5406 = vunpack.c.l.b16 %v4293
          %v5407 = vunpack.c.h.b16 %v4293
          %v5408 = vunpack.c.l.b16 %v4294
          %v5409 = vunpack.c.h.b16 %v4294
          %v5410 = vunpack.c.l.b16 %v4295
          %v5411 = vunpack.c.h.b16 %v4295
          %v5412 = vunpack.c.l.b16 %v4296
          %v5413 = vunpack.c.h.b16 %v4296
          %v5414 = vunpack.c.l.b16 %v4297
          %v5415 = vunpack.c.h.b16 %v4297
          %v5416 = vunpack.c.l.b16 %v4298
          %v5417 = vunpack.c.h.b16 %v4298
          %v5418 = vunpack.c.l.b16 %v4299
          %v5419 = vunpack.c.h.b16 %v4299
          %v5420 = vunpack.c.l.b16 %v4300
          %v5421 = vunpack.c.h.b16 %v4300
          %v5422 = vunpack.c.l.b16 %v4301
          %v5423 = vunpack.c.h.b16 %v4301
          %v5424 = vunpack.c.l.b16 %v4302
          %v5425 = vunpack.c.h.b16 %v4302
          %v5426 = vunpack.c.l.b16 %v4303
          %v5427 = vunpack.c.h.b16 %v4303
          %v5428 = vunpack.c.l.b16 %v4304
          %v5429 = vunpack.c.h.b16 %v4304
          %v5430 = vunpack.c.l.b16 %v4305
          %v5431 = vunpack.c.h.b16 %v4305
          %v5432 = vunpack.c.l.b16 %v4306
          %v5433 = vunpack.c.h.b16 %v4306
          %v5434 = vunpack.c.l.b16 %v4307
          %v5435 = vunpack.c.h.b16 %v4307
          %v5436 = vunpack.c.l.b16 %v4308
          %v5437 = vunpack.c.h.b16 %v4308
          %v5438 = vunpack.c.l.b16 %v4309
          %v5439 = vunpack.c.h.b16 %v4309
          %v5440 = vunpack.c.l.b16 %v4310
          %v5441 = vunpack.c.h.b16 %v4310
          %v5442 = vunpack.c.l.b16 %v4311
          %v5443 = vunpack.c.h.b16 %v4311
          %v5444 = vunpack.c.l.b16 %v4312
          %v5445 = vunpack.c.h.b16 %v4312
          %v5446 = vunpack.c.l.b16 %v4313
          %v5447 = vunpack.c.h.b16 %v4313
          %v5448 = vunpack.c.l.b16 %v4314
          %v5449 = vunpack.c.h.b16 %v4314
          %v5450 = vunpack.c.l.b16 %v4315
          %v5451 = vunpack.c.h.b16 %v4315
          %v5452 = vunpack.c.l.b16 %v4316
          %v5453 = vunpack.c.h.b16 %v4316
          %v5454 = vunpack.c.l.b16 %v4317
          %v5455 = vunpack.c.h.b16 %v4317
          %v5456 = vunpack.c.l.b16 %v4318
          %v5457 = vunpack.c.h.b16 %v4318
          %v5458 = vunpack.c.l.b16 %v4319
          %v5459 = vunpack.c.h.b16 %v4319
          %v5460 = vunpack.c.l.b16 %v4320
          %v5461 = vunpack.c.h.b16 %v4320
          %v5462 = vunpack.c.l.b16 %v4321
          %v5463 = vunpack.c.h.b16 %v4321
          %v5464 = vunpack.c.l.b16 %v4322
          %v5465 = vunpack.c.h.b16 %v4322
          %v5466 = vunpack.c.l.b16 %v4323
          %v5467 = vunpack.c.h.b16 %v4323
          %v5468 = vunpack.c.l.b16 %v4324
          %v5469 = vunpack.c.h.b16 %v4324
          %v5470 = vunpack.c.l.b16 %v4325
          %v5471 = vunpack.c.h.b16 %v4325
          %v5472 = vunpack.c.l.b16 %v4326
          %v5473 = vunpack.c.h.b16 %v4326
          %v5474 = vunpack.c.l.b16 %v4327
          %v5475 = vunpack.c.h.b16 %v4327
          %v5476 = vunpack.c.l.b16 %v4328
          %v5477 = vunpack.c.h.b16 %v4328
          %v5478 = vunpack.c.l.b16 %v4329
          %v5479 = vunpack.c.h.b16 %v4329
          %v5480 = vunpack.c.l.b16 %v4330
          %v5481 = vunpack.c.h.b16 %v4330
          %v5482 = vunpack.c.l.b16 %v4331
          %v5483 = vunpack.c.h.b16 %v4331
          %v5484 = vunpack.c.l.b16 %v4332
          %v5485 = vunpack.c.h.b16 %v4332
          %v5486 = vunpack.c.l.b16 %v4333
          %v5487 = vunpack.c.h.b16 %v4333
          %v5488 = vunpack.c.l.b16 %v4334
          %v5489 = vunpack.c.h.b16 %v4334
          %v5490 = vunpack.c.l.b16 %v4335
          %v5491 = vunpack.c.h.b16 %v4335
          %v5492 = vunpack.c.l.b16 %v4336
          %v5493 = vunpack.c.h.b16 %v4336
          %v5494 = vunpack.c.l.b16 %v4337
          %v5495 = vunpack.c.h.b16 %v4337
          %v5496 = vunpack.c.l.b16 %v4338
          %v5497 = vunpack.c.h.b16 %v4338
          %v5498 = vunpack.c.l.b16 %v4339
          %v5499 = vunpack.c.h.b16 %v4339
          %v5500 = vunpack.c.l.b16 %v4340
          %v5501 = vunpack.c.h.b16 %v4340
          %v5502 = vunpack.c.l.b16 %v4341
          %v5503 = vunpack.c.h.b16 %v4341
          %v5504 = vunpack.c.l.b16 %v4342
          %v5505 = vunpack.c.h.b16 %v4342
          %v5506 = vunpack.c.l.b16 %v4343
          %v5507 = vunpack.c.h.b16 %v4343
          %v5508 = vunpack.c.l.b16 %v4344
          %v5509 = vunpack.c.h.b16 %v4344
          %v5510 = vunpack.c.l.b16 %v4345
          %v5511 = vunpack.c.h.b16 %v4345
          %v5512 = vunpack.c.l.b16 %v4346
          %v5513 = vunpack.c.h.b16 %v4346
          %v5514 = vunpack.c.l.b16 %v4347
          %v5515 = vunpack.c.h.b16 %v4347
          %v5516 = vunpack.c.l.b16 %v4348
          %v5517 = vunpack.c.h.b16 %v4348
          %v5518 = vunpack.c.l.b16 %v4349
          %v5519 = vunpack.c.h.b16 %v4349
          %v5520 = vunpack.c.l.b16 %v4350
          %v5521 = vunpack.c.h.b16 %v4350
          %v5522 = vunpack.c.l.b16 %v4351
          %v5523 = vunpack.c.h.b16 %v4351
          %v5524 = vunpack.c.l.b16 %v4352
          %v5525 = vunpack.c.h.b16 %v4352
          %v5526 = vunpack.c.l.b16 %v4353
          %v5527 = vunpack.c.h.b16 %v4353
          %v5528 = vunpack.c.l.b16 %v4354
          %v5529 = vunpack.c.h.b16 %v4354
          %v5530 = vunpack.c.l.b16 %v4355
          %v5531 = vunpack.c.h.b16 %v4355
          %v5532 = vunpack.c.l.b16 %v4356
          %v5533 = vunpack.c.h.b16 %v4356
          %v5534 = vunpack.c.l.b16 %v4357
          %v5535 = vunpack.c.h.b16 %v4357
          %v5536 = vunpack.c.l.b16 %v4358
          %v5537 = vunpack.c.h.b16 %v4358
          %v5538 = vunpack.c.l.b16 %v4359
          %v5539 = vunpack.c.h.b16 %v4359
          %v5540 = vunpack.c.l.b16 %v4360
          %v5541 = vunpack.c.h.b16 %v4360
          %v5542 = vunpack.c.l.b16 %v4361
          %v5543 = vunpack.c.h.b16 %v4361
          %v5544 = vunpack.c.l.b16 %v4362
          %v5545 = vunpack.c.h.b16 %v4362
          %v5546 = vunpack.c.l.b16 %v4363
          %v5547 = vunpack.c.h.b16 %v4363
          %v5548 = vunpack.c.l.b16 %v4364
          %v5549 = vunpack.c.h.b16 %v4364
          %v5550 = vunpack.c.l.b16 %v4365
          %v5551 = vunpack.c.h.b16 %v4365
          %v5552 = vunpack.c.l.b16 %v4366
          %v5553 = vunpack.c.h.b16 %v4366
          %v5554 = vunpack.c.l.b16 %v4367
          %v5555 = vunpack.c.h.b16 %v4367
          %v5556 = vunpack.c.l.b16 %v4368
          %v5557 = vunpack.c.h.b16 %v4368
          %v5558 = vunpack.c.l.b16 %v4369
          %v5559 = vunpack.c.h.b16 %v4369
          %v5560 = vunpack.c.l.b16 %v4370
          %v5561 = vunpack.c.h.b16 %v4370
          %v5562 = vunpack.c.l.b16 %v4371
          %v5563 = vunpack.c.h.b16 %v4371
          %v5564 = vunpack.c.l.b16 %v4372
          %v5565 = vunpack.c.h.b16 %v4372
          %v5566 = vunpack.c.l.b16 %v4373
          %v5567 = vunpack.c.h.b16 %v4373
          %v5568 = vunpack.c.l.b16 %v4374
          %v5569 = vunpack.c.h.b16 %v4374
          %v5570 = vunpack.c.l.b16 %v4375
          %v5571 = vunpack.c.h.b16 %v4375
          %v5572 = vunpack.c.l.b16 %v4376
          %v5573 = vunpack.c.h.b16 %v4376
          %v5574 = vunpack.c.l.b16 %v4377
          %v5575 = vunpack.c.h.b16 %v4377
          %v5576 = vunpack.c.l.b16 %v4378
          %v5577 = vunpack.c.h.b16 %v4378
          %v5578 = vunpack.c.l.b16 %v4379
          %v5579 = vunpack.c.h.b16 %v4379
          %v5580 = vunpack.c.l.b16 %v4380
          %v5581 = vunpack.c.h.b16 %v4380
          %v5582 = vunpack.c.l.b16 %v4381
          %v5583 = vunpack.c.h.b16 %v4381
          %v5584 = vunpack.c.l.b16 %v4382
          %v5585 = vunpack.c.h.b16 %v4382
          %v5586 = vunpack.c.l.b16 %v4383
          %v5587 = vunpack.c.h.b16 %v4383
          %v5588 = vunpack.c.l.b16 %v4384
          %v5589 = vunpack.c.h.b16 %v4384
          %v5590 = vunpack.c.l.b16 %v4385
          %v5591 = vunpack.c.h.b16 %v4385
          %v5592 = vunpack.c.l.b16 %v4386
          %v5593 = vunpack.c.h.b16 %v4386
          %v5594 = vunpack.c.l.b16 %v4387
          %v5595 = vunpack.c.h.b16 %v4387
          %v5596 = vunpack.c.l.b16 %v4388
          %v5597 = vunpack.c.h.b16 %v4388
          %v5598 = vunpack.c.l.b16 %v4389
          %v5599 = vunpack.c.h.b16 %v4389
          %v5600 = vunpack.c.l.b16 %v4390
          %v5601 = vunpack.c.h.b16 %v4390
          %v5602 = vunpack.c.l.b16 %v4391
          %v5603 = vunpack.c.h.b16 %v4391
          %v5604 = vunpack.c.l.b16 %v4392
          %v5605 = vunpack.c.h.b16 %v4392
          %v5606 = vunpack.c.l.b16 %v4393
          %v5607 = vunpack.c.h.b16 %v4393
          %v5608 = vunpack.c.l.b16 %v4394
          %v5609 = vunpack.c.h.b16 %v4394
          %v5610 = vunpack.c.l.b16 %v4395
          %v5611 = vunpack.c.h.b16 %v4395
          %v5612 = vunpack.c.l.b16 %v4396
          %v5613 = vunpack.c.h.b16 %v4396
          %v5614 = vunpack.c.l.b16 %v4397
          %v5615 = vunpack.c.h.b16 %v4397
          %v5616 = vunpack.c.l.b16 %v4398
          %v5617 = vunpack.c.h.b16 %v4398
          %v5618 = vunpack.c.l.b16 %v4399
          %v5619 = vunpack.c.h.b16 %v4399
          %v5620 = vunpack.c.l.b16 %v4400
          %v5621 = vunpack.c.h.b16 %v4400
          %v5622 = vunpack.c.l.b16 %v4401
          %v5623 = vunpack.c.h.b16 %v4401
          %v5624 = vunpack.c.l.b16 %v4402
          %v5625 = vunpack.c.h.b16 %v4402
          %v5626 = vunpack.c.l.b16 %v4403
          %v5627 = vunpack.c.h.b16 %v4403
          %v5628 = vunpack.c.l.b16 %v4404
          %v5629 = vunpack.c.h.b16 %v4404
          %v5630 = vunpack.c.l.b16 %v4405
          %v5631 = vunpack.c.h.b16 %v4405
          %v5632 = vunpack.c.l.b16 %v4406
          %v5633 = vunpack.c.h.b16 %v4406
          %v5634 = vunpack.c.l.b16 %v4407
          %v5635 = vunpack.c.h.b16 %v4407
          %v5636 = vunpack.c.l.b16 %v4408
          %v5637 = vunpack.c.h.b16 %v4408
          %v5638 = vunpack.c.l.b16 %v4409
          %v5639 = vunpack.c.h.b16 %v4409
          %v5640 = vunpack.c.l.b16 %v4410
          %v5641 = vunpack.c.h.b16 %v4410
          %v5642 = vunpack.c.l.b16 %v4411
          %v5643 = vunpack.c.h.b16 %v4411
          %v5644 = vunpack.c.l.b16 %v4412
          %v5645 = vunpack.c.h.b16 %v4412
          %v5646 = vunpack.c.l.b16 %v4413
          %v5647 = vunpack.c.h.b16 %v4413
          %v5648 = vunpack.c.l.b16 %v4414
          %v5649 = vunpack.c.h.b16 %v4414
          %v5650 = vunpack.c.l.b16 %v4415
          %v5651 = vunpack.c.h.b16 %v4415
          %v5652 = vunpack.c.l.b16 %v4416
          %v5653 = vunpack.c.h.b16 %v4416
          %v5654 = vunpack.c.l.b16 %v4417
          %v5655 = vunpack.c.h.b16 %v4417
          %v5656 = vunpack.c.l.b16 %v4418
          %v5657 = vunpack.c.h.b16 %v4418
          %v5658 = vunpack.c.l.b16 %v4419
          %v5659 = vunpack.c.h.b16 %v4419
          %v5660 = vunpack.c.l.b16 %v4420
          %v5661 = vunpack.c.h.b16 %v4420
          %v5662 = vunpack.c.l.b16 %v4421
          %v5663 = vunpack.c.h.b16 %v4421
          %v5664 = vunpack.c.l.b16 %v4422
          %v5665 = vunpack.c.h.b16 %v4422
          %v5666 = vunpack.c.l.b16 %v4423
          %v5667 = vunpack.c.h.b16 %v4423
          %v5668 = vunpack.c.l.b16 %v4424
          %v5669 = vunpack.c.h.b16 %v4424
          %v5670 = vunpack.c.l.b16 %v4425
          %v5671 = vunpack.c.h.b16 %v4425
          %v5672 = vunpack.c.l.b16 %v4426
          %v5673 = vunpack.c.h.b16 %v4426
          %v5674 = vunpack.c.l.b16 %v4427
          %v5675 = vunpack.c.h.b16 %v4427
          %v5676 = vunpack.c.l.b16 %v4428
          %v5677 = vunpack.c.h.b16 %v4428
          %v5678 = vunpack.c.l.b16 %v4429
          %v5679 = vunpack.c.h.b16 %v4429
          %v5680 = vunpack.c.l.b16 %v4430
          %v5681 = vunpack.c.h.b16 %v4430
          %v5682 = vunpack.c.l.b16 %v4431
          %v5683 = vunpack.c.h.b16 %v4431
          %v5684 = vunpack.c.l.b16 %v4432
          %v5685 = vunpack.c.h.b16 %v4432
          %v5686 = vunpack.c.l.b16 %v4433
          %v5687 = vunpack.c.h.b16 %v4433
          %v5688 = vunpack.c.l.b16 %v4434
          %v5689 = vunpack.c.h.b16 %v4434
          %v5690 = vunpack.c.l.b16 %v4435
          %v5691 = vunpack.c.h.b16 %v4435
          %v5692 = vunpack.c.l.b16 %v4436
          %v5693 = vunpack.c.h.b16 %v4436
          %v5694 = vunpack.c.l.b16 %v4437
          %v5695 = vunpack.c.h.b16 %v4437
          %v5696 = vunpack.c.l.b16 %v4438
          %v5697 = vunpack.c.h.b16 %v4438
          %v5698 = vunpack.c.l.b16 %v4439
          %v5699 = vunpack.c.h.b16 %v4439
          %v5700 = vunpack.c.l.b16 %v4440
          %v5701 = vunpack.c.h.b16 %v4440
          %v5702 = vunpack.c.l.b16 %v4441
          %v5703 = vunpack.c.h.b16 %v4441
          %v5704 = vunpack.c.l.b16 %v4442
          %v5705 = vunpack.c.h.b16 %v4442
          %v5706 = vunpack.c.l.b16 %v4443
          %v5707 = vunpack.c.h.b16 %v4443
          %v5708 = vunpack.c.l.b16 %v4444
          %v5709 = vunpack.c.h.b16 %v4444
          %v5710 = vunpack.c.l.b16 %v4445
          %v5711 = vunpack.c.h.b16 %v4445
          %v5712 = vunpack.c.l.b16 %v4446
          %v5713 = vunpack.c.h.b16 %v4446
          %v5714 = vunpack.c.l.b16 %v4447
          %v5715 = vunpack.c.h.b16 %v4447
          %v5716 = vunpack.c.l.b16 %v4448
          %v5717 = vunpack.c.h.b16 %v4448
          %v5718 = vunpack.c.l.b16 %v4449
          %v5719 = vunpack.c.h.b16 %v4449
          %v5720 = vunpack.c.l.b16 %v4450
          %v5721 = vunpack.c.h.b16 %v4450
          %v5722 = vunpack.c.l.b16 %v4451
          %v5723 = vunpack.c.h.b16 %v4451
          %v5724 = vunpack.c.l.b16 %v4452
          %v5725 = vunpack.c.h.b16 %v4452
          %v5726 = vunpack.c.l.b16 %v4453
          %v5727 = vunpack.c.h.b16 %v4453
          %v5728 = vunpack.c.l.b16 %v4454
          %v5729 = vunpack.c.h.b16 %v4454
          %v5730 = vunpack.c.l.b16 %v4455
          %v5731 = vunpack.c.h.b16 %v4455
          %v5732 = vunpack.c.l.b16 %v4456
          %v5733 = vunpack.c.h.b16 %v4456
          %v5734 = vunpack.c.l.b16 %v4457
          %v5735 = vunpack.c.h.b16 %v4457
          %v5736 = vunpack.c.l.b16 %v4458
          %v5737 = vunpack.c.h.b16 %v4458
          %v5738 = vunpack.c.l.b16 %v4459
          %v5739 = vunpack.c.h.b16 %v4459
          %v5740 = vunpack.c.l.b16 %v4460
          %v5741 = vunpack.c.h.b16 %v4460
          %v5742 = vunpack.c.l.b16 %v4461
          %v5743 = vunpack.c.h.b16 %v4461
          %v5744 = vunpack.c.l.b16 %v4462
          %v5745 = vunpack.c.h.b16 %v4462
          %v5746 = vunpack.c.l.b16 %v4463
          %v5747 = vunpack.c.h.b16 %v4463
          %v5748 = vunpack.c.l.b16 %v4464
          %v5749 = vunpack.c.h.b16 %v4464
          %v5750 = vunpack.c.l.b16 %v4465
          %v5751 = vunpack.c.h.b16 %v4465
          %v5752 = vunpack.c.l.b16 %v4466
          %v5753 = vunpack.c.h.b16 %v4466
          %v5754 = vunpack.c.l.b16 %v4467
          %v5755 = vunpack.c.h.b16 %v4467
          %v5756 = vunpack.c.l.b16 %v4468
          %v5757 = vunpack.c.h.b16 %v4468
          %v5758 = vunpack.c.l.b16 %v4469
          %v5759 = vunpack.c.h.b16 %v4469
          %v5760 = vunpack.c.l.b16 %v4470
          %v5761 = vunpack.c.h.b16 %v4470
          %v5762 = vunpack.c.l.b16 %v4471
          %v5763 = vunpack.c.h.b16 %v4471
          %v5764 = vunpack.c.l.b16 %v4472
          %v5765 = vunpack.c.h.b16 %v4472
          %v5766 = vunpack.c.l.b16 %v4473
          %v5767 = vunpack.c.h.b16 %v4473
          %v5768 = vunpack.c.l.b16 %v4474
          %v5769 = vunpack.c.h.b16 %v4474
          %v5770 = vunpack.c.l.b16 %v4475
          %v5771 = vunpack.c.h.b16 %v4475
          %v5772 = vunpack.c.l.b16 %v4476
          %v5773 = vunpack.c.h.b16 %v4476
          %v5774 = vunpack.c.l.b16 %v4477
          %v5775 = vunpack.c.h.b16 %v4477
          %v5776 = vunpack.c.l.b16 %v4478
          %v5777 = vunpack.c.h.b16 %v4478
          %v5778 = vunpack.c.l.b16 %v4479
          %v5779 = vunpack.c.h.b16 %v4479
          %v5780 = vunpack.c.l.b16 %v4480
          %v5781 = vunpack.c.h.b16 %v4480
          %v5782 = vunpack.c.l.b16 %v4481
          %v5783 = vunpack.c.h.b16 %v4481
          %v5784 = vunpack.c.l.b16 %v4482
          %v5785 = vunpack.c.h.b16 %v4482
          %v5786 = vunpack.c.l.b16 %v4483
          %v5787 = vunpack.c.h.b16 %v4483
          %v5788 = vunpack.c.l.b16 %v4484
          %v5789 = vunpack.c.h.b16 %v4484
          %v5790 = vunpack.c.l.b16 %v4485
          %v5791 = vunpack.c.h.b16 %v4485
          %v5792 = vunpack.c.l.b16 %v4486
          %v5793 = vunpack.c.h.b16 %v4486
          %v5794 = vunpack.c.l.b16 %v4487
          %v5795 = vunpack.c.h.b16 %v4487
          %v5796 = vunpack.c.l.b16 %v4488
          %v5797 = vunpack.c.h.b16 %v4488
          %v5798 = vunpack.c.l.b16 %v4489
          %v5799 = vunpack.c.h.b16 %v4489
          %v5800 = vunpack.c.l.b16 %v4490
          %v5801 = vunpack.c.h.b16 %v4490
          %v5802 = vunpack.c.l.b16 %v4491
          %v5803 = vunpack.c.h.b16 %v4491
          %v5804 = vunpack.c.l.b16 %v4492
          %v5805 = vunpack.c.h.b16 %v4492
          %v5806 = vunpack.c.l.b16 %v4493
          %v5807 = vunpack.c.h.b16 %v4493
          %v5808 = vunpack.c.l.b16 %v4494
          %v5809 = vunpack.c.h.b16 %v4494
          %v5810 = vunpack.c.l.b16 %v4495
          %v5811 = vunpack.c.h.b16 %v4495
          %v5812 = vunpack.c.l.b16 %v4496
          %v5813 = vunpack.c.h.b16 %v4496
          %v5814 = vunpack.c.l.b16 %v4497
          %v5815 = vunpack.c.h.b16 %v4497
          %v5816 = vunpack.c.l.b16 %v4498
          %v5817 = vunpack.c.h.b16 %v4498
          %v5818 = vunpack.c.l.b16 %v4499
          %v5819 = vunpack.c.h.b16 %v4499
          %v5820 = vunpack.c.l.b16 %v4500
          %v5821 = vunpack.c.h.b16 %v4500
          %v5822 = vunpack.c.l.b16 %v4501
          %v5823 = vunpack.c.h.b16 %v4501
          %v5824 = vunpack.c.l.b16 %v4502
          %v5825 = vunpack.c.h.b16 %v4502
          %v5826 = vunpack.c.l.b16 %v4503
          %v5827 = vunpack.c.h.b16 %v4503
          %v5828 = vunpack.c.l.b16 %v4504
          %v5829 = vunpack.c.h.b16 %v4504
          %v5830 = vunpack.c.l.b16 %v4505
          %v5831 = vunpack.c.h.b16 %v4505
          %v5832 = vunpack.c.l.b16 %v4506
          %v5833 = vunpack.c.h.b16 %v4506
          %v5834 = vunpack.c.l.b16 %v4507
          %v5835 = vunpack.c.h.b16 %v4507
          %v5836 = vunpack.c.l.b16 %v4508
          %v5837 = vunpack.c.h.b16 %v4508
          %v5838 = vunpack.c.l.b16 %v4509
          %v5839 = vunpack.c.h.b16 %v4509
          %v5840 = vunpack.c.l.b16 %v4510
          %v5841 = vunpack.c.h.b16 %v4510
          %v5842 = vunpack.c.l.b16 %v4511
          %v5843 = vunpack.c.h.b16 %v4511
          %v5844 = vunpack.c.l.b16 %v4512
          %v5845 = vunpack.c.h.b16 %v4512
          %v5846 = vunpack.c.l.b16 %v4513
          %v5847 = vunpack.c.h.b16 %v4513
          %v5848 = vunpack.c.l.b16 %v4514
          %v5849 = vunpack.c.h.b16 %v4514
          %v5850 = vunpack.c.l.b16 %v4515
          %v5851 = vunpack.c.h.b16 %v4515
          %v5852 = vunpack.c.l.b16 %v4516
          %v5853 = vunpack.c.h.b16 %v4516
          %v5854 = vunpack.c.l.b16 %v4517
          %v5855 = vunpack.c.h.b16 %v4517
          %v5856 = vunpack.c.l.b16 %v4518
          %v5857 = vunpack.c.h.b16 %v4518
          %v5858 = vunpack.c.l.b16 %v4519
          %v5859 = vunpack.c.h.b16 %v4519
          %v5860 = vunpack.c.l.b16 %v4520
          %v5861 = vunpack.c.h.b16 %v4520
          %v5862 = vunpack.c.l.b16 %v4521
          %v5863 = vunpack.c.h.b16 %v4521
          %v5864 = vunpack.c.l.b16 %v4522
          %v5865 = vunpack.c.h.b16 %v4522
          %v5866 = vunpack.c.l.b16 %v4523
          %v5867 = vunpack.c.h.b16 %v4523
          %v5868 = vunpack.c.l.b16 %v4524
          %v5869 = vunpack.c.h.b16 %v4524
          %v5870 = vunpack.c.l.b16 %v4525
          %v5871 = vunpack.c.h.b16 %v4525
          %v5872 = vunpack.c.l.b16 %v4526
          %v5873 = vunpack.c.h.b16 %v4526
          %v5874 = vunpack.c.l.b16 %v4527
          %v5875 = vunpack.c.h.b16 %v4527
          %v5876 = vunpack.c.l.b16 %v4528
          %v5877 = vunpack.c.h.b16 %v4528
          %v5878 = vunpack.c.l.b16 %v4529
          %v5879 = vunpack.c.h.b16 %v4529
          %v5880 = vunpack.c.l.b16 %v4530
          %v5881 = vunpack.c.h.b16 %v4530
          %v5882 = vunpack.c.l.b16 %v4531
          %v5883 = vunpack.c.h.b16 %v4531
          %v5884 = vunpack.c.l.b16 %v4532
          %v5885 = vunpack.c.h.b16 %v4532
          %v5886 = vunpack.c.l.b16 %v4533
          %v5887 = vunpack.c.h.b16 %v4533
          %v5888 = vunpack.c.l.b16 %v4534
          %v5889 = vunpack.c.h.b16 %v4534
          %v5890 = vunpack.c.l.b16 %v4535
          %v5891 = vunpack.c.h.b16 %v4535
          %v5892 = vunpack.c.l.b16 %v4536
          %v5893 = vunpack.c.h.b16 %v4536
          %v5894 = vunpack.c.l.b16 %v4537
          %v5895 = vunpack.c.h.b16 %v4537
          %v5896 = vunpack.c.l.b16 %v4538
          %v5897 = vunpack.c.h.b16 %v4538
          %v5898 = vunpack.c.l.b16 %v4539
          %v5899 = vunpack.c.h.b16 %v4539
          %v5900 = vunpack.c.l.b16 %v4540
          %v5901 = vunpack.c.h.b16 %v4540
          %v5902 = vunpack.c.l.b16 %v4541
          %v5903 = vunpack.c.h.b16 %v4541
          %v5904 = vunpack.c.l.b16 %v4542
          %v5905 = vunpack.c.h.b16 %v4542
          %v5906 = vunpack.c.l.b16 %v4543
          %v5907 = vunpack.c.h.b16 %v4543
          %v5908 = vunpack.c.l.b16 %v4544
          %v5909 = vunpack.c.h.b16 %v4544
          %v5910 = vunpack.c.l.b16 %v4545
          %v5911 = vunpack.c.h.b16 %v4545
          %v5912 = vunpack.c.l.b16 %v4546
          %v5913 = vunpack.c.h.b16 %v4546
          %v5914 = vunpack.c.l.b16 %v4547
          %v5915 = vunpack.c.h.b16 %v4547
          %v5916 = vunpack.c.l.b16 %v4548
          %v5917 = vunpack.c.h.b16 %v4548
          %v5918 = vunpack.c.l.b16 %v4549
          %v5919 = vunpack.c.h.b16 %v4549
          %v5920 = vunpack.c.l.b16 %v4550
          %v5921 = vunpack.c.h.b16 %v4550
          %v5922 = vunpack.c.l.b16 %v4551
          %v5923 = vunpack.c.h.b16 %v4551
          %v5924 = vunpack.c.l.b16 %v4552
          %v5925 = vunpack.c.h.b16 %v4552
          %v5926 = vunpack.c.l.b16 %v4553
          %v5927 = vunpack.c.h.b16 %v4553
          %v5928 = vunpack.c.l.b16 %v4554
          %v5929 = vunpack.c.h.b16 %v4554
          %v5930 = vunpack.c.l.b16 %v4555
          %v5931 = vunpack.c.h.b16 %v4555
          %v5932 = vunpack.c.l.b16 %v4556
          %v5933 = vunpack.c.h.b16 %v4556
          %v5934 = vunpack.c.l.b16 %v4557
          %v5935 = vunpack.c.h.b16 %v4557
          %v5936 = vunpack.c.l.b16 %v4558
          %v5937 = vunpack.c.h.b16 %v4558
          %v5938 = vunpack.c.l.b16 %v4559
          %v5939 = vunpack.c.h.b16 %v4559
          %v5940 = vunpack.c.l.b16 %v4560
          %v5941 = vunpack.c.h.b16 %v4560
          %v5942 = vunpack.c.l.b16 %v4561
          %v5943 = vunpack.c.h.b16 %v4561
          %v5944 = vunpack.c.l.b16 %v4562
          %v5945 = vunpack.c.h.b16 %v4562
          %v5946 = vunpack.c.l.b16 %v4563
          %v5947 = vunpack.c.h.b16 %v4563
          %v5948 = vunpack.c.l.b16 %v4564
          %v5949 = vunpack.c.h.b16 %v4564
          %v5950 = vunpack.c.l.b16 %v4565
          %v5951 = vunpack.c.h.b16 %v4565
          %v5952 = vunpack.c.l.b16 %v4566
          %v5953 = vunpack.c.h.b16 %v4566
          %v5954 = vunpack.c.l.b16 %v4567
          %v5955 = vunpack.c.h.b16 %v4567
          %v5956 = vunpack.c.l.b16 %v4568
          %v5957 = vunpack.c.h.b16 %v4568
          %v5958 = vunpack.c.l.b16 %v4569
          %v5959 = vunpack.c.h.b16 %v4569
          %v5960 = vunpack.c.l.b16 %v4570
          %v5961 = vunpack.c.h.b16 %v4570
          %v5962 = vunpack.c.l.b16 %v4571
          %v5963 = vunpack.c.h.b16 %v4571
          %v5964 = vunpack.c.l.b16 %v4572
          %v5965 = vunpack.c.h.b16 %v4572
          %v5966 = vunpack.c.l.b16 %v4573
          %v5967 = vunpack.c.h.b16 %v4573
          %v5968 = vunpack.c.l.b16 %v4574
          %v5969 = vunpack.c.h.b16 %v4574
          %v5970 = vunpack.c.l.b16 %v4575
          %v5971 = vunpack.c.h.b16 %v4575
          %v5972 = vunpack.c.l.b16 %v4576
          %v5973 = vunpack.c.h.b16 %v4576
          %v5974 = vunpack.c.l.b16 %v4577
          %v5975 = vunpack.c.h.b16 %v4577
          %v5976 = vunpack.c.l.b16 %v4578
          %v5977 = vunpack.c.h.b16 %v4578
          %v5978 = vunpack.c.l.b16 %v4579
          %v5979 = vunpack.c.h.b16 %v4579
          %v5980 = vunpack.c.l.b16 %v4580
          %v5981 = vunpack.c.h.b16 %v4580
          %v5982 = vunpack.c.l.b16 %v4581
          %v5983 = vunpack.c.h.b16 %v4581
          %v5984 = vunpack.c.l.b16 %v4582
          %v5985 = vunpack.c.h.b16 %v4582
          %v5986 = vunpack.c.l.b16 %v4583
          %v5987 = vunpack.c.h.b16 %v4583
          %v5988 = vunpack.c.l.b16 %v4584
          %v5989 = vunpack.c.h.b16 %v4584
          %v5990 = vunpack.c.l.b16 %v4585
          %v5991 = vunpack.c.h.b16 %v4585
          %v5992 = vunpack.c.l.b16 %v4586
          %v5993 = vunpack.c.h.b16 %v4586
          %v5994 = vunpack.c.l.b16 %v4587
          %v5995 = vunpack.c.h.b16 %v4587
          %v5996 = vunpack.c.l.b16 %v4588
          %v5997 = vunpack.c.h.b16 %v4588
          %v5998 = vunpack.c.l.b16 %v4589
          %v5999 = vunpack.c.h.b16 %v4589
          %v6000 = vunpack.c.l.b16 %v4590
          %v6001 = vunpack.c.h.b16 %v4590
          %v6002 = vunpack.c.l.b16 %v4591
          %v6003 = vunpack.c.h.b16 %v4591
          %v6004 = vunpack.c.l.b16 %v4592
          %v6005 = vunpack.c.h.b16 %v4592
          %v6006 = vunpack.c.l.b16 %v4593
          %v6007 = vunpack.c.h.b16 %v4593
          %v6008 = vunpack.c.l.b16 %v4594
          %v6009 = vunpack.c.h.b16 %v4594
          %v6010 = vunpack.c.l.b16 %v4595
          %v6011 = vunpack.c.h.b16 %v4595
          %v6012 = vunpack.c.l.b16 %v4596
          %v6013 = vunpack.c.h.b16 %v4596
          %v6014 = vunpack.c.l.b16 %v4597
          %v6015 = vunpack.c.h.b16 %v4597
          %v6016 = vunpack.c.l.b16 %v4598
          %v6017 = vunpack.c.h.b16 %v4598
          %v6018 = vunpack.c.l.b16 %v4599
          %v6019 = vunpack.c.h.b16 %v4599
          %v6020 = vunpack.c.l.b16 %v4600
          %v6021 = vunpack.c.h.b16 %v4600
          %v6022 = vunpack.c.l.b16 %v4601
          %v6023 = vunpack.c.h.b16 %v4601
          %v6024 = vunpack.c.l.b16 %v4602
          %v6025 = vunpack.c.h.b16 %v4602
          %v6026 = vunpack.c.l.b16 %v4603
          %v6027 = vunpack.c.h.b16 %v4603
          %v6028 = vunpack.c.l.b16 %v4604
          %v6029 = vunpack.c.h.b16 %v4604
          %v6030 = vunpack.c.l.b16 %v4605
          %v6031 = vunpack.c.h.b16 %v4605
          %v6032 = vunpack.c.l.b16 %v4606
          %v6033 = vunpack.c.h.b16 %v4606
          %v6034 = vunpack.c.l.b16 %v4607
          %v6035 = vunpack.c.h.b16 %v4607
          %v6036 = vunpack.c.l.b16 %v4608
          %v6037 = vunpack.c.h.b16 %v4608
          %v6038 = vunpack.c.l.b16 %v4609
          %v6039 = vunpack.c.h.b16 %v4609
          %v6040 = vunpack.c.l.b16 %v4610
          %v6041 = vunpack.c.h.b16 %v4610
          %v6042 = vunpack.c.l.b16 %v4611
          %v6043 = vunpack.c.h.b16 %v4611
          %v6044 = vunpack.c.l.b16 %v4612
          %v6045 = vunpack.c.h.b16 %v4612
          %v6046 = vunpack.c.l.b16 %v4613
          %v6047 = vunpack.c.h.b16 %v4613
          %v6048 = vunpack.c.l.b16 %v4614
          %v6049 = vunpack.c.h.b16 %v4614
          %v6050 = vunpack.c.l.b16 %v4615
          %v6051 = vunpack.c.h.b16 %v4615
          %v6052 = vunpack.c.l.b16 %v4616
          %v6053 = vunpack.c.h.b16 %v4616
          %v6054 = vunpack.c.l.b16 %v4617
          %v6055 = vunpack.c.h.b16 %v4617
          %v6056 = vunpack.c.l.b16 %v4618
          %v6057 = vunpack.c.h.b16 %v4618
          %v6058 = vunpack.c.l.b16 %v4619
          %v6059 = vunpack.c.h.b16 %v4619
          %v6060 = vunpack.c.l.b16 %v4620
          %v6061 = vunpack.c.h.b16 %v4620
          %v6062 = vunpack.c.l.b16 %v4621
          %v6063 = vunpack.c.h.b16 %v4621
          %v6064 = vunpack.c.l.b16 %v4622
          %v6065 = vunpack.c.h.b16 %v4622
          %v6066 = vunpack.c.l.b16 %v4623
          %v6067 = vunpack.c.h.b16 %v4623
          %v6068 = vunpack.c.l.b16 %v4624
          %v6069 = vunpack.c.h.b16 %v4624
          %v6070 = vunpack.c.l.b16 %v4625
          %v6071 = vunpack.c.h.b16 %v4625
          %v6072 = vunpack.c.l.b16 %v4626
          %v6073 = vunpack.c.h.b16 %v4626
          %v6074 = vunpack.c.l.b16 %v4627
          %v6075 = vunpack.c.h.b16 %v4627
          %v6076 = vunpack.c.l.b16 %v4628
          %v6077 = vunpack.c.h.b16 %v4628
          %v6078 = vunpack.c.l.b16 %v4629
          %v6079 = vunpack.c.h.b16 %v4629
          %v6080 = vunpack.c.l.b16 %v4630
          %v6081 = vunpack.c.h.b16 %v4630
          %v6082 = vunpack.c.l.b16 %v4631
          %v6083 = vunpack.c.h.b16 %v4631
          %v6084 = vunpack.c.l.b16 %v4632
          %v6085 = vunpack.c.h.b16 %v4632
          %v6086 = vunpack.c.l.b16 %v4633
          %v6087 = vunpack.c.h.b16 %v4633
          %v6088 = vunpack.c.l.b16 %v4634
          %v6089 = vunpack.c.h.b16 %v4634
          %v6090 = vunpack.c.l.b16 %v4635
          %v6091 = vunpack.c.h.b16 %v4635
          %v6092 = vunpack.c.l.b16 %v4636
          %v6093 = vunpack.c.h.b16 %v4636
          %v6094 = vunpack.c.l.b16 %v4637
          %v6095 = vunpack.c.h.b16 %v4637
          %v6096 = vunpack.c.l.b16 %v4638
          %v6097 = vunpack.c.h.b16 %v4638
          %v6098 = vunpack.c.l.b16 %v4639
          %v6099 = vunpack.c.h.b16 %v4639
          %v6100 = vunpack.c.l.b16 %v4640
          %v6101 = vunpack.c.h.b16 %v4640
          %v6102 = vunpack.c.l.b16 %v4641
          %v6103 = vunpack.c.h.b16 %v4641
          %v6104 = vunpack.c.l.b16 %v4642
          %v6105 = vunpack.c.h.b16 %v4642
          %v6106 = vunpack.c.l.b16 %v4643
          %v6107 = vunpack.c.h.b16 %v4643
          %v6108 = vunpack.c.l.b16 %v4644
          %v6109 = vunpack.c.h.b16 %v4644
          %v6110 = vunpack.c.l.b16 %v4645
          %v6111 = vunpack.c.h.b16 %v4645
          %v6112 = vunpack.c.l.b16 %v4646
          %v6113 = vunpack.c.h.b16 %v4646
          %v6114 = vunpack.c.l.b16 %v4647
          %v6115 = vunpack.c.h.b16 %v4647
          %v6116 = vunpack.c.l.b16 %v4648
          %v6117 = vunpack.c.h.b16 %v4648
          %v6118 = vunpack.c.l.b16 %v4649
          %v6119 = vunpack.c.h.b16 %v4649
          %v6120 = vunpack.c.l.b16 %v4650
          %v6121 = vunpack.c.h.b16 %v4650
          %v6122 = vunpack.c.l.b16 %v4651
          %v6123 = vunpack.c.h.b16 %v4651
          %v6124 = vunpack.c.l.b16 %v4652
          %v6125 = vunpack.c.h.b16 %v4652
          %v6126 = vunpack.c.l.b16 %v4653
          %v6127 = vunpack.c.h.b16 %v4653
          %v6128 = vunpack.c.l.b16 %v4654
          %v6129 = vunpack.c.h.b16 %v4654
          %v6130 = vunpack.c.l.b16 %v4655
          %v6131 = vunpack.c.h.b16 %v4655
          %v6132 = vunpack.c.l.b16 %v4656
          %v6133 = vunpack.c.h.b16 %v4656
          %v6134 = vunpack.c.l.b16 %v4657
          %v6135 = vunpack.c.h.b16 %v4657
          %v6136 = vunpack.c.l.b16 %v4658
          %v6137 = vunpack.c.h.b16 %v4658
          %v6138 = vunpack.c.l.b16 %v4659
          %v6139 = vunpack.c.h.b16 %v4659
          %v6140 = vunpack.c.l.b16 %v4660
          %v6141 = vunpack.c.h.b16 %v4660
          %v6142 = vunpack.c.l.b16 %v4661
          %v6143 = vunpack.c.h.b16 %v4661
          %v6144 = vunpack.c.l.b16 %v4662
          %v6145 = vunpack.c.h.b16 %v4662
          %v6146 = vunpack.c.l.b16 %v4663
          %v6147 = vunpack.c.h.b16 %v4663
          %v6148 = vunpack.c.l.b16 %v4664
          %v6149 = vunpack.c.h.b16 %v4664
          %v6150 = vunpack.c.l.b16 %v4665
          %v6151 = vunpack.c.h.b16 %v4665
          %v6152 = vunpack.c.l.b16 %v4666
          %v6153 = vunpack.c.h.b16 %v4666
          %v6154 = vunpack.c.l.b16 %v4667
          %v6155 = vunpack.c.h.b16 %v4667
          %v6156 = vunpack.c.l.b16 %v4668
          %v6157 = vunpack.c.h.b16 %v4668
          %v6158 = vunpack.c.l.b16 %v4669
          %v6159 = vunpack.c.h.b16 %v4669
          %v6160 = vunpack.c.l.b16 %v4670
          %v6161 = vunpack.c.h.b16 %v4670
          %v6162 = vunpack.c.l.b16 %v4671
          %v6163 = vunpack.c.h.b16 %v4671
          %v6164 = vunpack.c.l.b16 %v4672
          %v6165 = vunpack.c.h.b16 %v4672
          %v6166 = vunpack.c.l.b16 %v4673
          %v6167 = vunpack.c.h.b16 %v4673
          %v6168 = vunpack.c.l.b16 %v4674
          %v6169 = vunpack.c.h.b16 %v4674
          %v6170 = vunpack.c.l.b16 %v4675
          %v6171 = vunpack.c.h.b16 %v4675
          %v6172 = vunpack.c.l.b16 %v4676
          %v6173 = vunpack.c.h.b16 %v4676
          %v6174 = vunpack.c.l.b16 %v4677
          %v6175 = vunpack.c.h.b16 %v4677
          %v6176 = vunpack.c.l.b16 %v4678
          %v6177 = vunpack.c.h.b16 %v4678
          %v6178 = vunpack.c.l.b16 %v4679
          %v6179 = vunpack.c.h.b16 %v4679
          %v6180 = vunpack.c.l.b16 %v4680
          %v6181 = vunpack.c.h.b16 %v4680
          %v6182 = vunpack.c.l.b16 %v4681
          %v6183 = vunpack.c.h.b16 %v4681
          %v6184 = vunpack.c.l.b16 %v4682
          %v6185 = vunpack.c.h.b16 %v4682
          %v6186 = vunpack.c.l.b16 %v4683
          %v6187 = vunpack.c.h.b16 %v4683
          %v6188 = vunpack.c.l.b16 %v4684
          %v6189 = vunpack.c.h.b16 %v4684
          %v6190 = vunpack.c.l.b16 %v4685
          %v6191 = vunpack.c.h.b16 %v4685
          %v6192 = vunpack.c.l.b16 %v4686
          %v6193 = vunpack.c.h.b16 %v4686
          %v6194 = vunpack.c.l.b16 %v4687
          %v6195 = vunpack.c.h.b16 %v4687
          %v6196 = vunpack.c.l.b16 %v4688
          %v6197 = vunpack.c.h.b16 %v4688
          %v6198 = vunpack.c.l.b16 %v4689
          %v6199 = vunpack.c.h.b16 %v4689
          %v6200 = vunpack.c.l.b16 %v4690
          %v6201 = vunpack.c.h.b16 %v4690
          %v6202 = vunpack.c.l.b16 %v4691
          %v6203 = vunpack.c.h.b16 %v4691
          %v6204 = vunpack.c.l.b16 %v4692
          %v6205 = vunpack.c.h.b16 %v4692
          %v6206 = vunpack.c.l.b16 %v4693
          %v6207 = vunpack.c.h.b16 %v4693
          %v6208 = vunpack.c.l.b16 %v4694
          %v6209 = vunpack.c.h.b16 %v4694
          %v6210 = vunpack.c.l.b16 %v4695
          %v6211 = vunpack.c.h.b16 %v4695
          %v6212 = vunpack.c.l.b16 %v4696
          %v6213 = vunpack.c.h.b16 %v4696
          %v6214 = vunpack.c.l.b16 %v4697
          %v6215 = vunpack.c.h.b16 %v4697
          %v6216 = vunpack.c.l.b16 %v4698
          %v6217 = vunpack.c.h.b16 %v4698
          %v6218 = vunpack.c.l.b16 %v4699
          %v6219 = vunpack.c.h.b16 %v4699
          %v6220 = vunpack.c.l.b16 %v4700
          %v6221 = vunpack.c.h.b16 %v4700
          %v6222 = vunpack.c.l.b16 %v4701
          %v6223 = vunpack.c.h.b16 %v4701
          %v6224 = vunpack.c.l.b16 %v4702
          %v6225 = vunpack.c.h.b16 %v4702
          %v6226 = vunpack.c.l.b16 %v4703
          %v6227 = vunpack.c.h.b16 %v4703
          %v6228 = vunpack.c.l.b16 %v4704
          %v6229 = vunpack.c.h.b16 %v4704
          %v6230 = vunpack.c.l.b16 %v4705
          %v6231 = vunpack.c.h.b16 %v4705
          %v6232 = vunpack.c.l.b16 %v4706
          %v6233 = vunpack.c.h.b16 %v4706
          %v6234 = vunpack.c.l.b16 %v4707
          %v6235 = vunpack.c.h.b16 %v4707
          %v6236 = vunpack.c.l.b16 %v4708
          %v6237 = vunpack.c.h.b16 %v4708
          %v6238 = vunpack.c.l.b16 %v4709
          %v6239 = vunpack.c.h.b16 %v4709
          %v6240 = vunpack.c.l.b16 %v4710
          %v6241 = vunpack.c.h.b16 %v4710
          %v6242 = vunpack.c.l.b16 %v4711
          %v6243 = vunpack.c.h.b16 %v4711
          %v6244 = vunpack.c.l.b16 %v4712
          %v6245 = vunpack.c.h.b16 %v4712
          %v6246 = vunpack.c.l.b16 %v4713
          %v6247 = vunpack.c.h.b16 %v4713
          %v6248 = vunpack.c.l.b16 %v4714
          %v6249 = vunpack.c.h.b16 %v4714
          %v6250 = vunpack.c.l.b16 %v4715
          %v6251 = vunpack.c.h.b16 %v4715
          %v6252 = vunpack.c.l.b16 %v4716
          %v6253 = vunpack.c.h.b16 %v4716
          %v6254 = vunpack.c.l.b16 %v4717
          %v6255 = vunpack.c.h.b16 %v4717
          %v6256 = vunpack.c.l.b16 %v4718
          %v6257 = vunpack.c.h.b16 %v4718
          %v6258 = vunpack.c.l.b16 %v4719
          %v6259 = vunpack.c.h.b16 %v4719
          %v6260 = vunpack.c.l.b16 %v4720
          %v6261 = vunpack.c.h.b16 %v4720
          %v6262 = vunpack.c.l.b16 %v4721
          %v6263 = vunpack.c.h.b16 %v4721
          %v6264 = vunpack.c.l.b16 %v4722
          %v6265 = vunpack.c.h.b16 %v4722
          %v6266 = vunpack.c.l.b16 %v4723
          %v6267 = vunpack.c.h.b16 %v4723
          %v6268 = vunpack.c.l.b16 %v4724
          %v6269 = vunpack.c.h.b16 %v4724
          %v6270 = vunpack.c.l.b16 %v4725
          %v6271 = vunpack.c.h.b16 %v4725
          %v6272 = vunpack.c.l.b16 %v4726
          %v6273 = vunpack.c.h.b16 %v4726
          %v6274 = vunpack.c.l.b16 %v4727
          %v6275 = vunpack.c.h.b16 %v4727
          %v6276 = vunpack.c.l.b16 %v4728
          %v6277 = vunpack.c.h.b16 %v4728
          %v6278 = vunpack.c.l.b16 %v4729
          %v6279 = vunpack.c.h.b16 %v4729
          %v6280 = vunpack.c.l.b16 %v4730
          %v6281 = vunpack.c.h.b16 %v4730
          %v6282 = vunpack.c.l.b16 %v4731
          %v6283 = vunpack.c.h.b16 %v4731
          %v6284 = vunpack.c.l.b16 %v4732
          %v6285 = vunpack.c.h.b16 %v4732
          %v6286 = vunpack.c.l.b16 %v4733
          %v6287 = vunpack.c.h.b16 %v4733
          %v6288 = vunpack.c.l.b16 %v4734
          %v6289 = vunpack.c.h.b16 %v4734
          %v6290 = vunpack.c.l.b16 %v4735
          %v6291 = vunpack.c.h.b16 %v4735
          %v6292 = vunpack.c.l.b16 %v4736
          %v6293 = vunpack.c.h.b16 %v4736
          %v6294 = vunpack.c.l.b16 %v4737
          %v6295 = vunpack.c.h.b16 %v4737
          %v6296 = vunpack.c.l.b16 %v4738
          %v6297 = vunpack.c.h.b16 %v4738
          %v6298 = vunpack.c.l.b16 %v4739
          %v6299 = vunpack.c.h.b16 %v4739
          %v6300 = vunpack.c.l.b16 %v4740
          %v6301 = vunpack.c.h.b16 %v4740
          %v6302 = vunpack.c.l.b16 %v4741
          %v6303 = vunpack.c.h.b16 %v4741
          %v6304 = vunpack.c.l.b16 %v4742
          %v6305 = vunpack.c.h.b16 %v4742
          %v6306 = vunpack.c.l.b16 %v4743
          %v6307 = vunpack.c.h.b16 %v4743
          %v6308 = vunpack.c.l.b16 %v4744
          %v6309 = vunpack.c.h.b16 %v4744
          %v6310 = vunpack.c.l.b16 %v4745
          %v6311 = vunpack.c.h.b16 %v4745
          %v6312 = vunpack.c.l.b16 %v4746
          %v6313 = vunpack.c.h.b16 %v4746
          %v6314 = vunpack.c.l.b16 %v4747
          %v6315 = vunpack.c.h.b16 %v4747
          %v6316 = vunpack.c.l.b16 %v4748
          %v6317 = vunpack.c.h.b16 %v4748
          %v6318 = vunpack.c.l.b16 %v4749
          %v6319 = vunpack.c.h.b16 %v4749
          %v6320 = vunpack.c.l.b16 %v4750
          %v6321 = vunpack.c.h.b16 %v4750
          %v6322 = vunpack.c.l.b16 %v4751
          %v6323 = vunpack.c.h.b16 %v4751
          %v6324 = vunpack.c.l.b16 %v4752
          %v6325 = vunpack.c.h.b16 %v4752
          %v6326 = vunpack.c.l.b16 %v4753
          %v6327 = vunpack.c.h.b16 %v4753
          %v6328 = vunpack.c.l.b16 %v4754
          %v6329 = vunpack.c.h.b16 %v4754
          %v6330 = vunpack.c.l.b16 %v4755
          %v6331 = vunpack.c.h.b16 %v4755
          %v6332 = vunpack.c.l.b16 %v4756
          %v6333 = vunpack.c.h.b16 %v4756
          %v6334 = vunpack.c.l.b16 %v4757
          %v6335 = vunpack.c.h.b16 %v4757
          %v6336 = vunpack.c.l.b16 %v4758
          %v6337 = vunpack.c.h.b16 %v4758
          %v6338 = vunpack.c.l.b16 %v4759
          %v6339 = vunpack.c.h.b16 %v4759
          %v6340 = vunpack.c.l.b16 %v4760
          %v6341 = vunpack.c.h.b16 %v4760
          %v6342 = vunpack.c.l.b16 %v4761
          %v6343 = vunpack.c.h.b16 %v4761
          %v6344 = vunpack.c.l.b16 %v4762
          %v6345 = vunpack.c.h.b16 %v4762
          %v6346 = vunpack.c.l.b16 %v4763
          %v6347 = vunpack.c.h.b16 %v4763
          %v6348 = vunpack.c.l.b16 %v4764
          %v6349 = vunpack.c.h.b16 %v4764
          %v6350 = vunpack.c.l.b16 %v4765
          %v6351 = vunpack.c.h.b16 %v4765
          %v6352 = vunpack.c.l.b16 %v4766
          %v6353 = vunpack.c.h.b16 %v4766
          %v6354 = vunpack.c.l.b16 %v4767
          %v6355 = vunpack.c.h.b16 %v4767
          %v6356 = vunpack.c.l.b16 %v4768
          %v6357 = vunpack.c.h.b16 %v4768
          %v6358 = vunpack.c.l.b16 %v4769
          %v6359 = vunpack.c.h.b16 %v4769
          %v6360 = vunpack.c.l.b16 %v4770
          %v6361 = vunpack.c.h.b16 %v4770
          %v6362 = vunpack.c.l.b16 %v4771
          %v6363 = vunpack.c.h.b16 %v4771
          %v6364 = vunpack.c.l.b16 %v4772
          %v6365 = vunpack.c.h.b16 %v4772
          %v6366 = vunpack.c.l.b16 %v4773
          %v6367 = vunpack.c.h.b16 %v4773
          %v6368 = vunpack.c.l.b16 %v4774
          %v6369 = vunpack.c.h.b16 %v4774
          %v6370 = vunpack.c.l.b16 %v4775
          %v6371 = vunpack.c.h.b16 %v4775
          %v6372 = vunpack.c.l.b16 %v4776
          %v6373 = vunpack.c.h.b16 %v4776
          %v6374 = vunpack.c.l.b16 %v4777
          %v6375 = vunpack.c.h.b16 %v4777
          %v6376 = vunpack.c.l.b16 %v4778
          %v6377 = vunpack.c.h.b16 %v4778
          %v6378 = vunpack.c.l.b16 %v4779
          %v6379 = vunpack.c.h.b16 %v4779
          %v6380 = vunpack.c.l.b16 %v4780
          %v6381 = vunpack.c.h.b16 %v4780
          %v6382 = vunpack.c.l.b16 %v4781
          %v6383 = vunpack.c.h.b16 %v4781
          %v6384 = vunpack.c.l.b16 %v4782
          %v6385 = vunpack.c.h.b16 %v4782
          %v6386 = vunpack.c.l.b16 %v4783
          %v6387 = vunpack.c.h.b16 %v4783
          %v6388 = vunpack.c.l.b16 %v4784
          %v6389 = vunpack.c.h.b16 %v4784
          %v6390 = vunpack.c.l.b16 %v4785
          %v6391 = vunpack.c.h.b16 %v4785
          %v6392 = vunpack.c.l.b16 %v4786
          %v6393 = vunpack.c.h.b16 %v4786
          %v6394 = vunpack.c.l.b16 %v4787
          %v6395 = vunpack.c.h.b16 %v4787
          %v6396 = vunpack.c.l.b16 %v4788
          %v6397 = vunpack.c.h.b16 %v4788
          %v6398 = vunpack.c.l.b16 %v4789
          %v6399 = vunpack.c.h.b16 %v4789
          %v6400 = vunpack.c.l.b16 %v4790
          %v6401 = vunpack.c.h.b16 %v4790
          %v6402 = vunpack.c.l.b16 %v4791
          %v6403 = vunpack.c.h.b16 %v4791
          %v6404 = vunpack.c.l.b16 %v4792
          %v6405 = vunpack.c.h.b16 %v4792
          %v6406 = vunpack.c.l.b16 %v4793
          %v6407 = vunpack.c.h.b16 %v4793
          %v6408 = vunpack.c.l.b16 %v4794
          %v6409 = vunpack.c.h.b16 %v4794
          %v6410 = vunpack.c.l.b16 %v4795
          %v6411 = vunpack.c.h.b16 %v4795
          %v6412 = vunpack.c.l.b16 %v4796
          %v6413 = vunpack.c.h.b16 %v4796
          %v6414 = vunpack.c.l.b16 %v4797
          %v6415 = vunpack.c.h.b16 %v4797
          %v6416 = vunpack.c.l.b16 %v4798
          %v6417 = vunpack.c.h.b16 %v4798
          %v6418 = vunpack.c.l.b16 %v4799
          %v6419 = vunpack.c.h.b16 %v4799
          %v6420 = vpack.c.b16 %v5412, %v5396
          %v6421 = vpack.c.b16 %v5413, %v5397
          %v6422 = vpack.c.b16 %v5414, %v5398
          %v6423 = vpack.c.b16 %v5415, %v5399
          %v6424 = vpack.c.b16 %v5416, %v5400
          %v6425 = vpack.c.b16 %v5417, %v5401
          %v6426 = vpack.c.b16 %v5418, %v5402
          %v6427 = vpack.c.b16 %v5419, %v5403
          %v6428 = vpack.c.b16 %v5420, %v5404
          %v6429 = vpack.c.b16 %v5421, %v5405
          %v6430 = vpack.c.b16 %v5422, %v5406
          %v6431 = vpack.c.b16 %v5423, %v5407
          %v6432 = vpack.c.b16 %v5424, %v5408
          %v6433 = vpack.c.b16 %v5425, %v5409
          %v6434 = vpack.c.b16 %v5426, %v5410
          %v6435 = vpack.c.b16 %v5427, %v5411
          %v6436 = vpack.c.b16 %v5444, %v5428
          %v6437 = vpack.c.b16 %v5445, %v5429
          %v6438 = vpack.c.b16 %v5446, %v5430
          %v6439 = vpack.c.b16 %v5447, %v5431
          %v6440 = vpack.c.b16 %v5448, %v5432
          %v6441 = vpack.c.b16 %v5449, %v5433
          %v6442 = vpack.c.b16 %v5450, %v5434
          %v6443 = vpack.c.b16 %v5451, %v5435
          %v6444 = vpack.c.b16 %v5452, %v5436
          %v6445 = vpack.c.b16 %v5453, %v5437
          %v6446 = vpack.c.b16 %v5454, %v5438
          %v6447 = vpack.c.b16 %v5455, %v5439
          %v6448 = vpack.c.b16 %v5456, %v5440
          %v6449 = vpack.c.b16 %v5457, %v5441
          %v6450 = vpack.c.b16 %v5458, %v5442
          %v6451 = vpack.c.b16 %v5459, %v5443
          %v6452 = vpack.c.b16 %v5476, %v5460
          %v6453 = vpack.c.b16 %v5477, %v5461
          %v6454 = vpack.c.b16 %v5478, %v5462
          %v6455 = vpack.c.b16 %v5479, %v5463
          %v6456 = vpack.c.b16 %v5480, %v5464
          %v6457 = vpack.c.b16 %v5481, %v5465
          %v6458 = vpack.c.b16 %v5482, %v5466
          %v6459 = vpack.c.b16 %v5483, %v5467
          %v6460 = vpack.c.b16 %v5484, %v5468
          %v6461 = vpack.c.b16 %v5485, %v5469
          %v6462 = vpack.c.b16 %v5486, %v5470
          %v6463 = vpack.c.b16 %v5487, %v5471
          %v6464 = vpack.c.b16 %v5488, %v5472
          %v6465 = vpack.c.b16 %v5489, %v5473
          %v6466 = vpack.c.b16 %v5490, %v5474
          %v6467 = vpack.c.b16 %v5491, %v5475
          %v6468 = vpack.c.b16 %v5508, %v5492
          %v6469 = vpack.c.b16 %v5509, %v5493
          %v6470 = vpack.c.b16 %v5510, %v5494
          %v6471 = vpack.c.b16 %v5511, %v5495
          %v6472 = vpack.c.b16 %v5512, %v5496
          %v6473 = vpack.c.b16 %v5513, %v5497
          %v6474 = vpack.c.b16 %v5514, %v5498
          %v6475 = vpack.c.b16 %v5515, %v5499
          %v6476 = vpack.c.b16 %v5516, %v5500
          %v6477 = vpack.c.b16 %v5517, %v5501
          %v6478 = vpack.c.b16 %v5518, %v5502
          %v6479 = vpack.c.b16 %v5519, %v5503
          %v6480 = vpack.c.b16 %v5520, %v5504
          %v6481 = vpack.c.b16 %v5521, %v5505
          %v6482 = vpack.c.b16 %v5522, %v5506
          %v6483 = vpack.c.b16 %v5523, %v5507
          %v6484 = vpack.c.b16 %v5540, %v5524
          %v6485 = vpack.c.b16 %v5541, %v5525
          %v6486 = vpack.c.b16 %v5542, %v5526
          %v6487 = vpack.c.b16 %v5543, %v5527
          %v6488 = vpack.c.b16 %v5544, %v5528
          %v6489 = vpack.c.b16 %v5545, %v5529
          %v6490 = vpack.c.b16 %v5546, %v5530
          %v6491 = vpack.c.b16 %v5547, %v5531
          %v6492 = vpack.c.b16 %v5548, %v5532
          %v6493 = vpack.c.b16 %v5549, %v5533
          %v6494 = vpack.c.b16 %v5550, %v5534
          %v6495 = vpack.c.b16 %v5551, %v5535
          %v6496 = vpack.c.b16 %v5552, %v5536
          %v6497 = vpack.c.b16 %v5553, %v5537
          %v6498 = vpack.c.b16 %v5554, %v5538
          %v6499 = vpack.c.b16 %v5555, %v5539
          %v6500 = vpack.c.b16 %v5572, %v5556
          %v6501 = vpack.c.b16 %v5573, %v5557
          %v6502 = vpack.c.b16 %v5574, %v5558
          %v6503 = vpack.c.b16 %v5575, %v5559
          %v6504 = vpack.c.b16 %v5576, %v5560
          %v6505 = vpack.c.b16 %v5577, %v5561
          %v6506 = vpack.c.b16 %v5578, %v5562
          %v6507 = vpack.c.b16 %v5579, %v5563
          %v6508 = vpack.c.b16 %v5580, %v5564
          %v6509 = vpack.c.b16 %v5581, %v5565
          %v6510 = vpack.c.b16 %v5582, %v5566
          %v6511 = vpack.c.b16 %v5583, %v5567
          %v6512 = vpack.c.b16 %v5584, %v5568
          %v6513 = vpack.c.b16 %v5585, %v5569
          %v6514 = vpack.c.b16 %v5586, %v5570
          %v6515 = vpack.c.b16 %v5587, %v5571
          %v6516 = vpack.c.b16 %v5604, %v5588
          %v6517 = vpack.c.b16 %v5605, %v5589
          %v6518 = vpack.c.b16 %v5606, %v5590
          %v6519 = vpack.c.b16 %v5607, %v5591
          %v6520 = vpack.c.b16 %v5608, %v5592
          %v6521 = vpack.c.b16 %v5609, %v5593
          %v6522 = vpack.c.b16 %v5610, %v5594
          %v6523 = vpack.c.b16 %v5611, %v5595
          %v6524 = vpack.c.b16 %v5612, %v5596
          %v6525 = vpack.c.b16 %v5613, %v5597
          %v6526 = vpack.c.b16 %v5614, %v5598
          %v6527 = vpack.c.b16 %v5615, %v5599
          %v6528 = vpack.c.b16 %v5616, %v5600
          %v6529 = vpack.c.b16 %v5617, %v5601
          %v6530 = vpack.c.b16 %v5618, %v5602
          %v6531 = vpack.c.b16 %v5619, %v5603
          %v6532 = vpack.c.b16 %v5636, %v5620
          %v6533 = vpack.c.b16 %v5637, %v5621
          %v6534 = vpack.c.b16 %v5638, %v5622
          %v6535 = vpack.c.b16 %v5639, %v5623
          %v6536 = vpack.c.b16 %v5640, %v5624
          %v6537 = vpack.c.b16 %v5641, %v5625
          %v6538 = vpack.c.b16 %v5642, %v5626
          %v6539 = vpack.c.b16 %v5643, %v5627
          %v6540 = vpack.c.b16 %v5644, %v5628
          %v6541 = vpack.c.b16 %v5645, %v5629
          %v6542 = vpack.c.b16 %v5646, %v5630
          %v6543 = vpack.c.b16 %v5647, %v5631
          %v6544 = vpack.c.b16 %v5648, %v5632
          %v6545 = vpack.c.b16 %v5649, %v5633
          %v6546 = vpack.c.b16 %v5650, %v5634
          %v6547 = vpack.c.b16 %v5651, %v5635
          %v6548 = vpack.c.b16 %v5668, %v5652
          %v6549 = vpack.c.b16 %v5669, %v5653
          %v6550 = vpack.c.b16 %v5670, %v5654
          %v6551 = vpack.c.b16 %v5671, %v5655
          %v6552 = vpack.c.b16 %v5672, %v5656
          %v6553 = vpack.c.b16 %v5673, %v5657
          %v6554 = vpack.c.b16 %v5674, %v5658
          %v6555 = vpack.c.b16 %v5675, %v5659
          %v6556 = vpack.c.b16 %v5676, %v5660
          %v6557 = vpack.c.b16 %v5677, %v5661
          %v6558 = vpack.c.b16 %v5678, %v5662
          %v6559 = vpack.c.b16 %v5679, %v5663
          %v6560 = vpack.c.b16 %v5680, %v5664
          %v6561 = vpack.c.b16 %v5681, %v5665
          %v6562 = vpack.c.b16 %v5682, %v5666
          %v6563 = vpack.c.b16 %v5683, %v5667
          %v6564 = vpack.c.b16 %v5700, %v5684
          %v6565 = vpack.c.b16 %v5701, %v5685
          %v6566 = vpack.c.b16 %v5702, %v5686
          %v6567 = vpack.c.b16 %v5703, %v5687
          %v6568 = vpack.c.b16 %v5704, %v5688
          %v6569 = vpack.c.b16 %v5705, %v5689
          %v6570 = vpack.c.b16 %v5706, %v5690
          %v6571 = vpack.c.b16 %v5707, %v5691
          %v6572 = vpack.c.b16 %v5708, %v5692
          %v6573 = vpack.c.b16 %v5709, %v5693
          %v6574 = vpack.c.b16 %v5710, %v5694
          %v6575 = vpack.c.b16 %v5711, %v5695
          %v6576 = vpack.c.b16 %v5712, %v5696
          %v6577 = vpack.c.b16 %v5713, %v5697
          %v6578 = vpack.c.b16 %v5714, %v5698
          %v6579 = vpack.c.b16 %v5715, %v5699
          %v6580 = vpack.c.b16 %v5732, %v5716
          %v6581 = vpack.c.b16 %v5733, %v5717
          %v6582 = vpack.c.b16 %v5734, %v5718
          %v6583 = vpack.c.b16 %v5735, %v5719
          %v6584 = vpack.c.b16 %v5736, %v5720
          %v6585 = vpack.c.b16 %v5737, %v5721
          %v6586 = vpack.c.b16 %v5738, %v5722
          %v6587 = vpack.c.b16 %v5739, %v5723
          %v6588 = vpack.c.b16 %v5740, %v5724
          %v6589 = vpack.c.b16 %v5741, %v5725
          %v6590 = vpack.c.b16 %v5742, %v5726
          %v6591 = vpack.c.b16 %v5743, %v5727
          %v6592 = vpack.c.b16 %v5744, %v5728
          %v6593 = vpack.c.b16 %v5745, %v5729
          %v6594 = vpack.c.b16 %v5746, %v5730
          %v6595 = vpack.c.b16 %v5747, %v5731
          %v6596 = vpack.c.b16 %v5764, %v5748
          %v6597 = vpack.c.b16 %v5765, %v5749
          %v6598 = vpack.c.b16 %v5766, %v5750
          %v6599 = vpack.c.b16 %v5767, %v5751
          %v6600 = vpack.c.b16 %v5768, %v5752
          %v6601 = vpack.c.b16 %v5769, %v5753
          %v6602 = vpack.c.b16 %v5770, %v5754
          %v6603 = vpack.c.b16 %v5771, %v5755
          %v6604 = vpack.c.b16 %v5772, %v5756
          %v6605 = vpack.c.b16 %v5773, %v5757
          %v6606 = vpack.c.b16 %v5774, %v5758
          %v6607 = vpack.c.b16 %v5775, %v5759
          %v6608 = vpack.c.b16 %v5776, %v5760
          %v6609 = vpack.c.b16 %v5777, %v5761
          %v6610 = vpack.c.b16 %v5778, %v5762
          %v6611 = vpack.c.b16 %v5779, %v5763
          %v6612 = vpack.c.b16 %v5796, %v5780
          %v6613 = vpack.c.b16 %v5797, %v5781
          %v6614 = vpack.c.b16 %v5798, %v5782
          %v6615 = vpack.c.b16 %v5799, %v5783
          %v6616 = vpack.c.b16 %v5800, %v5784
          %v6617 = vpack.c.b16 %v5801, %v5785
          %v6618 = vpack.c.b16 %v5802, %v5786
          %v6619 = vpack.c.b16 %v5803, %v5787
          %v6620 = vpack.c.b16 %v5804, %v5788
          %v6621 = vpack.c.b16 %v5805, %v5789
          %v6622 = vpack.c.b16 %v5806, %v5790
          %v6623 = vpack.c.b16 %v5807, %v5791
          %v6624 = vpack.c.b16 %v5808, %v5792
          %v6625 = vpack.c.b16 %v5809, %v5793
          %v6626 = vpack.c.b16 %v5810, %v5794
          %v6627 = vpack.c.b16 %v5811, %v5795
          %v6628 = vpack.c.b16 %v5828, %v5812
          %v6629 = vpack.c.b16 %v5829, %v5813
          %v6630 = vpack.c.b16 %v5830, %v5814
          %v6631 = vpack.c.b16 %v5831, %v5815
          %v6632 = vpack.c.b16 %v5832, %v5816
          %v6633 = vpack.c.b16 %v5833, %v5817
          %v6634 = vpack.c.b16 %v5834, %v5818
          %v6635 = vpack.c.b16 %v5835, %v5819
          %v6636 = vpack.c.b16 %v5836, %v5820
          %v6637 = vpack.c.b16 %v5837, %v5821
          %v6638 = vpack.c.b16 %v5838, %v5822
          %v6639 = vpack.c.b16 %v5839, %v5823
          %v6640 = vpack.c.b16 %v5840, %v5824
          %v6641 = vpack.c.b16 %v5841, %v5825
          %v6642 = vpack.c.b16 %v5842, %v5826
          %v6643 = vpack.c.b16 %v5843, %v5827
          %v6644 = vpack.c.b16 %v5860, %v5844
          %v6645 = vpack.c.b16 %v5861, %v5845
          %v6646 = vpack.c.b16 %v5862, %v5846
          %v6647 = vpack.c.b16 %v5863, %v5847
          %v6648 = vpack.c.b16 %v5864, %v5848
          %v6649 = vpack.c.b16 %v5865, %v5849
          %v6650 = vpack.c.b16 %v5866, %v5850
          %v6651 = vpack.c.b16 %v5867, %v5851
          %v6652 = vpack.c.b16 %v5868, %v5852
          %v6653 = vpack.c.b16 %v5869, %v5853
          %v6654 = vpack.c.b16 %v5870, %v5854
          %v6655 = vpack.c.b16 %v5871, %v5855
          %v6656 = vpack.c.b16 %v5872, %v5856
          %v6657 = vpack.c.b16 %v5873, %v5857
          %v6658 = vpack.c.b16 %v5874, %v5858
          %v6659 = vpack.c.b16 %v5875, %v5859
          %v6660 = vpack.c.b16 %v5892, %v5876
          %v6661 = vpack.c.b16 %v5893, %v5877
          %v6662 = vpack.c.b16 %v5894, %v5878
          %v6663 = vpack.c.b16 %v5895, %v5879
          %v6664 = vpack.c.b16 %v5896, %v5880
          %v6665 = vpack.c.b16 %v5897, %v5881
          %v6666 = vpack.c.b16 %v5898, %v5882
          %v6667 = vpack.c.b16 %v5899, %v5883
          %v6668 = vpack.c.b16 %v5900, %v5884
          %v6669 = vpack.c.b16 %v5901, %v5885
          %v6670 = vpack.c.b16 %v5902, %v5886
          %v6671 = vpack.c.b16 %v5903, %v5887
          %v6672 = vpack.c.b16 %v5904, %v5888
          %v6673 = vpack.c.b16 %v5905, %v5889
          %v6674 = vpack.c.b16 %v5906, %v5890
          %v6675 = vpack.c.b16 %v5907, %v5891
          %v6676 = vpack.c.b16 %v5924, %v5908
          %v6677 = vpack.c.b16 %v5925, %v5909
          %v6678 = vpack.c.b16 %v5926, %v5910
          %v6679 = vpack.c.b16 %v5927, %v5911
          %v6680 = vpack.c.b16 %v5928, %v5912
          %v6681 = vpack.c.b16 %v5929, %v5913
          %v6682 = vpack.c.b16 %v5930, %v5914
          %v6683 = vpack.c.b16 %v5931, %v5915
          %v6684 = vpack.c.b16 %v5932, %v5916
          %v6685 = vpack.c.b16 %v5933, %v5917
          %v6686 = vpack.c.b16 %v5934, %v5918
          %v6687 = vpack.c.b16 %v5935, %v5919
          %v6688 = vpack.c.b16 %v5936, %v5920
          %v6689 = vpack.c.b16 %v5937, %v5921
          %v6690 = vpack.c.b16 %v5938, %v5922
          %v6691 = vpack.c.b16 %v5939, %v5923
          %v6692 = vpack.c.b16 %v5956, %v5940
          %v6693 = vpack.c.b16 %v5957, %v5941
          %v6694 = vpack.c.b16 %v5958, %v5942
          %v6695 = vpack.c.b16 %v5959, %v5943
          %v6696 = vpack.c.b16 %v5960, %v5944
          %v6697 = vpack.c.b16 %v5961, %v5945
          %v6698 = vpack.c.b16 %v5962, %v5946
          %v6699 = vpack.c.b16 %v5963, %v5947
          %v6700 = vpack.c.b16 %v5964, %v5948
          %v6701 = vpack.c.b16 %v5965, %v5949
          %v6702 = vpack.c.b16 %v5966, %v5950
          %v6703 = vpack.c.b16 %v5967, %v5951
          %v6704 = vpack.c.b16 %v5968, %v5952
          %v6705 = vpack.c.b16 %v5969, %v5953
          %v6706 = vpack.c.b16 %v5970, %v5954
          %v6707 = vpack.c.b16 %v5971, %v5955
          %v6708 = vpack.c.b16 %v5988, %v5972
          %v6709 = vpack.c.b16 %v5989, %v5973
          %v6710 = vpack.c.b16 %v5990, %v5974
          %v6711 = vpack.c.b16 %v5991, %v5975
          %v6712 = vpack.c.b16 %v5992, %v5976
          %v6713 = vpack.c.b16 %v5993, %v5977
          %v6714 = vpack.c.b16 %v5994, %v5978
          %v6715 = vpack.c.b16 %v5995, %v5979
          %v6716 = vpack.c.b16 %v5996, %v5980
          %v6717 = vpack.c.b16 %v5997, %v5981
          %v6718 = vpack.c.b16 %v5998, %v5982
          %v6719 = vpack.c.b16 %v5999, %v5983
          %v6720 = vpack.c.b16 %v6000, %v5984
          %v6721 = vpack.c.b16 %v6001, %v5985
          %v6722 = vpack.c.b16 %v6002, %v5986
          %v6723 = vpack.c.b16 %v6003, %v5987
          %v6724 = vpack.c.b16 %v6020, %v6004
          %v6725 = vpack.c.b16 %v6021, %v6005
          %v6726 = vpack.c.b16 %v6022, %v6006
          %v6727 = vpack.c.b16 %v6023, %v6007
          %v6728 = vpack.c.b16 %v6024, %v6008
          %v6729 = vpack.c.b16 %v6025, %v6009
          %v6730 = vpack.c.b16 %v6026, %v6010
          %v6731 = vpack.c.b16 %v6027, %v6011
          %v6732 = vpack.c.b16 %v6028, %v6012
          %v6733 = vpack.c.b16 %v6029, %v6013
          %v6734 = vpack.c.b16 %v6030, %v6014
          %v6735 = vpack.c.b16 %v6031, %v6015
          %v6736 = vpack.c.b16 %v6032, %v6016
          %v6737 = vpack.c.b16 %v6033, %v6017
          %v6738 = vpack.c.b16 %v6034, %v6018
          %v6739 = vpack.c.b16 %v6035, %v6019
          %v6740 = vpack.c.b16 %v6052, %v6036
          %v6741 = vpack.c.b16 %v6053, %v6037
          %v6742 = vpack.c.b16 %v6054, %v6038
          %v6743 = vpack.c.b16 %v6055, %v6039
          %v6744 = vpack.c.b16 %v6056, %v6040
          %v6745 = vpack.c.b16 %v6057, %v6041
          %v6746 = vpack.c.b16 %v6058, %v6042
          %v6747 = vpack.c.b16 %v6059, %v6043
          %v6748 = vpack.c.b16 %v6060, %v6044
          %v6749 = vpack.c.b16 %v6061, %v6045
          %v6750 = vpack.c.b16 %v6062, %v6046
          %v6751 = vpack.c.b16 %v6063, %v6047
          %v6752 = vpack.c.b16 %v6064, %v6048
          %v6753 = vpack.c.b16 %v6065, %v6049
          %v6754 = vpack.c.b16 %v6066, %v6050
          %v6755 = vpack.c.b16 %v6067, %v6051
          %v6756 = vpack.c.b16 %v6084, %v6068
          %v6757 = vpack.c.b16 %v6085, %v6069
          %v6758 = vpack.c.b16 %v6086, %v6070
          %v6759 = vpack.c.b16 %v6087, %v6071
          %v6760 = vpack.c.b16 %v6088, %v6072
          %v6761 = vpack.c.b16 %v6089, %v6073
          %v6762 = vpack.c.b16 %v6090, %v6074
          %v6763 = vpack.c.b16 %v6091, %v6075
          %v6764 = vpack.c.b16 %v6092, %v6076
          %v6765 = vpack.c.b16 %v6093, %v6077
          %v6766 = vpack.c.b16 %v6094, %v6078
          %v6767 = vpack.c.b16 %v6095, %v6079
          %v6768 = vpack.c.b16 %v6096, %v6080
          %v6769 = vpack.c.b16 %v6097, %v6081
          %v6770 = vpack.c.b16 %v6098, %v6082
          %v6771 = vpack.c.b16 %v6099, %v6083
          %v6772 = vpack.c.b16 %v6116, %v6100
          %v6773 = vpack.c.b16 %v6117, %v6101
          %v6774 = vpack.c.b16 %v6118, %v6102
          %v6775 = vpack.c.b16 %v6119, %v6103
          %v6776 = vpack.c.b16 %v6120, %v6104
          %v6777 = vpack.c.b16 %v6121, %v6105
          %v6778 = vpack.c.b16 %v6122, %v6106
          %v6779 = vpack.c.b16 %v6123, %v6107
          %v6780 = vpack.c.b16 %v6124, %v6108
          %v6781 = vpack.c.b16 %v6125, %v6109
          %v6782 = vpack.c.b16 %v6126, %v6110
          %v6783 = vpack.c.b16 %v6127, %v6111
          %v6784 = vpack.c.b16 %v6128, %v6112
          %v6785 = vpack.c.b16 %v6129, %v6113
          %v6786 = vpack.c.b16 %v6130, %v6114
          %v6787 = vpack.c.b16 %v6131, %v6115
          %v6788 = vpack.c.b16 %v6148, %v6132
          %v6789 = vpack.c.b16 %v6149, %v6133
          %v6790 = vpack.c.b16 %v6150, %v6134
          %v6791 = vpack.c.b16 %v6151, %v6135
          %v6792 = vpack.c.b16 %v6152, %v6136
          %v6793 = vpack.c.b16 %v6153, %v6137
          %v6794 = vpack.c.b16 %v6154, %v6138
          %v6795 = vpack.c.b16 %v6155, %v6139
          %v6796 = vpack.c.b16 %v6156, %v6140
          %v6797 = vpack.c.b16 %v6157, %v6141
          %v6798 = vpack.c.b16 %v6158, %v6142
          %v6799 = vpack.c.b16 %v6159, %v6143
          %v6800 = vpack.c.b16 %v6160, %v6144
          %v6801 = vpack.c.b16 %v6161, %v6145
          %v6802 = vpack.c.b16 %v6162, %v6146
          %v6803 = vpack.c.b16 %v6163, %v6147
          %v6804 = vpack.c.b16 %v6180, %v6164
          %v6805 = vpack.c.b16 %v6181, %v6165
          %v6806 = vpack.c.b16 %v6182, %v6166
          %v6807 = vpack.c.b16 %v6183, %v6167
          %v6808 = vpack.c.b16 %v6184, %v6168
          %v6809 = vpack.c.b16 %v6185, %v6169
          %v6810 = vpack.c.b16 %v6186, %v6170
          %v6811 = vpack.c.b16 %v6187, %v6171
          %v6812 = vpack.c.b16 %v6188, %v6172
          %v6813 = vpack.c.b16 %v6189, %v6173
          %v6814 = vpack.c.b16 %v6190, %v6174
          %v6815 = vpack.c.b16 %v6191, %v6175
          %v6816 = vpack.c.b16 %v6192, %v6176
          %v6817 = vpack.c.b16 %v6193, %v6177
          %v6818 = vpack.c.b16 %v6194, %v6178
          %v6819 = vpack.c.b16 %v6195, %v6179
          %v6820 = vpack.c.b16 %v6212, %v6196
          %v6821 = vpack.c.b16 %v6213, %v6197
          %v6822 = vpack.c.b16 %v6214, %v6198
          %v6823 = vpack.c.b16 %v6215, %v6199
          %v6824 = vpack.c.b16 %v6216, %v6200
          %v6825 = vpack.c.b16 %v6217, %v6201
          %v6826 = vpack.c.b16 %v6218, %v6202
          %v6827 = vpack.c.b16 %v6219, %v6203
          %v6828 = vpack.c.b16 %v6220, %v6204
          %v6829 = vpack.c.b16 %v6221, %v6205
          %v6830 = vpack.c.b16 %v6222, %v6206
          %v6831 = vpack.c.b16 %v6223, %v6207
          %v6832 = vpack.c.b16 %v6224, %v6208
          %v6833 = vpack.c.b16 %v6225, %v6209
          %v6834 = vpack.c.b16 %v6226, %v6210
          %v6835 = vpack.c.b16 %v6227, %v6211
          %v6836 = vpack.c.b16 %v6244, %v6228
          %v6837 = vpack.c.b16 %v6245, %v6229
          %v6838 = vpack.c.b16 %v6246, %v6230
          %v6839 = vpack.c.b16 %v6247, %v6231
          %v6840 = vpack.c.b16 %v6248, %v6232
          %v6841 = vpack.c.b16 %v6249, %v6233
          %v6842 = vpack.c.b16 %v6250, %v6234
          %v6843 = vpack.c.b16 %v6251, %v6235
          %v6844 = vpack.c.b16 %v6252, %v6236
          %v6845 = vpack.c.b16 %v6253, %v6237
          %v6846 = vpack.c.b16 %v6254, %v6238
          %v6847 = vpack.c.b16 %v6255, %v6239
          %v6848 = vpack.c.b16 %v6256, %v6240
          %v6849 = vpack.c.b16 %v6257, %v6241
          %v6850 = vpack.c.b16 %v6258, %v6242
          %v6851 = vpack.c.b16 %v6259, %v6243
          %v6852 = vpack.c.b16 %v6276, %v6260
          %v6853 = vpack.c.b16 %v6277, %v6261
          %v6854 = vpack.c.b16 %v6278, %v6262
          %v6855 = vpack.c.b16 %v6279, %v6263
          %v6856 = vpack.c.b16 %v6280, %v6264
          %v6857 = vpack.c.b16 %v6281, %v6265
          %v6858 = vpack.c.b16 %v6282, %v6266
          %v6859 = vpack.c.b16 %v6283, %v6267
          %v6860 = vpack.c.b16 %v6284, %v6268
          %v6861 = vpack.c.b16 %v6285, %v6269
          %v6862 = vpack.c.b16 %v6286, %v6270
          %v6863 = vpack.c.b16 %v6287, %v6271
          %v6864 = vpack.c.b16 %v6288, %v6272
          %v6865 = vpack.c.b16 %v6289, %v6273
          %v6866 = vpack.c.b16 %v6290, %v6274
          %v6867 = vpack.c.b16 %v6291, %v6275
          %v6868 = vpack.c.b16 %v6308, %v6292
          %v6869 = vpack.c.b16 %v6309, %v6293
          %v6870 = vpack.c.b16 %v6310, %v6294
          %v6871 = vpack.c.b16 %v6311, %v6295
          %v6872 = vpack.c.b16 %v6312, %v6296
          %v6873 = vpack.c.b16 %v6313, %v6297
          %v6874 = vpack.c.b16 %v6314, %v6298
          %v6875 = vpack.c.b16 %v6315, %v6299
          %v6876 = vpack.c.b16 %v6316, %v6300
          %v6877 = vpack.c.b16 %v6317, %v6301
          %v6878 = vpack.c.b16 %v6318, %v6302
          %v6879 = vpack.c.b16 %v6319, %v6303
          %v6880 = vpack.c.b16 %v6320, %v6304
          %v6881 = vpack.c.b16 %v6321, %v6305
          %v6882 = vpack.c.b16 %v6322, %v6306
          %v6883 = vpack.c.b16 %v6323, %v6307
          %v6884 = vpack.c.b16 %v6340, %v6324
          %v6885 = vpack.c.b16 %v6341, %v6325
          %v6886 = vpack.c.b16 %v6342, %v6326
          %v6887 = vpack.c.b16 %v6343, %v6327
          %v6888 = vpack.c.b16 %v6344, %v6328
          %v6889 = vpack.c.b16 %v6345, %v6329
          %v6890 = vpack.c.b16 %v6346, %v6330
          %v6891 = vpack.c.b16 %v6347, %v6331
          %v6892 = vpack.c.b16 %v6348, %v6332
          %v6893 = vpack.c.b16 %v6349, %v6333
          %v6894 = vpack.c.b16 %v6350, %v6334
          %v6895 = vpack.c.b16 %v6351, %v6335
          %v6896 = vpack.c.b16 %v6352, %v6336
          %v6897 = vpack.c.b16 %v6353, %v6337
          %v6898 = vpack.c.b16 %v6354, %v6338
          %v6899 = vpack.c.b16 %v6355, %v6339
          %v6900 = vpack.c.b16 %v6372, %v6356
          %v6901 = vpack.c.b16 %v6373, %v6357
          %v6902 = vpack.c.b16 %v6374, %v6358
          %v6903 = vpack.c.b16 %v6375, %v6359
          %v6904 = vpack.c.b16 %v6376, %v6360
          %v6905 = vpack.c.b16 %v6377, %v6361
          %v6906 = vpack.c.b16 %v6378, %v6362
          %v6907 = vpack.c.b16 %v6379, %v6363
          %v6908 = vpack.c.b16 %v6380, %v6364
          %v6909 = vpack.c.b16 %v6381, %v6365
          %v6910 = vpack.c.b16 %v6382, %v6366
          %v6911 = vpack.c.b16 %v6383, %v6367
          %v6912 = vpack.c.b16 %v6384, %v6368
          %v6913 = vpack.c.b16 %v6385, %v6369
          %v6914 = vpack.c.b16 %v6386, %v6370
          %v6915 = vpack.c.b16 %v6387, %v6371
          %v6916 = vpack.c.b16 %v6404, %v6388
          %v6917 = vpack.c.b16 %v6405, %v6389
          %v6918 = vpack.c.b16 %v6406, %v6390
          %v6919 = vpack.c.b16 %v6407, %v6391
          %v6920 = vpack.c.b16 %v6408, %v6392
          %v6921 = vpack.c.b16 %v6409, %v6393
          %v6922 = vpack.c.b16 %v6410, %v6394
          %v6923 = vpack.c.b16 %v6411, %v6395
          %v6924 = vpack.c.b16 %v6412, %v6396
          %v6925 = vpack.c.b16 %v6413, %v6397
          %v6926 = vpack.c.b16 %v6414, %v6398
          %v6927 = vpack.c.b16 %v6415, %v6399
          %v6928 = vpack.c.b16 %v6416, %v6400
          %v6929 = vpack.c.b16 %v6417, %v6401
          %v6930 = vpack.c.b16 %v6418, %v6402
          %v6931 = vpack.c.b16 %v6419, %v6403
          %7444 = vmatprep.subr.bf16.mxu0 %v6533
          %7445 = vmatpush1.bf16.msra.mxu0 %v6532
          %7446 = vmatprep.subr.bf16.mxu0 %v6517
          %7447 = vmatpush1.bf16.msra.mxu0 %v6516
          %7448 = vmatprep.subr.bf16.mxu0 %v6501
          %7449 = vmatpush1.bf16.msra.mxu0 %v6500
          %7450 = vmatprep.subr.bf16.mxu0 %v6485
          %7451 = vmatpush1.bf16.msra.mxu0 %v6484
          %7452 = vmatprep.subr.bf16.mxu0 %v6469
          %7453 = vmatpush1.bf16.msra.mxu0 %v6468
          %7454 = vmatprep.subr.bf16.mxu0 %v6453
          %7455 = vmatpush1.bf16.msra.mxu0 %v6452
          %7456 = vmatprep.subr.bf16.mxu0 %v6437
          %7457 = vmatpush1.bf16.msra.mxu0 %v6436
          %7458 = vmatprep.subr.bf16.mxu0 %v6421
          %7459 = vmatpush1.bf16.msra.mxu0 %v6420
          %7460 = vmatprep.subr.bf16.mxu0 %v6661
          %7461 = vmatpush2.bf16.msra.mxu0 %v6660
          %7462 = vmatprep.subr.bf16.mxu0 %v6645
          %7463 = vmatpush2.bf16.msra.mxu0 %v6644
          %7464 = vmatprep.subr.bf16.mxu0 %v6629
          %7465 = vmatpush2.bf16.msra.mxu0 %v6628
          %7466 = vmatprep.subr.bf16.mxu0 %v6613
          %7467 = vmatpush2.bf16.msra.mxu0 %v6612
          %7468 = vmatprep.subr.bf16.mxu0 %v6597
          %7469 = vmatpush2.bf16.msra.mxu0 %v6596
          %7470 = vmatprep.subr.bf16.mxu0 %v6581
          %7471 = vmatpush2.bf16.msra.mxu0 %v6580
          %7472 = vmatprep.subr.bf16.mxu0 %v6565
          %7473 = vmatpush2.bf16.msra.mxu0 %v6564
          %7474 = vmatprep.subr.bf16.mxu0 %v6549
          %7475 = vmatpush2.bf16.msra.mxu0 %v6548
          %7476 = vmatprep.mubr.bf16.mxu0 %v4285
          %7477 = vmatmul.mubr.bf16.gmra.mxu0 %v4284
          %v7478 = vpop.f32.mrf.mxu0
          %v7479 = vadd.f32 %v4807, %v7478
          %v7480 = vpop.f32.mrf.mxu0
          %v7481 = vadd.f32 %v4811, %v7480
          %v7482 = vpop.f32.mrf.mxu0
          %v7483 = vpop.f32.mrf.mxu0
          %7484 = vdwg.mxu0
          %7485 = vmatprep.subr.bf16.mxu0 %v6789
          %7486 = vmatpush1.bf16.msra.mxu0 %v6788
          %7487 = vmatprep.subr.bf16.mxu0 %v6773
          %7488 = vmatpush1.bf16.msra.mxu0 %v6772
          %7489 = vmatprep.subr.bf16.mxu0 %v6757
          %7490 = vmatpush1.bf16.msra.mxu0 %v6756
          %7491 = vmatprep.subr.bf16.mxu0 %v6741
          %7492 = vmatpush1.bf16.msra.mxu0 %v6740
          %7493 = vmatprep.subr.bf16.mxu0 %v6725
          %7494 = vmatpush1.bf16.msra.mxu0 %v6724
          %7495 = vmatprep.subr.bf16.mxu0 %v6709
          %7496 = vmatpush1.bf16.msra.mxu0 %v6708
          %7497 = vmatprep.subr.bf16.mxu0 %v6693
          %7498 = vmatpush1.bf16.msra.mxu0 %v6692
          %7499 = vmatprep.subr.bf16.mxu0 %v6677
          %7500 = vmatpush1.bf16.msra.mxu0 %v6676
          %7501 = vmatprep.subr.bf16.mxu0 %v6917
          %7502 = vmatpush2.bf16.msra.mxu0 %v6916
          %7503 = vmatprep.subr.bf16.mxu0 %v6901
          %7504 = vmatpush2.bf16.msra.mxu0 %v6900
          %7505 = vmatprep.subr.bf16.mxu0 %v6885
          %7506 = vmatpush2.bf16.msra.mxu0 %v6884
          %7507 = vmatprep.subr.bf16.mxu0 %v6869
          %7508 = vmatpush2.bf16.msra.mxu0 %v6868
          %7509 = vmatprep.subr.bf16.mxu0 %v6853
          %7510 = vmatpush2.bf16.msra.mxu0 %v6852
          %7511 = vmatprep.subr.bf16.mxu0 %v6837
          %7512 = vmatpush2.bf16.msra.mxu0 %v6836
          %7513 = vmatprep.subr.bf16.mxu0 %v6821
          %7514 = vmatpush2.bf16.msra.mxu0 %v6820
          %7515 = vmatprep.subr.bf16.mxu0 %v6805
          %7516 = vmatpush2.bf16.msra.mxu0 %v6804
          %7517 = vmatprep.mubr.bf16.mxu0 %v4287
          %7518 = vmatmul.mubr.bf16.gmra.mxu0 %v4286
          %v7519 = vpop.f32.mrf.mxu0
          %v7520 = vadd.f32 %v7479, %v7519
          %v7521 = vpop.f32.mrf.mxu0
          %v7522 = vadd.f32 %v7481, %v7521
          %v7523 = vpop.f32.mrf.mxu0
          %v7524 = vpop.f32.mrf.mxu0
          %7525 = vdwg.mxu0
          %7526 = vmatprep.subr.bf16.mxu0 %v6535
          %7527 = vmatpush1.bf16.msra.mxu0 %v6534
          %7528 = vmatprep.subr.bf16.mxu0 %v6519
          %7529 = vmatpush1.bf16.msra.mxu0 %v6518
          %7530 = vmatprep.subr.bf16.mxu0 %v6503
          %7531 = vmatpush1.bf16.msra.mxu0 %v6502
          %7532 = vmatprep.subr.bf16.mxu0 %v6487
          %7533 = vmatpush1.bf16.msra.mxu0 %v6486
          %7534 = vmatprep.subr.bf16.mxu0 %v6471
          %7535 = vmatpush1.bf16.msra.mxu0 %v6470
          %7536 = vmatprep.subr.bf16.mxu0 %v6455
          %7537 = vmatpush1.bf16.msra.mxu0 %v6454
          %7538 = vmatprep.subr.bf16.mxu0 %v6439
          %7539 = vmatpush1.bf16.msra.mxu0 %v6438
          %7540 = vmatprep.subr.bf16.mxu0 %v6423
          %7541 = vmatpush1.bf16.msra.mxu0 %v6422
          %7542 = vmatprep.subr.bf16.mxu0 %v6663
          %7543 = vmatpush2.bf16.msra.mxu0 %v6662
          %7544 = vmatprep.subr.bf16.mxu0 %v6647
          %7545 = vmatpush2.bf16.msra.mxu0 %v6646
          %7546 = vmatprep.subr.bf16.mxu0 %v6631
          %7547 = vmatpush2.bf16.msra.mxu0 %v6630
          %7548 = vmatprep.subr.bf16.mxu0 %v6615
          %7549 = vmatpush2.bf16.msra.mxu0 %v6614
          %7550 = vmatprep.subr.bf16.mxu0 %v6599
          %7551 = vmatpush2.bf16.msra.mxu0 %v6598
          %7552 = vmatprep.subr.bf16.mxu0 %v6583
          %7553 = vmatpush2.bf16.msra.mxu0 %v6582
          %7554 = vmatprep.subr.bf16.mxu0 %v6567
          %7555 = vmatpush2.bf16.msra.mxu0 %v6566
          %7556 = vmatprep.subr.bf16.mxu0 %v6551
          %7557 = vmatpush2.bf16.msra.mxu0 %v6550
          %7558 = vmatprep.mubr.bf16.mxu0 %v4285
          %7559 = vmatmul.mubr.bf16.gmra.mxu0 %v4284
          %v7560 = vpop.f32.mrf.mxu0
          %v7561 = vadd.f32 %v4815, %v7560
          %v7562 = vpop.f32.mrf.mxu0
          %v7563 = vadd.f32 %v4819, %v7562
          %v7564 = vpop.f32.mrf.mxu0
          %v7565 = vpop.f32.mrf.mxu0
          %7566 = vdwg.mxu0
          %7567 = vmatprep.subr.bf16.mxu0 %v6791
          %7568 = vmatpush1.bf16.msra.mxu0 %v6790
          %7569 = vmatprep.subr.bf16.mxu0 %v6775
          %7570 = vmatpush1.bf16.msra.mxu0 %v6774
          %7571 = vmatprep.subr.bf16.mxu0 %v6759
          %7572 = vmatpush1.bf16.msra.mxu0 %v6758
          %7573 = vmatprep.subr.bf16.mxu0 %v6743
          %7574 = vmatpush1.bf16.msra.mxu0 %v6742
          %7575 = vmatprep.subr.bf16.mxu0 %v6727
          %7576 = vmatpush1.bf16.msra.mxu0 %v6726
          %7577 = vmatprep.subr.bf16.mxu0 %v6711
          %7578 = vmatpush1.bf16.msra.mxu0 %v6710
          %7579 = vmatprep.subr.bf16.mxu0 %v6695
          %7580 = vmatpush1.bf16.msra.mxu0 %v6694
          %7581 = vmatprep.subr.bf16.mxu0 %v6679
          %7582 = vmatpush1.bf16.msra.mxu0 %v6678
          %7583 = vmatprep.subr.bf16.mxu0 %v6919
          %7584 = vmatpush2.bf16.msra.mxu0 %v6918
          %7585 = vmatprep.subr.bf16.mxu0 %v6903
          %7586 = vmatpush2.bf16.msra.mxu0 %v6902
          %7587 = vmatprep.subr.bf16.mxu0 %v6887
          %7588 = vmatpush2.bf16.msra.mxu0 %v6886
          %7589 = vmatprep.subr.bf16.mxu0 %v6871
          %7590 = vmatpush2.bf16.msra.mxu0 %v6870
          %7591 = vmatprep.subr.bf16.mxu0 %v6855
          %7592 = vmatpush2.bf16.msra.mxu0 %v6854
          %7593 = vmatprep.subr.bf16.mxu0 %v6839
          %7594 = vmatpush2.bf16.msra.mxu0 %v6838
          %7595 = vmatprep.subr.bf16.mxu0 %v6823
          %7596 = vmatpush2.bf16.msra.mxu0 %v6822
          %7597 = vmatprep.subr.bf16.mxu0 %v6807
          %7598 = vmatpush2.bf16.msra.mxu0 %v6806
          %7599 = vmatprep.mubr.bf16.mxu0 %v4287
          %7600 = vmatmul.mubr.bf16.gmra.mxu0 %v4286
          %v7601 = vpop.f32.mrf.mxu0
          %v7602 = vadd.f32 %v7561, %v7601
          %v7603 = vpop.f32.mrf.mxu0
          %v7604 = vadd.f32 %v7563, %v7603
          %v7605 = vpop.f32.mrf.mxu0
          %v7606 = vpop.f32.mrf.mxu0
          %7607 = vdwg.mxu0
          %7608 = vmatprep.subr.bf16.mxu0 %v6537
          %7609 = vmatpush1.bf16.msra.mxu0 %v6536
          %7610 = vmatprep.subr.bf16.mxu0 %v6521
          %7611 = vmatpush1.bf16.msra.mxu0 %v6520
          %7612 = vmatprep.subr.bf16.mxu0 %v6505
          %7613 = vmatpush1.bf16.msra.mxu0 %v6504
          %7614 = vmatprep.subr.bf16.mxu0 %v6489
          %7615 = vmatpush1.bf16.msra.mxu0 %v6488
          %7616 = vmatprep.subr.bf16.mxu0 %v6473
          %7617 = vmatpush1.bf16.msra.mxu0 %v6472
          %7618 = vmatprep.subr.bf16.mxu0 %v6457
          %7619 = vmatpush1.bf16.msra.mxu0 %v6456
          %7620 = vmatprep.subr.bf16.mxu0 %v6441
          %7621 = vmatpush1.bf16.msra.mxu0 %v6440
          %7622 = vmatprep.subr.bf16.mxu0 %v6425
          %7623 = vmatpush1.bf16.msra.mxu0 %v6424
          %7624 = vmatprep.subr.bf16.mxu0 %v6665
          %7625 = vmatpush2.bf16.msra.mxu0 %v6664
          %7626 = vmatprep.subr.bf16.mxu0 %v6649
          %7627 = vmatpush2.bf16.msra.mxu0 %v6648
          %7628 = vmatprep.subr.bf16.mxu0 %v6633
          %7629 = vmatpush2.bf16.msra.mxu0 %v6632
          %7630 = vmatprep.subr.bf16.mxu0 %v6617
          %7631 = vmatpush2.bf16.msra.mxu0 %v6616
          %7632 = vmatprep.subr.bf16.mxu0 %v6601
          %7633 = vmatpush2.bf16.msra.mxu0 %v6600
          %7634 = vmatprep.subr.bf16.mxu0 %v6585
          %7635 = vmatpush2.bf16.msra.mxu0 %v6584
          %7636 = vmatprep.subr.bf16.mxu0 %v6569
          %7637 = vmatpush2.bf16.msra.mxu0 %v6568
          %7638 = vmatprep.subr.bf16.mxu0 %v6553
          %7639 = vmatpush2.bf16.msra.mxu0 %v6552
          %7640 = vmatprep.mubr.bf16.mxu0 %v4285
          %7641 = vmatmul.mubr.bf16.gmra.mxu0 %v4284
          %v7642 = vpop.f32.mrf.mxu0
          %v7643 = vadd.f32 %v4823, %v7642
          %v7644 = vpop.f32.mrf.mxu0
          %v7645 = vadd.f32 %v4827, %v7644
          %v7646 = vpop.f32.mrf.mxu0
          %v7647 = vpop.f32.mrf.mxu0
          %7648 = vdwg.mxu0
          %7649 = vmatprep.subr.bf16.mxu0 %v6793
          %7650 = vmatpush1.bf16.msra.mxu0 %v6792
          %7651 = vmatprep.subr.bf16.mxu0 %v6777
          %7652 = vmatpush1.bf16.msra.mxu0 %v6776
          %7653 = vmatprep.subr.bf16.mxu0 %v6761
          %7654 = vmatpush1.bf16.msra.mxu0 %v6760
          %7655 = vmatprep.subr.bf16.mxu0 %v6745
          %7656 = vmatpush1.bf16.msra.mxu0 %v6744
          %7657 = vmatprep.subr.bf16.mxu0 %v6729
          %7658 = vmatpush1.bf16.msra.mxu0 %v6728
          %7659 = vmatprep.subr.bf16.mxu0 %v6713
          %7660 = vmatpush1.bf16.msra.mxu0 %v6712
          %7661 = vmatprep.subr.bf16.mxu0 %v6697
          %7662 = vmatpush1.bf16.msra.mxu0 %v6696
          %7663 = vmatprep.subr.bf16.mxu0 %v6681
          %7664 = vmatpush1.bf16.msra.mxu0 %v6680
          %7665 = vmatprep.subr.bf16.mxu0 %v6921
          %7666 = vmatpush2.bf16.msra.mxu0 %v6920
          %7667 = vmatprep.subr.bf16.mxu0 %v6905
          %7668 = vmatpush2.bf16.msra.mxu0 %v6904
          %7669 = vmatprep.subr.bf16.mxu0 %v6889
          %7670 = vmatpush2.bf16.msra.mxu0 %v6888
          %7671 = vmatprep.subr.bf16.mxu0 %v6873
          %7672 = vmatpush2.bf16.msra.mxu0 %v6872
          %7673 = vmatprep.subr.bf16.mxu0 %v6857
          %7674 = vmatpush2.bf16.msra.mxu0 %v6856
          %7675 = vmatprep.subr.bf16.mxu0 %v6841
          %7676 = vmatpush2.bf16.msra.mxu0 %v6840
          %7677 = vmatprep.subr.bf16.mxu0 %v6825
          %7678 = vmatpush2.bf16.msra.mxu0 %v6824
          %7679 = vmatprep.subr.bf16.mxu0 %v6809
          %7680 = vmatpush2.bf16.msra.mxu0 %v6808
          %7681 = vmatprep.mubr.bf16.mxu0 %v4287
          %7682 = vmatmul.mubr.bf16.gmra.mxu0 %v4286
          %v7683 = vpop.f32.mrf.mxu0
          %v7684 = vadd.f32 %v7643, %v7683
          %v7685 = vpop.f32.mrf.mxu0
          %v7686 = vadd.f32 %v7645, %v7685
          %v7687 = vpop.f32.mrf.mxu0
          %v7688 = vpop.f32.mrf.mxu0
          %7689 = vdwg.mxu0
          %7690 = vmatprep.subr.bf16.mxu0 %v6539
          %7691 = vmatpush1.bf16.msra.mxu0 %v6538
          %7692 = vmatprep.subr.bf16.mxu0 %v6523
          %7693 = vmatpush1.bf16.msra.mxu0 %v6522
          %7694 = vmatprep.subr.bf16.mxu0 %v6507
          %7695 = vmatpush1.bf16.msra.mxu0 %v6506
          %7696 = vmatprep.subr.bf16.mxu0 %v6491
          %7697 = vmatpush1.bf16.msra.mxu0 %v6490
          %7698 = vmatprep.subr.bf16.mxu0 %v6475
          %7699 = vmatpush1.bf16.msra.mxu0 %v6474
          %7700 = vmatprep.subr.bf16.mxu0 %v6459
          %7701 = vmatpush1.bf16.msra.mxu0 %v6458
          %7702 = vmatprep.subr.bf16.mxu0 %v6443
          %7703 = vmatpush1.bf16.msra.mxu0 %v6442
          %7704 = vmatprep.subr.bf16.mxu0 %v6427
          %7705 = vmatpush1.bf16.msra.mxu0 %v6426
          %7706 = vmatprep.subr.bf16.mxu0 %v6667
          %7707 = vmatpush2.bf16.msra.mxu0 %v6666
          %7708 = vmatprep.subr.bf16.mxu0 %v6651
          %7709 = vmatpush2.bf16.msra.mxu0 %v6650
          %7710 = vmatprep.subr.bf16.mxu0 %v6635
          %7711 = vmatpush2.bf16.msra.mxu0 %v6634
          %7712 = vmatprep.subr.bf16.mxu0 %v6619
          %7713 = vmatpush2.bf16.msra.mxu0 %v6618
          %7714 = vmatprep.subr.bf16.mxu0 %v6603
          %7715 = vmatpush2.bf16.msra.mxu0 %v6602
          %7716 = vmatprep.subr.bf16.mxu0 %v6587
          %7717 = vmatpush2.bf16.msra.mxu0 %v6586
          %7718 = vmatprep.subr.bf16.mxu0 %v6571
          %7719 = vmatpush2.bf16.msra.mxu0 %v6570
          %7720 = vmatprep.subr.bf16.mxu0 %v6555
          %7721 = vmatpush2.bf16.msra.mxu0 %v6554
          %7722 = vmatprep.mubr.bf16.mxu0 %v4285
          %7723 = vmatmul.mubr.bf16.gmra.mxu0 %v4284
          %v7724 = vpop.f32.mrf.mxu0
          %v7725 = vadd.f32 %v4831, %v7724
          %v7726 = vpop.f32.mrf.mxu0
          %v7727 = vadd.f32 %v4835, %v7726
          %v7728 = vpop.f32.mrf.mxu0
          %v7729 = vpop.f32.mrf.mxu0
          %7730 = vdwg.mxu0
          %7731 = vmatprep.subr.bf16.mxu0 %v6795
          %7732 = vmatpush1.bf16.msra.mxu0 %v6794
          %7733 = vmatprep.subr.bf16.mxu0 %v6779
          %7734 = vmatpush1.bf16.msra.mxu0 %v6778
          %7735 = vmatprep.subr.bf16.mxu0 %v6763
          %7736 = vmatpush1.bf16.msra.mxu0 %v6762
          %7737 = vmatprep.subr.bf16.mxu0 %v6747
          %7738 = vmatpush1.bf16.msra.mxu0 %v6746
          %7739 = vmatprep.subr.bf16.mxu0 %v6731
          %7740 = vmatpush1.bf16.msra.mxu0 %v6730
          %7741 = vmatprep.subr.bf16.mxu0 %v6715
          %7742 = vmatpush1.bf16.msra.mxu0 %v6714
          %7743 = vmatprep.subr.bf16.mxu0 %v6699
          %7744 = vmatpush1.bf16.msra.mxu0 %v6698
          %7745 = vmatprep.subr.bf16.mxu0 %v6683
          %7746 = vmatpush1.bf16.msra.mxu0 %v6682
          %7747 = vmatprep.subr.bf16.mxu0 %v6923
          %7748 = vmatpush2.bf16.msra.mxu0 %v6922
          %7749 = vmatprep.subr.bf16.mxu0 %v6907
          %7750 = vmatpush2.bf16.msra.mxu0 %v6906
          %7751 = vmatprep.subr.bf16.mxu0 %v6891
          %7752 = vmatpush2.bf16.msra.mxu0 %v6890
          %7753 = vmatprep.subr.bf16.mxu0 %v6875
          %7754 = vmatpush2.bf16.msra.mxu0 %v6874
          %7755 = vmatprep.subr.bf16.mxu0 %v6859
          %7756 = vmatpush2.bf16.msra.mxu0 %v6858
          %7757 = vmatprep.subr.bf16.mxu0 %v6843
          %7758 = vmatpush2.bf16.msra.mxu0 %v6842
          %7759 = vmatprep.subr.bf16.mxu0 %v6827
          %7760 = vmatpush2.bf16.msra.mxu0 %v6826
          %7761 = vmatprep.subr.bf16.mxu0 %v6811
          %7762 = vmatpush2.bf16.msra.mxu0 %v6810
          %7763 = vmatprep.mubr.bf16.mxu0 %v4287
          %7764 = vmatmul.mubr.bf16.gmra.mxu0 %v4286
          %v7765 = vpop.f32.mrf.mxu0
          %v7766 = vadd.f32 %v7725, %v7765
          %v7767 = vpop.f32.mrf.mxu0
          %v7768 = vadd.f32 %v7727, %v7767
          %v7769 = vpop.f32.mrf.mxu0
          %v7770 = vpop.f32.mrf.mxu0
          %7771 = vdwg.mxu0
          %7772 = vmatprep.subr.bf16.mxu0 %v6541
          %7773 = vmatpush1.bf16.msra.mxu0 %v6540
          %7774 = vmatprep.subr.bf16.mxu0 %v6525
          %7775 = vmatpush1.bf16.msra.mxu0 %v6524
          %7776 = vmatprep.subr.bf16.mxu0 %v6509
          %7777 = vmatpush1.bf16.msra.mxu0 %v6508
          %7778 = vmatprep.subr.bf16.mxu0 %v6493
          %7779 = vmatpush1.bf16.msra.mxu0 %v6492
          %7780 = vmatprep.subr.bf16.mxu0 %v6477
          %7781 = vmatpush1.bf16.msra.mxu0 %v6476
          %7782 = vmatprep.subr.bf16.mxu0 %v6461
          %7783 = vmatpush1.bf16.msra.mxu0 %v6460
          %7784 = vmatprep.subr.bf16.mxu0 %v6445
          %7785 = vmatpush1.bf16.msra.mxu0 %v6444
          %7786 = vmatprep.subr.bf16.mxu0 %v6429
          %7787 = vmatpush1.bf16.msra.mxu0 %v6428
          %7788 = vmatprep.subr.bf16.mxu0 %v6669
          %7789 = vmatpush2.bf16.msra.mxu0 %v6668
          %7790 = vmatprep.subr.bf16.mxu0 %v6653
          %7791 = vmatpush2.bf16.msra.mxu0 %v6652
          %7792 = vmatprep.subr.bf16.mxu0 %v6637
          %7793 = vmatpush2.bf16.msra.mxu0 %v6636
          %7794 = vmatprep.subr.bf16.mxu0 %v6621
          %7795 = vmatpush2.bf16.msra.mxu0 %v6620
          %7796 = vmatprep.subr.bf16.mxu0 %v6605
          %7797 = vmatpush2.bf16.msra.mxu0 %v6604
          %7798 = vmatprep.subr.bf16.mxu0 %v6589
          %7799 = vmatpush2.bf16.msra.mxu0 %v6588
          %7800 = vmatprep.subr.bf16.mxu0 %v6573
          %7801 = vmatpush2.bf16.msra.mxu0 %v6572
          %7802 = vmatprep.subr.bf16.mxu0 %v6557
          %7803 = vmatpush2.bf16.msra.mxu0 %v6556
          %7804 = vmatprep.mubr.bf16.mxu0 %v4285
          %7805 = vmatmul.mubr.bf16.gmra.mxu0 %v4284
          %v7806 = vpop.f32.mrf.mxu0
          %v7807 = vadd.f32 %v4839, %v7806
          %v7808 = vpop.f32.mrf.mxu0
          %v7809 = vadd.f32 %v4843, %v7808
          %v7810 = vpop.f32.mrf.mxu0
          %v7811 = vpop.f32.mrf.mxu0
          %7812 = vdwg.mxu0
          %7813 = vmatprep.subr.bf16.mxu0 %v6797
          %7814 = vmatpush1.bf16.msra.mxu0 %v6796
          %7815 = vmatprep.subr.bf16.mxu0 %v6781
          %7816 = vmatpush1.bf16.msra.mxu0 %v6780
          %7817 = vmatprep.subr.bf16.mxu0 %v6765
          %7818 = vmatpush1.bf16.msra.mxu0 %v6764
          %7819 = vmatprep.subr.bf16.mxu0 %v6749
          %7820 = vmatpush1.bf16.msra.mxu0 %v6748
          %7821 = vmatprep.subr.bf16.mxu0 %v6733
          %7822 = vmatpush1.bf16.msra.mxu0 %v6732
          %7823 = vmatprep.subr.bf16.mxu0 %v6717
          %7824 = vmatpush1.bf16.msra.mxu0 %v6716
          %7825 = vmatprep.subr.bf16.mxu0 %v6701
          %7826 = vmatpush1.bf16.msra.mxu0 %v6700
          %7827 = vmatprep.subr.bf16.mxu0 %v6685
          %7828 = vmatpush1.bf16.msra.mxu0 %v6684
          %7829 = vmatprep.subr.bf16.mxu0 %v6925
          %7830 = vmatpush2.bf16.msra.mxu0 %v6924
          %7831 = vmatprep.subr.bf16.mxu0 %v6909
          %7832 = vmatpush2.bf16.msra.mxu0 %v6908
          %7833 = vmatprep.subr.bf16.mxu0 %v6893
          %7834 = vmatpush2.bf16.msra.mxu0 %v6892
          %7835 = vmatprep.subr.bf16.mxu0 %v6877
          %7836 = vmatpush2.bf16.msra.mxu0 %v6876
          %7837 = vmatprep.subr.bf16.mxu0 %v6861
          %7838 = vmatpush2.bf16.msra.mxu0 %v6860
          %7839 = vmatprep.subr.bf16.mxu0 %v6845
          %7840 = vmatpush2.bf16.msra.mxu0 %v6844
          %7841 = vmatprep.subr.bf16.mxu0 %v6829
          %7842 = vmatpush2.bf16.msra.mxu0 %v6828
          %7843 = vmatprep.subr.bf16.mxu0 %v6813
          %7844 = vmatpush2.bf16.msra.mxu0 %v6812
          %7845 = vmatprep.mubr.bf16.mxu0 %v4287
          %7846 = vmatmul.mubr.bf16.gmra.mxu0 %v4286
          %v7847 = vpop.f32.mrf.mxu0
          %v7848 = vadd.f32 %v7807, %v7847
          %v7849 = vpop.f32.mrf.mxu0
          %v7850 = vadd.f32 %v7809, %v7849
          %v7851 = vpop.f32.mrf.mxu0
          %v7852 = vpop.f32.mrf.mxu0
          %7853 = vdwg.mxu0
          %7854 = vmatprep.subr.bf16.mxu0 %v6543
          %7855 = vmatpush1.bf16.msra.mxu0 %v6542
          %7856 = vmatprep.subr.bf16.mxu0 %v6527
          %7857 = vmatpush1.bf16.msra.mxu0 %v6526
          %7858 = vmatprep.subr.bf16.mxu0 %v6511
          %7859 = vmatpush1.bf16.msra.mxu0 %v6510
          %7860 = vmatprep.subr.bf16.mxu0 %v6495
          %7861 = vmatpush1.bf16.msra.mxu0 %v6494
          %7862 = vmatprep.subr.bf16.mxu0 %v6479
          %7863 = vmatpush1.bf16.msra.mxu0 %v6478
          %7864 = vmatprep.subr.bf16.mxu0 %v6463
          %7865 = vmatpush1.bf16.msra.mxu0 %v6462
          %7866 = vmatprep.subr.bf16.mxu0 %v6447
          %7867 = vmatpush1.bf16.msra.mxu0 %v6446
          %7868 = vmatprep.subr.bf16.mxu0 %v6431
          %7869 = vmatpush1.bf16.msra.mxu0 %v6430
          %7870 = vmatprep.subr.bf16.mxu0 %v6671
          %7871 = vmatpush2.bf16.msra.mxu0 %v6670
          %7872 = vmatprep.subr.bf16.mxu0 %v6655
          %7873 = vmatpush2.bf16.msra.mxu0 %v6654
          %7874 = vmatprep.subr.bf16.mxu0 %v6639
          %7875 = vmatpush2.bf16.msra.mxu0 %v6638
          %7876 = vmatprep.subr.bf16.mxu0 %v6623
          %7877 = vmatpush2.bf16.msra.mxu0 %v6622
          %7878 = vmatprep.subr.bf16.mxu0 %v6607
          %7879 = vmatpush2.bf16.msra.mxu0 %v6606
          %7880 = vmatprep.subr.bf16.mxu0 %v6591
          %7881 = vmatpush2.bf16.msra.mxu0 %v6590
          %7882 = vmatprep.subr.bf16.mxu0 %v6575
          %7883 = vmatpush2.bf16.msra.mxu0 %v6574
          %7884 = vmatprep.subr.bf16.mxu0 %v6559
          %7885 = vmatpush2.bf16.msra.mxu0 %v6558
          %7886 = vmatprep.mubr.bf16.mxu0 %v4285
          %7887 = vmatmul.mubr.bf16.gmra.mxu0 %v4284
          %v7888 = vpop.f32.mrf.mxu0
          %v7889 = vadd.f32 %v4847, %v7888
          %v7890 = vpop.f32.mrf.mxu0
          %v7891 = vadd.f32 %v4851, %v7890
          %v7892 = vpop.f32.mrf.mxu0
          %v7893 = vpop.f32.mrf.mxu0
          %7894 = vdwg.mxu0
          %7895 = vmatprep.subr.bf16.mxu0 %v6799
          %7896 = vmatpush1.bf16.msra.mxu0 %v6798
          %7897 = vmatprep.subr.bf16.mxu0 %v6783
          %7898 = vmatpush1.bf16.msra.mxu0 %v6782
          %7899 = vmatprep.subr.bf16.mxu0 %v6767
          %7900 = vmatpush1.bf16.msra.mxu0 %v6766
          %7901 = vmatprep.subr.bf16.mxu0 %v6751
          %7902 = vmatpush1.bf16.msra.mxu0 %v6750
          %7903 = vmatprep.subr.bf16.mxu0 %v6735
          %7904 = vmatpush1.bf16.msra.mxu0 %v6734
          %7905 = vmatprep.subr.bf16.mxu0 %v6719
          %7906 = vmatpush1.bf16.msra.mxu0 %v6718
          %7907 = vmatprep.subr.bf16.mxu0 %v6703
          %7908 = vmatpush1.bf16.msra.mxu0 %v6702
          %7909 = vmatprep.subr.bf16.mxu0 %v6687
          %7910 = vmatpush1.bf16.msra.mxu0 %v6686
          %7911 = vmatprep.subr.bf16.mxu0 %v6927
          %7912 = vmatpush2.bf16.msra.mxu0 %v6926
          %7913 = vmatprep.subr.bf16.mxu0 %v6911
          %7914 = vmatpush2.bf16.msra.mxu0 %v6910
          %7915 = vmatprep.subr.bf16.mxu0 %v6895
          %7916 = vmatpush2.bf16.msra.mxu0 %v6894
          %7917 = vmatprep.subr.bf16.mxu0 %v6879
          %7918 = vmatpush2.bf16.msra.mxu0 %v6878
          %7919 = vmatprep.subr.bf16.mxu0 %v6863
          %7920 = vmatpush2.bf16.msra.mxu0 %v6862
          %7921 = vmatprep.subr.bf16.mxu0 %v6847
          %7922 = vmatpush2.bf16.msra.mxu0 %v6846
          %7923 = vmatprep.subr.bf16.mxu0 %v6831
          %7924 = vmatpush2.bf16.msra.mxu0 %v6830
          %7925 = vmatprep.subr.bf16.mxu0 %v6815
          %7926 = vmatpush2.bf16.msra.mxu0 %v6814
          %7927 = vmatprep.mubr.bf16.mxu0 %v4287
          %7928 = vmatmul.mubr.bf16.gmra.mxu0 %v4286
          %v7929 = vpop.f32.mrf.mxu0
          %v7930 = vadd.f32 %v7889, %v7929
          %v7931 = vpop.f32.mrf.mxu0
          %v7932 = vadd.f32 %v7891, %v7931
          %v7933 = vpop.f32.mrf.mxu0
          %v7934 = vpop.f32.mrf.mxu0
          %7935 = vdwg.mxu0
          %7936 = vmatprep.subr.bf16.mxu0 %v6545
          %7937 = vmatpush1.bf16.msra.mxu0 %v6544
          %7938 = vmatprep.subr.bf16.mxu0 %v6529
          %7939 = vmatpush1.bf16.msra.mxu0 %v6528
          %7940 = vmatprep.subr.bf16.mxu0 %v6513
          %7941 = vmatpush1.bf16.msra.mxu0 %v6512
          %7942 = vmatprep.subr.bf16.mxu0 %v6497
          %7943 = vmatpush1.bf16.msra.mxu0 %v6496
          %7944 = vmatprep.subr.bf16.mxu0 %v6481
          %7945 = vmatpush1.bf16.msra.mxu0 %v6480
          %7946 = vmatprep.subr.bf16.mxu0 %v6465
          %7947 = vmatpush1.bf16.msra.mxu0 %v6464
          %7948 = vmatprep.subr.bf16.mxu0 %v6449
          %7949 = vmatpush1.bf16.msra.mxu0 %v6448
          %7950 = vmatprep.subr.bf16.mxu0 %v6433
          %7951 = vmatpush1.bf16.msra.mxu0 %v6432
          %7952 = vmatprep.subr.bf16.mxu0 %v6673
          %7953 = vmatpush2.bf16.msra.mxu0 %v6672
          %7954 = vmatprep.subr.bf16.mxu0 %v6657
          %7955 = vmatpush2.bf16.msra.mxu0 %v6656
          %7956 = vmatprep.subr.bf16.mxu0 %v6641
          %7957 = vmatpush2.bf16.msra.mxu0 %v6640
          %7958 = vmatprep.subr.bf16.mxu0 %v6625
          %7959 = vmatpush2.bf16.msra.mxu0 %v6624
          %7960 = vmatprep.subr.bf16.mxu0 %v6609
          %7961 = vmatpush2.bf16.msra.mxu0 %v6608
          %7962 = vmatprep.subr.bf16.mxu0 %v6593
          %7963 = vmatpush2.bf16.msra.mxu0 %v6592
          %7964 = vmatprep.subr.bf16.mxu0 %v6577
          %7965 = vmatpush2.bf16.msra.mxu0 %v6576
          %7966 = vmatprep.subr.bf16.mxu0 %v6561
          %7967 = vmatpush2.bf16.msra.mxu0 %v6560
          %7968 = vmatprep.mubr.bf16.mxu0 %v4285
          %7969 = vmatmul.mubr.bf16.gmra.mxu0 %v4284
          %v7970 = vpop.f32.mrf.mxu0
          %v7971 = vadd.f32 %v4855, %v7970
          %v7972 = vpop.f32.mrf.mxu0
          %v7973 = vadd.f32 %v4859, %v7972
          %v7974 = vpop.f32.mrf.mxu0
          %v7975 = vpop.f32.mrf.mxu0
          %7976 = vdwg.mxu0
          %7977 = vmatprep.subr.bf16.mxu0 %v6801
          %7978 = vmatpush1.bf16.msra.mxu0 %v6800
          %7979 = vmatprep.subr.bf16.mxu0 %v6785
          %7980 = vmatpush1.bf16.msra.mxu0 %v6784
          %7981 = vmatprep.subr.bf16.mxu0 %v6769
          %7982 = vmatpush1.bf16.msra.mxu0 %v6768
          %7983 = vmatprep.subr.bf16.mxu0 %v6753
          %7984 = vmatpush1.bf16.msra.mxu0 %v6752
          %7985 = vmatprep.subr.bf16.mxu0 %v6737
          %7986 = vmatpush1.bf16.msra.mxu0 %v6736
          %7987 = vmatprep.subr.bf16.mxu0 %v6721
          %7988 = vmatpush1.bf16.msra.mxu0 %v6720
          %7989 = vmatprep.subr.bf16.mxu0 %v6705
          %7990 = vmatpush1.bf16.msra.mxu0 %v6704
          %7991 = vmatprep.subr.bf16.mxu0 %v6689
          %7992 = vmatpush1.bf16.msra.mxu0 %v6688
          %7993 = vmatprep.subr.bf16.mxu0 %v6929
          %7994 = vmatpush2.bf16.msra.mxu0 %v6928
          %7995 = vmatprep.subr.bf16.mxu0 %v6913
          %7996 = vmatpush2.bf16.msra.mxu0 %v6912
          %7997 = vmatprep.subr.bf16.mxu0 %v6897
          %7998 = vmatpush2.bf16.msra.mxu0 %v6896
          %7999 = vmatprep.subr.bf16.mxu0 %v6881
          %8000 = vmatpush2.bf16.msra.mxu0 %v6880
          %8001 = vmatprep.subr.bf16.mxu0 %v6865
          %8002 = vmatpush2.bf16.msra.mxu0 %v6864
          %8003 = vmatprep.subr.bf16.mxu0 %v6849
          %8004 = vmatpush2.bf16.msra.mxu0 %v6848
          %8005 = vmatprep.subr.bf16.mxu0 %v6833
          %8006 = vmatpush2.bf16.msra.mxu0 %v6832
          %8007 = vmatprep.subr.bf16.mxu0 %v6817
          %8008 = vmatpush2.bf16.msra.mxu0 %v6816
          %8009 = vmatprep.mubr.bf16.mxu0 %v4287
          %8010 = vmatmul.mubr.bf16.gmra.mxu0 %v4286
          %v8011 = vpop.f32.mrf.mxu0
          %v8012 = vadd.f32 %v7971, %v8011
          %v8013 = vpop.f32.mrf.mxu0
          %v8014 = vadd.f32 %v7973, %v8013
          %v8015 = vpop.f32.mrf.mxu0
          %v8016 = vpop.f32.mrf.mxu0
          %8017 = vdwg.mxu0
          %8018 = vmatprep.subr.bf16.mxu0 %v6547
          %8019 = vmatpush1.bf16.msra.mxu0 %v6546
          %8020 = vmatprep.subr.bf16.mxu0 %v6531
          %8021 = vmatpush1.bf16.msra.mxu0 %v6530
          %8022 = vmatprep.subr.bf16.mxu0 %v6515
          %8023 = vmatpush1.bf16.msra.mxu0 %v6514
          %8024 = vmatprep.subr.bf16.mxu0 %v6499
          %8025 = vmatpush1.bf16.msra.mxu0 %v6498
          %8026 = vmatprep.subr.bf16.mxu0 %v6483
          %8027 = vmatpush1.bf16.msra.mxu0 %v6482
          %8028 = vmatprep.subr.bf16.mxu0 %v6467
          %8029 = vmatpush1.bf16.msra.mxu0 %v6466
          %8030 = vmatprep.subr.bf16.mxu0 %v6451
          %8031 = vmatpush1.bf16.msra.mxu0 %v6450
          %8032 = vmatprep.subr.bf16.mxu0 %v6435
          %8033 = vmatpush1.bf16.msra.mxu0 %v6434
          %8034 = vmatprep.subr.bf16.mxu0 %v6675
          %8035 = vmatpush2.bf16.msra.mxu0 %v6674
          %8036 = vmatprep.subr.bf16.mxu0 %v6659
          %8037 = vmatpush2.bf16.msra.mxu0 %v6658
          %8038 = vmatprep.subr.bf16.mxu0 %v6643
          %8039 = vmatpush2.bf16.msra.mxu0 %v6642
          %8040 = vmatprep.subr.bf16.mxu0 %v6627
          %8041 = vmatpush2.bf16.msra.mxu0 %v6626
          %8042 = vmatprep.subr.bf16.mxu0 %v6611
          %8043 = vmatpush2.bf16.msra.mxu0 %v6610
          %8044 = vmatprep.subr.bf16.mxu0 %v6595
          %8045 = vmatpush2.bf16.msra.mxu0 %v6594
          %8046 = vmatprep.subr.bf16.mxu0 %v6579
          %8047 = vmatpush2.bf16.msra.mxu0 %v6578
          %8048 = vmatprep.subr.bf16.mxu0 %v6563
          %8049 = vmatpush2.bf16.msra.mxu0 %v6562
          %8050 = vmatprep.mubr.bf16.mxu0 %v4285
          %8051 = vmatmul.mubr.bf16.gmra.mxu0 %v4284
          %v8052 = vpop.f32.mrf.mxu0
          %v8053 = vadd.f32 %v4863, %v8052
          %v8054 = vpop.f32.mrf.mxu0
          %v8055 = vadd.f32 %v4867, %v8054
          %v8056 = vpop.f32.mrf.mxu0
          %v8057 = vpop.f32.mrf.mxu0
          %8058 = vdwg.mxu0
          %8059 = vmatprep.subr.bf16.mxu0 %v6803
          %8060 = vmatpush1.bf16.msra.mxu0 %v6802
          %8061 = vmatprep.subr.bf16.mxu0 %v6787
          %8062 = vmatpush1.bf16.msra.mxu0 %v6786
          %8063 = vmatprep.subr.bf16.mxu0 %v6771
          %8064 = vmatpush1.bf16.msra.mxu0 %v6770
          %8065 = vmatprep.subr.bf16.mxu0 %v6755
          %8066 = vmatpush1.bf16.msra.mxu0 %v6754
          %8067 = vmatprep.subr.bf16.mxu0 %v6739
          %8068 = vmatpush1.bf16.msra.mxu0 %v6738
          %8069 = vmatprep.subr.bf16.mxu0 %v6723
          %8070 = vmatpush1.bf16.msra.mxu0 %v6722
          %8071 = vmatprep.subr.bf16.mxu0 %v6707
          %8072 = vmatpush1.bf16.msra.mxu0 %v6706
          %8073 = vmatprep.subr.bf16.mxu0 %v6691
          %8074 = vmatpush1.bf16.msra.mxu0 %v6690
          %8075 = vmatprep.subr.bf16.mxu0 %v6931
          %8076 = vmatpush2.bf16.msra.mxu0 %v6930
          %8077 = vmatprep.subr.bf16.mxu0 %v6915
          %8078 = vmatpush2.bf16.msra.mxu0 %v6914
          %8079 = vmatprep.subr.bf16.mxu0 %v6899
          %8080 = vmatpush2.bf16.msra.mxu0 %v6898
          %8081 = vmatprep.subr.bf16.mxu0 %v6883
          %8082 = vmatpush2.bf16.msra.mxu0 %v6882
          %8083 = vmatprep.subr.bf16.mxu0 %v6867
          %8084 = vmatpush2.bf16.msra.mxu0 %v6866
          %8085 = vmatprep.subr.bf16.mxu0 %v6851
          %8086 = vmatpush2.bf16.msra.mxu0 %v6850
          %8087 = vmatprep.subr.bf16.mxu0 %v6835
          %8088 = vmatpush2.bf16.msra.mxu0 %v6834
          %8089 = vmatprep.subr.bf16.mxu0 %v6819
          %8090 = vmatpush2.bf16.msra.mxu0 %v6818
          %8091 = vmatprep.mubr.bf16.mxu0 %v4287
          %8092 = vmatmul.mubr.bf16.gmra.mxu0 %v4286
          %v8093 = vpop.f32.mrf.mxu0
          %v8094 = vadd.f32 %v8053, %v8093
          %v8095 = vpop.f32.mrf.mxu0
          %v8096 = vadd.f32 %v8055, %v8095
          %v8097 = vpop.f32.mrf.mxu0
          %v8098 = vpop.f32.mrf.mxu0
          %8099 = vdwg.mxu0
          %v8116 = vcombine.low %v7520, %v7522
          %v8117 = vcombine.low %v7602, %v7604
          %v8119 = vunpack.c.l.s4 1983009808
          %v8120 = vunpack.c.0.s8 %v8119
          %v8121 = vlaneseq
          %v8122 = vshrl.u32 %v8121, 7
          %v8123 = vsub.s32 %v8120, %v8122
          %v8124 = vrot.slane %v8116, %v8123
          %v8126 = vunpack.c.l.s4 1983009808
          %v8127 = vunpack.c.0.s8 %v8126
          %v8128 = vlaneseq
          %v8129 = vshrl.u32 %v8128, 7
          %v8130 = vsub.s32 %v8127, %v8129
          %v8131 = vrot.slane %v8117, %v8130
          %v8132 = vcombine.low %v8124, %v8131
          %v8133 = vcombine.low %v7684, %v7686
          %v8134 = vcombine.low %v7766, %v7768
          %v8136 = vunpack.c.l.s4 1983009808
          %v8137 = vunpack.c.0.s8 %v8136
          %v8138 = vlaneseq
          %v8139 = vshrl.u32 %v8138, 7
          %v8140 = vsub.s32 %v8137, %v8139
          %v8141 = vrot.slane %v8133, %v8140
          %v8143 = vunpack.c.l.s4 1983009808
          %v8144 = vunpack.c.0.s8 %v8143
          %v8145 = vlaneseq
          %v8146 = vshrl.u32 %v8145, 7
          %v8147 = vsub.s32 %v8144, %v8146
          %v8148 = vrot.slane %v8134, %v8147
          %v8149 = vcombine.low %v8141, %v8148
          %v8150 = vcombine.low %v7848, %v7850
          %v8151 = vcombine.low %v7930, %v7932
          %v8153 = vunpack.c.l.s4 1983009808
          %v8154 = vunpack.c.0.s8 %v8153
          %v8155 = vlaneseq
          %v8156 = vshrl.u32 %v8155, 7
          %v8157 = vsub.s32 %v8154, %v8156
          %v8158 = vrot.slane %v8150, %v8157
          %v8160 = vunpack.c.l.s4 1983009808
          %v8161 = vunpack.c.0.s8 %v8160
          %v8162 = vlaneseq
          %v8163 = vshrl.u32 %v8162, 7
          %v8164 = vsub.s32 %v8161, %v8163
          %v8165 = vrot.slane %v8151, %v8164
          %v8166 = vcombine.low %v8158, %v8165
          %v8167 = vcombine.low %v8012, %v8014
          %v8168 = vcombine.low %v8094, %v8096
          %v8170 = vunpack.c.l.s4 1983009808
          %v8171 = vunpack.c.0.s8 %v8170
          %v8172 = vlaneseq
          %v8173 = vshrl.u32 %v8172, 7
          %v8174 = vsub.s32 %v8171, %v8173
          %v8175 = vrot.slane %v8167, %v8174
          %v8177 = vunpack.c.l.s4 1983009808
          %v8178 = vunpack.c.0.s8 %v8177
          %v8179 = vlaneseq
          %v8180 = vshrl.u32 %v8179, 7
          %v8181 = vsub.s32 %v8178, %v8180
          %v8182 = vrot.slane %v8168, %v8181
          %v8183 = vcombine.low %v8175, %v8182
          %8188 = vst [vmem:[#allocation32] sm:$0xff] %v8132
          %8189 = vst [vmem:[#allocation32 + $0x8] sm:$0xff] %v8149
          %8190 = vst [vmem:[#allocation32 + $0x10] sm:$0xff] %v8166
          %8191 = vst [vmem:[#allocation32 + $0x18] sm:$0xff] %v8183
        $region208: #{model_forward.1} parent=115 // pred_fallthru
          _
        // Predicated region
        $region209: #{model_forward.1} parent=115 // pred_check
          %p8192 = pneg %p622
        $region210: #{model_forward.1} parent=115 // pred_check_branch
          %8194 = sbr.rel (%p8192) target = $region212
        $region211: #{model_forward.1} parent=115 // pred_region
          %s8196 = ssub.s32 16, 16
          %8197 = vsyncadd [#allocation7], %s8196
          %s8199 = sshll.u32 [#allocation31], 4
          %s8200 = int_to_ptr.vmem [resolvable:$true] %s8199
          %8202 = dma.vmem_to_hbm [thread:$0]  %s8200, 16, %s25, [#allocation7]
        $region212: #{model_forward.1} parent=115 // pred_fallthru
          _
        // Predicated region
        $region213: #{model_forward.1} parent=115 // pred_check
          %p8203 = pneg %p643
        $region214: #{model_forward.1} parent=115 // pred_check_branch
          %8205 = sbr.rel (%p8203) target = $region216
        $region215: #{model_forward.1} parent=115 // pred_region
          %s8207 = ssub.s32 512, 512
          %8208 = vsyncadd [#allocation33], %s8207
          %s8210 = sshll.u32 [#allocation32], 4
          %s8211 = int_to_ptr.vmem [resolvable:$true] %s8210
          %8213 = dma.vmem_to_hbm [thread:$0]  %s8211, 512, %s26, [#allocation33]
        $region216: #{model_forward.1} parent=115 // pred_fallthru
          _
        // Predicated region
        $region217: #{model_forward.1} parent=115 // pred_check
          %p8214 = pneg %p622
        $region218: #{model_forward.1} parent=115 // pred_check_branch
          %8216 = sbr.rel (%p8214) target = $region220
        $region219: #{model_forward.1} parent=115 // pred_region
          %8217 = dma.done [#allocation7], 16
        $region220: #{model_forward.1} parent=115 // pred_fallthru
          _
        // Predicated region
        $region221: #{model_forward.1} parent=115 // pred_check
          %p8218 = pneg %p643
        $region222: #{model_forward.1} parent=115 // pred_check_branch
          %8220 = sbr.rel (%p8218) target = $region224
        $region223: #{model_forward.1} parent=115 // pred_region
          %8221 = dma.done [#allocation33], 512
        $region224: #{model_forward.1} parent=115 // pred_fallthru
          _
      $region116: #{model_forward.1} parent=5 // pred_fallthru
        _
      %p8222 = scmp.le.s32.totalorder 2, %s40
      // Predicated region
      $region225: #{model_forward.1} parent=5 // pred_check
        %p8223 = pneg %p8222
      $region226: #{model_forward.1} parent=5 // pred_check_branch
        %8225 = sbr.rel (%p8223) target = $region228
      $region227: #{model_forward.1} parent=5 // pred_region
        %s8226 = ssub.s32 %s40, 2
      $region228: #{model_forward.1} parent=5 // pred_fallthru
        _
    $region6: #{model_forward.1} parent=1 // loop_footer
      %s44 = sadd.s32 1, %s40
    $region7: #{model_forward.1} parent=1 // loop_footer_branch
      %39 = sbr.rel target = $region3
    $region8: #{model_forward.1} parent=1 // loop_exit
      _
    %8227 = vsyncpa [#allocation6], 1
    %s8228 = scalar_lea.sflag [#allocation6], 1
    %8229 = vsyncpa %s8228, 1
    %8230 = vsyncpa [#allocation9], 1
    %8231 = vsyncpa [#allocation23], 1
    %8232 = vsyncpa [#allocation26], 1
    %8233 = vsyncpa [#allocation29], 1
    %8234 = vsyncpa [#allocation7], 1
    %s8235 = scalar_lea.sflag [#allocation7], 1
    %8236 = vsyncpa %s8235, 1
    %8237 = vsyncpa [#allocation33], 1
  %8238 = vsyncmov [#allocation4]
  %s8239 = vpop.sfrf %8238
  %p8240 = scmp.eq.s32.totalorder %s8239, 0
  %p8241 = pneg %p8240
  %8243 = shalt.err (%p8241)

</llo_original>
